<compile_context>
chip_gen: v7x
topology: tpu7x:2x2x1
jax: 0.10.0
libtpu: 0.0.40
codegen_flags: <defaults>
</compile_context>

<pallas_src>
import functools

import jax
import jax.numpy as jnp
import numpy as np
from jax import lax
from jax.experimental import pallas as pl
from jax.experimental.pallas import tpu as pltpu


def _conv4_fused_kernel(a1_ref, w1_ref, b1_ref, s12_ref, w2_ref, b2_ref,
                        w3_ref, b3_ref, s23_ref, w4_ref, b4_ref,
                        w5_ref, b5_ref, s34_ref,
                        w6_ref, b6_ref, sout_ref,
                        out_ref,
                        x2_ref, x3_ref, x4_ref,
                        *, wp2, rv2, wp3, rv3):
    """Whole conv4_512_s forward for ONE batch sample (one grid step)."""
    f32 = jnp.float32
    bf16 = jnp.bfloat16

    def dot(a, b):
        return jnp.dot(a, b, preferred_element_type=f32)

    def conv3x3(x_ref, w_ref, wp, rv):
        # 3x3 conv as 9 shifted-slice matmuls over a zero-padded flat buffer.
        # x_ref: (Hp*Wp, Cin), rows = (h, w) flattened, zero padding ring.
        # Result row r corresponds to padded window top-left at flat row r.
        acc = dot(x_ref[0:rv, :].astype(bf16), w_ref[0])
        for t in range(1, 9):
            di, dj = divmod(t, 3)
            off = di * wp + dj
            acc = acc + dot(x_ref[off:off + rv, :].astype(bf16), w_ref[t])
        return acc

    # ---- layer1: 3x3 valid conv (im2col matmul) + BN + ReLU, then stride-2
    #      subsample (selection matmul) followed by 1x1 conv + BN (no ReLU),
    #      embedded into layer2's zero-padded flat grid.
    y1 = dot(a1_ref[...], w1_ref[...]) + b1_ref[...]
    r1 = jnp.maximum(y1, 0.0).astype(bf16)                       # (M1p, 128)
    sub2 = dot(s12_ref[...], r1).astype(bf16)                    # (R2, 128)
    x2_ref[...] = dot(sub2, w2_ref[...]) + b2_ref[...]           # 1x1 conv + BN

    # ---- layer2: 3x3 valid conv + BN + ReLU, then stride-2 subsample and
    #      1x1 conv + BN, embedded into layer3's zero-padded flat grid.
    r2 = jnp.maximum(conv3x3(x2_ref, w3_ref, wp2, rv2) + b3_ref[...],
                     0.0).astype(bf16)                           # (RV2, 128)
    sub3 = dot(s23_ref[...], r2).astype(bf16)                    # (R3, 128)
    x3_ref[...] = dot(sub3, w4_ref[...]) + b4_ref[...]

    # ---- layer3: 3x3 "same" conv + BN + ReLU.
    r3 = jnp.maximum(conv3x3(x3_ref, w5_ref, wp3, rv3) + b5_ref[...],
                     0.0).astype(bf16)                           # (RV3, 256)
    x4_ref[...] = dot(s34_ref[...], r3)                          # (R3, 256)

    # ---- layer4: 3x3 "same" conv + BN + ReLU.
    r4 = jnp.maximum(conv3x3(x4_ref, w6_ref, wp3, rv3) + b6_ref[...],
                     0.0).astype(bf16)                           # (RV3, 512)
    out_ref[...] = dot(sout_ref[...], r4)                        # (Mop, 512)


def _fold_bn(w, bn, eps):
    """Fold eval-mode BatchNorm into conv weights + per-channel bias."""
    scale = bn["gamma"] * lax.rsqrt(bn["r_var"] + eps)
    bias = bn["beta"] - bn["r_mean"] * scale
    return w * scale, bias


def conv4_512_s_forward(x_nchw, convs, bns, *, eps=1e-5):
    N, cin, H0, W0 = x_nchw.shape
    bf16 = jnp.bfloat16

    # ---- static geometry of the stack --------------------------------------
    H1, W1 = H0 - 2, W0 - 2                            # layer1 conv1 (3x3, p=0)
    H2, W2 = (H1 - 1) // 2 + 1, (W1 - 1) // 2 + 1      # layer1 conv2 (1x1, s=2)
    H3, W3 = H2 - 2, W2 - 2                            # layer2 conv1 (3x3, p=0)
    H4, W4 = (H3 - 1) // 2 + 1, (W3 - 1) // 2 + 1      # layer2 conv2; layers3/4 keep H4

    M1 = H1 * W1
    M1p = -(-M1 // 8) * 8                              # per-sample rows, 8-aligned
    K1, K1p = 9 * cin, 128                             # im2col K padded lane-dense
    C1 = 128                                           # layer1 channels padded 64->128

    Wp2 = W2 + 2
    R2 = (H2 + 2) * Wp2
    RV2 = R2 - 2 * Wp2 - 2
    base2 = Wp2 + 1

    Wp3 = W4 + 2
    R3 = (H4 + 2) * Wp3
    RV3 = R3 - 2 * Wp3 - 2
    base3 = Wp3 + 1

    Mo = H4 * W4
    Mop = -(-Mo // 8) * 8

    # ---- layer-1 im2col of the network input (only wrapper-side im2col) ----
    x_nhwc = jnp.transpose(x_nchw, (0, 2, 3, 1)).astype(jnp.float32)
    patches = [x_nhwc[:, i:i + H1, j:j + W1, :] for i in range(3) for j in range(3)]
    a1 = jnp.concatenate(patches, axis=-1).reshape(N, M1, K1)
    a1 = jnp.pad(a1, ((0, 0), (0, M1p - M1), (0, K1p - K1)))
    a1 = a1.reshape(N * M1p, K1p).astype(bf16)

    # ---- fold eval-mode BN into weights; pad layer1 channels to 128 --------
    w1f, b1 = _fold_bn(convs["l1_conv1"], bns["l1_bn1"], eps)   # (3,3,cin,64)
    w1m = jnp.pad(w1f.reshape(K1, 64), ((0, K1p - K1), (0, C1 - 64))).astype(bf16)
    b1v = jnp.pad(b1, (0, C1 - 64)).reshape(1, C1).astype(jnp.float32)

    w2f, b2 = _fold_bn(convs["l1_conv2"], bns["l1_bn2"], eps)   # (1,1,64,64)
    w2m = jnp.pad(w2f.reshape(64, 64), ((0, C1 - 64), (0, C1 - 64))).astype(bf16)
    b2p = jnp.pad(b2, (0, C1 - 64)).reshape(1, C1).astype(jnp.float32)

    w3f, b3 = _fold_bn(convs["l2_conv1"], bns["l2_bn1"], eps)   # (3,3,64,128)
    w3m = jnp.pad(w3f.reshape(9, 64, 128), ((0, 0), (0, C1 - 64), (0, 0))).astype(bf16)
    b3v = b3.reshape(1, 128).astype(jnp.float32)

    w4f, b4 = _fold_bn(convs["l2_conv2"], bns["l2_bn2"], eps)   # (1,1,128,128)
    w4m = w4f.reshape(128, 128).astype(bf16)
    b4p = b4.reshape(1, 128).astype(jnp.float32)

    w5f, b5 = _fold_bn(convs["l3_conv1"], bns["l3_bn1"], eps)   # (3,3,128,256)
    w5m = w5f.reshape(9, 128, 256).astype(bf16)
    b5v = b5.reshape(1, 256).astype(jnp.float32)

    w6f, b6 = _fold_bn(convs["l4_conv1"], bns["l4_bn1"], eps)   # (3,3,256,512)
    w6m = w6f.reshape(9, 256, 512).astype(bf16)
    b6v = b6.reshape(1, 512).astype(jnp.float32)

    # ---- constant 0/1 selection matrices: stride-2 subsample + zero-padded
    #      embedding into the next layer's flat grid (compile-time constants),
    #      plus valid-row masks used to embed the post-1x1 BN biases.
    s12 = np.zeros((R2, M1p), np.float32)
    mask2 = np.zeros((R2, 1), np.float32)
    for a in range(H2):
        for b in range(W2):
            r = (a + 1) * Wp2 + (b + 1)
            s12[r, (2 * a) * W1 + 2 * b] = 1.0
            mask2[r, 0] = 1.0

    s23 = np.zeros((R3, RV2), np.float32)
    mask3 = np.zeros((R3, 1), np.float32)
    for a in range(H4):
        for b in range(W4):
            r = (a + 1) * Wp3 + (b + 1)
            s23[r, (2 * a + 2) * Wp2 + (2 * b + 2) - base2] = 1.0
            mask3[r, 0] = 1.0

    s34 = np.zeros((R3, RV3), np.float32)
    sout = np.zeros((Mop, RV3), np.float32)
    for a in range(H4):
        for b in range(W4):
            r = (a + 1) * Wp3 + (b + 1)
            s34[r, r - base3] = 1.0
            sout[a * W4 + b, r - base3] = 1.0

    s12 = jnp.asarray(s12, bf16)
    s23 = jnp.asarray(s23, bf16)
    s34 = jnp.asarray(s34, bf16)
    sout = jnp.asarray(sout, bf16)

    # Per-channel biases of the 1x1+BN layers, embedded into the padded grids
    # (zero on padding rows so the zero ring stays exact).
    b2e = (jnp.asarray(mask2) * b2p).astype(jnp.float32)        # (R2, C1)
    b4e = (jnp.asarray(mask3) * b4p).astype(jnp.float32)        # (R3, 128)

    # ---- one fused pallas_call over the batch -------------------------------
    def _full(shape):
        zeros = (0,) * len(shape)
        return pl.BlockSpec(shape, lambda n: zeros)

    kernel = functools.partial(_conv4_fused_kernel,
                               wp2=Wp2, rv2=RV2, wp3=Wp3, rv3=RV3)

    out = pl.pallas_call(
        kernel,
        out_shape=jax.ShapeDtypeStruct((N * Mop, 512), jnp.float32),
        grid=(N,),
        in_specs=[
            pl.BlockSpec((M1p, K1p), lambda n: (n, 0)),     # a1 (per-sample block)
            _full((K1p, C1)), _full((1, C1)),               # w1, b1
            _full((R2, M1p)),                               # s12
            _full((C1, C1)), _full((R2, C1)),               # w2, b2 (embedded)
            _full((9, C1, 128)), _full((1, 128)),           # w3, b3
            _full((R3, RV2)),                               # s23
            _full((128, 128)), _full((R3, 128)),            # w4, b4 (embedded)
            _full((9, 128, 256)), _full((1, 256)),          # w5, b5
            _full((R3, RV3)),                               # s34
            _full((9, 256, 512)), _full((1, 512)),          # w6, b6
            _full((Mop, RV3)),                              # sout
        ],
        out_specs=pl.BlockSpec((Mop, 512), lambda n: (n, 0)),
        scratch_shapes=[
            pltpu.VMEM((R2, C1), jnp.float32),              # x2: layer2 padded grid
            pltpu.VMEM((R3, 128), jnp.float32),             # x3: layer3 padded grid
            pltpu.VMEM((R3, 256), jnp.float32),             # x4: layer4 padded grid
        ],
        compiler_params=pltpu.CompilerParams(
            dimension_semantics=("parallel",),              # batch across v7x's 2 TCs
            vmem_limit_bytes=32 * 1024 * 1024,              # ~7 MiB footprint
        ),
    )(a1, w1m, b1v, s12, w2m, b2e, w3m, b3v, s23, w4m, b4e,
      w5m, b5v, s34, w6m, b6v, sout)

    out = out.reshape(N, Mop, 512)[:, :Mo, :].reshape(N, H4, W4, 512)
    return jnp.transpose(out, (0, 3, 1, 2))                 # NHWC -> NCHW


def _reference_forward(x_nchw, convs, bns, eps=1e-5):
    """Pure-JAX f32 reference of the same eval-mode Conv-BN-ReLU stack."""
    def block(x, w, bn, stride, padding, relu):
        y = lax.conv_general_dilated(
            x, w, window_strides=(stride, stride),
            padding=[(padding, padding), (padding, padding)],
            dimension_numbers=("NHWC", "HWIO", "NHWC"),
            precision=lax.Precision.HIGHEST)
        scale = bn["gamma"] * lax.rsqrt(bn["r_var"] + eps)
        y = y * scale + (bn["beta"] - bn["r_mean"] * scale)
        return jnp.maximum(y, 0.0) if relu else y

    x = jnp.transpose(x_nchw, (0, 2, 3, 1))
    x = block(x, convs["l1_conv1"], bns["l1_bn1"], 1, 0, True)
    x = block(x, convs["l1_conv2"], bns["l1_bn2"], 2, 0, False)
    x = block(x, convs["l2_conv1"], bns["l2_bn1"], 1, 0, True)
    x = block(x, convs["l2_conv2"], bns["l2_bn2"], 2, 0, False)
    x = block(x, convs["l3_conv1"], bns["l3_bn1"], 1, 1, True)
    x = block(x, convs["l4_conv1"], bns["l4_bn1"], 1, 1, True)
    return jnp.transpose(x, (0, 3, 1, 2))


def init_params(key):
    """Deterministic synthetic parameters matching conv4_512_s's shapes (HWIO)."""
    def conv_w(k, kh, kw, cin, cout):
        fan_in = kh * kw * cin
        return (jax.random.normal(k, (kh, kw, cin, cout), jnp.float32)
                / np.sqrt(fan_in))

    def bn_p(k, c):  # eval-mode buffers (randomized so BN folding is exercised)
        k1, k2, k3, k4 = jax.random.split(k, 4)
        return dict(
            gamma=1.0 + 0.1 * jax.random.normal(k1, (c,), jnp.float32),
            beta=0.1 * jax.random.normal(k2, (c,), jnp.float32),
            r_mean=0.1 * jax.random.normal(k3, (c,), jnp.float32),
            r_var=jax.random.uniform(k4, (c,), jnp.float32, 0.5, 1.5),
        )

    kc = jax.random.split(key, 12)
    convs = {
        "l1_conv1": conv_w(kc[0], 3, 3, 3, 64),     # Conv2d(3,64,k=3,p=0)
        "l1_conv2": conv_w(kc[1], 1, 1, 64, 64),    # Conv2d(64,64,k=1,s=2)
        "l2_conv1": conv_w(kc[2], 3, 3, 64, 128),   # Conv2d(64,128,k=3,p=0)
        "l2_conv2": conv_w(kc[3], 1, 1, 128, 128),  # Conv2d(128,128,k=1,s=2)
        "l3_conv1": conv_w(kc[4], 3, 3, 128, 256),  # Conv2d(128,256,k=3,p=1)
        "l4_conv1": conv_w(kc[5], 3, 3, 256, 512),  # Conv2d(256,512,k=3,p=1)
    }
    bns = {
        "l1_bn1": bn_p(kc[6], 64), "l1_bn2": bn_p(kc[7], 64),
        "l2_bn1": bn_p(kc[8], 128), "l2_bn2": bn_p(kc[9], 128),
        "l3_bn1": bn_p(kc[10], 256), "l4_bn1": bn_p(kc[11], 512),
    }
    return convs, bns


if __name__ == "__main__":
    key = jax.random.PRNGKey(0)
    k_x, k_p = jax.random.split(key)

    # Small NCHW input consistent with the module (3 input channels).
    x = jax.random.normal(k_x, (2, 3, 16, 16), jnp.float32)
    convs, bns = init_params(k_p)

    fwd = jax.jit(conv4_512_s_forward)
    out = jax.block_until_ready(fwd(x, convs, bns))

    # Shape trace: 16 -> 14 -> 7 (layer1) -> 5 -> 3 (layer2) -> 3 -> 3
    assert out.shape == (2, 512, 3, 3), out.shape
    assert out.dtype == jnp.float32

    # Numerical check vs a pure-JAX f32 reference (kernel uses bf16 MXU inputs
    # with f32 accumulation -> loose tolerance).
    ref = jax.block_until_ready(jax.jit(_reference_forward)(x, convs, bns))
    max_err = float(jnp.max(jnp.abs(out - ref)))
    assert max_err < 2e-1, f"max abs err {max_err}"

    print("KERNEL_OK")
</pallas_src>

<mosaic_0001>
module attributes {stable_mosaic.version = 11 : i64} {
  func.func @_conv4_fused_kernel(%arg0: i32, %arg1: memref<200x128xbf16, #tpu.memory_space<vmem>>, %arg2: memref<128x128xbf16, #tpu.memory_space<vmem>>, %arg3: memref<1x128xf32, #tpu.memory_space<vmem>>, %arg4: memref<81x200xbf16, #tpu.memory_space<vmem>>, %arg5: memref<128x128xbf16, #tpu.memory_space<vmem>>, %arg6: memref<81x128xf32, #tpu.memory_space<vmem>>, %arg7: memref<9x128x128xbf16, #tpu.memory_space<vmem>>, %arg8: memref<1x128xf32, #tpu.memory_space<vmem>>, %arg9: memref<25x61xbf16, #tpu.memory_space<vmem>>, %arg10: memref<128x128xbf16, #tpu.memory_space<vmem>>, %arg11: memref<25x128xf32, #tpu.memory_space<vmem>>, %arg12: memref<9x128x256xbf16, #tpu.memory_space<vmem>>, %arg13: memref<1x256xf32, #tpu.memory_space<vmem>>, %arg14: memref<25x13xbf16, #tpu.memory_space<vmem>>, %arg15: memref<9x256x512xbf16, #tpu.memory_space<vmem>>, %arg16: memref<1x512xf32, #tpu.memory_space<vmem>>, %arg17: memref<16x13xbf16, #tpu.memory_space<vmem>>, %arg18: memref<16x512xf32, #tpu.memory_space<vmem>>, %arg19: memref<81x128xf32, #tpu.memory_space<vmem>>, %arg20: memref<25x128xf32, #tpu.memory_space<vmem>>, %arg21: memref<25x256xf32, #tpu.memory_space<vmem>>) attributes {dimension_semantics = [#tpu.dimension_semantics<parallel>], iteration_bounds = array<i64: 2>, scalar_prefetch = 0 : i64, scratch_operands = 3 : i64, tpu.core_type = #tpu.core_type<tc>, window_params = [{transform_indices = @transform_0, window_bounds = array<i64: 200, 128>}, {pipeline_mode = #tpu.pipeline_mode<synchronous>, transform_indices = @transform_1, window_bounds = array<i64: 128, 128>}, {pipeline_mode = #tpu.pipeline_mode<synchronous>, transform_indices = @transform_2, window_bounds = array<i64: 1, 128>}, {pipeline_mode = #tpu.pipeline_mode<synchronous>, transform_indices = @transform_3, window_bounds = array<i64: 81, 200>}, {pipeline_mode = #tpu.pipeline_mode<synchronous>, transform_indices = @transform_4, window_bounds = array<i64: 128, 128>}, {pipeline_mode = #tpu.pipeline_mode<synchronous>, transform_indices = @transform_5, window_bounds = array<i64: 81, 128>}, {pipeline_mode = #tpu.pipeline_mode<synchronous>, transform_indices = @transform_6, window_bounds = array<i64: 9, 128, 128>}, {pipeline_mode = #tpu.pipeline_mode<synchronous>, transform_indices = @transform_7, window_bounds = array<i64: 1, 128>}, {pipeline_mode = #tpu.pipeline_mode<synchronous>, transform_indices = @transform_8, window_bounds = array<i64: 25, 61>}, {pipeline_mode = #tpu.pipeline_mode<synchronous>, transform_indices = @transform_9, window_bounds = array<i64: 128, 128>}, {pipeline_mode = #tpu.pipeline_mode<synchronous>, transform_indices = @transform_10, window_bounds = array<i64: 25, 128>}, {pipeline_mode = #tpu.pipeline_mode<synchronous>, transform_indices = @transform_11, window_bounds = array<i64: 9, 128, 256>}, {pipeline_mode = #tpu.pipeline_mode<synchronous>, transform_indices = @transform_12, window_bounds = array<i64: 1, 256>}, {pipeline_mode = #tpu.pipeline_mode<synchronous>, transform_indices = @transform_13, window_bounds = array<i64: 25, 13>}, {pipeline_mode = #tpu.pipeline_mode<synchronous>, transform_indices = @transform_14, window_bounds = array<i64: 9, 256, 512>}, {pipeline_mode = #tpu.pipeline_mode<synchronous>, transform_indices = @transform_15, window_bounds = array<i64: 1, 512>}, {pipeline_mode = #tpu.pipeline_mode<synchronous>, transform_indices = @transform_16, window_bounds = array<i64: 16, 13>}, {transform_indices = @transform_17, window_bounds = array<i64: 16, 512>}]} {
    %c0 = arith.constant 0 : index
    %c0_0 = arith.constant 0 : index
    %0 = vector.load %arg1[%c0, %c0_0] : memref<200x128xbf16, #tpu.memory_space<vmem>>, vector<200x128xbf16>
    %c0_1 = arith.constant 0 : index
    %c0_2 = arith.constant 0 : index
    %1 = vector.load %arg2[%c0_1, %c0_2] : memref<128x128xbf16, #tpu.memory_space<vmem>>, vector<128x128xbf16>
    %cst = arith.constant dense<0.000000e+00> : vector<200x128xf32>
    %2 = tpu.matmul %0, %1, %cst {dimension_numbers = #tpu.dot_dimension_numbers<[1], [0], [0], [1], [0, 0, 1, 1], [], []>} : vector<200x128xbf16>, vector<128x128xbf16>, vector<200x128xf32> -> vector<200x128xf32>
    %c0_3 = arith.constant 0 : index
    %c0_4 = arith.constant 0 : index
    %3 = vector.load %arg3[%c0_3, %c0_4] : memref<1x128xf32, #tpu.memory_space<vmem>>, vector<1x128xf32>
    %4 = vector.broadcast %3 : vector<1x128xf32> to vector<200x128xf32>
    %5 = arith.addf %2, %4 : vector<200x128xf32>
    %cst_5 = arith.constant 0.000000e+00 : f32
    %6 = vector.broadcast %cst_5 : f32 to vector<200x128xf32>
    %7 = arith.maximumf %5, %6 : vector<200x128xf32>
    %8 = arith.truncf %7 : vector<200x128xf32> to vector<200x128xbf16>
    %c0_6 = arith.constant 0 : index
    %c0_7 = arith.constant 0 : index
    %9 = vector.load %arg4[%c0_6, %c0_7] : memref<81x200xbf16, #tpu.memory_space<vmem>>, vector<81x200xbf16>
    %cst_8 = arith.constant dense<0.000000e+00> : vector<81x128xf32>
    %10 = tpu.matmul %9, %8, %cst_8 {dimension_numbers = #tpu.dot_dimension_numbers<[1], [0], [0], [1], [0, 0, 1, 1], [], []>} : vector<81x200xbf16>, vector<200x128xbf16>, vector<81x128xf32> -> vector<81x128xf32>
    %11 = arith.truncf %10 : vector<81x128xf32> to vector<81x128xbf16>
    %c0_9 = arith.constant 0 : index
    %c0_10 = arith.constant 0 : index
    %12 = vector.load %arg5[%c0_9, %c0_10] : memref<128x128xbf16, #tpu.memory_space<vmem>>, vector<128x128xbf16>
    %cst_11 = arith.constant dense<0.000000e+00> : vector<81x128xf32>
    %13 = tpu.matmul %11, %12, %cst_11 {dimension_numbers = #tpu.dot_dimension_numbers<[1], [0], [0], [1], [0, 0, 1, 1], [], []>} : vector<81x128xbf16>, vector<128x128xbf16>, vector<81x128xf32> -> vector<81x128xf32>
    %c0_12 = arith.constant 0 : index
    %c0_13 = arith.constant 0 : index
    %14 = vector.load %arg6[%c0_12, %c0_13] : memref<81x128xf32, #tpu.memory_space<vmem>>, vector<81x128xf32>
    %15 = arith.addf %13, %14 : vector<81x128xf32>
    %c0_14 = arith.constant 0 : index
    %c0_15 = arith.constant 0 : index
    %16 = vector.load %arg19[%c0_14, %c0_15] : memref<81x128xf32, #tpu.memory_space<vmem>>, vector<81x128xf32>
    tpu.vector_store %arg19[%c0_14, %c0_15], %15 {strides = array<i32>} : memref<81x128xf32, #tpu.memory_space<vmem>>, vector<81x128xf32>,
    %c0_16 = arith.constant 0 : index
    %c0_17 = arith.constant 0 : index
    %17 = vector.load %arg19[%c0_16, %c0_17] : memref<81x128xf32, #tpu.memory_space<vmem>>, vector<61x128xf32>
    %18 = arith.truncf %17 : vector<61x128xf32> to vector<61x128xbf16>
    %c0_18 = arith.constant 0 : index
    %c0_19 = arith.constant 0 : index
    %c0_20 = arith.constant 0 : index
    %19 = vector.load %arg7[%c0_18, %c0_19, %c0_20] : memref<9x128x128xbf16, #tpu.memory_space<vmem>>, vector<1x128x128xbf16>
    %20 = vector.shape_cast %19 : vector<1x128x128xbf16> to vector<128x128xbf16>
    %cst_21 = arith.constant dense<0.000000e+00> : vector<61x128xf32>
    %21 = tpu.matmul %18, %20, %cst_21 {dimension_numbers = #tpu.dot_dimension_numbers<[1], [0], [0], [1], [0, 0, 1, 1], [], []>} : vector<61x128xbf16>, vector<128x128xbf16>, vector<61x128xf32> -> vector<61x128xf32>
    %c1 = arith.constant 1 : index
    %c0_22 = arith.constant 0 : index
    %22 = vector.load %arg19[%c1, %c0_22] : memref<81x128xf32, #tpu.memory_space<vmem>>, vector<61x128xf32>
    %23 = arith.truncf %22 : vector<61x128xf32> to vector<61x128xbf16>
    %c1_23 = arith.constant 1 : index
    %c0_24 = arith.constant 0 : index
    %c0_25 = arith.constant 0 : index
    %24 = vector.load %arg7[%c1_23, %c0_24, %c0_25] : memref<9x128x128xbf16, #tpu.memory_space<vmem>>, vector<1x128x128xbf16>
    %25 = vector.shape_cast %24 : vector<1x128x128xbf16> to vector<128x128xbf16>
    %cst_26 = arith.constant dense<0.000000e+00> : vector<61x128xf32>
    %26 = tpu.matmul %23, %25, %cst_26 {dimension_numbers = #tpu.dot_dimension_numbers<[1], [0], [0], [1], [0, 0, 1, 1], [], []>} : vector<61x128xbf16>, vector<128x128xbf16>, vector<61x128xf32> -> vector<61x128xf32>
    %27 = arith.addf %21, %26 : vector<61x128xf32>
    %c2 = arith.constant 2 : index
    %c0_27 = arith.constant 0 : index
    %28 = vector.load %arg19[%c2, %c0_27] : memref<81x128xf32, #tpu.memory_space<vmem>>, vector<61x128xf32>
    %29 = arith.truncf %28 : vector<61x128xf32> to vector<61x128xbf16>
    %c2_28 = arith.constant 2 : index
    %c0_29 = arith.constant 0 : index
    %c0_30 = arith.constant 0 : index
    %30 = vector.load %arg7[%c2_28, %c0_29, %c0_30] : memref<9x128x128xbf16, #tpu.memory_space<vmem>>, vector<1x128x128xbf16>
    %31 = vector.shape_cast %30 : vector<1x128x128xbf16> to vector<128x128xbf16>
    %cst_31 = arith.constant dense<0.000000e+00> : vector<61x128xf32>
    %32 = tpu.matmul %29, %31, %cst_31 {dimension_numbers = #tpu.dot_dimension_numbers<[1], [0], [0], [1], [0, 0, 1, 1], [], []>} : vector<61x128xbf16>, vector<128x128xbf16>, vector<61x128xf32> -> vector<61x128xf32>
    %33 = arith.addf %27, %32 : vector<61x128xf32>
    %c9 = arith.constant 9 : index
    %c0_32 = arith.constant 0 : index
    %34 = vector.load %arg19[%c9, %c0_32] : memref<81x128xf32, #tpu.memory_space<vmem>>, vector<61x128xf32>
    %35 = arith.truncf %34 : vector<61x128xf32> to vector<61x128xbf16>
    %c3 = arith.constant 3 : index
    %c0_33 = arith.constant 0 : index
    %c0_34 = arith.constant 0 : index
    %36 = vector.load %arg7[%c3, %c0_33, %c0_34] : memref<9x128x128xbf16, #tpu.memory_space<vmem>>, vector<1x128x128xbf16>
    %37 = vector.shape_cast %36 : vector<1x128x128xbf16> to vector<128x128xbf16>
    %cst_35 = arith.constant dense<0.000000e+00> : vector<61x128xf32>
    %38 = tpu.matmul %35, %37, %cst_35 {dimension_numbers = #tpu.dot_dimension_numbers<[1], [0], [0], [1], [0, 0, 1, 1], [], []>} : vector<61x128xbf16>, vector<128x128xbf16>, vector<61x128xf32> -> vector<61x128xf32>
    %39 = arith.addf %33, %38 : vector<61x128xf32>
    %c10 = arith.constant 10 : index
    %c0_36 = arith.constant 0 : index
    %40 = vector.load %arg19[%c10, %c0_36] : memref<81x128xf32, #tpu.memory_space<vmem>>, vector<61x128xf32>
    %41 = arith.truncf %40 : vector<61x128xf32> to vector<61x128xbf16>
    %c4 = arith.constant 4 : index
    %c0_37 = arith.constant 0 : index
    %c0_38 = arith.constant 0 : index
    %42 = vector.load %arg7[%c4, %c0_37, %c0_38] : memref<9x128x128xbf16, #tpu.memory_space<vmem>>, vector<1x128x128xbf16>
    %43 = vector.shape_cast %42 : vector<1x128x128xbf16> to vector<128x128xbf16>
    %cst_39 = arith.constant dense<0.000000e+00> : vector<61x128xf32>
    %44 = tpu.matmul %41, %43, %cst_39 {dimension_numbers = #tpu.dot_dimension_numbers<[1], [0], [0], [1], [0, 0, 1, 1], [], []>} : vector<61x128xbf16>, vector<128x128xbf16>, vector<61x128xf32> -> vector<61x128xf32>
    %45 = arith.addf %39, %44 : vector<61x128xf32>
    %c11 = arith.constant 11 : index
    %c0_40 = arith.constant 0 : index
    %46 = vector.load %arg19[%c11, %c0_40] : memref<81x128xf32, #tpu.memory_space<vmem>>, vector<61x128xf32>
    %47 = arith.truncf %46 : vector<61x128xf32> to vector<61x128xbf16>
    %c5 = arith.constant 5 : index
    %c0_41 = arith.constant 0 : index
    %c0_42 = arith.constant 0 : index
    %48 = vector.load %arg7[%c5, %c0_41, %c0_42] : memref<9x128x128xbf16, #tpu.memory_space<vmem>>, vector<1x128x128xbf16>
    %49 = vector.shape_cast %48 : vector<1x128x128xbf16> to vector<128x128xbf16>
    %cst_43 = arith.constant dense<0.000000e+00> : vector<61x128xf32>
    %50 = tpu.matmul %47, %49, %cst_43 {dimension_numbers = #tpu.dot_dimension_numbers<[1], [0], [0], [1], [0, 0, 1, 1], [], []>} : vector<61x128xbf16>, vector<128x128xbf16>, vector<61x128xf32> -> vector<61x128xf32>
    %51 = arith.addf %45, %50 : vector<61x128xf32>
    %c18 = arith.constant 18 : index
    %c0_44 = arith.constant 0 : index
    %52 = vector.load %arg19[%c18, %c0_44] : memref<81x128xf32, #tpu.memory_space<vmem>>, vector<61x128xf32>
    %53 = arith.truncf %52 : vector<61x128xf32> to vector<61x128xbf16>
    %c6 = arith.constant 6 : index
    %c0_45 = arith.constant 0 : index
    %c0_46 = arith.constant 0 : index
    %54 = vector.load %arg7[%c6, %c0_45, %c0_46] : memref<9x128x128xbf16, #tpu.memory_space<vmem>>, vector<1x128x128xbf16>
    %55 = vector.shape_cast %54 : vector<1x128x128xbf16> to vector<128x128xbf16>
    %cst_47 = arith.constant dense<0.000000e+00> : vector<61x128xf32>
    %56 = tpu.matmul %53, %55, %cst_47 {dimension_numbers = #tpu.dot_dimension_numbers<[1], [0], [0], [1], [0, 0, 1, 1], [], []>} : vector<61x128xbf16>, vector<128x128xbf16>, vector<61x128xf32> -> vector<61x128xf32>
    %57 = arith.addf %51, %56 : vector<61x128xf32>
    %c19 = arith.constant 19 : index
    %c0_48 = arith.constant 0 : index
    %58 = vector.load %arg19[%c19, %c0_48] : memref<81x128xf32, #tpu.memory_space<vmem>>, vector<61x128xf32>
    %59 = arith.truncf %58 : vector<61x128xf32> to vector<61x128xbf16>
    %c7 = arith.constant 7 : index
    %c0_49 = arith.constant 0 : index
    %c0_50 = arith.constant 0 : index
    %60 = vector.load %arg7[%c7, %c0_49, %c0_50] : memref<9x128x128xbf16, #tpu.memory_space<vmem>>, vector<1x128x128xbf16>
    %61 = vector.shape_cast %60 : vector<1x128x128xbf16> to vector<128x128xbf16>
    %cst_51 = arith.constant dense<0.000000e+00> : vector<61x128xf32>
    %62 = tpu.matmul %59, %61, %cst_51 {dimension_numbers = #tpu.dot_dimension_numbers<[1], [0], [0], [1], [0, 0, 1, 1], [], []>} : vector<61x128xbf16>, vector<128x128xbf16>, vector<61x128xf32> -> vector<61x128xf32>
    %63 = arith.addf %57, %62 : vector<61x128xf32>
    %c20 = arith.constant 20 : index
    %c0_52 = arith.constant 0 : index
    %64 = vector.load %arg19[%c20, %c0_52] : memref<81x128xf32, #tpu.memory_space<vmem>>, vector<61x128xf32>
    %65 = arith.truncf %64 : vector<61x128xf32> to vector<61x128xbf16>
    %c8 = arith.constant 8 : index
    %c0_53 = arith.constant 0 : index
    %c0_54 = arith.constant 0 : index
    %66 = vector.load %arg7[%c8, %c0_53, %c0_54] : memref<9x128x128xbf16, #tpu.memory_space<vmem>>, vector<1x128x128xbf16>
    %67 = vector.shape_cast %66 : vector<1x128x128xbf16> to vector<128x128xbf16>
    %cst_55 = arith.constant dense<0.000000e+00> : vector<61x128xf32>
    %68 = tpu.matmul %65, %67, %cst_55 {dimension_numbers = #tpu.dot_dimension_numbers<[1], [0], [0], [1], [0, 0, 1, 1], [], []>} : vector<61x128xbf16>, vector<128x128xbf16>, vector<61x128xf32> -> vector<61x128xf32>
    %69 = arith.addf %63, %68 : vector<61x128xf32>
    %c0_56 = arith.constant 0 : index
    %c0_57 = arith.constant 0 : index
    %70 = vector.load %arg8[%c0_56, %c0_57] : memref<1x128xf32, #tpu.memory_space<vmem>>, vector<1x128xf32>
    %71 = vector.broadcast %70 : vector<1x128xf32> to vector<61x128xf32>
    %72 = arith.addf %69, %71 : vector<61x128xf32>
    %cst_58 = arith.constant 0.000000e+00 : f32
    %73 = vector.broadcast %cst_58 : f32 to vector<61x128xf32>
    %74 = arith.maximumf %72, %73 : vector<61x128xf32>
    %75 = arith.truncf %74 : vector<61x128xf32> to vector<61x128xbf16>
    %c0_59 = arith.constant 0 : index
    %c0_60 = arith.constant 0 : index
    %76 = vector.load %arg9[%c0_59, %c0_60] : memref<25x61xbf16, #tpu.memory_space<vmem>>, vector<25x61xbf16>
    %cst_61 = arith.constant dense<0.000000e+00> : vector<25x128xf32>
    %77 = tpu.matmul %76, %75, %cst_61 {dimension_numbers = #tpu.dot_dimension_numbers<[1], [0], [0], [1], [0, 0, 1, 1], [], []>} : vector<25x61xbf16>, vector<61x128xbf16>, vector<25x128xf32> -> vector<25x128xf32>
    %78 = arith.truncf %77 : vector<25x128xf32> to vector<25x128xbf16>
    %c0_62 = arith.constant 0 : index
    %c0_63 = arith.constant 0 : index
    %79 = vector.load %arg10[%c0_62, %c0_63] : memref<128x128xbf16, #tpu.memory_space<vmem>>, vector<128x128xbf16>
    %cst_64 = arith.constant dense<0.000000e+00> : vector<25x128xf32>
    %80 = tpu.matmul %78, %79, %cst_64 {dimension_numbers = #tpu.dot_dimension_numbers<[1], [0], [0], [1], [0, 0, 1, 1], [], []>} : vector<25x128xbf16>, vector<128x128xbf16>, vector<25x128xf32> -> vector<25x128xf32>
    %c0_65 = arith.constant 0 : index
    %c0_66 = arith.constant 0 : index
    %81 = vector.load %arg11[%c0_65, %c0_66] : memref<25x128xf32, #tpu.memory_space<vmem>>, vector<25x128xf32>
    %82 = arith.addf %80, %81 : vector<25x128xf32>
    %c0_67 = arith.constant 0 : index
    %c0_68 = arith.constant 0 : index
    %83 = vector.load %arg20[%c0_67, %c0_68] : memref<25x128xf32, #tpu.memory_space<vmem>>, vector<25x128xf32>
    tpu.vector_store %arg20[%c0_67, %c0_68], %82 {strides = array<i32>} : memref<25x128xf32, #tpu.memory_space<vmem>>, vector<25x128xf32>,
    %c0_69 = arith.constant 0 : index
    %c0_70 = arith.constant 0 : index
    %84 = vector.load %arg20[%c0_69, %c0_70] : memref<25x128xf32, #tpu.memory_space<vmem>>, vector<13x128xf32>
    %85 = arith.truncf %84 : vector<13x128xf32> to vector<13x128xbf16>
    %c0_71 = arith.constant 0 : index
    %c0_72 = arith.constant 0 : index
    %c0_73 = arith.constant 0 : index
    %86 = vector.load %arg12[%c0_71, %c0_72, %c0_73] : memref<9x128x256xbf16, #tpu.memory_space<vmem>>, vector<1x128x256xbf16>
    %87 = vector.shape_cast %86 : vector<1x128x256xbf16> to vector<128x256xbf16>
    %cst_74 = arith.constant dense<0.000000e+00> : vector<13x256xf32>
    %88 = tpu.matmul %85, %87, %cst_74 {dimension_numbers = #tpu.dot_dimension_numbers<[1], [0], [0], [1], [0, 0, 1, 1], [], []>} : vector<13x128xbf16>, vector<128x256xbf16>, vector<13x256xf32> -> vector<13x256xf32>
    %c1_75 = arith.constant 1 : index
    %c0_76 = arith.constant 0 : index
    %89 = vector.load %arg20[%c1_75, %c0_76] : memref<25x128xf32, #tpu.memory_space<vmem>>, vector<13x128xf32>
    %90 = arith.truncf %89 : vector<13x128xf32> to vector<13x128xbf16>
    %c1_77 = arith.constant 1 : index
    %c0_78 = arith.constant 0 : index
    %c0_79 = arith.constant 0 : index
    %91 = vector.load %arg12[%c1_77, %c0_78, %c0_79] : memref<9x128x256xbf16, #tpu.memory_space<vmem>>, vector<1x128x256xbf16>
    %92 = vector.shape_cast %91 : vector<1x128x256xbf16> to vector<128x256xbf16>
    %cst_80 = arith.constant dense<0.000000e+00> : vector<13x256xf32>
    %93 = tpu.matmul %90, %92, %cst_80 {dimension_numbers = #tpu.dot_dimension_numbers<[1], [0], [0], [1], [0, 0, 1, 1], [], []>} : vector<13x128xbf16>, vector<128x256xbf16>, vector<13x256xf32> -> vector<13x256xf32>
    %94 = arith.addf %88, %93 : vector<13x256xf32>
    %c2_81 = arith.constant 2 : index
    %c0_82 = arith.constant 0 : index
    %95 = vector.load %arg20[%c2_81, %c0_82] : memref<25x128xf32, #tpu.memory_space<vmem>>, vector<13x128xf32>
    %96 = arith.truncf %95 : vector<13x128xf32> to vector<13x128xbf16>
    %c2_83 = arith.constant 2 : index
    %c0_84 = arith.constant 0 : index
    %c0_85 = arith.constant 0 : index
    %97 = vector.load %arg12[%c2_83, %c0_84, %c0_85] : memref<9x128x256xbf16, #tpu.memory_space<vmem>>, vector<1x128x256xbf16>
    %98 = vector.shape_cast %97 : vector<1x128x256xbf16> to vector<128x256xbf16>
    %cst_86 = arith.constant dense<0.000000e+00> : vector<13x256xf32>
    %99 = tpu.matmul %96, %98, %cst_86 {dimension_numbers = #tpu.dot_dimension_numbers<[1], [0], [0], [1], [0, 0, 1, 1], [], []>} : vector<13x128xbf16>, vector<128x256xbf16>, vector<13x256xf32> -> vector<13x256xf32>
    %100 = arith.addf %94, %99 : vector<13x256xf32>
    %c5_87 = arith.constant 5 : index
    %c0_88 = arith.constant 0 : index
    %101 = vector.load %arg20[%c5_87, %c0_88] : memref<25x128xf32, #tpu.memory_space<vmem>>, vector<13x128xf32>
    %102 = arith.truncf %101 : vector<13x128xf32> to vector<13x128xbf16>
    %c3_89 = arith.constant 3 : index
    %c0_90 = arith.constant 0 : index
    %c0_91 = arith.constant 0 : index
    %103 = vector.load %arg12[%c3_89, %c0_90, %c0_91] : memref<9x128x256xbf16, #tpu.memory_space<vmem>>, vector<1x128x256xbf16>
    %104 = vector.shape_cast %103 : vector<1x128x256xbf16> to vector<128x256xbf16>
    %cst_92 = arith.constant dense<0.000000e+00> : vector<13x256xf32>
    %105 = tpu.matmul %102, %104, %cst_92 {dimension_numbers = #tpu.dot_dimension_numbers<[1], [0], [0], [1], [0, 0, 1, 1], [], []>} : vector<13x128xbf16>, vector<128x256xbf16>, vector<13x256xf32> -> vector<13x256xf32>
    %106 = arith.addf %100, %105 : vector<13x256xf32>
    %c6_93 = arith.constant 6 : index
    %c0_94 = arith.constant 0 : index
    %107 = vector.load %arg20[%c6_93, %c0_94] : memref<25x128xf32, #tpu.memory_space<vmem>>, vector<13x128xf32>
    %108 = arith.truncf %107 : vector<13x128xf32> to vector<13x128xbf16>
    %c4_95 = arith.constant 4 : index
    %c0_96 = arith.constant 0 : index
    %c0_97 = arith.constant 0 : index
    %109 = vector.load %arg12[%c4_95, %c0_96, %c0_97] : memref<9x128x256xbf16, #tpu.memory_space<vmem>>, vector<1x128x256xbf16>
    %110 = vector.shape_cast %109 : vector<1x128x256xbf16> to vector<128x256xbf16>
    %cst_98 = arith.constant dense<0.000000e+00> : vector<13x256xf32>
    %111 = tpu.matmul %108, %110, %cst_98 {dimension_numbers = #tpu.dot_dimension_numbers<[1], [0], [0], [1], [0, 0, 1, 1], [], []>} : vector<13x128xbf16>, vector<128x256xbf16>, vector<13x256xf32> -> vector<13x256xf32>
    %112 = arith.addf %106, %111 : vector<13x256xf32>
    %c7_99 = arith.constant 7 : index
    %c0_100 = arith.constant 0 : index
    %113 = vector.load %arg20[%c7_99, %c0_100] : memref<25x128xf32, #tpu.memory_space<vmem>>, vector<13x128xf32>
    %114 = arith.truncf %113 : vector<13x128xf32> to vector<13x128xbf16>
    %c5_101 = arith.constant 5 : index
    %c0_102 = arith.constant 0 : index
    %c0_103 = arith.constant 0 : index
    %115 = vector.load %arg12[%c5_101, %c0_102, %c0_103] : memref<9x128x256xbf16, #tpu.memory_space<vmem>>, vector<1x128x256xbf16>
    %116 = vector.shape_cast %115 : vector<1x128x256xbf16> to vector<128x256xbf16>
    %cst_104 = arith.constant dense<0.000000e+00> : vector<13x256xf32>
    %117 = tpu.matmul %114, %116, %cst_104 {dimension_numbers = #tpu.dot_dimension_numbers<[1], [0], [0], [1], [0, 0, 1, 1], [], []>} : vector<13x128xbf16>, vector<128x256xbf16>, vector<13x256xf32> -> vector<13x256xf32>
    %118 = arith.addf %112, %117 : vector<13x256xf32>
    %c10_105 = arith.constant 10 : index
    %c0_106 = arith.constant 0 : index
    %119 = vector.load %arg20[%c10_105, %c0_106] : memref<25x128xf32, #tpu.memory_space<vmem>>, vector<13x128xf32>
    %120 = arith.truncf %119 : vector<13x128xf32> to vector<13x128xbf16>
    %c6_107 = arith.constant 6 : index
    %c0_108 = arith.constant 0 : index
    %c0_109 = arith.constant 0 : index
    %121 = vector.load %arg12[%c6_107, %c0_108, %c0_109] : memref<9x128x256xbf16, #tpu.memory_space<vmem>>, vector<1x128x256xbf16>
    %122 = vector.shape_cast %121 : vector<1x128x256xbf16> to vector<128x256xbf16>
    %cst_110 = arith.constant dense<0.000000e+00> : vector<13x256xf32>
    %123 = tpu.matmul %120, %122, %cst_110 {dimension_numbers = #tpu.dot_dimension_numbers<[1], [0], [0], [1], [0, 0, 1, 1], [], []>} : vector<13x128xbf16>, vector<128x256xbf16>, vector<13x256xf32> -> vector<13x256xf32>
    %124 = arith.addf %118, %123 : vector<13x256xf32>
    %c11_111 = arith.constant 11 : index
    %c0_112 = arith.constant 0 : index
    %125 = vector.load %arg20[%c11_111, %c0_112] : memref<25x128xf32, #tpu.memory_space<vmem>>, vector<13x128xf32>
    %126 = arith.truncf %125 : vector<13x128xf32> to vector<13x128xbf16>
    %c7_113 = arith.constant 7 : index
    %c0_114 = arith.constant 0 : index
    %c0_115 = arith.constant 0 : index
    %127 = vector.load %arg12[%c7_113, %c0_114, %c0_115] : memref<9x128x256xbf16, #tpu.memory_space<vmem>>, vector<1x128x256xbf16>
    %128 = vector.shape_cast %127 : vector<1x128x256xbf16> to vector<128x256xbf16>
    %cst_116 = arith.constant dense<0.000000e+00> : vector<13x256xf32>
    %129 = tpu.matmul %126, %128, %cst_116 {dimension_numbers = #tpu.dot_dimension_numbers<[1], [0], [0], [1], [0, 0, 1, 1], [], []>} : vector<13x128xbf16>, vector<128x256xbf16>, vector<13x256xf32> -> vector<13x256xf32>
    %130 = arith.addf %124, %129 : vector<13x256xf32>
    %c12 = arith.constant 12 : index
    %c0_117 = arith.constant 0 : index
    %131 = vector.load %arg20[%c12, %c0_117] : memref<25x128xf32, #tpu.memory_space<vmem>>, vector<13x128xf32>
    %132 = arith.truncf %131 : vector<13x128xf32> to vector<13x128xbf16>
    %c8_118 = arith.constant 8 : index
    %c0_119 = arith.constant 0 : index
    %c0_120 = arith.constant 0 : index
    %133 = vector.load %arg12[%c8_118, %c0_119, %c0_120] : memref<9x128x256xbf16, #tpu.memory_space<vmem>>, vector<1x128x256xbf16>
    %134 = vector.shape_cast %133 : vector<1x128x256xbf16> to vector<128x256xbf16>
    %cst_121 = arith.constant dense<0.000000e+00> : vector<13x256xf32>
    %135 = tpu.matmul %132, %134, %cst_121 {dimension_numbers = #tpu.dot_dimension_numbers<[1], [0], [0], [1], [0, 0, 1, 1], [], []>} : vector<13x128xbf16>, vector<128x256xbf16>, vector<13x256xf32> -> vector<13x256xf32>
    %136 = arith.addf %130, %135 : vector<13x256xf32>
    %c0_122 = arith.constant 0 : index
    %c0_123 = arith.constant 0 : index
    %137 = vector.load %arg13[%c0_122, %c0_123] : memref<1x256xf32, #tpu.memory_space<vmem>>, vector<1x256xf32>
    %138 = vector.broadcast %137 : vector<1x256xf32> to vector<13x256xf32>
    %139 = arith.addf %136, %138 : vector<13x256xf32>
    %cst_124 = arith.constant 0.000000e+00 : f32
    %140 = vector.broadcast %cst_124 : f32 to vector<13x256xf32>
    %141 = arith.maximumf %139, %140 : vector<13x256xf32>
    %142 = arith.truncf %141 : vector<13x256xf32> to vector<13x256xbf16>
    %c0_125 = arith.constant 0 : index
    %c0_126 = arith.constant 0 : index
    %143 = vector.load %arg14[%c0_125, %c0_126] : memref<25x13xbf16, #tpu.memory_space<vmem>>, vector<25x13xbf16>
    %cst_127 = arith.constant dense<0.000000e+00> : vector<25x256xf32>
    %144 = tpu.matmul %143, %142, %cst_127 {dimension_numbers = #tpu.dot_dimension_numbers<[1], [0], [0], [1], [0, 0, 1, 1], [], []>} : vector<25x13xbf16>, vector<13x256xbf16>, vector<25x256xf32> -> vector<25x256xf32>
    %c0_128 = arith.constant 0 : index
    %c0_129 = arith.constant 0 : index
    %145 = vector.load %arg21[%c0_128, %c0_129] : memref<25x256xf32, #tpu.memory_space<vmem>>, vector<25x256xf32>
    tpu.vector_store %arg21[%c0_128, %c0_129], %144 {strides = array<i32>} : memref<25x256xf32, #tpu.memory_space<vmem>>, vector<25x256xf32>,
    %c0_130 = arith.constant 0 : index
    %c0_131 = arith.constant 0 : index
    %146 = vector.load %arg21[%c0_130, %c0_131] : memref<25x256xf32, #tpu.memory_space<vmem>>, vector<13x256xf32>
    %147 = arith.truncf %146 : vector<13x256xf32> to vector<13x256xbf16>
    %c0_132 = arith.constant 0 : index
    %c0_133 = arith.constant 0 : index
    %c0_134 = arith.constant 0 : index
    %148 = vector.load %arg15[%c0_132, %c0_133, %c0_134] : memref<9x256x512xbf16, #tpu.memory_space<vmem>>, vector<1x256x512xbf16>
    %149 = vector.shape_cast %148 : vector<1x256x512xbf16> to vector<256x512xbf16>
    %cst_135 = arith.constant dense<0.000000e+00> : vector<13x512xf32>
    %150 = tpu.matmul %147, %149, %cst_135 {dimension_numbers = #tpu.dot_dimension_numbers<[1], [0], [0], [1], [0, 0, 1, 1], [], []>} : vector<13x256xbf16>, vector<256x512xbf16>, vector<13x512xf32> -> vector<13x512xf32>
    %c1_136 = arith.constant 1 : index
    %c0_137 = arith.constant 0 : index
    %151 = vector.load %arg21[%c1_136, %c0_137] : memref<25x256xf32, #tpu.memory_space<vmem>>, vector<13x256xf32>
    %152 = arith.truncf %151 : vector<13x256xf32> to vector<13x256xbf16>
    %c1_138 = arith.constant 1 : index
    %c0_139 = arith.constant 0 : index
    %c0_140 = arith.constant 0 : index
    %153 = vector.load %arg15[%c1_138, %c0_139, %c0_140] : memref<9x256x512xbf16, #tpu.memory_space<vmem>>, vector<1x256x512xbf16>
    %154 = vector.shape_cast %153 : vector<1x256x512xbf16> to vector<256x512xbf16>
    %cst_141 = arith.constant dense<0.000000e+00> : vector<13x512xf32>
    %155 = tpu.matmul %152, %154, %cst_141 {dimension_numbers = #tpu.dot_dimension_numbers<[1], [0], [0], [1], [0, 0, 1, 1], [], []>} : vector<13x256xbf16>, vector<256x512xbf16>, vector<13x512xf32> -> vector<13x512xf32>
    %156 = arith.addf %150, %155 : vector<13x512xf32>
    %c2_142 = arith.constant 2 : index
    %c0_143 = arith.constant 0 : index
    %157 = vector.load %arg21[%c2_142, %c0_143] : memref<25x256xf32, #tpu.memory_space<vmem>>, vector<13x256xf32>
    %158 = arith.truncf %157 : vector<13x256xf32> to vector<13x256xbf16>
    %c2_144 = arith.constant 2 : index
    %c0_145 = arith.constant 0 : index
    %c0_146 = arith.constant 0 : index
    %159 = vector.load %arg15[%c2_144, %c0_145, %c0_146] : memref<9x256x512xbf16, #tpu.memory_space<vmem>>, vector<1x256x512xbf16>
    %160 = vector.shape_cast %159 : vector<1x256x512xbf16> to vector<256x512xbf16>
    %cst_147 = arith.constant dense<0.000000e+00> : vector<13x512xf32>
    %161 = tpu.matmul %158, %160, %cst_147 {dimension_numbers = #tpu.dot_dimension_numbers<[1], [0], [0], [1], [0, 0, 1, 1], [], []>} : vector<13x256xbf16>, vector<256x512xbf16>, vector<13x512xf32> -> vector<13x512xf32>
    %162 = arith.addf %156, %161 : vector<13x512xf32>
    %c5_148 = arith.constant 5 : index
    %c0_149 = arith.constant 0 : index
    %163 = vector.load %arg21[%c5_148, %c0_149] : memref<25x256xf32, #tpu.memory_space<vmem>>, vector<13x256xf32>
    %164 = arith.truncf %163 : vector<13x256xf32> to vector<13x256xbf16>
    %c3_150 = arith.constant 3 : index
    %c0_151 = arith.constant 0 : index
    %c0_152 = arith.constant 0 : index
    %165 = vector.load %arg15[%c3_150, %c0_151, %c0_152] : memref<9x256x512xbf16, #tpu.memory_space<vmem>>, vector<1x256x512xbf16>
    %166 = vector.shape_cast %165 : vector<1x256x512xbf16> to vector<256x512xbf16>
    %cst_153 = arith.constant dense<0.000000e+00> : vector<13x512xf32>
    %167 = tpu.matmul %164, %166, %cst_153 {dimension_numbers = #tpu.dot_dimension_numbers<[1], [0], [0], [1], [0, 0, 1, 1], [], []>} : vector<13x256xbf16>, vector<256x512xbf16>, vector<13x512xf32> -> vector<13x512xf32>
    %168 = arith.addf %162, %167 : vector<13x512xf32>
    %c6_154 = arith.constant 6 : index
    %c0_155 = arith.constant 0 : index
    %169 = vector.load %arg21[%c6_154, %c0_155] : memref<25x256xf32, #tpu.memory_space<vmem>>, vector<13x256xf32>
    %170 = arith.truncf %169 : vector<13x256xf32> to vector<13x256xbf16>
    %c4_156 = arith.constant 4 : index
    %c0_157 = arith.constant 0 : index
    %c0_158 = arith.constant 0 : index
    %171 = vector.load %arg15[%c4_156, %c0_157, %c0_158] : memref<9x256x512xbf16, #tpu.memory_space<vmem>>, vector<1x256x512xbf16>
    %172 = vector.shape_cast %171 : vector<1x256x512xbf16> to vector<256x512xbf16>
    %cst_159 = arith.constant dense<0.000000e+00> : vector<13x512xf32>
    %173 = tpu.matmul %170, %172, %cst_159 {dimension_numbers = #tpu.dot_dimension_numbers<[1], [0], [0], [1], [0, 0, 1, 1], [], []>} : vector<13x256xbf16>, vector<256x512xbf16>, vector<13x512xf32> -> vector<13x512xf32>
    %174 = arith.addf %168, %173 : vector<13x512xf32>
    %c7_160 = arith.constant 7 : index
    %c0_161 = arith.constant 0 : index
    %175 = vector.load %arg21[%c7_160, %c0_161] : memref<25x256xf32, #tpu.memory_space<vmem>>, vector<13x256xf32>
    %176 = arith.truncf %175 : vector<13x256xf32> to vector<13x256xbf16>
    %c5_162 = arith.constant 5 : index
    %c0_163 = arith.constant 0 : index
    %c0_164 = arith.constant 0 : index
    %177 = vector.load %arg15[%c5_162, %c0_163, %c0_164] : memref<9x256x512xbf16, #tpu.memory_space<vmem>>, vector<1x256x512xbf16>
    %178 = vector.shape_cast %177 : vector<1x256x512xbf16> to vector<256x512xbf16>
    %cst_165 = arith.constant dense<0.000000e+00> : vector<13x512xf32>
    %179 = tpu.matmul %176, %178, %cst_165 {dimension_numbers = #tpu.dot_dimension_numbers<[1], [0], [0], [1], [0, 0, 1, 1], [], []>} : vector<13x256xbf16>, vector<256x512xbf16>, vector<13x512xf32> -> vector<13x512xf32>
    %180 = arith.addf %174, %179 : vector<13x512xf32>
    %c10_166 = arith.constant 10 : index
    %c0_167 = arith.constant 0 : index
    %181 = vector.load %arg21[%c10_166, %c0_167] : memref<25x256xf32, #tpu.memory_space<vmem>>, vector<13x256xf32>
    %182 = arith.truncf %181 : vector<13x256xf32> to vector<13x256xbf16>
    %c6_168 = arith.constant 6 : index
    %c0_169 = arith.constant 0 : index
    %c0_170 = arith.constant 0 : index
    %183 = vector.load %arg15[%c6_168, %c0_169, %c0_170] : memref<9x256x512xbf16, #tpu.memory_space<vmem>>, vector<1x256x512xbf16>
    %184 = vector.shape_cast %183 : vector<1x256x512xbf16> to vector<256x512xbf16>
    %cst_171 = arith.constant dense<0.000000e+00> : vector<13x512xf32>
    %185 = tpu.matmul %182, %184, %cst_171 {dimension_numbers = #tpu.dot_dimension_numbers<[1], [0], [0], [1], [0, 0, 1, 1], [], []>} : vector<13x256xbf16>, vector<256x512xbf16>, vector<13x512xf32> -> vector<13x512xf32>
    %186 = arith.addf %180, %185 : vector<13x512xf32>
    %c11_172 = arith.constant 11 : index
    %c0_173 = arith.constant 0 : index
    %187 = vector.load %arg21[%c11_172, %c0_173] : memref<25x256xf32, #tpu.memory_space<vmem>>, vector<13x256xf32>
    %188 = arith.truncf %187 : vector<13x256xf32> to vector<13x256xbf16>
    %c7_174 = arith.constant 7 : index
    %c0_175 = arith.constant 0 : index
    %c0_176 = arith.constant 0 : index
    %189 = vector.load %arg15[%c7_174, %c0_175, %c0_176] : memref<9x256x512xbf16, #tpu.memory_space<vmem>>, vector<1x256x512xbf16>
    %190 = vector.shape_cast %189 : vector<1x256x512xbf16> to vector<256x512xbf16>
    %cst_177 = arith.constant dense<0.000000e+00> : vector<13x512xf32>
    %191 = tpu.matmul %188, %190, %cst_177 {dimension_numbers = #tpu.dot_dimension_numbers<[1], [0], [0], [1], [0, 0, 1, 1], [], []>} : vector<13x256xbf16>, vector<256x512xbf16>, vector<13x512xf32> -> vector<13x512xf32>
    %192 = arith.addf %186, %191 : vector<13x512xf32>
    %c12_178 = arith.constant 12 : index
    %c0_179 = arith.constant 0 : index
    %193 = vector.load %arg21[%c12_178, %c0_179] : memref<25x256xf32, #tpu.memory_space<vmem>>, vector<13x256xf32>
    %194 = arith.truncf %193 : vector<13x256xf32> to vector<13x256xbf16>
    %c8_180 = arith.constant 8 : index
    %c0_181 = arith.constant 0 : index
    %c0_182 = arith.constant 0 : index
    %195 = vector.load %arg15[%c8_180, %c0_181, %c0_182] : memref<9x256x512xbf16, #tpu.memory_space<vmem>>, vector<1x256x512xbf16>
    %196 = vector.shape_cast %195 : vector<1x256x512xbf16> to vector<256x512xbf16>
    %cst_183 = arith.constant dense<0.000000e+00> : vector<13x512xf32>
    %197 = tpu.matmul %194, %196, %cst_183 {dimension_numbers = #tpu.dot_dimension_numbers<[1], [0], [0], [1], [0, 0, 1, 1], [], []>} : vector<13x256xbf16>, vector<256x512xbf16>, vector<13x512xf32> -> vector<13x512xf32>
    %198 = arith.addf %192, %197 : vector<13x512xf32>
    %c0_184 = arith.constant 0 : index
    %c0_185 = arith.constant 0 : index
    %199 = vector.load %arg16[%c0_184, %c0_185] : memref<1x512xf32, #tpu.memory_space<vmem>>, vector<1x512xf32>
    %200 = vector.broadcast %199 : vector<1x512xf32> to vector<13x512xf32>
    %201 = arith.addf %198, %200 : vector<13x512xf32>
    %cst_186 = arith.constant 0.000000e+00 : f32
    %202 = vector.broadcast %cst_186 : f32 to vector<13x512xf32>
    %203 = arith.maximumf %201, %202 : vector<13x512xf32>
    %204 = arith.truncf %203 : vector<13x512xf32> to vector<13x512xbf16>
    %c0_187 = arith.constant 0 : index
    %c0_188 = arith.constant 0 : index
    %205 = vector.load %arg17[%c0_187, %c0_188] : memref<16x13xbf16, #tpu.memory_space<vmem>>, vector<16x13xbf16>
    %cst_189 = arith.constant dense<0.000000e+00> : vector<16x512xf32>
    %206 = tpu.matmul %205, %204, %cst_189 {dimension_numbers = #tpu.dot_dimension_numbers<[1], [0], [0], [1], [0, 0, 1, 1], [], []>} : vector<16x13xbf16>, vector<13x512xbf16>, vector<16x512xf32> -> vector<16x512xf32>
    %c0_190 = arith.constant 0 : index
    %c0_191 = arith.constant 0 : index
    %207 = vector.load %arg18[%c0_190, %c0_191] : memref<16x512xf32, #tpu.memory_space<vmem>>, vector<16x512xf32>
    tpu.vector_store %arg18[%c0_190, %c0_191], %206 {strides = array<i32>} : memref<16x512xf32, #tpu.memory_space<vmem>>, vector<16x512xf32>,
    return
  }
  func.func @transform_0(%arg0: i32) -> (i32, i32) {
    %c0_i32 = arith.constant 0 : i32
    %c0_i32_0 = arith.constant 0 : i32
    return %arg0, %c0_i32 : i32, i32
  }
  func.func @transform_1(%arg0: i32) -> (i32, i32) {
    %c0_i32 = arith.constant 0 : i32
    %c0_i32_0 = arith.constant 0 : i32
    %c0_i32_1 = arith.constant 0 : i32
    return %c0_i32, %c0_i32_0 : i32, i32
  }
  func.func @transform_2(%arg0: i32) -> (i32, i32) {
    %c0_i32 = arith.constant 0 : i32
    %c0_i32_0 = arith.constant 0 : i32
    %c0_i32_1 = arith.constant 0 : i32
    return %c0_i32, %c0_i32_0 : i32, i32
  }
  func.func @transform_3(%arg0: i32) -> (i32, i32) {
    %c0_i32 = arith.constant 0 : i32
    %c0_i32_0 = arith.constant 0 : i32
    %c0_i32_1 = arith.constant 0 : i32
    return %c0_i32, %c0_i32_0 : i32, i32
  }
  func.func @transform_4(%arg0: i32) -> (i32, i32) {
    %c0_i32 = arith.constant 0 : i32
    %c0_i32_0 = arith.constant 0 : i32
    %c0_i32_1 = arith.constant 0 : i32
    return %c0_i32, %c0_i32_0 : i32, i32
  }
  func.func @transform_5(%arg0: i32) -> (i32, i32) {
    %c0_i32 = arith.constant 0 : i32
    %c0_i32_0 = arith.constant 0 : i32
    %c0_i32_1 = arith.constant 0 : i32
    return %c0_i32, %c0_i32_0 : i32, i32
  }
  func.func @transform_6(%arg0: i32) -> (i32, i32, i32) {
    %c0_i32 = arith.constant 0 : i32
    %c0_i32_0 = arith.constant 0 : i32
    %c0_i32_1 = arith.constant 0 : i32
    %c0_i32_2 = arith.constant 0 : i32
    return %c0_i32, %c0_i32_0, %c0_i32_1 : i32, i32, i32
  }
  func.func @transform_7(%arg0: i32) -> (i32, i32) {
    %c0_i32 = arith.constant 0 : i32
    %c0_i32_0 = arith.constant 0 : i32
    %c0_i32_1 = arith.constant 0 : i32
    return %c0_i32, %c0_i32_0 : i32, i32
  }
  func.func @transform_8(%arg0: i32) -> (i32, i32) {
    %c0_i32 = arith.constant 0 : i32
    %c0_i32_0 = arith.constant 0 : i32
    %c0_i32_1 = arith.constant 0 : i32
    return %c0_i32, %c0_i32_0 : i32, i32
  }
  func.func @transform_9(%arg0: i32) -> (i32, i32) {
    %c0_i32 = arith.constant 0 : i32
    %c0_i32_0 = arith.constant 0 : i32
    %c0_i32_1 = arith.constant 0 : i32
    return %c0_i32, %c0_i32_0 : i32, i32
  }
  func.func @transform_10(%arg0: i32) -> (i32, i32) {
    %c0_i32 = arith.constant 0 : i32
    %c0_i32_0 = arith.constant 0 : i32
    %c0_i32_1 = arith.constant 0 : i32
    return %c0_i32, %c0_i32_0 : i32, i32
  }
  func.func @transform_11(%arg0: i32) -> (i32, i32, i32) {
    %c0_i32 = arith.constant 0 : i32
    %c0_i32_0 = arith.constant 0 : i32
    %c0_i32_1 = arith.constant 0 : i32
    %c0_i32_2 = arith.constant 0 : i32
    return %c0_i32, %c0_i32_0, %c0_i32_1 : i32, i32, i32
  }
  func.func @transform_12(%arg0: i32) -> (i32, i32) {
    %c0_i32 = arith.constant 0 : i32
    %c0_i32_0 = arith.constant 0 : i32
    %c0_i32_1 = arith.constant 0 : i32
    return %c0_i32, %c0_i32_0 : i32, i32
  }
  func.func @transform_13(%arg0: i32) -> (i32, i32) {
    %c0_i32 = arith.constant 0 : i32
    %c0_i32_0 = arith.constant 0 : i32
    %c0_i32_1 = arith.constant 0 : i32
    return %c0_i32, %c0_i32_0 : i32, i32
  }
  func.func @transform_14(%arg0: i32) -> (i32, i32, i32) {
    %c0_i32 = arith.constant 0 : i32
    %c0_i32_0 = arith.constant 0 : i32
    %c0_i32_1 = arith.constant 0 : i32
    %c0_i32_2 = arith.constant 0 : i32
    return %c0_i32, %c0_i32_0, %c0_i32_1 : i32, i32, i32
  }
  func.func @transform_15(%arg0: i32) -> (i32, i32) {
    %c0_i32 = arith.constant 0 : i32
    %c0_i32_0 = arith.constant 0 : i32
    %c0_i32_1 = arith.constant 0 : i32
    return %c0_i32, %c0_i32_0 : i32, i32
  }
  func.func @transform_16(%arg0: i32) -> (i32, i32) {
    %c0_i32 = arith.constant 0 : i32
    %c0_i32_0 = arith.constant 0 : i32
    %c0_i32_1 = arith.constant 0 : i32
    return %c0_i32, %c0_i32_0 : i32, i32
  }
  func.func @transform_17(%arg0: i32) -> (i32, i32) {
    %c0_i32 = arith.constant 0 : i32
    %c0_i32_0 = arith.constant 0 : i32
    return %arg0, %c0_i32 : i32, i32
  }
}

</mosaic_0001>

<llo_original>
// kernel: conv4_512_s_forward.1
$region0: #{conv4_512_s_forward.1}
  #allocation0 [shape = 'u32[]', space=smem, size = 0x4, offset = 0x4, fixed_abs, tag = 'smem constant byte address 0x4 - core index']
  #allocation1 [shape = 'u32[144,128]{1,0:T(1,128)}', space=vmem, size = 0x12000, scoped, tag = 'internal scratch']
  #allocation2 [shape = 'f32[81,128]{1,0:T(8,128)}', space=vmem, size = 0xb000, scoped, tag = 'scratch operand']
  #allocation3 [shape = 'f32[25,128]{1,0:T(8,128)}', space=vmem, size = 0x4000, scoped, tag = 'scratch operand']
  #allocation4 [shape = 'f32[25,256]{1,0:T(8,128)}', space=vmem, size = 0x8000, scoped, tag = 'scratch operand']
  %s0 = inlined_call_operand.vmem [shape: bf16[400,128], index: 0, kind: input, shape index: {}]
  %s1 = inlined_call_operand.vmem [shape: bf16[128,128], index: 1, kind: input, shape index: {}]
  %s2 = inlined_call_operand.vmem [shape: f32[1,128], index: 2, kind: input, shape index: {}]
  %s3 = inlined_call_operand.vmem [shape: bf16[81,200], index: 3, kind: input, shape index: {}]
  %s4 = inlined_call_operand.vmem [shape: bf16[128,128], index: 4, kind: input, shape index: {}]
  %s5 = inlined_call_operand.vmem [shape: f32[81,128], index: 5, kind: input, shape index: {}]
  %s6 = inlined_call_operand.vmem [shape: bf16[9,128,128], index: 6, kind: input, shape index: {}]
  %s7 = inlined_call_operand.vmem [shape: f32[1,128], index: 7, kind: input, shape index: {}]
  %s8 = inlined_call_operand.vmem [shape: bf16[25,61], index: 8, kind: input, shape index: {}]
  %s9 = inlined_call_operand.vmem [shape: bf16[128,128], index: 9, kind: input, shape index: {}]
  %s10 = inlined_call_operand.vmem [shape: f32[25,128], index: 10, kind: input, shape index: {}]
  %s11 = inlined_call_operand.vmem [shape: bf16[9,128,256], index: 11, kind: input, shape index: {}]
  %s12 = inlined_call_operand.vmem [shape: f32[1,256], index: 12, kind: input, shape index: {}]
  %s13 = inlined_call_operand.vmem [shape: bf16[25,13], index: 13, kind: input, shape index: {}]
  %s14 = inlined_call_operand.vmem [shape: bf16[9,256,512], index: 14, kind: input, shape index: {}]
  %s15 = inlined_call_operand.vmem [shape: f32[1,512], index: 15, kind: input, shape index: {}]
  %s16 = inlined_call_operand.vmem [shape: bf16[16,13], index: 16, kind: input, shape index: {}]
  %s17 = inlined_call_operand.vmem [shape: f32[32,512], index: 17, kind: output, shape index: {}]
  %s18 = sld [smem:[#allocation0]]
  $region101: #{conv4_512_s_forward.1} parent=0
    _
  %s20 = ssub.s32 1, %s18
  %s21 = scalar_select 0, %s20, %s18
  loop: start=0, step=1, limit=4
  $region2: #{conv4_512_s_forward.1} parent=0 // loop_pre_header
    _
  $region3: #{conv4_512_s_forward.1} parent=0 // loop_header
    %s23 = sphi 0, %s27
    %p24 = scmp.ge.s32.totalorder %s23, 4
    %s33 = sphi 0, %s35
    %s36 = sphi 0, %s33
    %s37 = sphi 0, %s36
    %s53 = sphi 0, %s37
    %s57 = sphi 0, %s57
    %s59 = sphi 0, %s57
    %s60 = sphi 0, %s59
    %s74 = sphi 0, %s60
    %s78 = sphi 0, %s78
    %s80 = sphi 0, %s78
    %s81 = sphi 0, %s80
    %s95 = sphi 0, %s81
    %s99 = sphi 0, %s99
    %s101 = sphi 0, %s99
    %s102 = sphi 0, %s101
    %s116 = sphi 0, %s102
    %s120 = sphi 0, %s120
    %s122 = sphi 0, %s120
    %s123 = sphi 0, %s122
    %s137 = sphi 0, %s123
    %s141 = sphi 0, %s141
    %s143 = sphi 0, %s141
    %s144 = sphi 0, %s143
    %s158 = sphi 0, %s144
    %s162 = sphi 0, %s162
    %s164 = sphi 0, %s162
    %s165 = sphi 0, %s164
    %s179 = sphi 0, %s165
    %s183 = sphi 0, %s183
    %s185 = sphi 0, %s183
    %s186 = sphi 0, %s185
    %s200 = sphi 0, %s186
    %s204 = sphi 0, %s204
    %s206 = sphi 0, %s204
    %s207 = sphi 0, %s206
    %s221 = sphi 0, %s207
    %s225 = sphi 0, %s225
    %s227 = sphi 0, %s225
    %s228 = sphi 0, %s227
    %s242 = sphi 0, %s228
    %s246 = sphi 0, %s246
    %s248 = sphi 0, %s246
    %s249 = sphi 0, %s248
    %s263 = sphi 0, %s249
    %s267 = sphi 0, %s267
    %s269 = sphi 0, %s267
    %s270 = sphi 0, %s269
    %s284 = sphi 0, %s270
    %s288 = sphi 0, %s288
    %s290 = sphi 0, %s288
    %s291 = sphi 0, %s290
    %s305 = sphi 0, %s291
    %s309 = sphi 0, %s309
    %s311 = sphi 0, %s309
    %s312 = sphi 0, %s311
    %s326 = sphi 0, %s312
    %s330 = sphi 0, %s330
    %s332 = sphi 0, %s330
    %s333 = sphi 0, %s332
    %s347 = sphi 0, %s333
    %s351 = sphi 0, %s351
    %s353 = sphi 0, %s351
    %s354 = sphi 0, %s353
    %s368 = sphi 0, %s354
    %s372 = sphi 0, %s372
    %s374 = sphi 0, %s372
    %s375 = sphi 0, %s374
    %s389 = sphi 0, %s375
    %s395 = sphi 0, %s397
    %s398 = sphi 0, %s395
    %s399 = sphi 0, %s398
    %s415 = sphi 0, %s399
  $region4: #{conv4_512_s_forward.1} parent=0 // loop_header_branch
    %26 = sbr.rel (%p24) target = $region8
  $region5: #{conv4_512_s_forward.1} parent=0 // loop_body
    %s28 = ssub.s32 %s23, 1
    %s29 = ssub.s32 %s23, 2
    %s30 = sadd.s32 %s23, 1
    %s31 = ssub.s32 %s23, %s30
    %p32 = scmp.eq.s32.totalorder %s31, 0
    %s34 = sadd.s32 %s33, 1
    %s35 = scalar_select %p32, %s33, %s34
    %p38 = pneg %p32
    %p39 = scmp.eq.s32.totalorder %s23, 1
    %p40 = por %p38, %p39
    %p41 = scmp.ne.s32.totalorder %s33, %s36
    %p42 = scmp.eq.s32.totalorder %s23, 0
    %p43 = por %p41, %p42
    %p44 = scmp.ne.s32.totalorder %s33, %s36
    %p45 = scmp.eq.s32.totalorder %s28, 1
    %p46 = por %p44, %p45
    %p47 = scmp.ne.s32.totalorder %s36, %s37
    %p48 = scmp.eq.s32.totalorder %s28, 0
    %p49 = por %p47, %p48
    %p50 = scmp.ne.s32.totalorder %s36, %s37
    %p51 = scmp.eq.s32.totalorder %s29, 1
    %p52 = por %p50, %p51
    %p54 = scmp.ne.s32.totalorder %s37, %s53
    %p55 = scmp.eq.s32.totalorder %s29, 0
    %p56 = por %p54, %p55
    %s58 = sadd.s32 %s57, 1
    %p61 = scmp.eq.s32.totalorder %s23, 1
    %p62 = scmp.ne.s32.totalorder %s57, %s59
    %p63 = scmp.eq.s32.totalorder %s23, 0
    %p64 = por %p62, %p63
    %p65 = scmp.ne.s32.totalorder %s57, %s59
    %p66 = scmp.eq.s32.totalorder %s28, 1
    %p67 = por %p65, %p66
    %p68 = scmp.ne.s32.totalorder %s59, %s60
    %p69 = scmp.eq.s32.totalorder %s28, 0
    %p70 = por %p68, %p69
    %p71 = scmp.ne.s32.totalorder %s59, %s60
    %p72 = scmp.eq.s32.totalorder %s29, 1
    %p73 = por %p71, %p72
    %p75 = scmp.ne.s32.totalorder %s60, %s74
    %p76 = scmp.eq.s32.totalorder %s29, 0
    %p77 = por %p75, %p76
    %s79 = sadd.s32 %s78, 1
    %p82 = scmp.eq.s32.totalorder %s23, 1
    %p83 = scmp.ne.s32.totalorder %s78, %s80
    %p84 = scmp.eq.s32.totalorder %s23, 0
    %p85 = por %p83, %p84
    %p86 = scmp.ne.s32.totalorder %s78, %s80
    %p87 = scmp.eq.s32.totalorder %s28, 1
    %p88 = por %p86, %p87
    %p89 = scmp.ne.s32.totalorder %s80, %s81
    %p90 = scmp.eq.s32.totalorder %s28, 0
    %p91 = por %p89, %p90
    %p92 = scmp.ne.s32.totalorder %s80, %s81
    %p93 = scmp.eq.s32.totalorder %s29, 1
    %p94 = por %p92, %p93
    %p96 = scmp.ne.s32.totalorder %s81, %s95
    %p97 = scmp.eq.s32.totalorder %s29, 0
    %p98 = por %p96, %p97
    %s100 = sadd.s32 %s99, 1
    %p103 = scmp.eq.s32.totalorder %s23, 1
    %p104 = scmp.ne.s32.totalorder %s99, %s101
    %p105 = scmp.eq.s32.totalorder %s23, 0
    %p106 = por %p104, %p105
    %p107 = scmp.ne.s32.totalorder %s99, %s101
    %p108 = scmp.eq.s32.totalorder %s28, 1
    %p109 = por %p107, %p108
    %p110 = scmp.ne.s32.totalorder %s101, %s102
    %p111 = scmp.eq.s32.totalorder %s28, 0
    %p112 = por %p110, %p111
    %p113 = scmp.ne.s32.totalorder %s101, %s102
    %p114 = scmp.eq.s32.totalorder %s29, 1
    %p115 = por %p113, %p114
    %p117 = scmp.ne.s32.totalorder %s102, %s116
    %p118 = scmp.eq.s32.totalorder %s29, 0
    %p119 = por %p117, %p118
    %s121 = sadd.s32 %s120, 1
    %p124 = scmp.eq.s32.totalorder %s23, 1
    %p125 = scmp.ne.s32.totalorder %s120, %s122
    %p126 = scmp.eq.s32.totalorder %s23, 0
    %p127 = por %p125, %p126
    %p128 = scmp.ne.s32.totalorder %s120, %s122
    %p129 = scmp.eq.s32.totalorder %s28, 1
    %p130 = por %p128, %p129
    %p131 = scmp.ne.s32.totalorder %s122, %s123
    %p132 = scmp.eq.s32.totalorder %s28, 0
    %p133 = por %p131, %p132
    %p134 = scmp.ne.s32.totalorder %s122, %s123
    %p135 = scmp.eq.s32.totalorder %s29, 1
    %p136 = por %p134, %p135
    %p138 = scmp.ne.s32.totalorder %s123, %s137
    %p139 = scmp.eq.s32.totalorder %s29, 0
    %p140 = por %p138, %p139
    %s142 = sadd.s32 %s141, 1
    %p145 = scmp.eq.s32.totalorder %s23, 1
    %p146 = scmp.ne.s32.totalorder %s141, %s143
    %p147 = scmp.eq.s32.totalorder %s23, 0
    %p148 = por %p146, %p147
    %p149 = scmp.ne.s32.totalorder %s141, %s143
    %p150 = scmp.eq.s32.totalorder %s28, 1
    %p151 = por %p149, %p150
    %p152 = scmp.ne.s32.totalorder %s143, %s144
    %p153 = scmp.eq.s32.totalorder %s28, 0
    %p154 = por %p152, %p153
    %p155 = scmp.ne.s32.totalorder %s143, %s144
    %p156 = scmp.eq.s32.totalorder %s29, 1
    %p157 = por %p155, %p156
    %p159 = scmp.ne.s32.totalorder %s144, %s158
    %p160 = scmp.eq.s32.totalorder %s29, 0
    %p161 = por %p159, %p160
    %s163 = sadd.s32 %s162, 1
    %p166 = scmp.eq.s32.totalorder %s23, 1
    %p167 = scmp.ne.s32.totalorder %s162, %s164
    %p168 = scmp.eq.s32.totalorder %s23, 0
    %p169 = por %p167, %p168
    %p170 = scmp.ne.s32.totalorder %s162, %s164
    %p171 = scmp.eq.s32.totalorder %s28, 1
    %p172 = por %p170, %p171
    %p173 = scmp.ne.s32.totalorder %s164, %s165
    %p174 = scmp.eq.s32.totalorder %s28, 0
    %p175 = por %p173, %p174
    %p176 = scmp.ne.s32.totalorder %s164, %s165
    %p177 = scmp.eq.s32.totalorder %s29, 1
    %p178 = por %p176, %p177
    %p180 = scmp.ne.s32.totalorder %s165, %s179
    %p181 = scmp.eq.s32.totalorder %s29, 0
    %p182 = por %p180, %p181
    %s184 = sadd.s32 %s183, 1
    %p187 = scmp.eq.s32.totalorder %s23, 1
    %p188 = scmp.ne.s32.totalorder %s183, %s185
    %p189 = scmp.eq.s32.totalorder %s23, 0
    %p190 = por %p188, %p189
    %p191 = scmp.ne.s32.totalorder %s183, %s185
    %p192 = scmp.eq.s32.totalorder %s28, 1
    %p193 = por %p191, %p192
    %p194 = scmp.ne.s32.totalorder %s185, %s186
    %p195 = scmp.eq.s32.totalorder %s28, 0
    %p196 = por %p194, %p195
    %p197 = scmp.ne.s32.totalorder %s185, %s186
    %p198 = scmp.eq.s32.totalorder %s29, 1
    %p199 = por %p197, %p198
    %p201 = scmp.ne.s32.totalorder %s186, %s200
    %p202 = scmp.eq.s32.totalorder %s29, 0
    %p203 = por %p201, %p202
    %s205 = sadd.s32 %s204, 1
    %p208 = scmp.eq.s32.totalorder %s23, 1
    %p209 = scmp.ne.s32.totalorder %s204, %s206
    %p210 = scmp.eq.s32.totalorder %s23, 0
    %p211 = por %p209, %p210
    %p212 = scmp.ne.s32.totalorder %s204, %s206
    %p213 = scmp.eq.s32.totalorder %s28, 1
    %p214 = por %p212, %p213
    %p215 = scmp.ne.s32.totalorder %s206, %s207
    %p216 = scmp.eq.s32.totalorder %s28, 0
    %p217 = por %p215, %p216
    %p218 = scmp.ne.s32.totalorder %s206, %s207
    %p219 = scmp.eq.s32.totalorder %s29, 1
    %p220 = por %p218, %p219
    %p222 = scmp.ne.s32.totalorder %s207, %s221
    %p223 = scmp.eq.s32.totalorder %s29, 0
    %p224 = por %p222, %p223
    %s226 = sadd.s32 %s225, 1
    %p229 = scmp.eq.s32.totalorder %s23, 1
    %p230 = scmp.ne.s32.totalorder %s225, %s227
    %p231 = scmp.eq.s32.totalorder %s23, 0
    %p232 = por %p230, %p231
    %p233 = scmp.ne.s32.totalorder %s225, %s227
    %p234 = scmp.eq.s32.totalorder %s28, 1
    %p235 = por %p233, %p234
    %p236 = scmp.ne.s32.totalorder %s227, %s228
    %p237 = scmp.eq.s32.totalorder %s28, 0
    %p238 = por %p236, %p237
    %p239 = scmp.ne.s32.totalorder %s227, %s228
    %p240 = scmp.eq.s32.totalorder %s29, 1
    %p241 = por %p239, %p240
    %p243 = scmp.ne.s32.totalorder %s228, %s242
    %p244 = scmp.eq.s32.totalorder %s29, 0
    %p245 = por %p243, %p244
    %s247 = sadd.s32 %s246, 1
    %p250 = scmp.eq.s32.totalorder %s23, 1
    %p251 = scmp.ne.s32.totalorder %s246, %s248
    %p252 = scmp.eq.s32.totalorder %s23, 0
    %p253 = por %p251, %p252
    %p254 = scmp.ne.s32.totalorder %s246, %s248
    %p255 = scmp.eq.s32.totalorder %s28, 1
    %p256 = por %p254, %p255
    %p257 = scmp.ne.s32.totalorder %s248, %s249
    %p258 = scmp.eq.s32.totalorder %s28, 0
    %p259 = por %p257, %p258
    %p260 = scmp.ne.s32.totalorder %s248, %s249
    %p261 = scmp.eq.s32.totalorder %s29, 1
    %p262 = por %p260, %p261
    %p264 = scmp.ne.s32.totalorder %s249, %s263
    %p265 = scmp.eq.s32.totalorder %s29, 0
    %p266 = por %p264, %p265
    %s268 = sadd.s32 %s267, 1
    %p271 = scmp.eq.s32.totalorder %s23, 1
    %p272 = scmp.ne.s32.totalorder %s267, %s269
    %p273 = scmp.eq.s32.totalorder %s23, 0
    %p274 = por %p272, %p273
    %p275 = scmp.ne.s32.totalorder %s267, %s269
    %p276 = scmp.eq.s32.totalorder %s28, 1
    %p277 = por %p275, %p276
    %p278 = scmp.ne.s32.totalorder %s269, %s270
    %p279 = scmp.eq.s32.totalorder %s28, 0
    %p280 = por %p278, %p279
    %p281 = scmp.ne.s32.totalorder %s269, %s270
    %p282 = scmp.eq.s32.totalorder %s29, 1
    %p283 = por %p281, %p282
    %p285 = scmp.ne.s32.totalorder %s270, %s284
    %p286 = scmp.eq.s32.totalorder %s29, 0
    %p287 = por %p285, %p286
    %s289 = sadd.s32 %s288, 1
    %p292 = scmp.eq.s32.totalorder %s23, 1
    %p293 = scmp.ne.s32.totalorder %s288, %s290
    %p294 = scmp.eq.s32.totalorder %s23, 0
    %p295 = por %p293, %p294
    %p296 = scmp.ne.s32.totalorder %s288, %s290
    %p297 = scmp.eq.s32.totalorder %s28, 1
    %p298 = por %p296, %p297
    %p299 = scmp.ne.s32.totalorder %s290, %s291
    %p300 = scmp.eq.s32.totalorder %s28, 0
    %p301 = por %p299, %p300
    %p302 = scmp.ne.s32.totalorder %s290, %s291
    %p303 = scmp.eq.s32.totalorder %s29, 1
    %p304 = por %p302, %p303
    %p306 = scmp.ne.s32.totalorder %s291, %s305
    %p307 = scmp.eq.s32.totalorder %s29, 0
    %p308 = por %p306, %p307
    %s310 = sadd.s32 %s309, 1
    %p313 = scmp.eq.s32.totalorder %s23, 1
    %p314 = scmp.ne.s32.totalorder %s309, %s311
    %p315 = scmp.eq.s32.totalorder %s23, 0
    %p316 = por %p314, %p315
    %p317 = scmp.ne.s32.totalorder %s309, %s311
    %p318 = scmp.eq.s32.totalorder %s28, 1
    %p319 = por %p317, %p318
    %p320 = scmp.ne.s32.totalorder %s311, %s312
    %p321 = scmp.eq.s32.totalorder %s28, 0
    %p322 = por %p320, %p321
    %p323 = scmp.ne.s32.totalorder %s311, %s312
    %p324 = scmp.eq.s32.totalorder %s29, 1
    %p325 = por %p323, %p324
    %p327 = scmp.ne.s32.totalorder %s312, %s326
    %p328 = scmp.eq.s32.totalorder %s29, 0
    %p329 = por %p327, %p328
    %s331 = sadd.s32 %s330, 1
    %p334 = scmp.eq.s32.totalorder %s23, 1
    %p335 = scmp.ne.s32.totalorder %s330, %s332
    %p336 = scmp.eq.s32.totalorder %s23, 0
    %p337 = por %p335, %p336
    %p338 = scmp.ne.s32.totalorder %s330, %s332
    %p339 = scmp.eq.s32.totalorder %s28, 1
    %p340 = por %p338, %p339
    %p341 = scmp.ne.s32.totalorder %s332, %s333
    %p342 = scmp.eq.s32.totalorder %s28, 0
    %p343 = por %p341, %p342
    %p344 = scmp.ne.s32.totalorder %s332, %s333
    %p345 = scmp.eq.s32.totalorder %s29, 1
    %p346 = por %p344, %p345
    %p348 = scmp.ne.s32.totalorder %s333, %s347
    %p349 = scmp.eq.s32.totalorder %s29, 0
    %p350 = por %p348, %p349
    %s352 = sadd.s32 %s351, 1
    %p355 = scmp.eq.s32.totalorder %s23, 1
    %p356 = scmp.ne.s32.totalorder %s351, %s353
    %p357 = scmp.eq.s32.totalorder %s23, 0
    %p358 = por %p356, %p357
    %p359 = scmp.ne.s32.totalorder %s351, %s353
    %p360 = scmp.eq.s32.totalorder %s28, 1
    %p361 = por %p359, %p360
    %p362 = scmp.ne.s32.totalorder %s353, %s354
    %p363 = scmp.eq.s32.totalorder %s28, 0
    %p364 = por %p362, %p363
    %p365 = scmp.ne.s32.totalorder %s353, %s354
    %p366 = scmp.eq.s32.totalorder %s29, 1
    %p367 = por %p365, %p366
    %p369 = scmp.ne.s32.totalorder %s354, %s368
    %p370 = scmp.eq.s32.totalorder %s29, 0
    %p371 = por %p369, %p370
    %s373 = sadd.s32 %s372, 1
    %p376 = scmp.eq.s32.totalorder %s23, 1
    %p377 = scmp.ne.s32.totalorder %s372, %s374
    %p378 = scmp.eq.s32.totalorder %s23, 0
    %p379 = por %p377, %p378
    %p380 = scmp.ne.s32.totalorder %s372, %s374
    %p381 = scmp.eq.s32.totalorder %s28, 1
    %p382 = por %p380, %p381
    %p383 = scmp.ne.s32.totalorder %s374, %s375
    %p384 = scmp.eq.s32.totalorder %s28, 0
    %p385 = por %p383, %p384
    %p386 = scmp.ne.s32.totalorder %s374, %s375
    %p387 = scmp.eq.s32.totalorder %s29, 1
    %p388 = por %p386, %p387
    %p390 = scmp.ne.s32.totalorder %s375, %s389
    %p391 = scmp.eq.s32.totalorder %s29, 0
    %p392 = por %p390, %p391
    %s393 = ssub.s32 %s23, %s30
    %p394 = scmp.eq.s32.totalorder %s393, 0
    %s396 = sadd.s32 %s395, 1
    %s397 = scalar_select %p394, %s395, %s396
    %p400 = pneg %p394
    %p401 = scmp.eq.s32.totalorder %s23, 1
    %p402 = por %p400, %p401
    %p403 = scmp.ne.s32.totalorder %s395, %s398
    %p404 = scmp.eq.s32.totalorder %s23, 0
    %p405 = por %p403, %p404
    %p406 = scmp.ne.s32.totalorder %s395, %s398
    %p407 = scmp.eq.s32.totalorder %s28, 1
    %p408 = por %p406, %p407
    %p409 = scmp.ne.s32.totalorder %s398, %s399
    %p410 = scmp.eq.s32.totalorder %s28, 0
    %p411 = por %p409, %p410
    %p412 = scmp.ne.s32.totalorder %s398, %s399
    %p413 = scmp.eq.s32.totalorder %s29, 1
    %p414 = por %p412, %p413
    %p416 = scmp.ne.s32.totalorder %s399, %s415
    %p417 = scmp.eq.s32.totalorder %s29, 0
    %p418 = por %p416, %p417
    %p419 = scmp.le.s32.totalorder 1, %s23
    %p420 = scmp.lt.s32.totalorder %s23, 3
    %p421 = pnand %p419, %p420
    %p422 = pneg %p421
    // Predicated region
    $region9: #{conv4_512_s_forward.1} parent=5 // pred_check
      _
    $region10: #{conv4_512_s_forward.1} parent=5 // pred_check_branch
      %424 = sbr.rel (%p421) target = $region12
    $region11: #{conv4_512_s_forward.1} parent=5 // pred_region
      %s425 = ssub.s32 %s23, 1
      // Predicated region
      $region13: #{conv4_512_s_forward.1} parent=11 // pred_check
        %p426 = pneg %p70
      $region14: #{conv4_512_s_forward.1} parent=11 // pred_check_branch
        %428 = sbr.rel (%p426) target = $region16
      $region15: #{conv4_512_s_forward.1} parent=11 // pred_region
        _
      $region16: #{conv4_512_s_forward.1} parent=11 // pred_fallthru
        _
      // Predicated region
      $region17: #{conv4_512_s_forward.1} parent=11 // pred_check
        %p429 = pneg %p91
      $region18: #{conv4_512_s_forward.1} parent=11 // pred_check_branch
        %431 = sbr.rel (%p429) target = $region20
      $region19: #{conv4_512_s_forward.1} parent=11 // pred_region
        _
      $region20: #{conv4_512_s_forward.1} parent=11 // pred_fallthru
        _
      // Predicated region
      $region21: #{conv4_512_s_forward.1} parent=11 // pred_check
        %p432 = pneg %p112
      $region22: #{conv4_512_s_forward.1} parent=11 // pred_check_branch
        %434 = sbr.rel (%p432) target = $region24
      $region23: #{conv4_512_s_forward.1} parent=11 // pred_region
        _
      $region24: #{conv4_512_s_forward.1} parent=11 // pred_fallthru
        _
      // Predicated region
      $region25: #{conv4_512_s_forward.1} parent=11 // pred_check
        %p435 = pneg %p133
      $region26: #{conv4_512_s_forward.1} parent=11 // pred_check_branch
        %437 = sbr.rel (%p435) target = $region28
      $region27: #{conv4_512_s_forward.1} parent=11 // pred_region
        _
      $region28: #{conv4_512_s_forward.1} parent=11 // pred_fallthru
        _
      // Predicated region
      $region29: #{conv4_512_s_forward.1} parent=11 // pred_check
        %p438 = pneg %p154
      $region30: #{conv4_512_s_forward.1} parent=11 // pred_check_branch
        %440 = sbr.rel (%p438) target = $region32
      $region31: #{conv4_512_s_forward.1} parent=11 // pred_region
        _
      $region32: #{conv4_512_s_forward.1} parent=11 // pred_fallthru
        _
      // Predicated region
      $region33: #{conv4_512_s_forward.1} parent=11 // pred_check
        %p441 = pneg %p175
      $region34: #{conv4_512_s_forward.1} parent=11 // pred_check_branch
        %443 = sbr.rel (%p441) target = $region36
      $region35: #{conv4_512_s_forward.1} parent=11 // pred_region
        _
      $region36: #{conv4_512_s_forward.1} parent=11 // pred_fallthru
        _
      // Predicated region
      $region37: #{conv4_512_s_forward.1} parent=11 // pred_check
        %p444 = pneg %p196
      $region38: #{conv4_512_s_forward.1} parent=11 // pred_check_branch
        %446 = sbr.rel (%p444) target = $region40
      $region39: #{conv4_512_s_forward.1} parent=11 // pred_region
        _
      $region40: #{conv4_512_s_forward.1} parent=11 // pred_fallthru
        _
      // Predicated region
      $region41: #{conv4_512_s_forward.1} parent=11 // pred_check
        %p447 = pneg %p217
      $region42: #{conv4_512_s_forward.1} parent=11 // pred_check_branch
        %449 = sbr.rel (%p447) target = $region44
      $region43: #{conv4_512_s_forward.1} parent=11 // pred_region
        _
      $region44: #{conv4_512_s_forward.1} parent=11 // pred_fallthru
        _
      // Predicated region
      $region45: #{conv4_512_s_forward.1} parent=11 // pred_check
        %p450 = pneg %p238
      $region46: #{conv4_512_s_forward.1} parent=11 // pred_check_branch
        %452 = sbr.rel (%p450) target = $region48
      $region47: #{conv4_512_s_forward.1} parent=11 // pred_region
        _
      $region48: #{conv4_512_s_forward.1} parent=11 // pred_fallthru
        _
      // Predicated region
      $region49: #{conv4_512_s_forward.1} parent=11 // pred_check
        %p453 = pneg %p259
      $region50: #{conv4_512_s_forward.1} parent=11 // pred_check_branch
        %455 = sbr.rel (%p453) target = $region52
      $region51: #{conv4_512_s_forward.1} parent=11 // pred_region
        _
      $region52: #{conv4_512_s_forward.1} parent=11 // pred_fallthru
        _
      // Predicated region
      $region53: #{conv4_512_s_forward.1} parent=11 // pred_check
        %p456 = pneg %p280
      $region54: #{conv4_512_s_forward.1} parent=11 // pred_check_branch
        %458 = sbr.rel (%p456) target = $region56
      $region55: #{conv4_512_s_forward.1} parent=11 // pred_region
        _
      $region56: #{conv4_512_s_forward.1} parent=11 // pred_fallthru
        _
      // Predicated region
      $region57: #{conv4_512_s_forward.1} parent=11 // pred_check
        %p459 = pneg %p301
      $region58: #{conv4_512_s_forward.1} parent=11 // pred_check_branch
        %461 = sbr.rel (%p459) target = $region60
      $region59: #{conv4_512_s_forward.1} parent=11 // pred_region
        _
      $region60: #{conv4_512_s_forward.1} parent=11 // pred_fallthru
        _
      // Predicated region
      $region61: #{conv4_512_s_forward.1} parent=11 // pred_check
        %p462 = pneg %p322
      $region62: #{conv4_512_s_forward.1} parent=11 // pred_check_branch
        %464 = sbr.rel (%p462) target = $region64
      $region63: #{conv4_512_s_forward.1} parent=11 // pred_region
        _
      $region64: #{conv4_512_s_forward.1} parent=11 // pred_fallthru
        _
      // Predicated region
      $region65: #{conv4_512_s_forward.1} parent=11 // pred_check
        %p465 = pneg %p343
      $region66: #{conv4_512_s_forward.1} parent=11 // pred_check_branch
        %467 = sbr.rel (%p465) target = $region68
      $region67: #{conv4_512_s_forward.1} parent=11 // pred_region
        _
      $region68: #{conv4_512_s_forward.1} parent=11 // pred_fallthru
        _
      // Predicated region
      $region69: #{conv4_512_s_forward.1} parent=11 // pred_check
        %p468 = pneg %p364
      $region70: #{conv4_512_s_forward.1} parent=11 // pred_check_branch
        %470 = sbr.rel (%p468) target = $region72
      $region71: #{conv4_512_s_forward.1} parent=11 // pred_region
        _
      $region72: #{conv4_512_s_forward.1} parent=11 // pred_fallthru
        _
      // Predicated region
      $region73: #{conv4_512_s_forward.1} parent=11 // pred_check
        %p471 = pneg %p385
      $region74: #{conv4_512_s_forward.1} parent=11 // pred_check_branch
        %473 = sbr.rel (%p471) target = $region76
      $region75: #{conv4_512_s_forward.1} parent=11 // pred_region
        _
      $region76: #{conv4_512_s_forward.1} parent=11 // pred_fallthru
        _
    $region12: #{conv4_512_s_forward.1} parent=5 // pred_fallthru
      _
    %p474 = scmp.lt.s32.totalorder %s23, 2
    // Predicated region
    $region77: #{conv4_512_s_forward.1} parent=5 // pred_check
      %p475 = pneg %p474
    $region78: #{conv4_512_s_forward.1} parent=5 // pred_check_branch
      %477 = sbr.rel (%p475) target = $region80
    $region79: #{conv4_512_s_forward.1} parent=5 // pred_region
      // Predicated region
      $region81: #{conv4_512_s_forward.1} parent=79 // pred_check
        %p478 = pneg %p43
      $region82: #{conv4_512_s_forward.1} parent=79 // pred_check_branch
        %480 = sbr.rel (%p478) target = $region84
      $region83: #{conv4_512_s_forward.1} parent=79 // pred_region
        %s481 = smul.u32 25, %s23
        %p482 = scmp.lt.s32.totalorder %s481, 49
        %s483 = scalar_select %p482, %s481, 49
        %s484 = smul.addr %s483, 4
        %s485 = scalar_lea.vmem %s0, %s484
        %s486 = smul.u32 25, %s23
      $region84: #{conv4_512_s_forward.1} parent=79 // pred_fallthru
        _
    $region80: #{conv4_512_s_forward.1} parent=5 // pred_fallthru
      _
    %p487 = scmp.le.s32.totalorder 1, %s23
    %p488 = scmp.lt.s32.totalorder %s23, 3
    %p489 = pnand %p487, %p488
    %p490 = pneg %p489
    // Predicated region
    $region85: #{conv4_512_s_forward.1} parent=5 // pred_check
      _
    $region86: #{conv4_512_s_forward.1} parent=5 // pred_check_branch
      %492 = sbr.rel (%p489) target = $region88
    $region87: #{conv4_512_s_forward.1} parent=5 // pred_region
      %s493 = ssub.s32 %s23, 1
      %s494 = smul.u32 25, %s28
      %p495 = scmp.lt.s32.totalorder %s494, 49
      %s496 = scalar_select %p495, %s494, 49
      %s497 = smul.addr %s496, 4
      %s498 = scalar_lea.vmem %s0, %s497
      %p499 = pneg %p49
      %p500 = pneg %p46
      %p501 = pneg %p70
      %p502 = pneg %p67
      %p503 = pneg %p91
      %p504 = pneg %p88
      %p505 = pneg %p112
      %p506 = pneg %p109
      %p507 = pneg %p133
      %p508 = pneg %p130
      %p509 = pneg %p154
      %p510 = pneg %p151
      %p511 = pneg %p175
      %p512 = pneg %p172
      %p513 = pneg %p196
      %p514 = pneg %p193
      %p515 = pneg %p217
      %p516 = pneg %p214
      %p517 = pneg %p238
      %p518 = pneg %p235
      %p519 = pneg %p259
      %p520 = pneg %p256
      %p521 = pneg %p280
      %p522 = pneg %p277
      %p523 = pneg %p301
      %p524 = pneg %p298
      %p525 = pneg %p322
      %p526 = pneg %p319
      %p527 = pneg %p343
      %p528 = pneg %p340
      %p529 = pneg %p364
      %p530 = pneg %p361
      %p531 = pneg %p385
      %p532 = pneg %p382
      %p533 = pneg %p411
      %p534 = pneg %p408
      %s535 = smul.u32 2, %s28
      %p536 = scmp.lt.s32.totalorder %s535, 3
      %s537 = scalar_select %p536, %s535, 3
      %s538 = smul.addr %s537, 4
      %s539 = smul.addr %s538, 8
      %s540 = scalar_lea.vmem %s17, %s539
      %s541 = smul.u32 25, %s28
      %p542 = scmp.lt.s32.totalorder %s541, 49
      %s543 = scalar_select %p542, %s541, 49
      %s544 = smul.addr %s543, 4
      %s545 = scalar_lea.vmem %s0, %s544
      %s546 = smul.u32 25, %s28
      %s547 = smul.u32 2, %s28
      %p548 = scmp.lt.s32.totalorder %s547, 3
      %s549 = scalar_select %p548, %s547, 3
      %s550 = smul.addr %s549, 4
      %s551 = smul.addr %s550, 8
      %s552 = scalar_lea.vmem %s17, %s551
      %s553 = smul.u32 2, %s28
      %v555 = vld [vmem:[%s545] sm:$0xf]
      %v556 = vld [vmem:[%s545 + $0x4] sm:$0xf]
      %v557 = vld [vmem:[%s545 + $0x8] sm:$0xf]
      %v558 = vld [vmem:[%s545 + $0xc] sm:$0xf]
      %v559 = vld [vmem:[%s545 + $0x10] sm:$0xf]
      %v560 = vld [vmem:[%s545 + $0x14] sm:$0xf]
      %v561 = vld [vmem:[%s545 + $0x18] sm:$0xf]
      %v562 = vld [vmem:[%s545 + $0x1c] sm:$0xf]
      %v563 = vld [vmem:[%s545 + $0x20] sm:$0xf]
      %v564 = vld [vmem:[%s545 + $0x24] sm:$0xf]
      %v565 = vld [vmem:[%s545 + $0x28] sm:$0xf]
      %v566 = vld [vmem:[%s545 + $0x2c] sm:$0xf]
      %v567 = vld [vmem:[%s545 + $0x30] sm:$0xf]
      %v568 = vld [vmem:[%s545 + $0x34] sm:$0xf]
      %v569 = vld [vmem:[%s545 + $0x38] sm:$0xf]
      %v570 = vld [vmem:[%s545 + $0x3c] sm:$0xf]
      %v571 = vld [vmem:[%s545 + $0x40] sm:$0xf]
      %v572 = vld [vmem:[%s545 + $0x44] sm:$0xf]
      %v573 = vld [vmem:[%s545 + $0x48] sm:$0xf]
      %v574 = vld [vmem:[%s545 + $0x4c] sm:$0xf]
      %v575 = vld [vmem:[%s545 + $0x50] sm:$0xf]
      %v576 = vld [vmem:[%s545 + $0x54] sm:$0xf]
      %v577 = vld [vmem:[%s545 + $0x58] sm:$0xf]
      %v578 = vld [vmem:[%s545 + $0x5c] sm:$0xf]
      %v579 = vld [vmem:[%s545 + $0x60] sm:$0xf]
      %v580 = vld [vmem:[%s1] sm:$0xf]
      %v581 = vld [vmem:[%s1 + $0x4] sm:$0xf]
      %v582 = vld [vmem:[%s1 + $0x8] sm:$0xf]
      %v583 = vld [vmem:[%s1 + $0xc] sm:$0xf]
      %v584 = vld [vmem:[%s1 + $0x10] sm:$0xf]
      %v585 = vld [vmem:[%s1 + $0x14] sm:$0xf]
      %v586 = vld [vmem:[%s1 + $0x18] sm:$0xf]
      %v587 = vld [vmem:[%s1 + $0x1c] sm:$0xf]
      %v588 = vld [vmem:[%s1 + $0x20] sm:$0xf]
      %v589 = vld [vmem:[%s1 + $0x24] sm:$0xf]
      %v590 = vld [vmem:[%s1 + $0x28] sm:$0xf]
      %v591 = vld [vmem:[%s1 + $0x2c] sm:$0xf]
      %v592 = vld [vmem:[%s1 + $0x30] sm:$0xf]
      %v593 = vld [vmem:[%s1 + $0x34] sm:$0xf]
      %v594 = vld [vmem:[%s1 + $0x38] sm:$0xf]
      %v595 = vld [vmem:[%s1 + $0x3c] sm:$0xf]
      %v596 = vld [vmem:[%s2] sm:$0x1]
      %v598 = vlaneseq
      %v599 = vshrl.u32 %v598, 7
      %v600 = vsub.s32 0, %v599
      %v601 = vrot.slane %v596, %v600
      %v628 = vunpack.c.l.b16 %v555
      %v629 = vunpack.c.l.b16 %v556
      %v630 = vunpack.c.l.b16 %v557
      %v631 = vunpack.c.l.b16 %v558
      %v632 = vunpack.c.l.b16 %v559
      %v633 = vunpack.c.l.b16 %v560
      %v634 = vunpack.c.l.b16 %v561
      %v635 = vunpack.c.l.b16 %v562
      %v636 = vunpack.c.l.b16 %v563
      %v637 = vunpack.c.l.b16 %v564
      %v638 = vunpack.c.l.b16 %v565
      %v639 = vunpack.c.l.b16 %v566
      %v640 = vunpack.c.l.b16 %v567
      %v641 = vunpack.c.l.b16 %v568
      %v642 = vunpack.c.l.b16 %v569
      %v643 = vunpack.c.l.b16 %v570
      %v644 = vunpack.c.l.b16 %v571
      %v645 = vunpack.c.l.b16 %v572
      %v646 = vunpack.c.l.b16 %v573
      %v647 = vunpack.c.l.b16 %v574
      %v648 = vunpack.c.l.b16 %v575
      %v649 = vunpack.c.l.b16 %v576
      %v650 = vunpack.c.l.b16 %v577
      %v651 = vunpack.c.l.b16 %v578
      %v652 = vunpack.c.l.b16 %v579
      %v653 = vpack.c.b16 %v629, %v628
      %v654 = vpack.c.b16 %v631, %v630
      %v655 = vpack.c.b16 %v633, %v632
      %v656 = vpack.c.b16 %v635, %v634
      %v657 = vpack.c.b16 %v637, %v636
      %v658 = vpack.c.b16 %v639, %v638
      %v659 = vpack.c.b16 %v641, %v640
      %v660 = vpack.c.b16 %v643, %v642
      %v661 = vpack.c.b16 %v645, %v644
      %v662 = vpack.c.b16 %v647, %v646
      %v663 = vpack.c.b16 %v649, %v648
      %v664 = vpack.c.b16 %v651, %v650
      %v665 = vpack.c.b16 %v652, %v652
      %v695 = vunpack.c.l.b16 %v580
      %v696 = vunpack.c.l.b16 %v581
      %v697 = vunpack.c.l.b16 %v582
      %v698 = vunpack.c.l.b16 %v583
      %v699 = vunpack.c.l.b16 %v584
      %v700 = vunpack.c.l.b16 %v585
      %v701 = vunpack.c.l.b16 %v586
      %v702 = vunpack.c.l.b16 %v587
      %v703 = vunpack.c.l.b16 %v588
      %v704 = vunpack.c.l.b16 %v589
      %v705 = vunpack.c.l.b16 %v590
      %v706 = vunpack.c.l.b16 %v591
      %v707 = vunpack.c.l.b16 %v592
      %v708 = vunpack.c.l.b16 %v593
      %v709 = vunpack.c.l.b16 %v594
      %v710 = vunpack.c.l.b16 %v595
      %v711 = vpack.c.b16 %v696, %v695
      %v712 = vpack.c.b16 %v698, %v697
      %v713 = vpack.c.b16 %v700, %v699
      %v714 = vpack.c.b16 %v702, %v701
      %v715 = vpack.c.b16 %v704, %v703
      %v716 = vpack.c.b16 %v706, %v705
      %v717 = vpack.c.b16 %v708, %v707
      %v718 = vpack.c.b16 %v710, %v709
      %727 = vmatprep.subr.bf16.mxu0 0
      %728 = vmatpush1.bf16.msra.mxu0 %v711
      %729 = vmatprep.subr.bf16.mxu0 0
      %730 = vmatpush1.bf16.msra.mxu0 %v712
      %731 = vmatprep.subr.bf16.mxu0 0
      %732 = vmatpush1.bf16.msra.mxu0 %v713
      %733 = vmatprep.subr.bf16.mxu0 0
      %734 = vmatpush1.bf16.msra.mxu0 %v714
      %735 = vmatprep.subr.bf16.mxu0 0
      %736 = vmatpush1.bf16.msra.mxu0 %v715
      %737 = vmatprep.subr.bf16.mxu0 0
      %738 = vmatpush1.bf16.msra.mxu0 %v716
      %739 = vmatprep.subr.bf16.mxu0 0
      %740 = vmatpush1.bf16.msra.mxu0 %v717
      %741 = vmatprep.subr.bf16.mxu0 0
      %742 = vmatpush1.bf16.msra.mxu0 %v718
      %743 = vmatprep.subr.bf16.mxu0 0
      %744 = vmatpush1.bf16.msra.mxu0 0
      %745 = vmatprep.subr.bf16.mxu0 0
      %746 = vmatpush1.bf16.msra.mxu0 0
      %747 = vmatprep.subr.bf16.mxu0 0
      %748 = vmatpush1.bf16.msra.mxu0 0
      %749 = vmatprep.subr.bf16.mxu0 0
      %750 = vmatpush1.bf16.msra.mxu0 0
      %751 = vmatprep.subr.bf16.mxu0 0
      %752 = vmatpush1.bf16.msra.mxu0 0
      %753 = vmatprep.subr.bf16.mxu0 0
      %754 = vmatpush1.bf16.msra.mxu0 0
      %755 = vmatprep.subr.bf16.mxu0 0
      %756 = vmatpush1.bf16.msra.mxu0 0
      %757 = vmatprep.subr.bf16.mxu0 0
      %758 = vmatpush1.bf16.msra.mxu0 0
      %759 = vmatprep.mubr.bf16.mxu0 0
      %760 = vmatmul.mubr.bf16.gmra.mrb[0].mxu0 %v653
      %v761 = vpop.f32.mrb[0].mxu0
      %v762 = vadd.f32 %v601, %v761
      %v763 = vpop.f32.mrb[0].mxu0
      %v764 = vpop.f32.mrb[0].mxu0
      %v765 = vadd.f32 %v601, %v764
      %v766 = vpop.f32.mrb[0].mxu0
      %767 = vmatprep.mubr.bf16.mxu0 0
      %768 = vmatmul.mubr.bf16.gmra.mrb[0].mxu0 %v654
      %v769 = vpop.f32.mrb[0].mxu0
      %v770 = vadd.f32 %v601, %v769
      %v771 = vpop.f32.mrb[0].mxu0
      %v772 = vpop.f32.mrb[0].mxu0
      %v773 = vadd.f32 %v601, %v772
      %v774 = vpop.f32.mrb[0].mxu0
      %775 = vmatprep.mubr.bf16.mxu0 0
      %776 = vmatmul.mubr.bf16.gmra.mrb[0].mxu0 %v655
      %v777 = vpop.f32.mrb[0].mxu0
      %v778 = vadd.f32 %v601, %v777
      %v779 = vpop.f32.mrb[0].mxu0
      %v780 = vpop.f32.mrb[0].mxu0
      %v781 = vadd.f32 %v601, %v780
      %v782 = vpop.f32.mrb[0].mxu0
      %783 = vmatprep.mubr.bf16.mxu0 0
      %784 = vmatmul.mubr.bf16.gmra.mrb[0].mxu0 %v656
      %v785 = vpop.f32.mrb[0].mxu0
      %v786 = vadd.f32 %v601, %v785
      %v787 = vpop.f32.mrb[0].mxu0
      %v788 = vpop.f32.mrb[0].mxu0
      %v789 = vadd.f32 %v601, %v788
      %v790 = vpop.f32.mrb[0].mxu0
      %791 = vmatprep.mubr.bf16.mxu0 0
      %792 = vmatmul.mubr.bf16.gmra.mrb[0].mxu0 %v657
      %v793 = vpop.f32.mrb[0].mxu0
      %v794 = vadd.f32 %v601, %v793
      %v795 = vpop.f32.mrb[0].mxu0
      %v796 = vpop.f32.mrb[0].mxu0
      %v797 = vadd.f32 %v601, %v796
      %v798 = vpop.f32.mrb[0].mxu0
      %799 = vmatprep.mubr.bf16.mxu0 0
      %800 = vmatmul.mubr.bf16.gmra.mrb[0].mxu0 %v658
      %v801 = vpop.f32.mrb[0].mxu0
      %v802 = vadd.f32 %v601, %v801
      %v803 = vpop.f32.mrb[0].mxu0
      %v804 = vpop.f32.mrb[0].mxu0
      %v805 = vadd.f32 %v601, %v804
      %v806 = vpop.f32.mrb[0].mxu0
      %807 = vmatprep.mubr.bf16.mxu0 0
      %808 = vmatmul.mubr.bf16.gmra.mrb[0].mxu0 %v659
      %v809 = vpop.f32.mrb[0].mxu0
      %v810 = vadd.f32 %v601, %v809
      %v811 = vpop.f32.mrb[0].mxu0
      %v812 = vpop.f32.mrb[0].mxu0
      %v813 = vadd.f32 %v601, %v812
      %v814 = vpop.f32.mrb[0].mxu0
      %815 = vmatprep.mubr.bf16.mxu0 0
      %816 = vmatmul.mubr.bf16.gmra.mrb[0].mxu0 %v660
      %v817 = vpop.f32.mrb[0].mxu0
      %v818 = vadd.f32 %v601, %v817
      %v819 = vpop.f32.mrb[0].mxu0
      %v820 = vpop.f32.mrb[0].mxu0
      %v821 = vadd.f32 %v601, %v820
      %v822 = vpop.f32.mrb[0].mxu0
      %823 = vmatprep.mubr.bf16.mxu0 0
      %824 = vmatmul.mubr.bf16.gmra.mrb[0].mxu0 %v661
      %v825 = vpop.f32.mrb[0].mxu0
      %v826 = vadd.f32 %v601, %v825
      %v827 = vpop.f32.mrb[0].mxu0
      %v828 = vpop.f32.mrb[0].mxu0
      %v829 = vadd.f32 %v601, %v828
      %v830 = vpop.f32.mrb[0].mxu0
      %831 = vmatprep.mubr.bf16.mxu0 0
      %832 = vmatmul.mubr.bf16.gmra.mrb[0].mxu0 %v662
      %v833 = vpop.f32.mrb[0].mxu0
      %v834 = vadd.f32 %v601, %v833
      %v835 = vpop.f32.mrb[0].mxu0
      %v836 = vpop.f32.mrb[0].mxu0
      %v837 = vadd.f32 %v601, %v836
      %v838 = vpop.f32.mrb[0].mxu0
      %839 = vmatprep.mubr.bf16.mxu0 0
      %840 = vmatmul.mubr.bf16.gmra.mrb[0].mxu0 %v663
      %v841 = vpop.f32.mrb[0].mxu0
      %v842 = vadd.f32 %v601, %v841
      %v843 = vpop.f32.mrb[0].mxu0
      %v844 = vpop.f32.mrb[0].mxu0
      %v845 = vadd.f32 %v601, %v844
      %v846 = vpop.f32.mrb[0].mxu0
      %847 = vmatprep.mubr.bf16.mxu0 0
      %848 = vmatmul.mubr.bf16.gmra.mrb[0].mxu0 %v664
      %v849 = vpop.f32.mrb[0].mxu0
      %v850 = vadd.f32 %v601, %v849
      %v851 = vpop.f32.mrb[0].mxu0
      %v852 = vpop.f32.mrb[0].mxu0
      %v853 = vadd.f32 %v601, %v852
      %v854 = vpop.f32.mrb[0].mxu0
      %855 = vmatprep.mubr.bf16.mxu0 0
      %856 = vmatmul.mubr.bf16.gmra.mrb[0].mxu0 %v665
      %v857 = vpop.f32.mrb[0].mxu0
      %v858 = vadd.f32 %v601, %v857
      %v859 = vpop.f32.mrb[0].mxu0
      %v860 = vpop.f32.mrb[0].mxu0
      %v861 = vpop.f32.mrb[0].mxu0
      %862 = vdwg.mxu0
      %v863 = vmax.f32 %v762, 0.0
      %v864 = vmax.f32 %v765, 0.0
      %v865 = vmax.f32 %v770, 0.0
      %v866 = vmax.f32 %v773, 0.0
      %v867 = vmax.f32 %v778, 0.0
      %v868 = vmax.f32 %v781, 0.0
      %v869 = vmax.f32 %v786, 0.0
      %v870 = vmax.f32 %v789, 0.0
      %v871 = vmax.f32 %v794, 0.0
      %v872 = vmax.f32 %v797, 0.0
      %v873 = vmax.f32 %v802, 0.0
      %v874 = vmax.f32 %v805, 0.0
      %v875 = vmax.f32 %v810, 0.0
      %v876 = vmax.f32 %v813, 0.0
      %v877 = vmax.f32 %v818, 0.0
      %v878 = vmax.f32 %v821, 0.0
      %v879 = vmax.f32 %v826, 0.0
      %v880 = vmax.f32 %v829, 0.0
      %v881 = vmax.f32 %v834, 0.0
      %v882 = vmax.f32 %v837, 0.0
      %v883 = vmax.f32 %v842, 0.0
      %v884 = vmax.f32 %v845, 0.0
      %v885 = vmax.f32 %v850, 0.0
      %v886 = vmax.f32 %v853, 0.0
      %v887 = vmax.f32 %v858, 0.0
      %v888 = vpack.c.bf16 %v864, %v863
      %v889 = vpack.c.bf16 %v866, %v865
      %v890 = vpack.c.bf16 %v868, %v867
      %v891 = vpack.c.bf16 %v870, %v869
      %v892 = vpack.c.bf16 %v872, %v871
      %v893 = vpack.c.bf16 %v874, %v873
      %v894 = vpack.c.bf16 %v876, %v875
      %v895 = vpack.c.bf16 %v878, %v877
      %v896 = vpack.c.bf16 %v880, %v879
      %v897 = vpack.c.bf16 %v882, %v881
      %v898 = vpack.c.bf16 %v884, %v883
      %v899 = vpack.c.bf16 %v886, %v885
      %v900 = vpack.c.bf16 %v887, %v887
      %v901 = vld [vmem:[%s3] sm:$0xff]
      %v902 = vld [vmem:[%s3 + $0x8] sm:$0xff]
      %v903 = vld [vmem:[%s3 + $0x10] sm:$0xff]
      %v904 = vld [vmem:[%s3 + $0x18] sm:$0xff]
      %v905 = vld [vmem:[%s3 + $0x20] sm:$0xff]
      %v906 = vld [vmem:[%s3 + $0x28] sm:$0xff]
      %v907 = vld [vmem:[%s3 + $0x30] sm:$0xff]
      %v908 = vld [vmem:[%s3 + $0x38] sm:$0xff]
      %v909 = vld [vmem:[%s3 + $0x40] sm:$0xff]
      %v910 = vld [vmem:[%s3 + $0x48] sm:$0xff]
      %v911 = vld [vmem:[%s3 + $0x50] sm:$0x11]
      %v923 = vunpack.c.l.b16 %v901
      %v924 = vunpack.c.h.b16 %v901
      %v925 = vunpack.c.l.b16 %v902
      %v926 = vunpack.c.h.b16 %v902
      %v927 = vunpack.c.l.b16 %v903
      %v928 = vunpack.c.h.b16 %v903
      %v929 = vunpack.c.l.b16 %v904
      %v930 = vunpack.c.h.b16 %v904
      %v931 = vunpack.c.l.b16 %v905
      %v932 = vunpack.c.h.b16 %v905
      %v933 = vunpack.c.l.b16 %v906
      %v934 = vunpack.c.h.b16 %v906
      %v935 = vunpack.c.l.b16 %v907
      %v936 = vunpack.c.h.b16 %v907
      %v937 = vunpack.c.l.b16 %v908
      %v938 = vunpack.c.h.b16 %v908
      %v939 = vunpack.c.l.b16 %v909
      %v940 = vunpack.c.h.b16 %v909
      %v941 = vunpack.c.l.b16 %v910
      %v942 = vunpack.c.h.b16 %v910
      %v943 = vunpack.c.l.b16 %v911
      %v944 = vunpack.c.h.b16 %v911
      %v945 = vpack.c.b16 %v925, %v923
      %v946 = vpack.c.b16 %v926, %v924
      %v947 = vpack.c.b16 %v929, %v927
      %v948 = vpack.c.b16 %v930, %v928
      %v949 = vpack.c.b16 %v933, %v931
      %v950 = vpack.c.b16 %v934, %v932
      %v951 = vpack.c.b16 %v937, %v935
      %v952 = vpack.c.b16 %v938, %v936
      %v953 = vpack.c.b16 %v941, %v939
      %v954 = vpack.c.b16 %v942, %v940
      %v955 = vpack.c.b16 %v943, %v943
      %v956 = vpack.c.b16 %v944, %v944
      %vm963 = vcmask 588800
      %v965 = vsel %vm963, %v946, 0
      %v968 = vsel %vm963, %v948, 0
      %v971 = vsel %vm963, %v950, 0
      %v974 = vsel %vm963, %v952, 0
      %v977 = vsel %vm963, %v954, 0
      %v980 = vsel %vm963, %v956, 0
      %vm982 = vcmask 1043456
      %v984 = vsel %vm982, %v900, 0
      %986 = vmatprep.subr.bf16.mxu0 0
      %987 = vmatpush1.bf16.msra.mxu0 %v888
      %988 = vmatprep.subr.bf16.mxu0 0
      %989 = vmatpush1.bf16.msra.mxu0 %v889
      %990 = vmatprep.subr.bf16.mxu0 0
      %991 = vmatpush1.bf16.msra.mxu0 %v890
      %992 = vmatprep.subr.bf16.mxu0 0
      %993 = vmatpush1.bf16.msra.mxu0 %v891
      %994 = vmatprep.subr.bf16.mxu0 0
      %995 = vmatpush1.bf16.msra.mxu0 %v892
      %996 = vmatprep.subr.bf16.mxu0 0
      %997 = vmatpush1.bf16.msra.mxu0 %v893
      %998 = vmatprep.subr.bf16.mxu0 0
      %999 = vmatpush1.bf16.msra.mxu0 %v894
      %1000 = vmatprep.subr.bf16.mxu0 0
      %1001 = vmatpush1.bf16.msra.mxu0 %v895
      %1002 = vmatprep.subr.bf16.mxu0 0
      %1003 = vmatpush1.bf16.msra.mxu0 %v896
      %1004 = vmatprep.subr.bf16.mxu0 0
      %1005 = vmatpush1.bf16.msra.mxu0 %v897
      %1006 = vmatprep.subr.bf16.mxu0 0
      %1007 = vmatpush1.bf16.msra.mxu0 %v898
      %1008 = vmatprep.subr.bf16.mxu0 0
      %1009 = vmatpush1.bf16.msra.mxu0 %v899
      %1010 = vmatprep.subr.bf16.mxu0 0
      %1011 = vmatpush1.bf16.msra.mxu0 %v984
      %1012 = vmatprep.subr.bf16.mxu0 0
      %1013 = vmatpush1.bf16.msra.mxu0 0
      %1014 = vmatprep.subr.bf16.mxu0 0
      %1015 = vmatpush1.bf16.msra.mxu0 0
      %1016 = vmatprep.subr.bf16.mxu0 0
      %1017 = vmatpush1.bf16.msra.mxu0 0
      %1018 = vmatprep.mubr.bf16.mxu0 %v965
      %1019 = vmatmul.mubr.bf16.gmra.mrb[0].mxu0 %v945
      %v1020 = vpop.f32.mrb[0].mxu0
      %v1021 = vadd.f32 0.0, %v1020
      %v1022 = vpop.f32.mrb[0].mxu0
      %v1023 = vpop.f32.mrb[0].mxu0
      %v1024 = vadd.f32 0.0, %v1023
      %v1025 = vpop.f32.mrb[0].mxu0
      %1026 = vmatprep.mubr.bf16.mxu0 %v968
      %1027 = vmatmul.mubr.bf16.gmra.mrb[0].mxu0 %v947
      %v1028 = vpop.f32.mrb[0].mxu0
      %v1029 = vadd.f32 0.0, %v1028
      %v1030 = vpop.f32.mrb[0].mxu0
      %v1031 = vpop.f32.mrb[0].mxu0
      %v1032 = vadd.f32 0.0, %v1031
      %v1033 = vpop.f32.mrb[0].mxu0
      %1034 = vmatprep.mubr.bf16.mxu0 %v971
      %1035 = vmatmul.mubr.bf16.gmra.mrb[0].mxu0 %v949
      %v1036 = vpop.f32.mrb[0].mxu0
      %v1037 = vadd.f32 0.0, %v1036
      %v1038 = vpop.f32.mrb[0].mxu0
      %v1039 = vpop.f32.mrb[0].mxu0
      %v1040 = vadd.f32 0.0, %v1039
      %v1041 = vpop.f32.mrb[0].mxu0
      %1042 = vmatprep.mubr.bf16.mxu0 %v974
      %1043 = vmatmul.mubr.bf16.gmra.mrb[0].mxu0 %v951
      %v1044 = vpop.f32.mrb[0].mxu0
      %v1045 = vadd.f32 0.0, %v1044
      %v1046 = vpop.f32.mrb[0].mxu0
      %v1047 = vpop.f32.mrb[0].mxu0
      %v1048 = vadd.f32 0.0, %v1047
      %v1049 = vpop.f32.mrb[0].mxu0
      %1050 = vmatprep.mubr.bf16.mxu0 %v977
      %1051 = vmatmul.mubr.bf16.gmra.mrb[0].mxu0 %v953
      %v1052 = vpop.f32.mrb[0].mxu0
      %v1053 = vadd.f32 0.0, %v1052
      %v1054 = vpop.f32.mrb[0].mxu0
      %v1055 = vpop.f32.mrb[0].mxu0
      %v1056 = vadd.f32 0.0, %v1055
      %v1057 = vpop.f32.mrb[0].mxu0
      %1058 = vmatprep.mubr.bf16.mxu0 %v980
      %1059 = vmatmul.mubr.bf16.gmra.mrb[0].mxu0 %v955
      %v1060 = vpop.f32.mrb[0].mxu0
      %v1061 = vadd.f32 0.0, %v1060
      %v1062 = vpop.f32.mrb[0].mxu0
      %v1063 = vpop.f32.mrb[0].mxu0
      %v1064 = vpop.f32.mrb[0].mxu0
      %1065 = vdwg.mxu0
      %v1066 = vpack.c.bf16 %v1024, %v1021
      %v1067 = vpack.c.bf16 %v1032, %v1029
      %v1068 = vpack.c.bf16 %v1040, %v1037
      %v1069 = vpack.c.bf16 %v1048, %v1045
      %v1070 = vpack.c.bf16 %v1056, %v1053
      %v1071 = vpack.c.bf16 %v1061, %v1061
      %v1072 = vld [vmem:[%s4] sm:$0xf]
      %v1073 = vld [vmem:[%s4 + $0x4] sm:$0xf]
      %v1074 = vld [vmem:[%s4 + $0x8] sm:$0xf]
      %v1075 = vld [vmem:[%s4 + $0xc] sm:$0xf]
      %v1076 = vld [vmem:[%s4 + $0x10] sm:$0xf]
      %v1077 = vld [vmem:[%s4 + $0x14] sm:$0xf]
      %v1078 = vld [vmem:[%s4 + $0x18] sm:$0xf]
      %v1079 = vld [vmem:[%s4 + $0x1c] sm:$0xf]
      %v1080 = vld [vmem:[%s4 + $0x20] sm:$0xf]
      %v1081 = vld [vmem:[%s4 + $0x24] sm:$0xf]
      %v1082 = vld [vmem:[%s4 + $0x28] sm:$0xf]
      %v1083 = vld [vmem:[%s4 + $0x2c] sm:$0xf]
      %v1084 = vld [vmem:[%s4 + $0x30] sm:$0xf]
      %v1085 = vld [vmem:[%s4 + $0x34] sm:$0xf]
      %v1086 = vld [vmem:[%s4 + $0x38] sm:$0xf]
      %v1087 = vld [vmem:[%s4 + $0x3c] sm:$0xf]
      %v1088 = vld [vmem:[%s5] sm:$0xff]
      %v1089 = vld [vmem:[%s5 + $0x8] sm:$0xff]
      %v1090 = vld [vmem:[%s5 + $0x10] sm:$0xff]
      %v1091 = vld [vmem:[%s5 + $0x18] sm:$0xff]
      %v1092 = vld [vmem:[%s5 + $0x20] sm:$0xff]
      %v1093 = vld [vmem:[%s5 + $0x28] sm:$0xff]
      %v1094 = vld [vmem:[%s5 + $0x30] sm:$0xff]
      %v1095 = vld [vmem:[%s5 + $0x38] sm:$0xff]
      %v1096 = vld [vmem:[%s5 + $0x40] sm:$0xff]
      %v1097 = vld [vmem:[%s5 + $0x48] sm:$0xff]
      %v1098 = vld [vmem:[%s5 + $0x50] sm:$0x1]
      %v1115 = vunpack.c.l.b16 %v1072
      %v1116 = vunpack.c.l.b16 %v1073
      %v1117 = vunpack.c.l.b16 %v1074
      %v1118 = vunpack.c.l.b16 %v1075
      %v1119 = vunpack.c.l.b16 %v1076
      %v1120 = vunpack.c.l.b16 %v1077
      %v1121 = vunpack.c.l.b16 %v1078
      %v1122 = vunpack.c.l.b16 %v1079
      %v1123 = vunpack.c.l.b16 %v1080
      %v1124 = vunpack.c.l.b16 %v1081
      %v1125 = vunpack.c.l.b16 %v1082
      %v1126 = vunpack.c.l.b16 %v1083
      %v1127 = vunpack.c.l.b16 %v1084
      %v1128 = vunpack.c.l.b16 %v1085
      %v1129 = vunpack.c.l.b16 %v1086
      %v1130 = vunpack.c.l.b16 %v1087
      %v1131 = vpack.c.b16 %v1116, %v1115
      %v1132 = vpack.c.b16 %v1118, %v1117
      %v1133 = vpack.c.b16 %v1120, %v1119
      %v1134 = vpack.c.b16 %v1122, %v1121
      %v1135 = vpack.c.b16 %v1124, %v1123
      %v1136 = vpack.c.b16 %v1126, %v1125
      %v1137 = vpack.c.b16 %v1128, %v1127
      %v1138 = vpack.c.b16 %v1130, %v1129
      %1147 = vmatprep.subr.bf16.mxu0 0
      %1148 = vmatpush1.bf16.msra.mxu0 %v1131
      %1149 = vmatprep.subr.bf16.mxu0 0
      %1150 = vmatpush1.bf16.msra.mxu0 %v1132
      %1151 = vmatprep.subr.bf16.mxu0 0
      %1152 = vmatpush1.bf16.msra.mxu0 %v1133
      %1153 = vmatprep.subr.bf16.mxu0 0
      %1154 = vmatpush1.bf16.msra.mxu0 %v1134
      %1155 = vmatprep.subr.bf16.mxu0 0
      %1156 = vmatpush1.bf16.msra.mxu0 %v1135
      %1157 = vmatprep.subr.bf16.mxu0 0
      %1158 = vmatpush1.bf16.msra.mxu0 %v1136
      %1159 = vmatprep.subr.bf16.mxu0 0
      %1160 = vmatpush1.bf16.msra.mxu0 %v1137
      %1161 = vmatprep.subr.bf16.mxu0 0
      %1162 = vmatpush1.bf16.msra.mxu0 %v1138
      %1163 = vmatprep.subr.bf16.mxu0 0
      %1164 = vmatpush1.bf16.msra.mxu0 0
      %1165 = vmatprep.subr.bf16.mxu0 0
      %1166 = vmatpush1.bf16.msra.mxu0 0
      %1167 = vmatprep.subr.bf16.mxu0 0
      %1168 = vmatpush1.bf16.msra.mxu0 0
      %1169 = vmatprep.subr.bf16.mxu0 0
      %1170 = vmatpush1.bf16.msra.mxu0 0
      %1171 = vmatprep.subr.bf16.mxu0 0
      %1172 = vmatpush1.bf16.msra.mxu0 0
      %1173 = vmatprep.subr.bf16.mxu0 0
      %1174 = vmatpush1.bf16.msra.mxu0 0
      %1175 = vmatprep.subr.bf16.mxu0 0
      %1176 = vmatpush1.bf16.msra.mxu0 0
      %1177 = vmatprep.subr.bf16.mxu0 0
      %1178 = vmatpush1.bf16.msra.mxu0 0
      %1179 = vmatprep.mubr.bf16.mxu0 0
      %1180 = vmatmul.mubr.bf16.gmra.mrb[0].mxu0 %v1066
      %v1181 = vpop.f32.mrb[0].mxu0
      %v1182 = vadd.f32 %v1088, %v1181
      %v1183 = vpop.f32.mrb[0].mxu0
      %v1184 = vpop.f32.mrb[0].mxu0
      %v1185 = vadd.f32 %v1089, %v1184
      %v1186 = vpop.f32.mrb[0].mxu0
      %1187 = vmatprep.mubr.bf16.mxu0 0
      %1188 = vmatmul.mubr.bf16.gmra.mrb[0].mxu0 %v1067
      %v1189 = vpop.f32.mrb[0].mxu0
      %v1190 = vadd.f32 %v1090, %v1189
      %v1191 = vpop.f32.mrb[0].mxu0
      %v1192 = vpop.f32.mrb[0].mxu0
      %v1193 = vadd.f32 %v1091, %v1192
      %v1194 = vpop.f32.mrb[0].mxu0
      %1195 = vmatprep.mubr.bf16.mxu0 0
      %1196 = vmatmul.mubr.bf16.gmra.mrb[0].mxu0 %v1068
      %v1197 = vpop.f32.mrb[0].mxu0
      %v1198 = vadd.f32 %v1092, %v1197
      %v1199 = vpop.f32.mrb[0].mxu0
      %v1200 = vpop.f32.mrb[0].mxu0
      %v1201 = vadd.f32 %v1093, %v1200
      %v1202 = vpop.f32.mrb[0].mxu0
      %1203 = vmatprep.mubr.bf16.mxu0 0
      %1204 = vmatmul.mubr.bf16.gmra.mrb[0].mxu0 %v1069
      %v1205 = vpop.f32.mrb[0].mxu0
      %v1206 = vadd.f32 %v1094, %v1205
      %v1207 = vpop.f32.mrb[0].mxu0
      %v1208 = vpop.f32.mrb[0].mxu0
      %v1209 = vadd.f32 %v1095, %v1208
      %v1210 = vpop.f32.mrb[0].mxu0
      %1211 = vmatprep.mubr.bf16.mxu0 0
      %1212 = vmatmul.mubr.bf16.gmra.mrb[0].mxu0 %v1070
      %v1213 = vpop.f32.mrb[0].mxu0
      %v1214 = vadd.f32 %v1096, %v1213
      %v1215 = vpop.f32.mrb[0].mxu0
      %v1216 = vpop.f32.mrb[0].mxu0
      %v1217 = vadd.f32 %v1097, %v1216
      %v1218 = vpop.f32.mrb[0].mxu0
      %1219 = vmatprep.mubr.bf16.mxu0 0
      %1220 = vmatmul.mubr.bf16.gmra.mrb[0].mxu0 %v1071
      %v1221 = vpop.f32.mrb[0].mxu0
      %v1222 = vadd.f32 %v1098, %v1221
      %v1223 = vpop.f32.mrb[0].mxu0
      %v1224 = vpop.f32.mrb[0].mxu0
      %v1225 = vpop.f32.mrb[0].mxu0
      %1226 = vdwg.mxu0
      %1227 = vst [vmem:[#allocation2] sm:$0xff] %v1182
      %1228 = vst [vmem:[#allocation2 + $0x8] sm:$0xff] %v1185
      %1229 = vst [vmem:[#allocation2 + $0x10] sm:$0xff] %v1190
      %1230 = vst [vmem:[#allocation2 + $0x18] sm:$0xff] %v1193
      %1231 = vst [vmem:[#allocation2 + $0x20] sm:$0xff] %v1198
      %1232 = vst [vmem:[#allocation2 + $0x28] sm:$0xff] %v1201
      %1233 = vst [vmem:[#allocation2 + $0x30] sm:$0xff] %v1206
      %1234 = vst [vmem:[#allocation2 + $0x38] sm:$0xff] %v1209
      %1235 = vst [vmem:[#allocation2 + $0x40] sm:$0xff] %v1214
      %1236 = vst [vmem:[#allocation2 + $0x48] sm:$0xff] %v1217
      %1237 = vst [vmem:[#allocation2 + $0x50] sm:$0x1] %v1222
      %v1238 = vld [vmem:[#allocation2] sm:$0xff]
      %v1239 = vld [vmem:[#allocation2 + $0x8] sm:$0xff]
      %v1240 = vld [vmem:[#allocation2 + $0x10] sm:$0xff]
      %v1241 = vld [vmem:[#allocation2 + $0x18] sm:$0xff]
      %v1242 = vld [vmem:[#allocation2 + $0x20] sm:$0xff]
      %v1243 = vld [vmem:[#allocation2 + $0x28] sm:$0xff]
      %v1244 = vld [vmem:[#allocation2 + $0x30] sm:$0xff]
      %v1245 = vld [vmem:[#allocation2 + $0x38] sm:$0x1f]
      %v1246 = vpack.c.bf16 %v1239, %v1238
      %v1247 = vpack.c.bf16 %v1241, %v1240
      %v1248 = vpack.c.bf16 %v1243, %v1242
      %v1249 = vpack.c.bf16 %v1245, %v1244
      %v1250 = vld [vmem:[%s6] sm:$0xf]
      %v1251 = vld [vmem:[%s6 + $0x4] sm:$0xf]
      %v1252 = vld [vmem:[%s6 + $0x8] sm:$0xf]
      %v1253 = vld [vmem:[%s6 + $0xc] sm:$0xf]
      %v1254 = vld [vmem:[%s6 + $0x10] sm:$0xf]
      %v1255 = vld [vmem:[%s6 + $0x14] sm:$0xf]
      %v1256 = vld [vmem:[%s6 + $0x18] sm:$0xf]
      %v1257 = vld [vmem:[%s6 + $0x1c] sm:$0xf]
      %v1258 = vld [vmem:[%s6 + $0x20] sm:$0xf]
      %v1259 = vld [vmem:[%s6 + $0x24] sm:$0xf]
      %v1260 = vld [vmem:[%s6 + $0x28] sm:$0xf]
      %v1261 = vld [vmem:[%s6 + $0x2c] sm:$0xf]
      %v1262 = vld [vmem:[%s6 + $0x30] sm:$0xf]
      %v1263 = vld [vmem:[%s6 + $0x34] sm:$0xf]
      %v1264 = vld [vmem:[%s6 + $0x38] sm:$0xf]
      %v1265 = vld [vmem:[%s6 + $0x3c] sm:$0xf]
      %v1266 = vld [vmem:[#allocation2 + $0x1] sm:$0xff]
      %v1267 = vld [vmem:[#allocation2 + $0x9] sm:$0xff]
      %v1268 = vld [vmem:[#allocation2 + $0x11] sm:$0xff]
      %v1269 = vld [vmem:[#allocation2 + $0x19] sm:$0xff]
      %v1270 = vld [vmem:[#allocation2 + $0x21] sm:$0xff]
      %v1271 = vld [vmem:[#allocation2 + $0x29] sm:$0xff]
      %v1272 = vld [vmem:[#allocation2 + $0x31] sm:$0xff]
      %v1273 = vld [vmem:[#allocation2 + $0x39] sm:$0x1f]
      %v1274 = vpack.c.bf16 %v1267, %v1266
      %v1275 = vpack.c.bf16 %v1269, %v1268
      %v1276 = vpack.c.bf16 %v1271, %v1270
      %v1277 = vpack.c.bf16 %v1273, %v1272
      %s1278 = scalar_lea.vmem %s6, 64
      %v1279 = vld [vmem:[%s1278] sm:$0xf]
      %v1280 = vld [vmem:[%s1278 + $0x4] sm:$0xf]
      %v1281 = vld [vmem:[%s1278 + $0x8] sm:$0xf]
      %v1282 = vld [vmem:[%s1278 + $0xc] sm:$0xf]
      %v1283 = vld [vmem:[%s1278 + $0x10] sm:$0xf]
      %v1284 = vld [vmem:[%s1278 + $0x14] sm:$0xf]
      %v1285 = vld [vmem:[%s1278 + $0x18] sm:$0xf]
      %v1286 = vld [vmem:[%s1278 + $0x1c] sm:$0xf]
      %v1287 = vld [vmem:[%s1278 + $0x20] sm:$0xf]
      %v1288 = vld [vmem:[%s1278 + $0x24] sm:$0xf]
      %v1289 = vld [vmem:[%s1278 + $0x28] sm:$0xf]
      %v1290 = vld [vmem:[%s1278 + $0x2c] sm:$0xf]
      %v1291 = vld [vmem:[%s1278 + $0x30] sm:$0xf]
      %v1292 = vld [vmem:[%s1278 + $0x34] sm:$0xf]
      %v1293 = vld [vmem:[%s1278 + $0x38] sm:$0xf]
      %v1294 = vld [vmem:[%s1278 + $0x3c] sm:$0xf]
      %v1311 = vunpack.c.l.b16 %v1279
      %v1312 = vunpack.c.l.b16 %v1280
      %v1313 = vunpack.c.l.b16 %v1281
      %v1314 = vunpack.c.l.b16 %v1282
      %v1315 = vunpack.c.l.b16 %v1283
      %v1316 = vunpack.c.l.b16 %v1284
      %v1317 = vunpack.c.l.b16 %v1285
      %v1318 = vunpack.c.l.b16 %v1286
      %v1319 = vunpack.c.l.b16 %v1287
      %v1320 = vunpack.c.l.b16 %v1288
      %v1321 = vunpack.c.l.b16 %v1289
      %v1322 = vunpack.c.l.b16 %v1290
      %v1323 = vunpack.c.l.b16 %v1291
      %v1324 = vunpack.c.l.b16 %v1292
      %v1325 = vunpack.c.l.b16 %v1293
      %v1326 = vunpack.c.l.b16 %v1294
      %v1327 = vpack.c.b16 %v1312, %v1311
      %v1328 = vpack.c.b16 %v1314, %v1313
      %v1329 = vpack.c.b16 %v1316, %v1315
      %v1330 = vpack.c.b16 %v1318, %v1317
      %v1331 = vpack.c.b16 %v1320, %v1319
      %v1332 = vpack.c.b16 %v1322, %v1321
      %v1333 = vpack.c.b16 %v1324, %v1323
      %v1334 = vpack.c.b16 %v1326, %v1325
      %1343 = vmatprep.subr.bf16.mxu0 0
      %1344 = vmatpush1.bf16.msra.mxu0 %v1327
      %1345 = vmatprep.subr.bf16.mxu0 0
      %1346 = vmatpush1.bf16.msra.mxu0 %v1328
      %1347 = vmatprep.subr.bf16.mxu0 0
      %1348 = vmatpush1.bf16.msra.mxu0 %v1329
      %1349 = vmatprep.subr.bf16.mxu0 0
      %1350 = vmatpush1.bf16.msra.mxu0 %v1330
      %1351 = vmatprep.subr.bf16.mxu0 0
      %1352 = vmatpush1.bf16.msra.mxu0 %v1331
      %1353 = vmatprep.subr.bf16.mxu0 0
      %1354 = vmatpush1.bf16.msra.mxu0 %v1332
      %1355 = vmatprep.subr.bf16.mxu0 0
      %1356 = vmatpush1.bf16.msra.mxu0 %v1333
      %1357 = vmatprep.subr.bf16.mxu0 0
      %1358 = vmatpush1.bf16.msra.mxu0 %v1334
      %1359 = vmatprep.subr.bf16.mxu0 0
      %1360 = vmatpush1.bf16.msra.mxu0 0
      %1361 = vmatprep.subr.bf16.mxu0 0
      %1362 = vmatpush1.bf16.msra.mxu0 0
      %1363 = vmatprep.subr.bf16.mxu0 0
      %1364 = vmatpush1.bf16.msra.mxu0 0
      %1365 = vmatprep.subr.bf16.mxu0 0
      %1366 = vmatpush1.bf16.msra.mxu0 0
      %1367 = vmatprep.subr.bf16.mxu0 0
      %1368 = vmatpush1.bf16.msra.mxu0 0
      %1369 = vmatprep.subr.bf16.mxu0 0
      %1370 = vmatpush1.bf16.msra.mxu0 0
      %1371 = vmatprep.subr.bf16.mxu0 0
      %1372 = vmatpush1.bf16.msra.mxu0 0
      %1373 = vmatprep.subr.bf16.mxu0 0
      %1374 = vmatpush1.bf16.msra.mxu0 0
      %1375 = vmatprep.mubr.bf16.mxu0 0
      %1376 = vmatmul.mubr.bf16.gmra.mrb[0].mxu0 %v1274
      %v1377 = vpop.f32.mrb[0].mxu0
      %v1378 = vadd.f32 0.0, %v1377
      %v1379 = vpop.f32.mrb[0].mxu0
      %v1380 = vpop.f32.mrb[0].mxu0
      %v1381 = vadd.f32 0.0, %v1380
      %v1382 = vpop.f32.mrb[0].mxu0
      %1383 = vmatprep.mubr.bf16.mxu0 0
      %1384 = vmatmul.mubr.bf16.gmra.mrb[0].mxu0 %v1275
      %v1385 = vpop.f32.mrb[0].mxu0
      %v1386 = vadd.f32 0.0, %v1385
      %v1387 = vpop.f32.mrb[0].mxu0
      %v1388 = vpop.f32.mrb[0].mxu0
      %v1389 = vadd.f32 0.0, %v1388
      %v1390 = vpop.f32.mrb[0].mxu0
      %1391 = vmatprep.mubr.bf16.mxu0 0
      %1392 = vmatmul.mubr.bf16.gmra.mrb[0].mxu0 %v1276
      %v1393 = vpop.f32.mrb[0].mxu0
      %v1394 = vadd.f32 0.0, %v1393
      %v1395 = vpop.f32.mrb[0].mxu0
      %v1396 = vpop.f32.mrb[0].mxu0
      %v1397 = vadd.f32 0.0, %v1396
      %v1398 = vpop.f32.mrb[0].mxu0
      %1399 = vmatprep.mubr.bf16.mxu0 0
      %1400 = vmatmul.mubr.bf16.gmra.mrb[0].mxu0 %v1277
      %v1401 = vpop.f32.mrb[0].mxu0
      %v1402 = vadd.f32 0.0, %v1401
      %v1403 = vpop.f32.mrb[0].mxu0
      %v1404 = vpop.f32.mrb[0].mxu0
      %v1405 = vadd.f32 0.0, %v1404
      %v1406 = vpop.f32.mrb[0].mxu0
      %1407 = vdwg.mxu0
      %v1424 = vunpack.c.l.b16 %v1250
      %v1425 = vunpack.c.l.b16 %v1251
      %v1426 = vunpack.c.l.b16 %v1252
      %v1427 = vunpack.c.l.b16 %v1253
      %v1428 = vunpack.c.l.b16 %v1254
      %v1429 = vunpack.c.l.b16 %v1255
      %v1430 = vunpack.c.l.b16 %v1256
      %v1431 = vunpack.c.l.b16 %v1257
      %v1432 = vunpack.c.l.b16 %v1258
      %v1433 = vunpack.c.l.b16 %v1259
      %v1434 = vunpack.c.l.b16 %v1260
      %v1435 = vunpack.c.l.b16 %v1261
      %v1436 = vunpack.c.l.b16 %v1262
      %v1437 = vunpack.c.l.b16 %v1263
      %v1438 = vunpack.c.l.b16 %v1264
      %v1439 = vunpack.c.l.b16 %v1265
      %v1440 = vpack.c.b16 %v1425, %v1424
      %v1441 = vpack.c.b16 %v1427, %v1426
      %v1442 = vpack.c.b16 %v1429, %v1428
      %v1443 = vpack.c.b16 %v1431, %v1430
      %v1444 = vpack.c.b16 %v1433, %v1432
      %v1445 = vpack.c.b16 %v1435, %v1434
      %v1446 = vpack.c.b16 %v1437, %v1436
      %v1447 = vpack.c.b16 %v1439, %v1438
      %1456 = vmatprep.subr.bf16.mxu0 0
      %1457 = vmatpush1.bf16.msra.mxu0 %v1440
      %1458 = vmatprep.subr.bf16.mxu0 0
      %1459 = vmatpush1.bf16.msra.mxu0 %v1441
      %1460 = vmatprep.subr.bf16.mxu0 0
      %1461 = vmatpush1.bf16.msra.mxu0 %v1442
      %1462 = vmatprep.subr.bf16.mxu0 0
      %1463 = vmatpush1.bf16.msra.mxu0 %v1443
      %1464 = vmatprep.subr.bf16.mxu0 0
      %1465 = vmatpush1.bf16.msra.mxu0 %v1444
      %1466 = vmatprep.subr.bf16.mxu0 0
      %1467 = vmatpush1.bf16.msra.mxu0 %v1445
      %1468 = vmatprep.subr.bf16.mxu0 0
      %1469 = vmatpush1.bf16.msra.mxu0 %v1446
      %1470 = vmatprep.subr.bf16.mxu0 0
      %1471 = vmatpush1.bf16.msra.mxu0 %v1447
      %1472 = vmatprep.subr.bf16.mxu0 0
      %1473 = vmatpush1.bf16.msra.mxu0 0
      %1474 = vmatprep.subr.bf16.mxu0 0
      %1475 = vmatpush1.bf16.msra.mxu0 0
      %1476 = vmatprep.subr.bf16.mxu0 0
      %1477 = vmatpush1.bf16.msra.mxu0 0
      %1478 = vmatprep.subr.bf16.mxu0 0
      %1479 = vmatpush1.bf16.msra.mxu0 0
      %1480 = vmatprep.subr.bf16.mxu0 0
      %1481 = vmatpush1.bf16.msra.mxu0 0
      %1482 = vmatprep.subr.bf16.mxu0 0
      %1483 = vmatpush1.bf16.msra.mxu0 0
      %1484 = vmatprep.subr.bf16.mxu0 0
      %1485 = vmatpush1.bf16.msra.mxu0 0
      %1486 = vmatprep.subr.bf16.mxu0 0
      %1487 = vmatpush1.bf16.msra.mxu0 0
      %1488 = vmatprep.mubr.bf16.mxu0 0
      %1489 = vmatmul.mubr.bf16.gmra.mrb[0].mxu0 %v1246
      %v1490 = vpop.f32.mrb[0].mxu0
      %v1491 = vadd.f32 %v1378, %v1490
      %v1492 = vpop.f32.mrb[0].mxu0
      %v1493 = vpop.f32.mrb[0].mxu0
      %v1494 = vadd.f32 %v1381, %v1493
      %v1495 = vpop.f32.mrb[0].mxu0
      %1496 = vmatprep.mubr.bf16.mxu0 0
      %1497 = vmatmul.mubr.bf16.gmra.mrb[0].mxu0 %v1247
      %v1498 = vpop.f32.mrb[0].mxu0
      %v1499 = vadd.f32 %v1386, %v1498
      %v1500 = vpop.f32.mrb[0].mxu0
      %v1501 = vpop.f32.mrb[0].mxu0
      %v1502 = vadd.f32 %v1389, %v1501
      %v1503 = vpop.f32.mrb[0].mxu0
      %1504 = vmatprep.mubr.bf16.mxu0 0
      %1505 = vmatmul.mubr.bf16.gmra.mrb[0].mxu0 %v1248
      %v1506 = vpop.f32.mrb[0].mxu0
      %v1507 = vadd.f32 %v1394, %v1506
      %v1508 = vpop.f32.mrb[0].mxu0
      %v1509 = vpop.f32.mrb[0].mxu0
      %v1510 = vadd.f32 %v1397, %v1509
      %v1511 = vpop.f32.mrb[0].mxu0
      %1512 = vmatprep.mubr.bf16.mxu0 0
      %1513 = vmatmul.mubr.bf16.gmra.mrb[0].mxu0 %v1249
      %v1514 = vpop.f32.mrb[0].mxu0
      %v1515 = vadd.f32 %v1402, %v1514
      %v1516 = vpop.f32.mrb[0].mxu0
      %v1517 = vpop.f32.mrb[0].mxu0
      %v1518 = vadd.f32 %v1405, %v1517
      %v1519 = vpop.f32.mrb[0].mxu0
      %1520 = vdwg.mxu0
      %v1521 = vld [vmem:[#allocation2 + $0x2] sm:$0xff]
      %v1522 = vld [vmem:[#allocation2 + $0xa] sm:$0xff]
      %v1523 = vld [vmem:[#allocation2 + $0x12] sm:$0xff]
      %v1524 = vld [vmem:[#allocation2 + $0x1a] sm:$0xff]
      %v1525 = vld [vmem:[#allocation2 + $0x22] sm:$0xff]
      %v1526 = vld [vmem:[#allocation2 + $0x2a] sm:$0xff]
      %v1527 = vld [vmem:[#allocation2 + $0x32] sm:$0xff]
      %v1528 = vld [vmem:[#allocation2 + $0x3a] sm:$0x1f]
      %v1529 = vpack.c.bf16 %v1522, %v1521
      %v1530 = vpack.c.bf16 %v1524, %v1523
      %v1531 = vpack.c.bf16 %v1526, %v1525
      %v1532 = vpack.c.bf16 %v1528, %v1527
      %s1533 = scalar_lea.vmem %s6, 128
      %v1534 = vld [vmem:[%s1533] sm:$0xf]
      %v1535 = vld [vmem:[%s1533 + $0x4] sm:$0xf]
      %v1536 = vld [vmem:[%s1533 + $0x8] sm:$0xf]
      %v1537 = vld [vmem:[%s1533 + $0xc] sm:$0xf]
      %v1538 = vld [vmem:[%s1533 + $0x10] sm:$0xf]
      %v1539 = vld [vmem:[%s1533 + $0x14] sm:$0xf]
      %v1540 = vld [vmem:[%s1533 + $0x18] sm:$0xf]
      %v1541 = vld [vmem:[%s1533 + $0x1c] sm:$0xf]
      %v1542 = vld [vmem:[%s1533 + $0x20] sm:$0xf]
      %v1543 = vld [vmem:[%s1533 + $0x24] sm:$0xf]
      %v1544 = vld [vmem:[%s1533 + $0x28] sm:$0xf]
      %v1545 = vld [vmem:[%s1533 + $0x2c] sm:$0xf]
      %v1546 = vld [vmem:[%s1533 + $0x30] sm:$0xf]
      %v1547 = vld [vmem:[%s1533 + $0x34] sm:$0xf]
      %v1548 = vld [vmem:[%s1533 + $0x38] sm:$0xf]
      %v1549 = vld [vmem:[%s1533 + $0x3c] sm:$0xf]
      %v1566 = vunpack.c.l.b16 %v1534
      %v1567 = vunpack.c.l.b16 %v1535
      %v1568 = vunpack.c.l.b16 %v1536
      %v1569 = vunpack.c.l.b16 %v1537
      %v1570 = vunpack.c.l.b16 %v1538
      %v1571 = vunpack.c.l.b16 %v1539
      %v1572 = vunpack.c.l.b16 %v1540
      %v1573 = vunpack.c.l.b16 %v1541
      %v1574 = vunpack.c.l.b16 %v1542
      %v1575 = vunpack.c.l.b16 %v1543
      %v1576 = vunpack.c.l.b16 %v1544
      %v1577 = vunpack.c.l.b16 %v1545
      %v1578 = vunpack.c.l.b16 %v1546
      %v1579 = vunpack.c.l.b16 %v1547
      %v1580 = vunpack.c.l.b16 %v1548
      %v1581 = vunpack.c.l.b16 %v1549
      %v1582 = vpack.c.b16 %v1567, %v1566
      %v1583 = vpack.c.b16 %v1569, %v1568
      %v1584 = vpack.c.b16 %v1571, %v1570
      %v1585 = vpack.c.b16 %v1573, %v1572
      %v1586 = vpack.c.b16 %v1575, %v1574
      %v1587 = vpack.c.b16 %v1577, %v1576
      %v1588 = vpack.c.b16 %v1579, %v1578
      %v1589 = vpack.c.b16 %v1581, %v1580
      %1598 = vmatprep.subr.bf16.mxu0 0
      %1599 = vmatpush1.bf16.msra.mxu0 %v1582
      %1600 = vmatprep.subr.bf16.mxu0 0
      %1601 = vmatpush1.bf16.msra.mxu0 %v1583
      %1602 = vmatprep.subr.bf16.mxu0 0
      %1603 = vmatpush1.bf16.msra.mxu0 %v1584
      %1604 = vmatprep.subr.bf16.mxu0 0
      %1605 = vmatpush1.bf16.msra.mxu0 %v1585
      %1606 = vmatprep.subr.bf16.mxu0 0
      %1607 = vmatpush1.bf16.msra.mxu0 %v1586
      %1608 = vmatprep.subr.bf16.mxu0 0
      %1609 = vmatpush1.bf16.msra.mxu0 %v1587
      %1610 = vmatprep.subr.bf16.mxu0 0
      %1611 = vmatpush1.bf16.msra.mxu0 %v1588
      %1612 = vmatprep.subr.bf16.mxu0 0
      %1613 = vmatpush1.bf16.msra.mxu0 %v1589
      %1614 = vmatprep.subr.bf16.mxu0 0
      %1615 = vmatpush1.bf16.msra.mxu0 0
      %1616 = vmatprep.subr.bf16.mxu0 0
      %1617 = vmatpush1.bf16.msra.mxu0 0
      %1618 = vmatprep.subr.bf16.mxu0 0
      %1619 = vmatpush1.bf16.msra.mxu0 0
      %1620 = vmatprep.subr.bf16.mxu0 0
      %1621 = vmatpush1.bf16.msra.mxu0 0
      %1622 = vmatprep.subr.bf16.mxu0 0
      %1623 = vmatpush1.bf16.msra.mxu0 0
      %1624 = vmatprep.subr.bf16.mxu0 0
      %1625 = vmatpush1.bf16.msra.mxu0 0
      %1626 = vmatprep.subr.bf16.mxu0 0
      %1627 = vmatpush1.bf16.msra.mxu0 0
      %1628 = vmatprep.subr.bf16.mxu0 0
      %1629 = vmatpush1.bf16.msra.mxu0 0
      %1630 = vmatprep.mubr.bf16.mxu0 0
      %1631 = vmatmul.mubr.bf16.gmra.mrb[0].mxu0 %v1529
      %v1632 = vpop.f32.mrb[0].mxu0
      %v1633 = vadd.f32 0.0, %v1632
      %v1634 = vpop.f32.mrb[0].mxu0
      %v1635 = vpop.f32.mrb[0].mxu0
      %v1636 = vadd.f32 0.0, %v1635
      %v1637 = vpop.f32.mrb[0].mxu0
      %1638 = vmatprep.mubr.bf16.mxu0 0
      %1639 = vmatmul.mubr.bf16.gmra.mrb[0].mxu0 %v1530
      %v1640 = vpop.f32.mrb[0].mxu0
      %v1641 = vadd.f32 0.0, %v1640
      %v1642 = vpop.f32.mrb[0].mxu0
      %v1643 = vpop.f32.mrb[0].mxu0
      %v1644 = vadd.f32 0.0, %v1643
      %v1645 = vpop.f32.mrb[0].mxu0
      %1646 = vmatprep.mubr.bf16.mxu0 0
      %1647 = vmatmul.mubr.bf16.gmra.mrb[0].mxu0 %v1531
      %v1648 = vpop.f32.mrb[0].mxu0
      %v1649 = vadd.f32 0.0, %v1648
      %v1650 = vpop.f32.mrb[0].mxu0
      %v1651 = vpop.f32.mrb[0].mxu0
      %v1652 = vadd.f32 0.0, %v1651
      %v1653 = vpop.f32.mrb[0].mxu0
      %1654 = vmatprep.mubr.bf16.mxu0 0
      %1655 = vmatmul.mubr.bf16.gmra.mrb[0].mxu0 %v1532
      %v1656 = vpop.f32.mrb[0].mxu0
      %v1657 = vadd.f32 0.0, %v1656
      %v1658 = vpop.f32.mrb[0].mxu0
      %v1659 = vpop.f32.mrb[0].mxu0
      %v1660 = vadd.f32 0.0, %v1659
      %v1661 = vpop.f32.mrb[0].mxu0
      %1662 = vdwg.mxu0
      %v1663 = vadd.f32 %v1491, %v1633
      %v1664 = vadd.f32 %v1494, %v1636
      %v1665 = vadd.f32 %v1499, %v1641
      %v1666 = vadd.f32 %v1502, %v1644
      %v1667 = vadd.f32 %v1507, %v1649
      %v1668 = vadd.f32 %v1510, %v1652
      %v1669 = vadd.f32 %v1515, %v1657
      %v1670 = vadd.f32 %v1518, %v1660
      %v1671 = vld [vmem:[#allocation2 + $0x9] sm:$0xff]
      %v1672 = vld [vmem:[#allocation2 + $0x11] sm:$0xff]
      %v1673 = vld [vmem:[#allocation2 + $0x19] sm:$0xff]
      %v1674 = vld [vmem:[#allocation2 + $0x21] sm:$0xff]
      %v1675 = vld [vmem:[#allocation2 + $0x29] sm:$0xff]
      %v1676 = vld [vmem:[#allocation2 + $0x31] sm:$0xff]
      %v1677 = vld [vmem:[#allocation2 + $0x39] sm:$0xff]
      %v1678 = vld [vmem:[#allocation2 + $0x41] sm:$0x1f]
      %v1679 = vpack.c.bf16 %v1672, %v1671
      %v1680 = vpack.c.bf16 %v1674, %v1673
      %v1681 = vpack.c.bf16 %v1676, %v1675
      %v1682 = vpack.c.bf16 %v1678, %v1677
      %s1683 = scalar_lea.vmem %s6, 192
      %v1684 = vld [vmem:[%s1683] sm:$0xf]
      %v1685 = vld [vmem:[%s1683 + $0x4] sm:$0xf]
      %v1686 = vld [vmem:[%s1683 + $0x8] sm:$0xf]
      %v1687 = vld [vmem:[%s1683 + $0xc] sm:$0xf]
      %v1688 = vld [vmem:[%s1683 + $0x10] sm:$0xf]
      %v1689 = vld [vmem:[%s1683 + $0x14] sm:$0xf]
      %v1690 = vld [vmem:[%s1683 + $0x18] sm:$0xf]
      %v1691 = vld [vmem:[%s1683 + $0x1c] sm:$0xf]
      %v1692 = vld [vmem:[%s1683 + $0x20] sm:$0xf]
      %v1693 = vld [vmem:[%s1683 + $0x24] sm:$0xf]
      %v1694 = vld [vmem:[%s1683 + $0x28] sm:$0xf]
      %v1695 = vld [vmem:[%s1683 + $0x2c] sm:$0xf]
      %v1696 = vld [vmem:[%s1683 + $0x30] sm:$0xf]
      %v1697 = vld [vmem:[%s1683 + $0x34] sm:$0xf]
      %v1698 = vld [vmem:[%s1683 + $0x38] sm:$0xf]
      %v1699 = vld [vmem:[%s1683 + $0x3c] sm:$0xf]
      %v1716 = vunpack.c.l.b16 %v1684
      %v1717 = vunpack.c.l.b16 %v1685
      %v1718 = vunpack.c.l.b16 %v1686
      %v1719 = vunpack.c.l.b16 %v1687
      %v1720 = vunpack.c.l.b16 %v1688
      %v1721 = vunpack.c.l.b16 %v1689
      %v1722 = vunpack.c.l.b16 %v1690
      %v1723 = vunpack.c.l.b16 %v1691
      %v1724 = vunpack.c.l.b16 %v1692
      %v1725 = vunpack.c.l.b16 %v1693
      %v1726 = vunpack.c.l.b16 %v1694
      %v1727 = vunpack.c.l.b16 %v1695
      %v1728 = vunpack.c.l.b16 %v1696
      %v1729 = vunpack.c.l.b16 %v1697
      %v1730 = vunpack.c.l.b16 %v1698
      %v1731 = vunpack.c.l.b16 %v1699
      %v1732 = vpack.c.b16 %v1717, %v1716
      %v1733 = vpack.c.b16 %v1719, %v1718
      %v1734 = vpack.c.b16 %v1721, %v1720
      %v1735 = vpack.c.b16 %v1723, %v1722
      %v1736 = vpack.c.b16 %v1725, %v1724
      %v1737 = vpack.c.b16 %v1727, %v1726
      %v1738 = vpack.c.b16 %v1729, %v1728
      %v1739 = vpack.c.b16 %v1731, %v1730
      %1748 = vmatprep.subr.bf16.mxu0 0
      %1749 = vmatpush1.bf16.msra.mxu0 %v1732
      %1750 = vmatprep.subr.bf16.mxu0 0
      %1751 = vmatpush1.bf16.msra.mxu0 %v1733
      %1752 = vmatprep.subr.bf16.mxu0 0
      %1753 = vmatpush1.bf16.msra.mxu0 %v1734
      %1754 = vmatprep.subr.bf16.mxu0 0
      %1755 = vmatpush1.bf16.msra.mxu0 %v1735
      %1756 = vmatprep.subr.bf16.mxu0 0
      %1757 = vmatpush1.bf16.msra.mxu0 %v1736
      %1758 = vmatprep.subr.bf16.mxu0 0
      %1759 = vmatpush1.bf16.msra.mxu0 %v1737
      %1760 = vmatprep.subr.bf16.mxu0 0
      %1761 = vmatpush1.bf16.msra.mxu0 %v1738
      %1762 = vmatprep.subr.bf16.mxu0 0
      %1763 = vmatpush1.bf16.msra.mxu0 %v1739
      %1764 = vmatprep.subr.bf16.mxu0 0
      %1765 = vmatpush1.bf16.msra.mxu0 0
      %1766 = vmatprep.subr.bf16.mxu0 0
      %1767 = vmatpush1.bf16.msra.mxu0 0
      %1768 = vmatprep.subr.bf16.mxu0 0
      %1769 = vmatpush1.bf16.msra.mxu0 0
      %1770 = vmatprep.subr.bf16.mxu0 0
      %1771 = vmatpush1.bf16.msra.mxu0 0
      %1772 = vmatprep.subr.bf16.mxu0 0
      %1773 = vmatpush1.bf16.msra.mxu0 0
      %1774 = vmatprep.subr.bf16.mxu0 0
      %1775 = vmatpush1.bf16.msra.mxu0 0
      %1776 = vmatprep.subr.bf16.mxu0 0
      %1777 = vmatpush1.bf16.msra.mxu0 0
      %1778 = vmatprep.subr.bf16.mxu0 0
      %1779 = vmatpush1.bf16.msra.mxu0 0
      %1780 = vmatprep.mubr.bf16.mxu0 0
      %1781 = vmatmul.mubr.bf16.gmra.mrb[0].mxu0 %v1679
      %v1782 = vpop.f32.mrb[0].mxu0
      %v1783 = vadd.f32 0.0, %v1782
      %v1784 = vpop.f32.mrb[0].mxu0
      %v1785 = vpop.f32.mrb[0].mxu0
      %v1786 = vadd.f32 0.0, %v1785
      %v1787 = vpop.f32.mrb[0].mxu0
      %1788 = vmatprep.mubr.bf16.mxu0 0
      %1789 = vmatmul.mubr.bf16.gmra.mrb[0].mxu0 %v1680
      %v1790 = vpop.f32.mrb[0].mxu0
      %v1791 = vadd.f32 0.0, %v1790
      %v1792 = vpop.f32.mrb[0].mxu0
      %v1793 = vpop.f32.mrb[0].mxu0
      %v1794 = vadd.f32 0.0, %v1793
      %v1795 = vpop.f32.mrb[0].mxu0
      %1796 = vmatprep.mubr.bf16.mxu0 0
      %1797 = vmatmul.mubr.bf16.gmra.mrb[0].mxu0 %v1681
      %v1798 = vpop.f32.mrb[0].mxu0
      %v1799 = vadd.f32 0.0, %v1798
      %v1800 = vpop.f32.mrb[0].mxu0
      %v1801 = vpop.f32.mrb[0].mxu0
      %v1802 = vadd.f32 0.0, %v1801
      %v1803 = vpop.f32.mrb[0].mxu0
      %1804 = vmatprep.mubr.bf16.mxu0 0
      %1805 = vmatmul.mubr.bf16.gmra.mrb[0].mxu0 %v1682
      %v1806 = vpop.f32.mrb[0].mxu0
      %v1807 = vadd.f32 0.0, %v1806
      %v1808 = vpop.f32.mrb[0].mxu0
      %v1809 = vpop.f32.mrb[0].mxu0
      %v1810 = vadd.f32 0.0, %v1809
      %v1811 = vpop.f32.mrb[0].mxu0
      %1812 = vdwg.mxu0
      %v1813 = vadd.f32 %v1663, %v1783
      %v1814 = vadd.f32 %v1664, %v1786
      %v1815 = vadd.f32 %v1665, %v1791
      %v1816 = vadd.f32 %v1666, %v1794
      %v1817 = vadd.f32 %v1667, %v1799
      %v1818 = vadd.f32 %v1668, %v1802
      %v1819 = vadd.f32 %v1669, %v1807
      %v1820 = vadd.f32 %v1670, %v1810
      %v1821 = vld [vmem:[#allocation2 + $0xa] sm:$0xff]
      %v1822 = vld [vmem:[#allocation2 + $0x12] sm:$0xff]
      %v1823 = vld [vmem:[#allocation2 + $0x1a] sm:$0xff]
      %v1824 = vld [vmem:[#allocation2 + $0x22] sm:$0xff]
      %v1825 = vld [vmem:[#allocation2 + $0x2a] sm:$0xff]
      %v1826 = vld [vmem:[#allocation2 + $0x32] sm:$0xff]
      %v1827 = vld [vmem:[#allocation2 + $0x3a] sm:$0xff]
      %v1828 = vld [vmem:[#allocation2 + $0x42] sm:$0x1f]
      %v1829 = vpack.c.bf16 %v1822, %v1821
      %v1830 = vpack.c.bf16 %v1824, %v1823
      %v1831 = vpack.c.bf16 %v1826, %v1825
      %v1832 = vpack.c.bf16 %v1828, %v1827
      %s1833 = scalar_lea.vmem %s6, 256
      %v1834 = vld [vmem:[%s1833] sm:$0xf]
      %v1835 = vld [vmem:[%s1833 + $0x4] sm:$0xf]
      %v1836 = vld [vmem:[%s1833 + $0x8] sm:$0xf]
      %v1837 = vld [vmem:[%s1833 + $0xc] sm:$0xf]
      %v1838 = vld [vmem:[%s1833 + $0x10] sm:$0xf]
      %v1839 = vld [vmem:[%s1833 + $0x14] sm:$0xf]
      %v1840 = vld [vmem:[%s1833 + $0x18] sm:$0xf]
      %v1841 = vld [vmem:[%s1833 + $0x1c] sm:$0xf]
      %v1842 = vld [vmem:[%s1833 + $0x20] sm:$0xf]
      %v1843 = vld [vmem:[%s1833 + $0x24] sm:$0xf]
      %v1844 = vld [vmem:[%s1833 + $0x28] sm:$0xf]
      %v1845 = vld [vmem:[%s1833 + $0x2c] sm:$0xf]
      %v1846 = vld [vmem:[%s1833 + $0x30] sm:$0xf]
      %v1847 = vld [vmem:[%s1833 + $0x34] sm:$0xf]
      %v1848 = vld [vmem:[%s1833 + $0x38] sm:$0xf]
      %v1849 = vld [vmem:[%s1833 + $0x3c] sm:$0xf]
      %v1866 = vunpack.c.l.b16 %v1834
      %v1867 = vunpack.c.l.b16 %v1835
      %v1868 = vunpack.c.l.b16 %v1836
      %v1869 = vunpack.c.l.b16 %v1837
      %v1870 = vunpack.c.l.b16 %v1838
      %v1871 = vunpack.c.l.b16 %v1839
      %v1872 = vunpack.c.l.b16 %v1840
      %v1873 = vunpack.c.l.b16 %v1841
      %v1874 = vunpack.c.l.b16 %v1842
      %v1875 = vunpack.c.l.b16 %v1843
      %v1876 = vunpack.c.l.b16 %v1844
      %v1877 = vunpack.c.l.b16 %v1845
      %v1878 = vunpack.c.l.b16 %v1846
      %v1879 = vunpack.c.l.b16 %v1847
      %v1880 = vunpack.c.l.b16 %v1848
      %v1881 = vunpack.c.l.b16 %v1849
      %v1882 = vpack.c.b16 %v1867, %v1866
      %v1883 = vpack.c.b16 %v1869, %v1868
      %v1884 = vpack.c.b16 %v1871, %v1870
      %v1885 = vpack.c.b16 %v1873, %v1872
      %v1886 = vpack.c.b16 %v1875, %v1874
      %v1887 = vpack.c.b16 %v1877, %v1876
      %v1888 = vpack.c.b16 %v1879, %v1878
      %v1889 = vpack.c.b16 %v1881, %v1880
      %1898 = vmatprep.subr.bf16.mxu0 0
      %1899 = vmatpush1.bf16.msra.mxu0 %v1882
      %1900 = vmatprep.subr.bf16.mxu0 0
      %1901 = vmatpush1.bf16.msra.mxu0 %v1883
      %1902 = vmatprep.subr.bf16.mxu0 0
      %1903 = vmatpush1.bf16.msra.mxu0 %v1884
      %1904 = vmatprep.subr.bf16.mxu0 0
      %1905 = vmatpush1.bf16.msra.mxu0 %v1885
      %1906 = vmatprep.subr.bf16.mxu0 0
      %1907 = vmatpush1.bf16.msra.mxu0 %v1886
      %1908 = vmatprep.subr.bf16.mxu0 0
      %1909 = vmatpush1.bf16.msra.mxu0 %v1887
      %1910 = vmatprep.subr.bf16.mxu0 0
      %1911 = vmatpush1.bf16.msra.mxu0 %v1888
      %1912 = vmatprep.subr.bf16.mxu0 0
      %1913 = vmatpush1.bf16.msra.mxu0 %v1889
      %1914 = vmatprep.subr.bf16.mxu0 0
      %1915 = vmatpush1.bf16.msra.mxu0 0
      %1916 = vmatprep.subr.bf16.mxu0 0
      %1917 = vmatpush1.bf16.msra.mxu0 0
      %1918 = vmatprep.subr.bf16.mxu0 0
      %1919 = vmatpush1.bf16.msra.mxu0 0
      %1920 = vmatprep.subr.bf16.mxu0 0
      %1921 = vmatpush1.bf16.msra.mxu0 0
      %1922 = vmatprep.subr.bf16.mxu0 0
      %1923 = vmatpush1.bf16.msra.mxu0 0
      %1924 = vmatprep.subr.bf16.mxu0 0
      %1925 = vmatpush1.bf16.msra.mxu0 0
      %1926 = vmatprep.subr.bf16.mxu0 0
      %1927 = vmatpush1.bf16.msra.mxu0 0
      %1928 = vmatprep.subr.bf16.mxu0 0
      %1929 = vmatpush1.bf16.msra.mxu0 0
      %1930 = vmatprep.mubr.bf16.mxu0 0
      %1931 = vmatmul.mubr.bf16.gmra.mrb[0].mxu0 %v1829
      %v1932 = vpop.f32.mrb[0].mxu0
      %v1933 = vadd.f32 0.0, %v1932
      %v1934 = vpop.f32.mrb[0].mxu0
      %v1935 = vpop.f32.mrb[0].mxu0
      %v1936 = vadd.f32 0.0, %v1935
      %v1937 = vpop.f32.mrb[0].mxu0
      %1938 = vmatprep.mubr.bf16.mxu0 0
      %1939 = vmatmul.mubr.bf16.gmra.mrb[0].mxu0 %v1830
      %v1940 = vpop.f32.mrb[0].mxu0
      %v1941 = vadd.f32 0.0, %v1940
      %v1942 = vpop.f32.mrb[0].mxu0
      %v1943 = vpop.f32.mrb[0].mxu0
      %v1944 = vadd.f32 0.0, %v1943
      %v1945 = vpop.f32.mrb[0].mxu0
      %1946 = vmatprep.mubr.bf16.mxu0 0
      %1947 = vmatmul.mubr.bf16.gmra.mrb[0].mxu0 %v1831
      %v1948 = vpop.f32.mrb[0].mxu0
      %v1949 = vadd.f32 0.0, %v1948
      %v1950 = vpop.f32.mrb[0].mxu0
      %v1951 = vpop.f32.mrb[0].mxu0
      %v1952 = vadd.f32 0.0, %v1951
      %v1953 = vpop.f32.mrb[0].mxu0
      %1954 = vmatprep.mubr.bf16.mxu0 0
      %1955 = vmatmul.mubr.bf16.gmra.mrb[0].mxu0 %v1832
      %v1956 = vpop.f32.mrb[0].mxu0
      %v1957 = vadd.f32 0.0, %v1956
      %v1958 = vpop.f32.mrb[0].mxu0
      %v1959 = vpop.f32.mrb[0].mxu0
      %v1960 = vadd.f32 0.0, %v1959
      %v1961 = vpop.f32.mrb[0].mxu0
      %1962 = vdwg.mxu0
      %v1963 = vadd.f32 %v1813, %v1933
      %v1964 = vadd.f32 %v1814, %v1936
      %v1965 = vadd.f32 %v1815, %v1941
      %v1966 = vadd.f32 %v1816, %v1944
      %v1967 = vadd.f32 %v1817, %v1949
      %v1968 = vadd.f32 %v1818, %v1952
      %v1969 = vadd.f32 %v1819, %v1957
      %v1970 = vadd.f32 %v1820, %v1960
      %v1971 = vld [vmem:[#allocation2 + $0xb] sm:$0xff]
      %v1972 = vld [vmem:[#allocation2 + $0x13] sm:$0xff]
      %v1973 = vld [vmem:[#allocation2 + $0x1b] sm:$0xff]
      %v1974 = vld [vmem:[#allocation2 + $0x23] sm:$0xff]
      %v1975 = vld [vmem:[#allocation2 + $0x2b] sm:$0xff]
      %v1976 = vld [vmem:[#allocation2 + $0x33] sm:$0xff]
      %v1977 = vld [vmem:[#allocation2 + $0x3b] sm:$0xff]
      %v1978 = vld [vmem:[#allocation2 + $0x43] sm:$0x1f]
      %v1979 = vpack.c.bf16 %v1972, %v1971
      %v1980 = vpack.c.bf16 %v1974, %v1973
      %v1981 = vpack.c.bf16 %v1976, %v1975
      %v1982 = vpack.c.bf16 %v1978, %v1977
      %s1983 = scalar_lea.vmem %s6, 320
      %v1984 = vld [vmem:[%s1983] sm:$0xf]
      %v1985 = vld [vmem:[%s1983 + $0x4] sm:$0xf]
      %v1986 = vld [vmem:[%s1983 + $0x8] sm:$0xf]
      %v1987 = vld [vmem:[%s1983 + $0xc] sm:$0xf]
      %v1988 = vld [vmem:[%s1983 + $0x10] sm:$0xf]
      %v1989 = vld [vmem:[%s1983 + $0x14] sm:$0xf]
      %v1990 = vld [vmem:[%s1983 + $0x18] sm:$0xf]
      %v1991 = vld [vmem:[%s1983 + $0x1c] sm:$0xf]
      %v1992 = vld [vmem:[%s1983 + $0x20] sm:$0xf]
      %v1993 = vld [vmem:[%s1983 + $0x24] sm:$0xf]
      %v1994 = vld [vmem:[%s1983 + $0x28] sm:$0xf]
      %v1995 = vld [vmem:[%s1983 + $0x2c] sm:$0xf]
      %v1996 = vld [vmem:[%s1983 + $0x30] sm:$0xf]
      %v1997 = vld [vmem:[%s1983 + $0x34] sm:$0xf]
      %v1998 = vld [vmem:[%s1983 + $0x38] sm:$0xf]
      %v1999 = vld [vmem:[%s1983 + $0x3c] sm:$0xf]
      %v2016 = vunpack.c.l.b16 %v1984
      %v2017 = vunpack.c.l.b16 %v1985
      %v2018 = vunpack.c.l.b16 %v1986
      %v2019 = vunpack.c.l.b16 %v1987
      %v2020 = vunpack.c.l.b16 %v1988
      %v2021 = vunpack.c.l.b16 %v1989
      %v2022 = vunpack.c.l.b16 %v1990
      %v2023 = vunpack.c.l.b16 %v1991
      %v2024 = vunpack.c.l.b16 %v1992
      %v2025 = vunpack.c.l.b16 %v1993
      %v2026 = vunpack.c.l.b16 %v1994
      %v2027 = vunpack.c.l.b16 %v1995
      %v2028 = vunpack.c.l.b16 %v1996
      %v2029 = vunpack.c.l.b16 %v1997
      %v2030 = vunpack.c.l.b16 %v1998
      %v2031 = vunpack.c.l.b16 %v1999
      %v2032 = vpack.c.b16 %v2017, %v2016
      %v2033 = vpack.c.b16 %v2019, %v2018
      %v2034 = vpack.c.b16 %v2021, %v2020
      %v2035 = vpack.c.b16 %v2023, %v2022
      %v2036 = vpack.c.b16 %v2025, %v2024
      %v2037 = vpack.c.b16 %v2027, %v2026
      %v2038 = vpack.c.b16 %v2029, %v2028
      %v2039 = vpack.c.b16 %v2031, %v2030
      %2048 = vmatprep.subr.bf16.mxu0 0
      %2049 = vmatpush1.bf16.msra.mxu0 %v2032
      %2050 = vmatprep.subr.bf16.mxu0 0
      %2051 = vmatpush1.bf16.msra.mxu0 %v2033
      %2052 = vmatprep.subr.bf16.mxu0 0
      %2053 = vmatpush1.bf16.msra.mxu0 %v2034
      %2054 = vmatprep.subr.bf16.mxu0 0
      %2055 = vmatpush1.bf16.msra.mxu0 %v2035
      %2056 = vmatprep.subr.bf16.mxu0 0
      %2057 = vmatpush1.bf16.msra.mxu0 %v2036
      %2058 = vmatprep.subr.bf16.mxu0 0
      %2059 = vmatpush1.bf16.msra.mxu0 %v2037
      %2060 = vmatprep.subr.bf16.mxu0 0
      %2061 = vmatpush1.bf16.msra.mxu0 %v2038
      %2062 = vmatprep.subr.bf16.mxu0 0
      %2063 = vmatpush1.bf16.msra.mxu0 %v2039
      %2064 = vmatprep.subr.bf16.mxu0 0
      %2065 = vmatpush1.bf16.msra.mxu0 0
      %2066 = vmatprep.subr.bf16.mxu0 0
      %2067 = vmatpush1.bf16.msra.mxu0 0
      %2068 = vmatprep.subr.bf16.mxu0 0
      %2069 = vmatpush1.bf16.msra.mxu0 0
      %2070 = vmatprep.subr.bf16.mxu0 0
      %2071 = vmatpush1.bf16.msra.mxu0 0
      %2072 = vmatprep.subr.bf16.mxu0 0
      %2073 = vmatpush1.bf16.msra.mxu0 0
      %2074 = vmatprep.subr.bf16.mxu0 0
      %2075 = vmatpush1.bf16.msra.mxu0 0
      %2076 = vmatprep.subr.bf16.mxu0 0
      %2077 = vmatpush1.bf16.msra.mxu0 0
      %2078 = vmatprep.subr.bf16.mxu0 0
      %2079 = vmatpush1.bf16.msra.mxu0 0
      %2080 = vmatprep.mubr.bf16.mxu0 0
      %2081 = vmatmul.mubr.bf16.gmra.mrb[0].mxu0 %v1979
      %v2082 = vpop.f32.mrb[0].mxu0
      %v2083 = vadd.f32 0.0, %v2082
      %v2084 = vpop.f32.mrb[0].mxu0
      %v2085 = vpop.f32.mrb[0].mxu0
      %v2086 = vadd.f32 0.0, %v2085
      %v2087 = vpop.f32.mrb[0].mxu0
      %2088 = vmatprep.mubr.bf16.mxu0 0
      %2089 = vmatmul.mubr.bf16.gmra.mrb[0].mxu0 %v1980
      %v2090 = vpop.f32.mrb[0].mxu0
      %v2091 = vadd.f32 0.0, %v2090
      %v2092 = vpop.f32.mrb[0].mxu0
      %v2093 = vpop.f32.mrb[0].mxu0
      %v2094 = vadd.f32 0.0, %v2093
      %v2095 = vpop.f32.mrb[0].mxu0
      %2096 = vmatprep.mubr.bf16.mxu0 0
      %2097 = vmatmul.mubr.bf16.gmra.mrb[0].mxu0 %v1981
      %v2098 = vpop.f32.mrb[0].mxu0
      %v2099 = vadd.f32 0.0, %v2098
      %v2100 = vpop.f32.mrb[0].mxu0
      %v2101 = vpop.f32.mrb[0].mxu0
      %v2102 = vadd.f32 0.0, %v2101
      %v2103 = vpop.f32.mrb[0].mxu0
      %2104 = vmatprep.mubr.bf16.mxu0 0
      %2105 = vmatmul.mubr.bf16.gmra.mrb[0].mxu0 %v1982
      %v2106 = vpop.f32.mrb[0].mxu0
      %v2107 = vadd.f32 0.0, %v2106
      %v2108 = vpop.f32.mrb[0].mxu0
      %v2109 = vpop.f32.mrb[0].mxu0
      %v2110 = vadd.f32 0.0, %v2109
      %v2111 = vpop.f32.mrb[0].mxu0
      %2112 = vdwg.mxu0
      %v2113 = vadd.f32 %v1963, %v2083
      %v2114 = vadd.f32 %v1964, %v2086
      %v2115 = vadd.f32 %v1965, %v2091
      %v2116 = vadd.f32 %v1966, %v2094
      %v2117 = vadd.f32 %v1967, %v2099
      %v2118 = vadd.f32 %v1968, %v2102
      %v2119 = vadd.f32 %v1969, %v2107
      %v2120 = vadd.f32 %v1970, %v2110
      %v2121 = vld [vmem:[#allocation2 + $0x12] sm:$0xff]
      %v2122 = vld [vmem:[#allocation2 + $0x1a] sm:$0xff]
      %v2123 = vld [vmem:[#allocation2 + $0x22] sm:$0xff]
      %v2124 = vld [vmem:[#allocation2 + $0x2a] sm:$0xff]
      %v2125 = vld [vmem:[#allocation2 + $0x32] sm:$0xff]
      %v2126 = vld [vmem:[#allocation2 + $0x3a] sm:$0xff]
      %v2127 = vld [vmem:[#allocation2 + $0x42] sm:$0xff]
      %v2128 = vld [vmem:[#allocation2 + $0x4a] sm:$0x1f]
      %v2129 = vpack.c.bf16 %v2122, %v2121
      %v2130 = vpack.c.bf16 %v2124, %v2123
      %v2131 = vpack.c.bf16 %v2126, %v2125
      %v2132 = vpack.c.bf16 %v2128, %v2127
      %s2133 = scalar_lea.vmem %s6, 384
      %v2134 = vld [vmem:[%s2133] sm:$0xf]
      %v2135 = vld [vmem:[%s2133 + $0x4] sm:$0xf]
      %v2136 = vld [vmem:[%s2133 + $0x8] sm:$0xf]
      %v2137 = vld [vmem:[%s2133 + $0xc] sm:$0xf]
      %v2138 = vld [vmem:[%s2133 + $0x10] sm:$0xf]
      %v2139 = vld [vmem:[%s2133 + $0x14] sm:$0xf]
      %v2140 = vld [vmem:[%s2133 + $0x18] sm:$0xf]
      %v2141 = vld [vmem:[%s2133 + $0x1c] sm:$0xf]
      %v2142 = vld [vmem:[%s2133 + $0x20] sm:$0xf]
      %v2143 = vld [vmem:[%s2133 + $0x24] sm:$0xf]
      %v2144 = vld [vmem:[%s2133 + $0x28] sm:$0xf]
      %v2145 = vld [vmem:[%s2133 + $0x2c] sm:$0xf]
      %v2146 = vld [vmem:[%s2133 + $0x30] sm:$0xf]
      %v2147 = vld [vmem:[%s2133 + $0x34] sm:$0xf]
      %v2148 = vld [vmem:[%s2133 + $0x38] sm:$0xf]
      %v2149 = vld [vmem:[%s2133 + $0x3c] sm:$0xf]
      %v2166 = vunpack.c.l.b16 %v2134
      %v2167 = vunpack.c.l.b16 %v2135
      %v2168 = vunpack.c.l.b16 %v2136
      %v2169 = vunpack.c.l.b16 %v2137
      %v2170 = vunpack.c.l.b16 %v2138
      %v2171 = vunpack.c.l.b16 %v2139
      %v2172 = vunpack.c.l.b16 %v2140
      %v2173 = vunpack.c.l.b16 %v2141
      %v2174 = vunpack.c.l.b16 %v2142
      %v2175 = vunpack.c.l.b16 %v2143
      %v2176 = vunpack.c.l.b16 %v2144
      %v2177 = vunpack.c.l.b16 %v2145
      %v2178 = vunpack.c.l.b16 %v2146
      %v2179 = vunpack.c.l.b16 %v2147
      %v2180 = vunpack.c.l.b16 %v2148
      %v2181 = vunpack.c.l.b16 %v2149
      %v2182 = vpack.c.b16 %v2167, %v2166
      %v2183 = vpack.c.b16 %v2169, %v2168
      %v2184 = vpack.c.b16 %v2171, %v2170
      %v2185 = vpack.c.b16 %v2173, %v2172
      %v2186 = vpack.c.b16 %v2175, %v2174
      %v2187 = vpack.c.b16 %v2177, %v2176
      %v2188 = vpack.c.b16 %v2179, %v2178
      %v2189 = vpack.c.b16 %v2181, %v2180
      %2198 = vmatprep.subr.bf16.mxu0 0
      %2199 = vmatpush1.bf16.msra.mxu0 %v2182
      %2200 = vmatprep.subr.bf16.mxu0 0
      %2201 = vmatpush1.bf16.msra.mxu0 %v2183
      %2202 = vmatprep.subr.bf16.mxu0 0
      %2203 = vmatpush1.bf16.msra.mxu0 %v2184
      %2204 = vmatprep.subr.bf16.mxu0 0
      %2205 = vmatpush1.bf16.msra.mxu0 %v2185
      %2206 = vmatprep.subr.bf16.mxu0 0
      %2207 = vmatpush1.bf16.msra.mxu0 %v2186
      %2208 = vmatprep.subr.bf16.mxu0 0
      %2209 = vmatpush1.bf16.msra.mxu0 %v2187
      %2210 = vmatprep.subr.bf16.mxu0 0
      %2211 = vmatpush1.bf16.msra.mxu0 %v2188
      %2212 = vmatprep.subr.bf16.mxu0 0
      %2213 = vmatpush1.bf16.msra.mxu0 %v2189
      %2214 = vmatprep.subr.bf16.mxu0 0
      %2215 = vmatpush1.bf16.msra.mxu0 0
      %2216 = vmatprep.subr.bf16.mxu0 0
      %2217 = vmatpush1.bf16.msra.mxu0 0
      %2218 = vmatprep.subr.bf16.mxu0 0
      %2219 = vmatpush1.bf16.msra.mxu0 0
      %2220 = vmatprep.subr.bf16.mxu0 0
      %2221 = vmatpush1.bf16.msra.mxu0 0
      %2222 = vmatprep.subr.bf16.mxu0 0
      %2223 = vmatpush1.bf16.msra.mxu0 0
      %2224 = vmatprep.subr.bf16.mxu0 0
      %2225 = vmatpush1.bf16.msra.mxu0 0
      %2226 = vmatprep.subr.bf16.mxu0 0
      %2227 = vmatpush1.bf16.msra.mxu0 0
      %2228 = vmatprep.subr.bf16.mxu0 0
      %2229 = vmatpush1.bf16.msra.mxu0 0
      %2230 = vmatprep.mubr.bf16.mxu0 0
      %2231 = vmatmul.mubr.bf16.gmra.mrb[0].mxu0 %v2129
      %v2232 = vpop.f32.mrb[0].mxu0
      %v2233 = vadd.f32 0.0, %v2232
      %v2234 = vpop.f32.mrb[0].mxu0
      %v2235 = vpop.f32.mrb[0].mxu0
      %v2236 = vadd.f32 0.0, %v2235
      %v2237 = vpop.f32.mrb[0].mxu0
      %2238 = vmatprep.mubr.bf16.mxu0 0
      %2239 = vmatmul.mubr.bf16.gmra.mrb[0].mxu0 %v2130
      %v2240 = vpop.f32.mrb[0].mxu0
      %v2241 = vadd.f32 0.0, %v2240
      %v2242 = vpop.f32.mrb[0].mxu0
      %v2243 = vpop.f32.mrb[0].mxu0
      %v2244 = vadd.f32 0.0, %v2243
      %v2245 = vpop.f32.mrb[0].mxu0
      %2246 = vmatprep.mubr.bf16.mxu0 0
      %2247 = vmatmul.mubr.bf16.gmra.mrb[0].mxu0 %v2131
      %v2248 = vpop.f32.mrb[0].mxu0
      %v2249 = vadd.f32 0.0, %v2248
      %v2250 = vpop.f32.mrb[0].mxu0
      %v2251 = vpop.f32.mrb[0].mxu0
      %v2252 = vadd.f32 0.0, %v2251
      %v2253 = vpop.f32.mrb[0].mxu0
      %2254 = vmatprep.mubr.bf16.mxu0 0
      %2255 = vmatmul.mubr.bf16.gmra.mrb[0].mxu0 %v2132
      %v2256 = vpop.f32.mrb[0].mxu0
      %v2257 = vadd.f32 0.0, %v2256
      %v2258 = vpop.f32.mrb[0].mxu0
      %v2259 = vpop.f32.mrb[0].mxu0
      %v2260 = vadd.f32 0.0, %v2259
      %v2261 = vpop.f32.mrb[0].mxu0
      %2262 = vdwg.mxu0
      %v2263 = vadd.f32 %v2113, %v2233
      %v2264 = vadd.f32 %v2114, %v2236
      %v2265 = vadd.f32 %v2115, %v2241
      %v2266 = vadd.f32 %v2116, %v2244
      %v2267 = vadd.f32 %v2117, %v2249
      %v2268 = vadd.f32 %v2118, %v2252
      %v2269 = vadd.f32 %v2119, %v2257
      %v2270 = vadd.f32 %v2120, %v2260
      %v2271 = vld [vmem:[#allocation2 + $0x13] sm:$0xff]
      %v2272 = vld [vmem:[#allocation2 + $0x1b] sm:$0xff]
      %v2273 = vld [vmem:[#allocation2 + $0x23] sm:$0xff]
      %v2274 = vld [vmem:[#allocation2 + $0x2b] sm:$0xff]
      %v2275 = vld [vmem:[#allocation2 + $0x33] sm:$0xff]
      %v2276 = vld [vmem:[#allocation2 + $0x3b] sm:$0xff]
      %v2277 = vld [vmem:[#allocation2 + $0x43] sm:$0xff]
      %v2278 = vld [vmem:[#allocation2 + $0x4b] sm:$0x1f]
      %v2279 = vpack.c.bf16 %v2272, %v2271
      %v2280 = vpack.c.bf16 %v2274, %v2273
      %v2281 = vpack.c.bf16 %v2276, %v2275
      %v2282 = vpack.c.bf16 %v2278, %v2277
      %s2283 = scalar_lea.vmem %s6, 448
      %v2284 = vld [vmem:[%s2283] sm:$0xf]
      %v2285 = vld [vmem:[%s2283 + $0x4] sm:$0xf]
      %v2286 = vld [vmem:[%s2283 + $0x8] sm:$0xf]
      %v2287 = vld [vmem:[%s2283 + $0xc] sm:$0xf]
      %v2288 = vld [vmem:[%s2283 + $0x10] sm:$0xf]
      %v2289 = vld [vmem:[%s2283 + $0x14] sm:$0xf]
      %v2290 = vld [vmem:[%s2283 + $0x18] sm:$0xf]
      %v2291 = vld [vmem:[%s2283 + $0x1c] sm:$0xf]
      %v2292 = vld [vmem:[%s2283 + $0x20] sm:$0xf]
      %v2293 = vld [vmem:[%s2283 + $0x24] sm:$0xf]
      %v2294 = vld [vmem:[%s2283 + $0x28] sm:$0xf]
      %v2295 = vld [vmem:[%s2283 + $0x2c] sm:$0xf]
      %v2296 = vld [vmem:[%s2283 + $0x30] sm:$0xf]
      %v2297 = vld [vmem:[%s2283 + $0x34] sm:$0xf]
      %v2298 = vld [vmem:[%s2283 + $0x38] sm:$0xf]
      %v2299 = vld [vmem:[%s2283 + $0x3c] sm:$0xf]
      %v2316 = vunpack.c.l.b16 %v2284
      %v2317 = vunpack.c.l.b16 %v2285
      %v2318 = vunpack.c.l.b16 %v2286
      %v2319 = vunpack.c.l.b16 %v2287
      %v2320 = vunpack.c.l.b16 %v2288
      %v2321 = vunpack.c.l.b16 %v2289
      %v2322 = vunpack.c.l.b16 %v2290
      %v2323 = vunpack.c.l.b16 %v2291
      %v2324 = vunpack.c.l.b16 %v2292
      %v2325 = vunpack.c.l.b16 %v2293
      %v2326 = vunpack.c.l.b16 %v2294
      %v2327 = vunpack.c.l.b16 %v2295
      %v2328 = vunpack.c.l.b16 %v2296
      %v2329 = vunpack.c.l.b16 %v2297
      %v2330 = vunpack.c.l.b16 %v2298
      %v2331 = vunpack.c.l.b16 %v2299
      %v2332 = vpack.c.b16 %v2317, %v2316
      %v2333 = vpack.c.b16 %v2319, %v2318
      %v2334 = vpack.c.b16 %v2321, %v2320
      %v2335 = vpack.c.b16 %v2323, %v2322
      %v2336 = vpack.c.b16 %v2325, %v2324
      %v2337 = vpack.c.b16 %v2327, %v2326
      %v2338 = vpack.c.b16 %v2329, %v2328
      %v2339 = vpack.c.b16 %v2331, %v2330
      %2348 = vmatprep.subr.bf16.mxu0 0
      %2349 = vmatpush1.bf16.msra.mxu0 %v2332
      %2350 = vmatprep.subr.bf16.mxu0 0
      %2351 = vmatpush1.bf16.msra.mxu0 %v2333
      %2352 = vmatprep.subr.bf16.mxu0 0
      %2353 = vmatpush1.bf16.msra.mxu0 %v2334
      %2354 = vmatprep.subr.bf16.mxu0 0
      %2355 = vmatpush1.bf16.msra.mxu0 %v2335
      %2356 = vmatprep.subr.bf16.mxu0 0
      %2357 = vmatpush1.bf16.msra.mxu0 %v2336
      %2358 = vmatprep.subr.bf16.mxu0 0
      %2359 = vmatpush1.bf16.msra.mxu0 %v2337
      %2360 = vmatprep.subr.bf16.mxu0 0
      %2361 = vmatpush1.bf16.msra.mxu0 %v2338
      %2362 = vmatprep.subr.bf16.mxu0 0
      %2363 = vmatpush1.bf16.msra.mxu0 %v2339
      %2364 = vmatprep.subr.bf16.mxu0 0
      %2365 = vmatpush1.bf16.msra.mxu0 0
      %2366 = vmatprep.subr.bf16.mxu0 0
      %2367 = vmatpush1.bf16.msra.mxu0 0
      %2368 = vmatprep.subr.bf16.mxu0 0
      %2369 = vmatpush1.bf16.msra.mxu0 0
      %2370 = vmatprep.subr.bf16.mxu0 0
      %2371 = vmatpush1.bf16.msra.mxu0 0
      %2372 = vmatprep.subr.bf16.mxu0 0
      %2373 = vmatpush1.bf16.msra.mxu0 0
      %2374 = vmatprep.subr.bf16.mxu0 0
      %2375 = vmatpush1.bf16.msra.mxu0 0
      %2376 = vmatprep.subr.bf16.mxu0 0
      %2377 = vmatpush1.bf16.msra.mxu0 0
      %2378 = vmatprep.subr.bf16.mxu0 0
      %2379 = vmatpush1.bf16.msra.mxu0 0
      %2380 = vmatprep.mubr.bf16.mxu0 0
      %2381 = vmatmul.mubr.bf16.gmra.mrb[0].mxu0 %v2279
      %v2382 = vpop.f32.mrb[0].mxu0
      %v2383 = vadd.f32 0.0, %v2382
      %v2384 = vpop.f32.mrb[0].mxu0
      %v2385 = vpop.f32.mrb[0].mxu0
      %v2386 = vadd.f32 0.0, %v2385
      %v2387 = vpop.f32.mrb[0].mxu0
      %2388 = vmatprep.mubr.bf16.mxu0 0
      %2389 = vmatmul.mubr.bf16.gmra.mrb[0].mxu0 %v2280
      %v2390 = vpop.f32.mrb[0].mxu0
      %v2391 = vadd.f32 0.0, %v2390
      %v2392 = vpop.f32.mrb[0].mxu0
      %v2393 = vpop.f32.mrb[0].mxu0
      %v2394 = vadd.f32 0.0, %v2393
      %v2395 = vpop.f32.mrb[0].mxu0
      %2396 = vmatprep.mubr.bf16.mxu0 0
      %2397 = vmatmul.mubr.bf16.gmra.mrb[0].mxu0 %v2281
      %v2398 = vpop.f32.mrb[0].mxu0
      %v2399 = vadd.f32 0.0, %v2398
      %v2400 = vpop.f32.mrb[0].mxu0
      %v2401 = vpop.f32.mrb[0].mxu0
      %v2402 = vadd.f32 0.0, %v2401
      %v2403 = vpop.f32.mrb[0].mxu0
      %2404 = vmatprep.mubr.bf16.mxu0 0
      %2405 = vmatmul.mubr.bf16.gmra.mrb[0].mxu0 %v2282
      %v2406 = vpop.f32.mrb[0].mxu0
      %v2407 = vadd.f32 0.0, %v2406
      %v2408 = vpop.f32.mrb[0].mxu0
      %v2409 = vpop.f32.mrb[0].mxu0
      %v2410 = vadd.f32 0.0, %v2409
      %v2411 = vpop.f32.mrb[0].mxu0
      %2412 = vdwg.mxu0
      %v2413 = vadd.f32 %v2263, %v2383
      %v2414 = vadd.f32 %v2264, %v2386
      %v2415 = vadd.f32 %v2265, %v2391
      %v2416 = vadd.f32 %v2266, %v2394
      %v2417 = vadd.f32 %v2267, %v2399
      %v2418 = vadd.f32 %v2268, %v2402
      %v2419 = vadd.f32 %v2269, %v2407
      %v2420 = vadd.f32 %v2270, %v2410
      %v2421 = vld [vmem:[#allocation2 + $0x14] sm:$0xff]
      %v2422 = vld [vmem:[#allocation2 + $0x1c] sm:$0xff]
      %v2423 = vld [vmem:[#allocation2 + $0x24] sm:$0xff]
      %v2424 = vld [vmem:[#allocation2 + $0x2c] sm:$0xff]
      %v2425 = vld [vmem:[#allocation2 + $0x34] sm:$0xff]
      %v2426 = vld [vmem:[#allocation2 + $0x3c] sm:$0xff]
      %v2427 = vld [vmem:[#allocation2 + $0x44] sm:$0xff]
      %v2428 = vld [vmem:[#allocation2 + $0x4c] sm:$0x1f]
      %v2429 = vpack.c.bf16 %v2422, %v2421
      %v2430 = vpack.c.bf16 %v2424, %v2423
      %v2431 = vpack.c.bf16 %v2426, %v2425
      %v2432 = vpack.c.bf16 %v2428, %v2427
      %s2433 = scalar_lea.vmem %s6, 512
      %v2434 = vld [vmem:[%s2433] sm:$0xf]
      %v2435 = vld [vmem:[%s2433 + $0x4] sm:$0xf]
      %v2436 = vld [vmem:[%s2433 + $0x8] sm:$0xf]
      %v2437 = vld [vmem:[%s2433 + $0xc] sm:$0xf]
      %v2438 = vld [vmem:[%s2433 + $0x10] sm:$0xf]
      %v2439 = vld [vmem:[%s2433 + $0x14] sm:$0xf]
      %v2440 = vld [vmem:[%s2433 + $0x18] sm:$0xf]
      %v2441 = vld [vmem:[%s2433 + $0x1c] sm:$0xf]
      %v2442 = vld [vmem:[%s2433 + $0x20] sm:$0xf]
      %v2443 = vld [vmem:[%s2433 + $0x24] sm:$0xf]
      %v2444 = vld [vmem:[%s2433 + $0x28] sm:$0xf]
      %v2445 = vld [vmem:[%s2433 + $0x2c] sm:$0xf]
      %v2446 = vld [vmem:[%s2433 + $0x30] sm:$0xf]
      %v2447 = vld [vmem:[%s2433 + $0x34] sm:$0xf]
      %v2448 = vld [vmem:[%s2433 + $0x38] sm:$0xf]
      %v2449 = vld [vmem:[%s2433 + $0x3c] sm:$0xf]
      %v2466 = vunpack.c.l.b16 %v2434
      %v2467 = vunpack.c.l.b16 %v2435
      %v2468 = vunpack.c.l.b16 %v2436
      %v2469 = vunpack.c.l.b16 %v2437
      %v2470 = vunpack.c.l.b16 %v2438
      %v2471 = vunpack.c.l.b16 %v2439
      %v2472 = vunpack.c.l.b16 %v2440
      %v2473 = vunpack.c.l.b16 %v2441
      %v2474 = vunpack.c.l.b16 %v2442
      %v2475 = vunpack.c.l.b16 %v2443
      %v2476 = vunpack.c.l.b16 %v2444
      %v2477 = vunpack.c.l.b16 %v2445
      %v2478 = vunpack.c.l.b16 %v2446
      %v2479 = vunpack.c.l.b16 %v2447
      %v2480 = vunpack.c.l.b16 %v2448
      %v2481 = vunpack.c.l.b16 %v2449
      %v2482 = vpack.c.b16 %v2467, %v2466
      %v2483 = vpack.c.b16 %v2469, %v2468
      %v2484 = vpack.c.b16 %v2471, %v2470
      %v2485 = vpack.c.b16 %v2473, %v2472
      %v2486 = vpack.c.b16 %v2475, %v2474
      %v2487 = vpack.c.b16 %v2477, %v2476
      %v2488 = vpack.c.b16 %v2479, %v2478
      %v2489 = vpack.c.b16 %v2481, %v2480
      %2498 = vmatprep.subr.bf16.mxu0 0
      %2499 = vmatpush1.bf16.msra.mxu0 %v2482
      %2500 = vmatprep.subr.bf16.mxu0 0
      %2501 = vmatpush1.bf16.msra.mxu0 %v2483
      %2502 = vmatprep.subr.bf16.mxu0 0
      %2503 = vmatpush1.bf16.msra.mxu0 %v2484
      %2504 = vmatprep.subr.bf16.mxu0 0
      %2505 = vmatpush1.bf16.msra.mxu0 %v2485
      %2506 = vmatprep.subr.bf16.mxu0 0
      %2507 = vmatpush1.bf16.msra.mxu0 %v2486
      %2508 = vmatprep.subr.bf16.mxu0 0
      %2509 = vmatpush1.bf16.msra.mxu0 %v2487
      %2510 = vmatprep.subr.bf16.mxu0 0
      %2511 = vmatpush1.bf16.msra.mxu0 %v2488
      %2512 = vmatprep.subr.bf16.mxu0 0
      %2513 = vmatpush1.bf16.msra.mxu0 %v2489
      %2514 = vmatprep.subr.bf16.mxu0 0
      %2515 = vmatpush1.bf16.msra.mxu0 0
      %2516 = vmatprep.subr.bf16.mxu0 0
      %2517 = vmatpush1.bf16.msra.mxu0 0
      %2518 = vmatprep.subr.bf16.mxu0 0
      %2519 = vmatpush1.bf16.msra.mxu0 0
      %2520 = vmatprep.subr.bf16.mxu0 0
      %2521 = vmatpush1.bf16.msra.mxu0 0
      %2522 = vmatprep.subr.bf16.mxu0 0
      %2523 = vmatpush1.bf16.msra.mxu0 0
      %2524 = vmatprep.subr.bf16.mxu0 0
      %2525 = vmatpush1.bf16.msra.mxu0 0
      %2526 = vmatprep.subr.bf16.mxu0 0
      %2527 = vmatpush1.bf16.msra.mxu0 0
      %2528 = vmatprep.subr.bf16.mxu0 0
      %2529 = vmatpush1.bf16.msra.mxu0 0
      %2530 = vmatprep.mubr.bf16.mxu0 0
      %2531 = vmatmul.mubr.bf16.gmra.mrb[0].mxu0 %v2429
      %v2532 = vpop.f32.mrb[0].mxu0
      %v2533 = vadd.f32 0.0, %v2532
      %v2534 = vpop.f32.mrb[0].mxu0
      %v2535 = vpop.f32.mrb[0].mxu0
      %v2536 = vadd.f32 0.0, %v2535
      %v2537 = vpop.f32.mrb[0].mxu0
      %2538 = vmatprep.mubr.bf16.mxu0 0
      %2539 = vmatmul.mubr.bf16.gmra.mrb[0].mxu0 %v2430
      %v2540 = vpop.f32.mrb[0].mxu0
      %v2541 = vadd.f32 0.0, %v2540
      %v2542 = vpop.f32.mrb[0].mxu0
      %v2543 = vpop.f32.mrb[0].mxu0
      %v2544 = vadd.f32 0.0, %v2543
      %v2545 = vpop.f32.mrb[0].mxu0
      %2546 = vmatprep.mubr.bf16.mxu0 0
      %2547 = vmatmul.mubr.bf16.gmra.mrb[0].mxu0 %v2431
      %v2548 = vpop.f32.mrb[0].mxu0
      %v2549 = vadd.f32 0.0, %v2548
      %v2550 = vpop.f32.mrb[0].mxu0
      %v2551 = vpop.f32.mrb[0].mxu0
      %v2552 = vadd.f32 0.0, %v2551
      %v2553 = vpop.f32.mrb[0].mxu0
      %2554 = vmatprep.mubr.bf16.mxu0 0
      %2555 = vmatmul.mubr.bf16.gmra.mrb[0].mxu0 %v2432
      %v2556 = vpop.f32.mrb[0].mxu0
      %v2557 = vadd.f32 0.0, %v2556
      %v2558 = vpop.f32.mrb[0].mxu0
      %v2559 = vpop.f32.mrb[0].mxu0
      %v2560 = vadd.f32 0.0, %v2559
      %v2561 = vpop.f32.mrb[0].mxu0
      %2562 = vdwg.mxu0
      %v2563 = vadd.f32 %v2413, %v2533
      %v2564 = vadd.f32 %v2414, %v2536
      %v2565 = vadd.f32 %v2415, %v2541
      %v2566 = vadd.f32 %v2416, %v2544
      %v2567 = vadd.f32 %v2417, %v2549
      %v2568 = vadd.f32 %v2418, %v2552
      %v2569 = vadd.f32 %v2419, %v2557
      %v2570 = vadd.f32 %v2420, %v2560
      %v2571 = vld [vmem:[%s7] sm:$0x1]
      %v2573 = vlaneseq
      %v2574 = vshrl.u32 %v2573, 7
      %v2575 = vsub.s32 0, %v2574
      %v2576 = vrot.slane %v2571, %v2575
      %v2578 = vadd.f32 %v2563, %v2576
      %v2579 = vadd.f32 %v2564, %v2576
      %v2580 = vadd.f32 %v2565, %v2576
      %v2581 = vadd.f32 %v2566, %v2576
      %v2582 = vadd.f32 %v2567, %v2576
      %v2583 = vadd.f32 %v2568, %v2576
      %v2584 = vadd.f32 %v2569, %v2576
      %v2585 = vadd.f32 %v2570, %v2576
      %v2586 = vmax.f32 %v2578, 0.0
      %v2587 = vmax.f32 %v2579, 0.0
      %v2588 = vmax.f32 %v2580, 0.0
      %v2589 = vmax.f32 %v2581, 0.0
      %v2590 = vmax.f32 %v2582, 0.0
      %v2591 = vmax.f32 %v2583, 0.0
      %v2592 = vmax.f32 %v2584, 0.0
      %v2593 = vmax.f32 %v2585, 0.0
      %v2594 = vpack.c.bf16 %v2587, %v2586
      %v2595 = vpack.c.bf16 %v2589, %v2588
      %v2596 = vpack.c.bf16 %v2591, %v2590
      %v2597 = vpack.c.bf16 %v2593, %v2592
      %v2598 = vld [vmem:[%s8] sm:$0xf]
      %v2599 = vld [vmem:[%s8 + $0x4] sm:$0xf]
      %v2600 = vld [vmem:[%s8 + $0x8] sm:$0xf]
      %v2601 = vld [vmem:[%s8 + $0xc] sm:$0x1]
      %v2606 = vunpack.c.l.b16 %v2598
      %v2607 = vunpack.c.l.b16 %v2599
      %v2608 = vunpack.c.l.b16 %v2600
      %v2609 = vunpack.c.l.b16 %v2601
      %v2610 = vpack.c.b16 %v2607, %v2606
      %v2611 = vpack.c.b16 %v2609, %v2608
      %vm2612 = vcmask 498688
      %v2614 = vsel %vm2612, %v2610, 0
      %v2617 = vsel %vm2612, %v2611, 0
      %vm2619 = vcmask 1045504
      %vm2620 = vcmask 1046528
      %v2621 = vsel %vm2619, 4294967295, 65535
      %v2622 = vsel %vm2620, %v2621, 0
      %v2624 = vand.u32 %v2597, %v2622
      %2626 = vmatprep.subr.bf16.mxu0 0
      %2627 = vmatpush1.bf16.msra.mxu0 %v2594
      %2628 = vmatprep.subr.bf16.mxu0 0
      %2629 = vmatpush1.bf16.msra.mxu0 %v2595
      %2630 = vmatprep.subr.bf16.mxu0 0
      %2631 = vmatpush1.bf16.msra.mxu0 %v2596
      %2632 = vmatprep.subr.bf16.mxu0 0
      %2633 = vmatpush1.bf16.msra.mxu0 %v2624
      %2634 = vmatprep.subr.bf16.mxu0 0
      %2635 = vmatpush1.bf16.msra.mxu0 0
      %2636 = vmatprep.subr.bf16.mxu0 0
      %2637 = vmatpush1.bf16.msra.mxu0 0
      %2638 = vmatprep.subr.bf16.mxu0 0
      %2639 = vmatpush1.bf16.msra.mxu0 0
      %2640 = vmatprep.subr.bf16.mxu0 0
      %2641 = vmatpush1.bf16.msra.mxu0 0
      %2642 = vmatprep.subr.bf16.mxu0 0
      %2643 = vmatpush1.bf16.msra.mxu0 0
      %2644 = vmatprep.subr.bf16.mxu0 0
      %2645 = vmatpush1.bf16.msra.mxu0 0
      %2646 = vmatprep.subr.bf16.mxu0 0
      %2647 = vmatpush1.bf16.msra.mxu0 0
      %2648 = vmatprep.subr.bf16.mxu0 0
      %2649 = vmatpush1.bf16.msra.mxu0 0
      %2650 = vmatprep.subr.bf16.mxu0 0
      %2651 = vmatpush1.bf16.msra.mxu0 0
      %2652 = vmatprep.subr.bf16.mxu0 0
      %2653 = vmatpush1.bf16.msra.mxu0 0
      %2654 = vmatprep.subr.bf16.mxu0 0
      %2655 = vmatpush1.bf16.msra.mxu0 0
      %2656 = vmatprep.subr.bf16.mxu0 0
      %2657 = vmatpush1.bf16.msra.mxu0 0
      %2658 = vmatprep.mubr.bf16.mxu0 0
      %2659 = vmatmul.mubr.bf16.gmra.mrb[0].mxu0 %v2614
      %v2660 = vpop.f32.mrb[0].mxu0
      %v2661 = vadd.f32 0.0, %v2660
      %v2662 = vpop.f32.mrb[0].mxu0
      %v2663 = vpop.f32.mrb[0].mxu0
      %v2664 = vadd.f32 0.0, %v2663
      %v2665 = vpop.f32.mrb[0].mxu0
      %2666 = vmatprep.mubr.bf16.mxu0 0
      %2667 = vmatmul.mubr.bf16.gmra.mrb[0].mxu0 %v2617
      %v2668 = vpop.f32.mrb[0].mxu0
      %v2669 = vadd.f32 0.0, %v2668
      %v2670 = vpop.f32.mrb[0].mxu0
      %v2671 = vpop.f32.mrb[0].mxu0
      %v2672 = vadd.f32 0.0, %v2671
      %v2673 = vpop.f32.mrb[0].mxu0
      %2674 = vdwg.mxu0
      %v2675 = vpack.c.bf16 %v2664, %v2661
      %v2676 = vpack.c.bf16 %v2672, %v2669
      %v2677 = vld [vmem:[%s9] sm:$0xf]
      %v2678 = vld [vmem:[%s9 + $0x4] sm:$0xf]
      %v2679 = vld [vmem:[%s9 + $0x8] sm:$0xf]
      %v2680 = vld [vmem:[%s9 + $0xc] sm:$0xf]
      %v2681 = vld [vmem:[%s9 + $0x10] sm:$0xf]
      %v2682 = vld [vmem:[%s9 + $0x14] sm:$0xf]
      %v2683 = vld [vmem:[%s9 + $0x18] sm:$0xf]
      %v2684 = vld [vmem:[%s9 + $0x1c] sm:$0xf]
      %v2685 = vld [vmem:[%s9 + $0x20] sm:$0xf]
      %v2686 = vld [vmem:[%s9 + $0x24] sm:$0xf]
      %v2687 = vld [vmem:[%s9 + $0x28] sm:$0xf]
      %v2688 = vld [vmem:[%s9 + $0x2c] sm:$0xf]
      %v2689 = vld [vmem:[%s9 + $0x30] sm:$0xf]
      %v2690 = vld [vmem:[%s9 + $0x34] sm:$0xf]
      %v2691 = vld [vmem:[%s9 + $0x38] sm:$0xf]
      %v2692 = vld [vmem:[%s9 + $0x3c] sm:$0xf]
      %v2693 = vld [vmem:[%s10] sm:$0xff]
      %v2694 = vld [vmem:[%s10 + $0x8] sm:$0xff]
      %v2695 = vld [vmem:[%s10 + $0x10] sm:$0xff]
      %v2696 = vld [vmem:[%s10 + $0x18] sm:$0x1]
      %v2713 = vunpack.c.l.b16 %v2677
      %v2714 = vunpack.c.l.b16 %v2678
      %v2715 = vunpack.c.l.b16 %v2679
      %v2716 = vunpack.c.l.b16 %v2680
      %v2717 = vunpack.c.l.b16 %v2681
      %v2718 = vunpack.c.l.b16 %v2682
      %v2719 = vunpack.c.l.b16 %v2683
      %v2720 = vunpack.c.l.b16 %v2684
      %v2721 = vunpack.c.l.b16 %v2685
      %v2722 = vunpack.c.l.b16 %v2686
      %v2723 = vunpack.c.l.b16 %v2687
      %v2724 = vunpack.c.l.b16 %v2688
      %v2725 = vunpack.c.l.b16 %v2689
      %v2726 = vunpack.c.l.b16 %v2690
      %v2727 = vunpack.c.l.b16 %v2691
      %v2728 = vunpack.c.l.b16 %v2692
      %v2729 = vpack.c.b16 %v2714, %v2713
      %v2730 = vpack.c.b16 %v2716, %v2715
      %v2731 = vpack.c.b16 %v2718, %v2717
      %v2732 = vpack.c.b16 %v2720, %v2719
      %v2733 = vpack.c.b16 %v2722, %v2721
      %v2734 = vpack.c.b16 %v2724, %v2723
      %v2735 = vpack.c.b16 %v2726, %v2725
      %v2736 = vpack.c.b16 %v2728, %v2727
      %2745 = vmatprep.subr.bf16.mxu0 0
      %2746 = vmatpush1.bf16.msra.mxu0 %v2729
      %2747 = vmatprep.subr.bf16.mxu0 0
      %2748 = vmatpush1.bf16.msra.mxu0 %v2730
      %2749 = vmatprep.subr.bf16.mxu0 0
      %2750 = vmatpush1.bf16.msra.mxu0 %v2731
      %2751 = vmatprep.subr.bf16.mxu0 0
      %2752 = vmatpush1.bf16.msra.mxu0 %v2732
      %2753 = vmatprep.subr.bf16.mxu0 0
      %2754 = vmatpush1.bf16.msra.mxu0 %v2733
      %2755 = vmatprep.subr.bf16.mxu0 0
      %2756 = vmatpush1.bf16.msra.mxu0 %v2734
      %2757 = vmatprep.subr.bf16.mxu0 0
      %2758 = vmatpush1.bf16.msra.mxu0 %v2735
      %2759 = vmatprep.subr.bf16.mxu0 0
      %2760 = vmatpush1.bf16.msra.mxu0 %v2736
      %2761 = vmatprep.subr.bf16.mxu0 0
      %2762 = vmatpush1.bf16.msra.mxu0 0
      %2763 = vmatprep.subr.bf16.mxu0 0
      %2764 = vmatpush1.bf16.msra.mxu0 0
      %2765 = vmatprep.subr.bf16.mxu0 0
      %2766 = vmatpush1.bf16.msra.mxu0 0
      %2767 = vmatprep.subr.bf16.mxu0 0
      %2768 = vmatpush1.bf16.msra.mxu0 0
      %2769 = vmatprep.subr.bf16.mxu0 0
      %2770 = vmatpush1.bf16.msra.mxu0 0
      %2771 = vmatprep.subr.bf16.mxu0 0
      %2772 = vmatpush1.bf16.msra.mxu0 0
      %2773 = vmatprep.subr.bf16.mxu0 0
      %2774 = vmatpush1.bf16.msra.mxu0 0
      %2775 = vmatprep.subr.bf16.mxu0 0
      %2776 = vmatpush1.bf16.msra.mxu0 0
      %2777 = vmatprep.mubr.bf16.mxu0 0
      %2778 = vmatmul.mubr.bf16.gmra.mrb[0].mxu0 %v2675
      %v2779 = vpop.f32.mrb[0].mxu0
      %v2780 = vadd.f32 %v2693, %v2779
      %v2781 = vpop.f32.mrb[0].mxu0
      %v2782 = vpop.f32.mrb[0].mxu0
      %v2783 = vadd.f32 %v2694, %v2782
      %v2784 = vpop.f32.mrb[0].mxu0
      %2785 = vmatprep.mubr.bf16.mxu0 0
      %2786 = vmatmul.mubr.bf16.gmra.mrb[0].mxu0 %v2676
      %v2787 = vpop.f32.mrb[0].mxu0
      %v2788 = vadd.f32 %v2695, %v2787
      %v2789 = vpop.f32.mrb[0].mxu0
      %v2790 = vpop.f32.mrb[0].mxu0
      %v2791 = vadd.f32 %v2696, %v2790
      %v2792 = vpop.f32.mrb[0].mxu0
      %2793 = vdwg.mxu0
      %2794 = vst [vmem:[#allocation3] sm:$0xff] %v2780
      %2795 = vst [vmem:[#allocation3 + $0x8] sm:$0xff] %v2783
      %2796 = vst [vmem:[#allocation3 + $0x10] sm:$0xff] %v2788
      %2797 = vst [vmem:[#allocation3 + $0x18] sm:$0x1] %v2791
      %v2798 = vld [vmem:[#allocation3] sm:$0xff]
      %v2799 = vld [vmem:[#allocation3 + $0x8] sm:$0x1f]
      %v2800 = vpack.c.bf16 %v2799, %v2798
      %v2801 = vld [vmem:[%s11] sm:$0xff]
      %v2802 = vld [vmem:[%s11 + $0x8] sm:$0xff]
      %v2803 = vld [vmem:[%s11 + $0x10] sm:$0xff]
      %v2804 = vld [vmem:[%s11 + $0x18] sm:$0xff]
      %v2805 = vld [vmem:[%s11 + $0x20] sm:$0xff]
      %v2806 = vld [vmem:[%s11 + $0x28] sm:$0xff]
      %v2807 = vld [vmem:[%s11 + $0x30] sm:$0xff]
      %v2808 = vld [vmem:[%s11 + $0x38] sm:$0xff]
      %v2809 = vld [vmem:[%s11 + $0x40] sm:$0xff]
      %v2810 = vld [vmem:[%s11 + $0x48] sm:$0xff]
      %v2811 = vld [vmem:[%s11 + $0x50] sm:$0xff]
      %v2812 = vld [vmem:[%s11 + $0x58] sm:$0xff]
      %v2813 = vld [vmem:[%s11 + $0x60] sm:$0xff]
      %v2814 = vld [vmem:[%s11 + $0x68] sm:$0xff]
      %v2815 = vld [vmem:[%s11 + $0x70] sm:$0xff]
      %v2816 = vld [vmem:[%s11 + $0x78] sm:$0xff]
      %v2817 = vld [vmem:[#allocation3 + $0x1] sm:$0xff]
      %v2818 = vld [vmem:[#allocation3 + $0x9] sm:$0x1f]
      %v2819 = vpack.c.bf16 %v2818, %v2817
      %s2820 = scalar_lea.vmem %s11, 128
      %v2821 = vld [vmem:[%s2820] sm:$0xff]
      %v2822 = vld [vmem:[%s2820 + $0x8] sm:$0xff]
      %v2823 = vld [vmem:[%s2820 + $0x10] sm:$0xff]
      %v2824 = vld [vmem:[%s2820 + $0x18] sm:$0xff]
      %v2825 = vld [vmem:[%s2820 + $0x20] sm:$0xff]
      %v2826 = vld [vmem:[%s2820 + $0x28] sm:$0xff]
      %v2827 = vld [vmem:[%s2820 + $0x30] sm:$0xff]
      %v2828 = vld [vmem:[%s2820 + $0x38] sm:$0xff]
      %v2829 = vld [vmem:[%s2820 + $0x40] sm:$0xff]
      %v2830 = vld [vmem:[%s2820 + $0x48] sm:$0xff]
      %v2831 = vld [vmem:[%s2820 + $0x50] sm:$0xff]
      %v2832 = vld [vmem:[%s2820 + $0x58] sm:$0xff]
      %v2833 = vld [vmem:[%s2820 + $0x60] sm:$0xff]
      %v2834 = vld [vmem:[%s2820 + $0x68] sm:$0xff]
      %v2835 = vld [vmem:[%s2820 + $0x70] sm:$0xff]
      %v2836 = vld [vmem:[%s2820 + $0x78] sm:$0xff]
      %v2853 = vunpack.c.l.b16 %v2821
      %v2854 = vunpack.c.h.b16 %v2821
      %v2855 = vunpack.c.l.b16 %v2822
      %v2856 = vunpack.c.h.b16 %v2822
      %v2857 = vunpack.c.l.b16 %v2823
      %v2858 = vunpack.c.h.b16 %v2823
      %v2859 = vunpack.c.l.b16 %v2824
      %v2860 = vunpack.c.h.b16 %v2824
      %v2861 = vunpack.c.l.b16 %v2825
      %v2862 = vunpack.c.h.b16 %v2825
      %v2863 = vunpack.c.l.b16 %v2826
      %v2864 = vunpack.c.h.b16 %v2826
      %v2865 = vunpack.c.l.b16 %v2827
      %v2866 = vunpack.c.h.b16 %v2827
      %v2867 = vunpack.c.l.b16 %v2828
      %v2868 = vunpack.c.h.b16 %v2828
      %v2869 = vunpack.c.l.b16 %v2829
      %v2870 = vunpack.c.h.b16 %v2829
      %v2871 = vunpack.c.l.b16 %v2830
      %v2872 = vunpack.c.h.b16 %v2830
      %v2873 = vunpack.c.l.b16 %v2831
      %v2874 = vunpack.c.h.b16 %v2831
      %v2875 = vunpack.c.l.b16 %v2832
      %v2876 = vunpack.c.h.b16 %v2832
      %v2877 = vunpack.c.l.b16 %v2833
      %v2878 = vunpack.c.h.b16 %v2833
      %v2879 = vunpack.c.l.b16 %v2834
      %v2880 = vunpack.c.h.b16 %v2834
      %v2881 = vunpack.c.l.b16 %v2835
      %v2882 = vunpack.c.h.b16 %v2835
      %v2883 = vunpack.c.l.b16 %v2836
      %v2884 = vunpack.c.h.b16 %v2836
      %v2885 = vpack.c.b16 %v2855, %v2853
      %v2886 = vpack.c.b16 %v2856, %v2854
      %v2887 = vpack.c.b16 %v2859, %v2857
      %v2888 = vpack.c.b16 %v2860, %v2858
      %v2889 = vpack.c.b16 %v2863, %v2861
      %v2890 = vpack.c.b16 %v2864, %v2862
      %v2891 = vpack.c.b16 %v2867, %v2865
      %v2892 = vpack.c.b16 %v2868, %v2866
      %v2893 = vpack.c.b16 %v2871, %v2869
      %v2894 = vpack.c.b16 %v2872, %v2870
      %v2895 = vpack.c.b16 %v2875, %v2873
      %v2896 = vpack.c.b16 %v2876, %v2874
      %v2897 = vpack.c.b16 %v2879, %v2877
      %v2898 = vpack.c.b16 %v2880, %v2878
      %v2899 = vpack.c.b16 %v2883, %v2881
      %v2900 = vpack.c.b16 %v2884, %v2882
      %2917 = vmatprep.subr.bf16.mxu0 %v2886
      %2918 = vmatpush1.bf16.msra.mxu0 %v2885
      %2919 = vmatprep.subr.bf16.mxu0 %v2888
      %2920 = vmatpush1.bf16.msra.mxu0 %v2887
      %2921 = vmatprep.subr.bf16.mxu0 %v2890
      %2922 = vmatpush1.bf16.msra.mxu0 %v2889
      %2923 = vmatprep.subr.bf16.mxu0 %v2892
      %2924 = vmatpush1.bf16.msra.mxu0 %v2891
      %2925 = vmatprep.subr.bf16.mxu0 %v2894
      %2926 = vmatpush1.bf16.msra.mxu0 %v2893
      %2927 = vmatprep.subr.bf16.mxu0 %v2896
      %2928 = vmatpush1.bf16.msra.mxu0 %v2895
      %2929 = vmatprep.subr.bf16.mxu0 %v2898
      %2930 = vmatpush1.bf16.msra.mxu0 %v2897
      %2931 = vmatprep.subr.bf16.mxu0 %v2900
      %2932 = vmatpush1.bf16.msra.mxu0 %v2899
      %2933 = vmatprep.subr.bf16.mxu0 0
      %2934 = vmatpush1.bf16.msra.mxu0 0
      %2935 = vmatprep.subr.bf16.mxu0 0
      %2936 = vmatpush1.bf16.msra.mxu0 0
      %2937 = vmatprep.subr.bf16.mxu0 0
      %2938 = vmatpush1.bf16.msra.mxu0 0
      %2939 = vmatprep.subr.bf16.mxu0 0
      %2940 = vmatpush1.bf16.msra.mxu0 0
      %2941 = vmatprep.subr.bf16.mxu0 0
      %2942 = vmatpush1.bf16.msra.mxu0 0
      %2943 = vmatprep.subr.bf16.mxu0 0
      %2944 = vmatpush1.bf16.msra.mxu0 0
      %2945 = vmatprep.subr.bf16.mxu0 0
      %2946 = vmatpush1.bf16.msra.mxu0 0
      %2947 = vmatprep.subr.bf16.mxu0 0
      %2948 = vmatpush1.bf16.msra.mxu0 0
      %2949 = vmatprep.mubr.bf16.mxu0 0
      %2950 = vmatmul.mubr.bf16.gmra.mrb[0].mxu0 %v2819
      %v2951 = vpop.f32.mrb[0].mxu0
      %v2952 = vadd.f32 0.0, %v2951
      %v2953 = vpop.f32.mrb[0].mxu0
      %v2954 = vadd.f32 0.0, %v2953
      %v2955 = vpop.f32.mrb[0].mxu0
      %v2956 = vadd.f32 0.0, %v2955
      %v2957 = vpop.f32.mrb[0].mxu0
      %v2958 = vadd.f32 0.0, %v2957
      %2959 = vdwg.mxu0
      %v2976 = vunpack.c.l.b16 %v2801
      %v2977 = vunpack.c.h.b16 %v2801
      %v2978 = vunpack.c.l.b16 %v2802
      %v2979 = vunpack.c.h.b16 %v2802
      %v2980 = vunpack.c.l.b16 %v2803
      %v2981 = vunpack.c.h.b16 %v2803
      %v2982 = vunpack.c.l.b16 %v2804
      %v2983 = vunpack.c.h.b16 %v2804
      %v2984 = vunpack.c.l.b16 %v2805
      %v2985 = vunpack.c.h.b16 %v2805
      %v2986 = vunpack.c.l.b16 %v2806
      %v2987 = vunpack.c.h.b16 %v2806
      %v2988 = vunpack.c.l.b16 %v2807
      %v2989 = vunpack.c.h.b16 %v2807
      %v2990 = vunpack.c.l.b16 %v2808
      %v2991 = vunpack.c.h.b16 %v2808
      %v2992 = vunpack.c.l.b16 %v2809
      %v2993 = vunpack.c.h.b16 %v2809
      %v2994 = vunpack.c.l.b16 %v2810
      %v2995 = vunpack.c.h.b16 %v2810
      %v2996 = vunpack.c.l.b16 %v2811
      %v2997 = vunpack.c.h.b16 %v2811
      %v2998 = vunpack.c.l.b16 %v2812
      %v2999 = vunpack.c.h.b16 %v2812
      %v3000 = vunpack.c.l.b16 %v2813
      %v3001 = vunpack.c.h.b16 %v2813
      %v3002 = vunpack.c.l.b16 %v2814
      %v3003 = vunpack.c.h.b16 %v2814
      %v3004 = vunpack.c.l.b16 %v2815
      %v3005 = vunpack.c.h.b16 %v2815
      %v3006 = vunpack.c.l.b16 %v2816
      %v3007 = vunpack.c.h.b16 %v2816
      %v3008 = vpack.c.b16 %v2978, %v2976
      %v3009 = vpack.c.b16 %v2979, %v2977
      %v3010 = vpack.c.b16 %v2982, %v2980
      %v3011 = vpack.c.b16 %v2983, %v2981
      %v3012 = vpack.c.b16 %v2986, %v2984
      %v3013 = vpack.c.b16 %v2987, %v2985
      %v3014 = vpack.c.b16 %v2990, %v2988
      %v3015 = vpack.c.b16 %v2991, %v2989
      %v3016 = vpack.c.b16 %v2994, %v2992
      %v3017 = vpack.c.b16 %v2995, %v2993
      %v3018 = vpack.c.b16 %v2998, %v2996
      %v3019 = vpack.c.b16 %v2999, %v2997
      %v3020 = vpack.c.b16 %v3002, %v3000
      %v3021 = vpack.c.b16 %v3003, %v3001
      %v3022 = vpack.c.b16 %v3006, %v3004
      %v3023 = vpack.c.b16 %v3007, %v3005
      %3040 = vmatprep.subr.bf16.mxu0 %v3009
      %3041 = vmatpush1.bf16.msra.mxu0 %v3008
      %3042 = vmatprep.subr.bf16.mxu0 %v3011
      %3043 = vmatpush1.bf16.msra.mxu0 %v3010
      %3044 = vmatprep.subr.bf16.mxu0 %v3013
      %3045 = vmatpush1.bf16.msra.mxu0 %v3012
      %3046 = vmatprep.subr.bf16.mxu0 %v3015
      %3047 = vmatpush1.bf16.msra.mxu0 %v3014
      %3048 = vmatprep.subr.bf16.mxu0 %v3017
      %3049 = vmatpush1.bf16.msra.mxu0 %v3016
      %3050 = vmatprep.subr.bf16.mxu0 %v3019
      %3051 = vmatpush1.bf16.msra.mxu0 %v3018
      %3052 = vmatprep.subr.bf16.mxu0 %v3021
      %3053 = vmatpush1.bf16.msra.mxu0 %v3020
      %3054 = vmatprep.subr.bf16.mxu0 %v3023
      %3055 = vmatpush1.bf16.msra.mxu0 %v3022
      %3056 = vmatprep.subr.bf16.mxu0 0
      %3057 = vmatpush1.bf16.msra.mxu0 0
      %3058 = vmatprep.subr.bf16.mxu0 0
      %3059 = vmatpush1.bf16.msra.mxu0 0
      %3060 = vmatprep.subr.bf16.mxu0 0
      %3061 = vmatpush1.bf16.msra.mxu0 0
      %3062 = vmatprep.subr.bf16.mxu0 0
      %3063 = vmatpush1.bf16.msra.mxu0 0
      %3064 = vmatprep.subr.bf16.mxu0 0
      %3065 = vmatpush1.bf16.msra.mxu0 0
      %3066 = vmatprep.subr.bf16.mxu0 0
      %3067 = vmatpush1.bf16.msra.mxu0 0
      %3068 = vmatprep.subr.bf16.mxu0 0
      %3069 = vmatpush1.bf16.msra.mxu0 0
      %3070 = vmatprep.subr.bf16.mxu0 0
      %3071 = vmatpush1.bf16.msra.mxu0 0
      %3072 = vmatprep.mubr.bf16.mxu0 0
      %3073 = vmatmul.mubr.bf16.gmra.mrb[0].mxu0 %v2800
      %v3074 = vpop.f32.mrb[0].mxu0
      %v3075 = vadd.f32 %v2952, %v3074
      %v3076 = vpop.f32.mrb[0].mxu0
      %v3077 = vadd.f32 %v2954, %v3076
      %v3078 = vpop.f32.mrb[0].mxu0
      %v3079 = vadd.f32 %v2956, %v3078
      %v3080 = vpop.f32.mrb[0].mxu0
      %v3081 = vadd.f32 %v2958, %v3080
      %3082 = vdwg.mxu0
      %v3083 = vld [vmem:[#allocation3 + $0x2] sm:$0xff]
      %v3084 = vld [vmem:[#allocation3 + $0xa] sm:$0x1f]
      %v3085 = vpack.c.bf16 %v3084, %v3083
      %s3086 = scalar_lea.vmem %s11, 256
      %v3087 = vld [vmem:[%s3086] sm:$0xff]
      %v3088 = vld [vmem:[%s3086 + $0x8] sm:$0xff]
      %v3089 = vld [vmem:[%s3086 + $0x10] sm:$0xff]
      %v3090 = vld [vmem:[%s3086 + $0x18] sm:$0xff]
      %v3091 = vld [vmem:[%s3086 + $0x20] sm:$0xff]
      %v3092 = vld [vmem:[%s3086 + $0x28] sm:$0xff]
      %v3093 = vld [vmem:[%s3086 + $0x30] sm:$0xff]
      %v3094 = vld [vmem:[%s3086 + $0x38] sm:$0xff]
      %v3095 = vld [vmem:[%s3086 + $0x40] sm:$0xff]
      %v3096 = vld [vmem:[%s3086 + $0x48] sm:$0xff]
      %v3097 = vld [vmem:[%s3086 + $0x50] sm:$0xff]
      %v3098 = vld [vmem:[%s3086 + $0x58] sm:$0xff]
      %v3099 = vld [vmem:[%s3086 + $0x60] sm:$0xff]
      %v3100 = vld [vmem:[%s3086 + $0x68] sm:$0xff]
      %v3101 = vld [vmem:[%s3086 + $0x70] sm:$0xff]
      %v3102 = vld [vmem:[%s3086 + $0x78] sm:$0xff]
      %v3119 = vunpack.c.l.b16 %v3087
      %v3120 = vunpack.c.h.b16 %v3087
      %v3121 = vunpack.c.l.b16 %v3088
      %v3122 = vunpack.c.h.b16 %v3088
      %v3123 = vunpack.c.l.b16 %v3089
      %v3124 = vunpack.c.h.b16 %v3089
      %v3125 = vunpack.c.l.b16 %v3090
      %v3126 = vunpack.c.h.b16 %v3090
      %v3127 = vunpack.c.l.b16 %v3091
      %v3128 = vunpack.c.h.b16 %v3091
      %v3129 = vunpack.c.l.b16 %v3092
      %v3130 = vunpack.c.h.b16 %v3092
      %v3131 = vunpack.c.l.b16 %v3093
      %v3132 = vunpack.c.h.b16 %v3093
      %v3133 = vunpack.c.l.b16 %v3094
      %v3134 = vunpack.c.h.b16 %v3094
      %v3135 = vunpack.c.l.b16 %v3095
      %v3136 = vunpack.c.h.b16 %v3095
      %v3137 = vunpack.c.l.b16 %v3096
      %v3138 = vunpack.c.h.b16 %v3096
      %v3139 = vunpack.c.l.b16 %v3097
      %v3140 = vunpack.c.h.b16 %v3097
      %v3141 = vunpack.c.l.b16 %v3098
      %v3142 = vunpack.c.h.b16 %v3098
      %v3143 = vunpack.c.l.b16 %v3099
      %v3144 = vunpack.c.h.b16 %v3099
      %v3145 = vunpack.c.l.b16 %v3100
      %v3146 = vunpack.c.h.b16 %v3100
      %v3147 = vunpack.c.l.b16 %v3101
      %v3148 = vunpack.c.h.b16 %v3101
      %v3149 = vunpack.c.l.b16 %v3102
      %v3150 = vunpack.c.h.b16 %v3102
      %v3151 = vpack.c.b16 %v3121, %v3119
      %v3152 = vpack.c.b16 %v3122, %v3120
      %v3153 = vpack.c.b16 %v3125, %v3123
      %v3154 = vpack.c.b16 %v3126, %v3124
      %v3155 = vpack.c.b16 %v3129, %v3127
      %v3156 = vpack.c.b16 %v3130, %v3128
      %v3157 = vpack.c.b16 %v3133, %v3131
      %v3158 = vpack.c.b16 %v3134, %v3132
      %v3159 = vpack.c.b16 %v3137, %v3135
      %v3160 = vpack.c.b16 %v3138, %v3136
      %v3161 = vpack.c.b16 %v3141, %v3139
      %v3162 = vpack.c.b16 %v3142, %v3140
      %v3163 = vpack.c.b16 %v3145, %v3143
      %v3164 = vpack.c.b16 %v3146, %v3144
      %v3165 = vpack.c.b16 %v3149, %v3147
      %v3166 = vpack.c.b16 %v3150, %v3148
      %3183 = vmatprep.subr.bf16.mxu0 %v3152
      %3184 = vmatpush1.bf16.msra.mxu0 %v3151
      %3185 = vmatprep.subr.bf16.mxu0 %v3154
      %3186 = vmatpush1.bf16.msra.mxu0 %v3153
      %3187 = vmatprep.subr.bf16.mxu0 %v3156
      %3188 = vmatpush1.bf16.msra.mxu0 %v3155
      %3189 = vmatprep.subr.bf16.mxu0 %v3158
      %3190 = vmatpush1.bf16.msra.mxu0 %v3157
      %3191 = vmatprep.subr.bf16.mxu0 %v3160
      %3192 = vmatpush1.bf16.msra.mxu0 %v3159
      %3193 = vmatprep.subr.bf16.mxu0 %v3162
      %3194 = vmatpush1.bf16.msra.mxu0 %v3161
      %3195 = vmatprep.subr.bf16.mxu0 %v3164
      %3196 = vmatpush1.bf16.msra.mxu0 %v3163
      %3197 = vmatprep.subr.bf16.mxu0 %v3166
      %3198 = vmatpush1.bf16.msra.mxu0 %v3165
      %3199 = vmatprep.subr.bf16.mxu0 0
      %3200 = vmatpush1.bf16.msra.mxu0 0
      %3201 = vmatprep.subr.bf16.mxu0 0
      %3202 = vmatpush1.bf16.msra.mxu0 0
      %3203 = vmatprep.subr.bf16.mxu0 0
      %3204 = vmatpush1.bf16.msra.mxu0 0
      %3205 = vmatprep.subr.bf16.mxu0 0
      %3206 = vmatpush1.bf16.msra.mxu0 0
      %3207 = vmatprep.subr.bf16.mxu0 0
      %3208 = vmatpush1.bf16.msra.mxu0 0
      %3209 = vmatprep.subr.bf16.mxu0 0
      %3210 = vmatpush1.bf16.msra.mxu0 0
      %3211 = vmatprep.subr.bf16.mxu0 0
      %3212 = vmatpush1.bf16.msra.mxu0 0
      %3213 = vmatprep.subr.bf16.mxu0 0
      %3214 = vmatpush1.bf16.msra.mxu0 0
      %3215 = vmatprep.mubr.bf16.mxu0 0
      %3216 = vmatmul.mubr.bf16.gmra.mrb[0].mxu0 %v3085
      %v3217 = vpop.f32.mrb[0].mxu0
      %v3218 = vadd.f32 0.0, %v3217
      %v3219 = vpop.f32.mrb[0].mxu0
      %v3220 = vadd.f32 0.0, %v3219
      %v3221 = vpop.f32.mrb[0].mxu0
      %v3222 = vadd.f32 0.0, %v3221
      %v3223 = vpop.f32.mrb[0].mxu0
      %v3224 = vadd.f32 0.0, %v3223
      %3225 = vdwg.mxu0
      %v3226 = vadd.f32 %v3075, %v3218
      %v3227 = vadd.f32 %v3077, %v3220
      %v3228 = vadd.f32 %v3079, %v3222
      %v3229 = vadd.f32 %v3081, %v3224
      %v3230 = vld [vmem:[#allocation3 + $0x5] sm:$0xff]
      %v3231 = vld [vmem:[#allocation3 + $0xd] sm:$0x1f]
      %v3232 = vpack.c.bf16 %v3231, %v3230
      %s3233 = scalar_lea.vmem %s11, 384
      %v3234 = vld [vmem:[%s3233] sm:$0xff]
      %v3235 = vld [vmem:[%s3233 + $0x8] sm:$0xff]
      %v3236 = vld [vmem:[%s3233 + $0x10] sm:$0xff]
      %v3237 = vld [vmem:[%s3233 + $0x18] sm:$0xff]
      %v3238 = vld [vmem:[%s3233 + $0x20] sm:$0xff]
      %v3239 = vld [vmem:[%s3233 + $0x28] sm:$0xff]
      %v3240 = vld [vmem:[%s3233 + $0x30] sm:$0xff]
      %v3241 = vld [vmem:[%s3233 + $0x38] sm:$0xff]
      %v3242 = vld [vmem:[%s3233 + $0x40] sm:$0xff]
      %v3243 = vld [vmem:[%s3233 + $0x48] sm:$0xff]
      %v3244 = vld [vmem:[%s3233 + $0x50] sm:$0xff]
      %v3245 = vld [vmem:[%s3233 + $0x58] sm:$0xff]
      %v3246 = vld [vmem:[%s3233 + $0x60] sm:$0xff]
      %v3247 = vld [vmem:[%s3233 + $0x68] sm:$0xff]
      %v3248 = vld [vmem:[%s3233 + $0x70] sm:$0xff]
      %v3249 = vld [vmem:[%s3233 + $0x78] sm:$0xff]
      %v3266 = vunpack.c.l.b16 %v3234
      %v3267 = vunpack.c.h.b16 %v3234
      %v3268 = vunpack.c.l.b16 %v3235
      %v3269 = vunpack.c.h.b16 %v3235
      %v3270 = vunpack.c.l.b16 %v3236
      %v3271 = vunpack.c.h.b16 %v3236
      %v3272 = vunpack.c.l.b16 %v3237
      %v3273 = vunpack.c.h.b16 %v3237
      %v3274 = vunpack.c.l.b16 %v3238
      %v3275 = vunpack.c.h.b16 %v3238
      %v3276 = vunpack.c.l.b16 %v3239
      %v3277 = vunpack.c.h.b16 %v3239
      %v3278 = vunpack.c.l.b16 %v3240
      %v3279 = vunpack.c.h.b16 %v3240
      %v3280 = vunpack.c.l.b16 %v3241
      %v3281 = vunpack.c.h.b16 %v3241
      %v3282 = vunpack.c.l.b16 %v3242
      %v3283 = vunpack.c.h.b16 %v3242
      %v3284 = vunpack.c.l.b16 %v3243
      %v3285 = vunpack.c.h.b16 %v3243
      %v3286 = vunpack.c.l.b16 %v3244
      %v3287 = vunpack.c.h.b16 %v3244
      %v3288 = vunpack.c.l.b16 %v3245
      %v3289 = vunpack.c.h.b16 %v3245
      %v3290 = vunpack.c.l.b16 %v3246
      %v3291 = vunpack.c.h.b16 %v3246
      %v3292 = vunpack.c.l.b16 %v3247
      %v3293 = vunpack.c.h.b16 %v3247
      %v3294 = vunpack.c.l.b16 %v3248
      %v3295 = vunpack.c.h.b16 %v3248
      %v3296 = vunpack.c.l.b16 %v3249
      %v3297 = vunpack.c.h.b16 %v3249
      %v3298 = vpack.c.b16 %v3268, %v3266
      %v3299 = vpack.c.b16 %v3269, %v3267
      %v3300 = vpack.c.b16 %v3272, %v3270
      %v3301 = vpack.c.b16 %v3273, %v3271
      %v3302 = vpack.c.b16 %v3276, %v3274
      %v3303 = vpack.c.b16 %v3277, %v3275
      %v3304 = vpack.c.b16 %v3280, %v3278
      %v3305 = vpack.c.b16 %v3281, %v3279
      %v3306 = vpack.c.b16 %v3284, %v3282
      %v3307 = vpack.c.b16 %v3285, %v3283
      %v3308 = vpack.c.b16 %v3288, %v3286
      %v3309 = vpack.c.b16 %v3289, %v3287
      %v3310 = vpack.c.b16 %v3292, %v3290
      %v3311 = vpack.c.b16 %v3293, %v3291
      %v3312 = vpack.c.b16 %v3296, %v3294
      %v3313 = vpack.c.b16 %v3297, %v3295
      %3330 = vmatprep.subr.bf16.mxu0 %v3299
      %3331 = vmatpush1.bf16.msra.mxu0 %v3298
      %3332 = vmatprep.subr.bf16.mxu0 %v3301
      %3333 = vmatpush1.bf16.msra.mxu0 %v3300
      %3334 = vmatprep.subr.bf16.mxu0 %v3303
      %3335 = vmatpush1.bf16.msra.mxu0 %v3302
      %3336 = vmatprep.subr.bf16.mxu0 %v3305
      %3337 = vmatpush1.bf16.msra.mxu0 %v3304
      %3338 = vmatprep.subr.bf16.mxu0 %v3307
      %3339 = vmatpush1.bf16.msra.mxu0 %v3306
      %3340 = vmatprep.subr.bf16.mxu0 %v3309
      %3341 = vmatpush1.bf16.msra.mxu0 %v3308
      %3342 = vmatprep.subr.bf16.mxu0 %v3311
      %3343 = vmatpush1.bf16.msra.mxu0 %v3310
      %3344 = vmatprep.subr.bf16.mxu0 %v3313
      %3345 = vmatpush1.bf16.msra.mxu0 %v3312
      %3346 = vmatprep.subr.bf16.mxu0 0
      %3347 = vmatpush1.bf16.msra.mxu0 0
      %3348 = vmatprep.subr.bf16.mxu0 0
      %3349 = vmatpush1.bf16.msra.mxu0 0
      %3350 = vmatprep.subr.bf16.mxu0 0
      %3351 = vmatpush1.bf16.msra.mxu0 0
      %3352 = vmatprep.subr.bf16.mxu0 0
      %3353 = vmatpush1.bf16.msra.mxu0 0
      %3354 = vmatprep.subr.bf16.mxu0 0
      %3355 = vmatpush1.bf16.msra.mxu0 0
      %3356 = vmatprep.subr.bf16.mxu0 0
      %3357 = vmatpush1.bf16.msra.mxu0 0
      %3358 = vmatprep.subr.bf16.mxu0 0
      %3359 = vmatpush1.bf16.msra.mxu0 0
      %3360 = vmatprep.subr.bf16.mxu0 0
      %3361 = vmatpush1.bf16.msra.mxu0 0
      %3362 = vmatprep.mubr.bf16.mxu0 0
      %3363 = vmatmul.mubr.bf16.gmra.mrb[0].mxu0 %v3232
      %v3364 = vpop.f32.mrb[0].mxu0
      %v3365 = vadd.f32 0.0, %v3364
      %v3366 = vpop.f32.mrb[0].mxu0
      %v3367 = vadd.f32 0.0, %v3366
      %v3368 = vpop.f32.mrb[0].mxu0
      %v3369 = vadd.f32 0.0, %v3368
      %v3370 = vpop.f32.mrb[0].mxu0
      %v3371 = vadd.f32 0.0, %v3370
      %3372 = vdwg.mxu0
      %v3373 = vadd.f32 %v3226, %v3365
      %v3374 = vadd.f32 %v3227, %v3367
      %v3375 = vadd.f32 %v3228, %v3369
      %v3376 = vadd.f32 %v3229, %v3371
      %v3377 = vld [vmem:[#allocation3 + $0x6] sm:$0xff]
      %v3378 = vld [vmem:[#allocation3 + $0xe] sm:$0x1f]
      %v3379 = vpack.c.bf16 %v3378, %v3377
      %s3380 = scalar_lea.vmem %s11, 512
      %v3381 = vld [vmem:[%s3380] sm:$0xff]
      %v3382 = vld [vmem:[%s3380 + $0x8] sm:$0xff]
      %v3383 = vld [vmem:[%s3380 + $0x10] sm:$0xff]
      %v3384 = vld [vmem:[%s3380 + $0x18] sm:$0xff]
      %v3385 = vld [vmem:[%s3380 + $0x20] sm:$0xff]
      %v3386 = vld [vmem:[%s3380 + $0x28] sm:$0xff]
      %v3387 = vld [vmem:[%s3380 + $0x30] sm:$0xff]
      %v3388 = vld [vmem:[%s3380 + $0x38] sm:$0xff]
      %v3389 = vld [vmem:[%s3380 + $0x40] sm:$0xff]
      %v3390 = vld [vmem:[%s3380 + $0x48] sm:$0xff]
      %v3391 = vld [vmem:[%s3380 + $0x50] sm:$0xff]
      %v3392 = vld [vmem:[%s3380 + $0x58] sm:$0xff]
      %v3393 = vld [vmem:[%s3380 + $0x60] sm:$0xff]
      %v3394 = vld [vmem:[%s3380 + $0x68] sm:$0xff]
      %v3395 = vld [vmem:[%s3380 + $0x70] sm:$0xff]
      %v3396 = vld [vmem:[%s3380 + $0x78] sm:$0xff]
      %v3413 = vunpack.c.l.b16 %v3381
      %v3414 = vunpack.c.h.b16 %v3381
      %v3415 = vunpack.c.l.b16 %v3382
      %v3416 = vunpack.c.h.b16 %v3382
      %v3417 = vunpack.c.l.b16 %v3383
      %v3418 = vunpack.c.h.b16 %v3383
      %v3419 = vunpack.c.l.b16 %v3384
      %v3420 = vunpack.c.h.b16 %v3384
      %v3421 = vunpack.c.l.b16 %v3385
      %v3422 = vunpack.c.h.b16 %v3385
      %v3423 = vunpack.c.l.b16 %v3386
      %v3424 = vunpack.c.h.b16 %v3386
      %v3425 = vunpack.c.l.b16 %v3387
      %v3426 = vunpack.c.h.b16 %v3387
      %v3427 = vunpack.c.l.b16 %v3388
      %v3428 = vunpack.c.h.b16 %v3388
      %v3429 = vunpack.c.l.b16 %v3389
      %v3430 = vunpack.c.h.b16 %v3389
      %v3431 = vunpack.c.l.b16 %v3390
      %v3432 = vunpack.c.h.b16 %v3390
      %v3433 = vunpack.c.l.b16 %v3391
      %v3434 = vunpack.c.h.b16 %v3391
      %v3435 = vunpack.c.l.b16 %v3392
      %v3436 = vunpack.c.h.b16 %v3392
      %v3437 = vunpack.c.l.b16 %v3393
      %v3438 = vunpack.c.h.b16 %v3393
      %v3439 = vunpack.c.l.b16 %v3394
      %v3440 = vunpack.c.h.b16 %v3394
      %v3441 = vunpack.c.l.b16 %v3395
      %v3442 = vunpack.c.h.b16 %v3395
      %v3443 = vunpack.c.l.b16 %v3396
      %v3444 = vunpack.c.h.b16 %v3396
      %v3445 = vpack.c.b16 %v3415, %v3413
      %v3446 = vpack.c.b16 %v3416, %v3414
      %v3447 = vpack.c.b16 %v3419, %v3417
      %v3448 = vpack.c.b16 %v3420, %v3418
      %v3449 = vpack.c.b16 %v3423, %v3421
      %v3450 = vpack.c.b16 %v3424, %v3422
      %v3451 = vpack.c.b16 %v3427, %v3425
      %v3452 = vpack.c.b16 %v3428, %v3426
      %v3453 = vpack.c.b16 %v3431, %v3429
      %v3454 = vpack.c.b16 %v3432, %v3430
      %v3455 = vpack.c.b16 %v3435, %v3433
      %v3456 = vpack.c.b16 %v3436, %v3434
      %v3457 = vpack.c.b16 %v3439, %v3437
      %v3458 = vpack.c.b16 %v3440, %v3438
      %v3459 = vpack.c.b16 %v3443, %v3441
      %v3460 = vpack.c.b16 %v3444, %v3442
      %3477 = vmatprep.subr.bf16.mxu0 %v3446
      %3478 = vmatpush1.bf16.msra.mxu0 %v3445
      %3479 = vmatprep.subr.bf16.mxu0 %v3448
      %3480 = vmatpush1.bf16.msra.mxu0 %v3447
      %3481 = vmatprep.subr.bf16.mxu0 %v3450
      %3482 = vmatpush1.bf16.msra.mxu0 %v3449
      %3483 = vmatprep.subr.bf16.mxu0 %v3452
      %3484 = vmatpush1.bf16.msra.mxu0 %v3451
      %3485 = vmatprep.subr.bf16.mxu0 %v3454
      %3486 = vmatpush1.bf16.msra.mxu0 %v3453
      %3487 = vmatprep.subr.bf16.mxu0 %v3456
      %3488 = vmatpush1.bf16.msra.mxu0 %v3455
      %3489 = vmatprep.subr.bf16.mxu0 %v3458
      %3490 = vmatpush1.bf16.msra.mxu0 %v3457
      %3491 = vmatprep.subr.bf16.mxu0 %v3460
      %3492 = vmatpush1.bf16.msra.mxu0 %v3459
      %3493 = vmatprep.subr.bf16.mxu0 0
      %3494 = vmatpush1.bf16.msra.mxu0 0
      %3495 = vmatprep.subr.bf16.mxu0 0
      %3496 = vmatpush1.bf16.msra.mxu0 0
      %3497 = vmatprep.subr.bf16.mxu0 0
      %3498 = vmatpush1.bf16.msra.mxu0 0
      %3499 = vmatprep.subr.bf16.mxu0 0
      %3500 = vmatpush1.bf16.msra.mxu0 0
      %3501 = vmatprep.subr.bf16.mxu0 0
      %3502 = vmatpush1.bf16.msra.mxu0 0
      %3503 = vmatprep.subr.bf16.mxu0 0
      %3504 = vmatpush1.bf16.msra.mxu0 0
      %3505 = vmatprep.subr.bf16.mxu0 0
      %3506 = vmatpush1.bf16.msra.mxu0 0
      %3507 = vmatprep.subr.bf16.mxu0 0
      %3508 = vmatpush1.bf16.msra.mxu0 0
      %3509 = vmatprep.mubr.bf16.mxu0 0
      %3510 = vmatmul.mubr.bf16.gmra.mrb[0].mxu0 %v3379
      %v3511 = vpop.f32.mrb[0].mxu0
      %v3512 = vadd.f32 0.0, %v3511
      %v3513 = vpop.f32.mrb[0].mxu0
      %v3514 = vadd.f32 0.0, %v3513
      %v3515 = vpop.f32.mrb[0].mxu0
      %v3516 = vadd.f32 0.0, %v3515
      %v3517 = vpop.f32.mrb[0].mxu0
      %v3518 = vadd.f32 0.0, %v3517
      %3519 = vdwg.mxu0
      %v3520 = vadd.f32 %v3373, %v3512
      %v3521 = vadd.f32 %v3374, %v3514
      %v3522 = vadd.f32 %v3375, %v3516
      %v3523 = vadd.f32 %v3376, %v3518
      %v3524 = vld [vmem:[#allocation3 + $0x7] sm:$0xff]
      %v3525 = vld [vmem:[#allocation3 + $0xf] sm:$0x1f]
      %v3526 = vpack.c.bf16 %v3525, %v3524
      %s3527 = scalar_lea.vmem %s11, 640
      %v3528 = vld [vmem:[%s3527] sm:$0xff]
      %v3529 = vld [vmem:[%s3527 + $0x8] sm:$0xff]
      %v3530 = vld [vmem:[%s3527 + $0x10] sm:$0xff]
      %v3531 = vld [vmem:[%s3527 + $0x18] sm:$0xff]
      %v3532 = vld [vmem:[%s3527 + $0x20] sm:$0xff]
      %v3533 = vld [vmem:[%s3527 + $0x28] sm:$0xff]
      %v3534 = vld [vmem:[%s3527 + $0x30] sm:$0xff]
      %v3535 = vld [vmem:[%s3527 + $0x38] sm:$0xff]
      %v3536 = vld [vmem:[%s3527 + $0x40] sm:$0xff]
      %v3537 = vld [vmem:[%s3527 + $0x48] sm:$0xff]
      %v3538 = vld [vmem:[%s3527 + $0x50] sm:$0xff]
      %v3539 = vld [vmem:[%s3527 + $0x58] sm:$0xff]
      %v3540 = vld [vmem:[%s3527 + $0x60] sm:$0xff]
      %v3541 = vld [vmem:[%s3527 + $0x68] sm:$0xff]
      %v3542 = vld [vmem:[%s3527 + $0x70] sm:$0xff]
      %v3543 = vld [vmem:[%s3527 + $0x78] sm:$0xff]
      %v3560 = vunpack.c.l.b16 %v3528
      %v3561 = vunpack.c.h.b16 %v3528
      %v3562 = vunpack.c.l.b16 %v3529
      %v3563 = vunpack.c.h.b16 %v3529
      %v3564 = vunpack.c.l.b16 %v3530
      %v3565 = vunpack.c.h.b16 %v3530
      %v3566 = vunpack.c.l.b16 %v3531
      %v3567 = vunpack.c.h.b16 %v3531
      %v3568 = vunpack.c.l.b16 %v3532
      %v3569 = vunpack.c.h.b16 %v3532
      %v3570 = vunpack.c.l.b16 %v3533
      %v3571 = vunpack.c.h.b16 %v3533
      %v3572 = vunpack.c.l.b16 %v3534
      %v3573 = vunpack.c.h.b16 %v3534
      %v3574 = vunpack.c.l.b16 %v3535
      %v3575 = vunpack.c.h.b16 %v3535
      %v3576 = vunpack.c.l.b16 %v3536
      %v3577 = vunpack.c.h.b16 %v3536
      %v3578 = vunpack.c.l.b16 %v3537
      %v3579 = vunpack.c.h.b16 %v3537
      %v3580 = vunpack.c.l.b16 %v3538
      %v3581 = vunpack.c.h.b16 %v3538
      %v3582 = vunpack.c.l.b16 %v3539
      %v3583 = vunpack.c.h.b16 %v3539
      %v3584 = vunpack.c.l.b16 %v3540
      %v3585 = vunpack.c.h.b16 %v3540
      %v3586 = vunpack.c.l.b16 %v3541
      %v3587 = vunpack.c.h.b16 %v3541
      %v3588 = vunpack.c.l.b16 %v3542
      %v3589 = vunpack.c.h.b16 %v3542
      %v3590 = vunpack.c.l.b16 %v3543
      %v3591 = vunpack.c.h.b16 %v3543
      %v3592 = vpack.c.b16 %v3562, %v3560
      %v3593 = vpack.c.b16 %v3563, %v3561
      %v3594 = vpack.c.b16 %v3566, %v3564
      %v3595 = vpack.c.b16 %v3567, %v3565
      %v3596 = vpack.c.b16 %v3570, %v3568
      %v3597 = vpack.c.b16 %v3571, %v3569
      %v3598 = vpack.c.b16 %v3574, %v3572
      %v3599 = vpack.c.b16 %v3575, %v3573
      %v3600 = vpack.c.b16 %v3578, %v3576
      %v3601 = vpack.c.b16 %v3579, %v3577
      %v3602 = vpack.c.b16 %v3582, %v3580
      %v3603 = vpack.c.b16 %v3583, %v3581
      %v3604 = vpack.c.b16 %v3586, %v3584
      %v3605 = vpack.c.b16 %v3587, %v3585
      %v3606 = vpack.c.b16 %v3590, %v3588
      %v3607 = vpack.c.b16 %v3591, %v3589
      %3624 = vmatprep.subr.bf16.mxu0 %v3593
      %3625 = vmatpush1.bf16.msra.mxu0 %v3592
      %3626 = vmatprep.subr.bf16.mxu0 %v3595
      %3627 = vmatpush1.bf16.msra.mxu0 %v3594
      %3628 = vmatprep.subr.bf16.mxu0 %v3597
      %3629 = vmatpush1.bf16.msra.mxu0 %v3596
      %3630 = vmatprep.subr.bf16.mxu0 %v3599
      %3631 = vmatpush1.bf16.msra.mxu0 %v3598
      %3632 = vmatprep.subr.bf16.mxu0 %v3601
      %3633 = vmatpush1.bf16.msra.mxu0 %v3600
      %3634 = vmatprep.subr.bf16.mxu0 %v3603
      %3635 = vmatpush1.bf16.msra.mxu0 %v3602
      %3636 = vmatprep.subr.bf16.mxu0 %v3605
      %3637 = vmatpush1.bf16.msra.mxu0 %v3604
      %3638 = vmatprep.subr.bf16.mxu0 %v3607
      %3639 = vmatpush1.bf16.msra.mxu0 %v3606
      %3640 = vmatprep.subr.bf16.mxu0 0
      %3641 = vmatpush1.bf16.msra.mxu0 0
      %3642 = vmatprep.subr.bf16.mxu0 0
      %3643 = vmatpush1.bf16.msra.mxu0 0
      %3644 = vmatprep.subr.bf16.mxu0 0
      %3645 = vmatpush1.bf16.msra.mxu0 0
      %3646 = vmatprep.subr.bf16.mxu0 0
      %3647 = vmatpush1.bf16.msra.mxu0 0
      %3648 = vmatprep.subr.bf16.mxu0 0
      %3649 = vmatpush1.bf16.msra.mxu0 0
      %3650 = vmatprep.subr.bf16.mxu0 0
      %3651 = vmatpush1.bf16.msra.mxu0 0
      %3652 = vmatprep.subr.bf16.mxu0 0
      %3653 = vmatpush1.bf16.msra.mxu0 0
      %3654 = vmatprep.subr.bf16.mxu0 0
      %3655 = vmatpush1.bf16.msra.mxu0 0
      %3656 = vmatprep.mubr.bf16.mxu0 0
      %3657 = vmatmul.mubr.bf16.gmra.mrb[0].mxu0 %v3526
      %v3658 = vpop.f32.mrb[0].mxu0
      %v3659 = vadd.f32 0.0, %v3658
      %v3660 = vpop.f32.mrb[0].mxu0
      %v3661 = vadd.f32 0.0, %v3660
      %v3662 = vpop.f32.mrb[0].mxu0
      %v3663 = vadd.f32 0.0, %v3662
      %v3664 = vpop.f32.mrb[0].mxu0
      %v3665 = vadd.f32 0.0, %v3664
      %3666 = vdwg.mxu0
      %v3667 = vadd.f32 %v3520, %v3659
      %v3668 = vadd.f32 %v3521, %v3661
      %v3669 = vadd.f32 %v3522, %v3663
      %v3670 = vadd.f32 %v3523, %v3665
      %v3671 = vld [vmem:[#allocation3 + $0xa] sm:$0xff]
      %v3672 = vld [vmem:[#allocation3 + $0x12] sm:$0x1f]
      %v3673 = vpack.c.bf16 %v3672, %v3671
      %s3674 = scalar_lea.vmem %s11, 768
      %v3675 = vld [vmem:[%s3674] sm:$0xff]
      %v3676 = vld [vmem:[%s3674 + $0x8] sm:$0xff]
      %v3677 = vld [vmem:[%s3674 + $0x10] sm:$0xff]
      %v3678 = vld [vmem:[%s3674 + $0x18] sm:$0xff]
      %v3679 = vld [vmem:[%s3674 + $0x20] sm:$0xff]
      %v3680 = vld [vmem:[%s3674 + $0x28] sm:$0xff]
      %v3681 = vld [vmem:[%s3674 + $0x30] sm:$0xff]
      %v3682 = vld [vmem:[%s3674 + $0x38] sm:$0xff]
      %v3683 = vld [vmem:[%s3674 + $0x40] sm:$0xff]
      %v3684 = vld [vmem:[%s3674 + $0x48] sm:$0xff]
      %v3685 = vld [vmem:[%s3674 + $0x50] sm:$0xff]
      %v3686 = vld [vmem:[%s3674 + $0x58] sm:$0xff]
      %v3687 = vld [vmem:[%s3674 + $0x60] sm:$0xff]
      %v3688 = vld [vmem:[%s3674 + $0x68] sm:$0xff]
      %v3689 = vld [vmem:[%s3674 + $0x70] sm:$0xff]
      %v3690 = vld [vmem:[%s3674 + $0x78] sm:$0xff]
      %v3707 = vunpack.c.l.b16 %v3675
      %v3708 = vunpack.c.h.b16 %v3675
      %v3709 = vunpack.c.l.b16 %v3676
      %v3710 = vunpack.c.h.b16 %v3676
      %v3711 = vunpack.c.l.b16 %v3677
      %v3712 = vunpack.c.h.b16 %v3677
      %v3713 = vunpack.c.l.b16 %v3678
      %v3714 = vunpack.c.h.b16 %v3678
      %v3715 = vunpack.c.l.b16 %v3679
      %v3716 = vunpack.c.h.b16 %v3679
      %v3717 = vunpack.c.l.b16 %v3680
      %v3718 = vunpack.c.h.b16 %v3680
      %v3719 = vunpack.c.l.b16 %v3681
      %v3720 = vunpack.c.h.b16 %v3681
      %v3721 = vunpack.c.l.b16 %v3682
      %v3722 = vunpack.c.h.b16 %v3682
      %v3723 = vunpack.c.l.b16 %v3683
      %v3724 = vunpack.c.h.b16 %v3683
      %v3725 = vunpack.c.l.b16 %v3684
      %v3726 = vunpack.c.h.b16 %v3684
      %v3727 = vunpack.c.l.b16 %v3685
      %v3728 = vunpack.c.h.b16 %v3685
      %v3729 = vunpack.c.l.b16 %v3686
      %v3730 = vunpack.c.h.b16 %v3686
      %v3731 = vunpack.c.l.b16 %v3687
      %v3732 = vunpack.c.h.b16 %v3687
      %v3733 = vunpack.c.l.b16 %v3688
      %v3734 = vunpack.c.h.b16 %v3688
      %v3735 = vunpack.c.l.b16 %v3689
      %v3736 = vunpack.c.h.b16 %v3689
      %v3737 = vunpack.c.l.b16 %v3690
      %v3738 = vunpack.c.h.b16 %v3690
      %v3739 = vpack.c.b16 %v3709, %v3707
      %v3740 = vpack.c.b16 %v3710, %v3708
      %v3741 = vpack.c.b16 %v3713, %v3711
      %v3742 = vpack.c.b16 %v3714, %v3712
      %v3743 = vpack.c.b16 %v3717, %v3715
      %v3744 = vpack.c.b16 %v3718, %v3716
      %v3745 = vpack.c.b16 %v3721, %v3719
      %v3746 = vpack.c.b16 %v3722, %v3720
      %v3747 = vpack.c.b16 %v3725, %v3723
      %v3748 = vpack.c.b16 %v3726, %v3724
      %v3749 = vpack.c.b16 %v3729, %v3727
      %v3750 = vpack.c.b16 %v3730, %v3728
      %v3751 = vpack.c.b16 %v3733, %v3731
      %v3752 = vpack.c.b16 %v3734, %v3732
      %v3753 = vpack.c.b16 %v3737, %v3735
      %v3754 = vpack.c.b16 %v3738, %v3736
      %3771 = vmatprep.subr.bf16.mxu0 %v3740
      %3772 = vmatpush1.bf16.msra.mxu0 %v3739
      %3773 = vmatprep.subr.bf16.mxu0 %v3742
      %3774 = vmatpush1.bf16.msra.mxu0 %v3741
      %3775 = vmatprep.subr.bf16.mxu0 %v3744
      %3776 = vmatpush1.bf16.msra.mxu0 %v3743
      %3777 = vmatprep.subr.bf16.mxu0 %v3746
      %3778 = vmatpush1.bf16.msra.mxu0 %v3745
      %3779 = vmatprep.subr.bf16.mxu0 %v3748
      %3780 = vmatpush1.bf16.msra.mxu0 %v3747
      %3781 = vmatprep.subr.bf16.mxu0 %v3750
      %3782 = vmatpush1.bf16.msra.mxu0 %v3749
      %3783 = vmatprep.subr.bf16.mxu0 %v3752
      %3784 = vmatpush1.bf16.msra.mxu0 %v3751
      %3785 = vmatprep.subr.bf16.mxu0 %v3754
      %3786 = vmatpush1.bf16.msra.mxu0 %v3753
      %3787 = vmatprep.subr.bf16.mxu0 0
      %3788 = vmatpush1.bf16.msra.mxu0 0
      %3789 = vmatprep.subr.bf16.mxu0 0
      %3790 = vmatpush1.bf16.msra.mxu0 0
      %3791 = vmatprep.subr.bf16.mxu0 0
      %3792 = vmatpush1.bf16.msra.mxu0 0
      %3793 = vmatprep.subr.bf16.mxu0 0
      %3794 = vmatpush1.bf16.msra.mxu0 0
      %3795 = vmatprep.subr.bf16.mxu0 0
      %3796 = vmatpush1.bf16.msra.mxu0 0
      %3797 = vmatprep.subr.bf16.mxu0 0
      %3798 = vmatpush1.bf16.msra.mxu0 0
      %3799 = vmatprep.subr.bf16.mxu0 0
      %3800 = vmatpush1.bf16.msra.mxu0 0
      %3801 = vmatprep.subr.bf16.mxu0 0
      %3802 = vmatpush1.bf16.msra.mxu0 0
      %3803 = vmatprep.mubr.bf16.mxu0 0
      %3804 = vmatmul.mubr.bf16.gmra.mrb[0].mxu0 %v3673
      %v3805 = vpop.f32.mrb[0].mxu0
      %v3806 = vadd.f32 0.0, %v3805
      %v3807 = vpop.f32.mrb[0].mxu0
      %v3808 = vadd.f32 0.0, %v3807
      %v3809 = vpop.f32.mrb[0].mxu0
      %v3810 = vadd.f32 0.0, %v3809
      %v3811 = vpop.f32.mrb[0].mxu0
      %v3812 = vadd.f32 0.0, %v3811
      %3813 = vdwg.mxu0
      %v3814 = vadd.f32 %v3667, %v3806
      %v3815 = vadd.f32 %v3668, %v3808
      %v3816 = vadd.f32 %v3669, %v3810
      %v3817 = vadd.f32 %v3670, %v3812
      %v3818 = vld [vmem:[#allocation3 + $0xb] sm:$0xff]
      %v3819 = vld [vmem:[#allocation3 + $0x13] sm:$0x1f]
      %v3820 = vpack.c.bf16 %v3819, %v3818
      %s3821 = scalar_lea.vmem %s11, 896
      %v3822 = vld [vmem:[%s3821] sm:$0xff]
      %v3823 = vld [vmem:[%s3821 + $0x8] sm:$0xff]
      %v3824 = vld [vmem:[%s3821 + $0x10] sm:$0xff]
      %v3825 = vld [vmem:[%s3821 + $0x18] sm:$0xff]
      %v3826 = vld [vmem:[%s3821 + $0x20] sm:$0xff]
      %v3827 = vld [vmem:[%s3821 + $0x28] sm:$0xff]
      %v3828 = vld [vmem:[%s3821 + $0x30] sm:$0xff]
      %v3829 = vld [vmem:[%s3821 + $0x38] sm:$0xff]
      %v3830 = vld [vmem:[%s3821 + $0x40] sm:$0xff]
      %v3831 = vld [vmem:[%s3821 + $0x48] sm:$0xff]
      %v3832 = vld [vmem:[%s3821 + $0x50] sm:$0xff]
      %v3833 = vld [vmem:[%s3821 + $0x58] sm:$0xff]
      %v3834 = vld [vmem:[%s3821 + $0x60] sm:$0xff]
      %v3835 = vld [vmem:[%s3821 + $0x68] sm:$0xff]
      %v3836 = vld [vmem:[%s3821 + $0x70] sm:$0xff]
      %v3837 = vld [vmem:[%s3821 + $0x78] sm:$0xff]
      %v3854 = vunpack.c.l.b16 %v3822
      %v3855 = vunpack.c.h.b16 %v3822
      %v3856 = vunpack.c.l.b16 %v3823
      %v3857 = vunpack.c.h.b16 %v3823
      %v3858 = vunpack.c.l.b16 %v3824
      %v3859 = vunpack.c.h.b16 %v3824
      %v3860 = vunpack.c.l.b16 %v3825
      %v3861 = vunpack.c.h.b16 %v3825
      %v3862 = vunpack.c.l.b16 %v3826
      %v3863 = vunpack.c.h.b16 %v3826
      %v3864 = vunpack.c.l.b16 %v3827
      %v3865 = vunpack.c.h.b16 %v3827
      %v3866 = vunpack.c.l.b16 %v3828
      %v3867 = vunpack.c.h.b16 %v3828
      %v3868 = vunpack.c.l.b16 %v3829
      %v3869 = vunpack.c.h.b16 %v3829
      %v3870 = vunpack.c.l.b16 %v3830
      %v3871 = vunpack.c.h.b16 %v3830
      %v3872 = vunpack.c.l.b16 %v3831
      %v3873 = vunpack.c.h.b16 %v3831
      %v3874 = vunpack.c.l.b16 %v3832
      %v3875 = vunpack.c.h.b16 %v3832
      %v3876 = vunpack.c.l.b16 %v3833
      %v3877 = vunpack.c.h.b16 %v3833
      %v3878 = vunpack.c.l.b16 %v3834
      %v3879 = vunpack.c.h.b16 %v3834
      %v3880 = vunpack.c.l.b16 %v3835
      %v3881 = vunpack.c.h.b16 %v3835
      %v3882 = vunpack.c.l.b16 %v3836
      %v3883 = vunpack.c.h.b16 %v3836
      %v3884 = vunpack.c.l.b16 %v3837
      %v3885 = vunpack.c.h.b16 %v3837
      %v3886 = vpack.c.b16 %v3856, %v3854
      %v3887 = vpack.c.b16 %v3857, %v3855
      %v3888 = vpack.c.b16 %v3860, %v3858
      %v3889 = vpack.c.b16 %v3861, %v3859
      %v3890 = vpack.c.b16 %v3864, %v3862
      %v3891 = vpack.c.b16 %v3865, %v3863
      %v3892 = vpack.c.b16 %v3868, %v3866
      %v3893 = vpack.c.b16 %v3869, %v3867
      %v3894 = vpack.c.b16 %v3872, %v3870
      %v3895 = vpack.c.b16 %v3873, %v3871
      %v3896 = vpack.c.b16 %v3876, %v3874
      %v3897 = vpack.c.b16 %v3877, %v3875
      %v3898 = vpack.c.b16 %v3880, %v3878
      %v3899 = vpack.c.b16 %v3881, %v3879
      %v3900 = vpack.c.b16 %v3884, %v3882
      %v3901 = vpack.c.b16 %v3885, %v3883
      %3918 = vmatprep.subr.bf16.mxu0 %v3887
      %3919 = vmatpush1.bf16.msra.mxu0 %v3886
      %3920 = vmatprep.subr.bf16.mxu0 %v3889
      %3921 = vmatpush1.bf16.msra.mxu0 %v3888
      %3922 = vmatprep.subr.bf16.mxu0 %v3891
      %3923 = vmatpush1.bf16.msra.mxu0 %v3890
      %3924 = vmatprep.subr.bf16.mxu0 %v3893
      %3925 = vmatpush1.bf16.msra.mxu0 %v3892
      %3926 = vmatprep.subr.bf16.mxu0 %v3895
      %3927 = vmatpush1.bf16.msra.mxu0 %v3894
      %3928 = vmatprep.subr.bf16.mxu0 %v3897
      %3929 = vmatpush1.bf16.msra.mxu0 %v3896
      %3930 = vmatprep.subr.bf16.mxu0 %v3899
      %3931 = vmatpush1.bf16.msra.mxu0 %v3898
      %3932 = vmatprep.subr.bf16.mxu0 %v3901
      %3933 = vmatpush1.bf16.msra.mxu0 %v3900
      %3934 = vmatprep.subr.bf16.mxu0 0
      %3935 = vmatpush1.bf16.msra.mxu0 0
      %3936 = vmatprep.subr.bf16.mxu0 0
      %3937 = vmatpush1.bf16.msra.mxu0 0
      %3938 = vmatprep.subr.bf16.mxu0 0
      %3939 = vmatpush1.bf16.msra.mxu0 0
      %3940 = vmatprep.subr.bf16.mxu0 0
      %3941 = vmatpush1.bf16.msra.mxu0 0
      %3942 = vmatprep.subr.bf16.mxu0 0
      %3943 = vmatpush1.bf16.msra.mxu0 0
      %3944 = vmatprep.subr.bf16.mxu0 0
      %3945 = vmatpush1.bf16.msra.mxu0 0
      %3946 = vmatprep.subr.bf16.mxu0 0
      %3947 = vmatpush1.bf16.msra.mxu0 0
      %3948 = vmatprep.subr.bf16.mxu0 0
      %3949 = vmatpush1.bf16.msra.mxu0 0
      %3950 = vmatprep.mubr.bf16.mxu0 0
      %3951 = vmatmul.mubr.bf16.gmra.mrb[0].mxu0 %v3820
      %v3952 = vpop.f32.mrb[0].mxu0
      %v3953 = vadd.f32 0.0, %v3952
      %v3954 = vpop.f32.mrb[0].mxu0
      %v3955 = vadd.f32 0.0, %v3954
      %v3956 = vpop.f32.mrb[0].mxu0
      %v3957 = vadd.f32 0.0, %v3956
      %v3958 = vpop.f32.mrb[0].mxu0
      %v3959 = vadd.f32 0.0, %v3958
      %3960 = vdwg.mxu0
      %v3961 = vadd.f32 %v3814, %v3953
      %v3962 = vadd.f32 %v3815, %v3955
      %v3963 = vadd.f32 %v3816, %v3957
      %v3964 = vadd.f32 %v3817, %v3959
      %v3965 = vld [vmem:[#allocation3 + $0xc] sm:$0xff]
      %v3966 = vld [vmem:[#allocation3 + $0x14] sm:$0x1f]
      %v3967 = vpack.c.bf16 %v3966, %v3965
      %s3968 = scalar_lea.vmem %s11, 1024
      %v3969 = vld [vmem:[%s3968] sm:$0xff]
      %v3970 = vld [vmem:[%s3968 + $0x8] sm:$0xff]
      %v3971 = vld [vmem:[%s3968 + $0x10] sm:$0xff]
      %v3972 = vld [vmem:[%s3968 + $0x18] sm:$0xff]
      %v3973 = vld [vmem:[%s3968 + $0x20] sm:$0xff]
      %v3974 = vld [vmem:[%s3968 + $0x28] sm:$0xff]
      %v3975 = vld [vmem:[%s3968 + $0x30] sm:$0xff]
      %v3976 = vld [vmem:[%s3968 + $0x38] sm:$0xff]
      %v3977 = vld [vmem:[%s3968 + $0x40] sm:$0xff]
      %v3978 = vld [vmem:[%s3968 + $0x48] sm:$0xff]
      %v3979 = vld [vmem:[%s3968 + $0x50] sm:$0xff]
      %v3980 = vld [vmem:[%s3968 + $0x58] sm:$0xff]
      %v3981 = vld [vmem:[%s3968 + $0x60] sm:$0xff]
      %v3982 = vld [vmem:[%s3968 + $0x68] sm:$0xff]
      %v3983 = vld [vmem:[%s3968 + $0x70] sm:$0xff]
      %v3984 = vld [vmem:[%s3968 + $0x78] sm:$0xff]
      %v4001 = vunpack.c.l.b16 %v3969
      %v4002 = vunpack.c.h.b16 %v3969
      %v4003 = vunpack.c.l.b16 %v3970
      %v4004 = vunpack.c.h.b16 %v3970
      %v4005 = vunpack.c.l.b16 %v3971
      %v4006 = vunpack.c.h.b16 %v3971
      %v4007 = vunpack.c.l.b16 %v3972
      %v4008 = vunpack.c.h.b16 %v3972
      %v4009 = vunpack.c.l.b16 %v3973
      %v4010 = vunpack.c.h.b16 %v3973
      %v4011 = vunpack.c.l.b16 %v3974
      %v4012 = vunpack.c.h.b16 %v3974
      %v4013 = vunpack.c.l.b16 %v3975
      %v4014 = vunpack.c.h.b16 %v3975
      %v4015 = vunpack.c.l.b16 %v3976
      %v4016 = vunpack.c.h.b16 %v3976
      %v4017 = vunpack.c.l.b16 %v3977
      %v4018 = vunpack.c.h.b16 %v3977
      %v4019 = vunpack.c.l.b16 %v3978
      %v4020 = vunpack.c.h.b16 %v3978
      %v4021 = vunpack.c.l.b16 %v3979
      %v4022 = vunpack.c.h.b16 %v3979
      %v4023 = vunpack.c.l.b16 %v3980
      %v4024 = vunpack.c.h.b16 %v3980
      %v4025 = vunpack.c.l.b16 %v3981
      %v4026 = vunpack.c.h.b16 %v3981
      %v4027 = vunpack.c.l.b16 %v3982
      %v4028 = vunpack.c.h.b16 %v3982
      %v4029 = vunpack.c.l.b16 %v3983
      %v4030 = vunpack.c.h.b16 %v3983
      %v4031 = vunpack.c.l.b16 %v3984
      %v4032 = vunpack.c.h.b16 %v3984
      %v4033 = vpack.c.b16 %v4003, %v4001
      %v4034 = vpack.c.b16 %v4004, %v4002
      %v4035 = vpack.c.b16 %v4007, %v4005
      %v4036 = vpack.c.b16 %v4008, %v4006
      %v4037 = vpack.c.b16 %v4011, %v4009
      %v4038 = vpack.c.b16 %v4012, %v4010
      %v4039 = vpack.c.b16 %v4015, %v4013
      %v4040 = vpack.c.b16 %v4016, %v4014
      %v4041 = vpack.c.b16 %v4019, %v4017
      %v4042 = vpack.c.b16 %v4020, %v4018
      %v4043 = vpack.c.b16 %v4023, %v4021
      %v4044 = vpack.c.b16 %v4024, %v4022
      %v4045 = vpack.c.b16 %v4027, %v4025
      %v4046 = vpack.c.b16 %v4028, %v4026
      %v4047 = vpack.c.b16 %v4031, %v4029
      %v4048 = vpack.c.b16 %v4032, %v4030
      %4065 = vmatprep.subr.bf16.mxu0 %v4034
      %4066 = vmatpush1.bf16.msra.mxu0 %v4033
      %4067 = vmatprep.subr.bf16.mxu0 %v4036
      %4068 = vmatpush1.bf16.msra.mxu0 %v4035
      %4069 = vmatprep.subr.bf16.mxu0 %v4038
      %4070 = vmatpush1.bf16.msra.mxu0 %v4037
      %4071 = vmatprep.subr.bf16.mxu0 %v4040
      %4072 = vmatpush1.bf16.msra.mxu0 %v4039
      %4073 = vmatprep.subr.bf16.mxu0 %v4042
      %4074 = vmatpush1.bf16.msra.mxu0 %v4041
      %4075 = vmatprep.subr.bf16.mxu0 %v4044
      %4076 = vmatpush1.bf16.msra.mxu0 %v4043
      %4077 = vmatprep.subr.bf16.mxu0 %v4046
      %4078 = vmatpush1.bf16.msra.mxu0 %v4045
      %4079 = vmatprep.subr.bf16.mxu0 %v4048
      %4080 = vmatpush1.bf16.msra.mxu0 %v4047
      %4081 = vmatprep.subr.bf16.mxu0 0
      %4082 = vmatpush1.bf16.msra.mxu0 0
      %4083 = vmatprep.subr.bf16.mxu0 0
      %4084 = vmatpush1.bf16.msra.mxu0 0
      %4085 = vmatprep.subr.bf16.mxu0 0
      %4086 = vmatpush1.bf16.msra.mxu0 0
      %4087 = vmatprep.subr.bf16.mxu0 0
      %4088 = vmatpush1.bf16.msra.mxu0 0
      %4089 = vmatprep.subr.bf16.mxu0 0
      %4090 = vmatpush1.bf16.msra.mxu0 0
      %4091 = vmatprep.subr.bf16.mxu0 0
      %4092 = vmatpush1.bf16.msra.mxu0 0
      %4093 = vmatprep.subr.bf16.mxu0 0
      %4094 = vmatpush1.bf16.msra.mxu0 0
      %4095 = vmatprep.subr.bf16.mxu0 0
      %4096 = vmatpush1.bf16.msra.mxu0 0
      %4097 = vmatprep.mubr.bf16.mxu0 0
      %4098 = vmatmul.mubr.bf16.gmra.mrb[0].mxu0 %v3967
      %v4099 = vpop.f32.mrb[0].mxu0
      %v4100 = vadd.f32 0.0, %v4099
      %v4101 = vpop.f32.mrb[0].mxu0
      %v4102 = vadd.f32 0.0, %v4101
      %v4103 = vpop.f32.mrb[0].mxu0
      %v4104 = vadd.f32 0.0, %v4103
      %v4105 = vpop.f32.mrb[0].mxu0
      %v4106 = vadd.f32 0.0, %v4105
      %4107 = vdwg.mxu0
      %v4108 = vadd.f32 %v3961, %v4100
      %v4109 = vadd.f32 %v3962, %v4102
      %v4110 = vadd.f32 %v3963, %v4104
      %v4111 = vadd.f32 %v3964, %v4106
      %v4112 = vld [vmem:[%s12] sm:$0x3]
      %v4114 = vlaneseq
      %v4115 = vshrl.u32 %v4114, 7
      %v4116 = vsub.s32 0, %v4115
      %v4117 = vrot.slane %v4112, %v4116
      %v4118 = vlaneseq
      %v4119 = vshrl.u32 %v4118, 7
      %v4120 = vsub.s32 1, %v4119
      %v4121 = vrot.slane %v4112, %v4120
      %v4124 = vadd.f32 %v4108, %v4117
      %v4125 = vadd.f32 %v4109, %v4121
      %v4126 = vadd.f32 %v4110, %v4117
      %v4127 = vadd.f32 %v4111, %v4121
      %v4128 = vmax.f32 %v4124, 0.0
      %v4129 = vmax.f32 %v4125, 0.0
      %v4130 = vmax.f32 %v4126, 0.0
      %v4131 = vmax.f32 %v4127, 0.0
      %v4132 = vpack.c.bf16 %v4130, %v4128
      %v4133 = vpack.c.bf16 %v4131, %v4129
      %v4134 = vld [vmem:[%s13] sm:$0xf]
      %v4135 = vld [vmem:[%s13 + $0x4] sm:$0xf]
      %v4136 = vld [vmem:[%s13 + $0x8] sm:$0xf]
      %v4137 = vld [vmem:[%s13 + $0xc] sm:$0x1]
      %v4142 = vunpack.c.l.b16 %v4134
      %v4143 = vunpack.c.l.b16 %v4135
      %v4144 = vunpack.c.l.b16 %v4136
      %v4145 = vunpack.c.l.b16 %v4137
      %v4146 = vpack.c.b16 %v4143, %v4142
      %v4147 = vpack.c.b16 %v4145, %v4144
      %vm4148 = vcmask 105472
      %v4150 = vsel %vm4148, %v4146, 0
      %v4153 = vsel %vm4148, %v4147, 0
      %v4156 = vand.u32 %v4132, %v2622
      %v4159 = vand.u32 %v4133, %v2622
      %4161 = vmatprep.subr.bf16.mxu0 %v4159
      %4162 = vmatpush1.bf16.msra.mxu0 %v4156
      %4163 = vmatprep.subr.bf16.mxu0 0
      %4164 = vmatpush1.bf16.msra.mxu0 0
      %4165 = vmatprep.subr.bf16.mxu0 0
      %4166 = vmatpush1.bf16.msra.mxu0 0
      %4167 = vmatprep.subr.bf16.mxu0 0
      %4168 = vmatpush1.bf16.msra.mxu0 0
      %4169 = vmatprep.subr.bf16.mxu0 0
      %4170 = vmatpush1.bf16.msra.mxu0 0
      %4171 = vmatprep.subr.bf16.mxu0 0
      %4172 = vmatpush1.bf16.msra.mxu0 0
      %4173 = vmatprep.subr.bf16.mxu0 0
      %4174 = vmatpush1.bf16.msra.mxu0 0
      %4175 = vmatprep.subr.bf16.mxu0 0
      %4176 = vmatpush1.bf16.msra.mxu0 0
      %4177 = vmatprep.subr.bf16.mxu0 0
      %4178 = vmatpush1.bf16.msra.mxu0 0
      %4179 = vmatprep.subr.bf16.mxu0 0
      %4180 = vmatpush1.bf16.msra.mxu0 0
      %4181 = vmatprep.subr.bf16.mxu0 0
      %4182 = vmatpush1.bf16.msra.mxu0 0
      %4183 = vmatprep.subr.bf16.mxu0 0
      %4184 = vmatpush1.bf16.msra.mxu0 0
      %4185 = vmatprep.subr.bf16.mxu0 0
      %4186 = vmatpush1.bf16.msra.mxu0 0
      %4187 = vmatprep.subr.bf16.mxu0 0
      %4188 = vmatpush1.bf16.msra.mxu0 0
      %4189 = vmatprep.subr.bf16.mxu0 0
      %4190 = vmatpush1.bf16.msra.mxu0 0
      %4191 = vmatprep.subr.bf16.mxu0 0
      %4192 = vmatpush1.bf16.msra.mxu0 0
      %4193 = vmatprep.mubr.bf16.mxu0 0
      %4194 = vmatmul.mubr.bf16.gmra.mrb[0].mxu0 %v4150
      %v4195 = vpop.f32.mrb[0].mxu0
      %v4196 = vadd.f32 0.0, %v4195
      %v4197 = vpop.f32.mrb[0].mxu0
      %v4198 = vadd.f32 0.0, %v4197
      %v4199 = vpop.f32.mrb[0].mxu0
      %v4200 = vadd.f32 0.0, %v4199
      %v4201 = vpop.f32.mrb[0].mxu0
      %v4202 = vadd.f32 0.0, %v4201
      %4203 = vmatprep.mubr.bf16.mxu0 0
      %4204 = vmatmul.mubr.bf16.gmra.mrb[0].mxu0 %v4153
      %v4205 = vpop.f32.mrb[0].mxu0
      %v4206 = vadd.f32 0.0, %v4205
      %v4207 = vpop.f32.mrb[0].mxu0
      %v4208 = vadd.f32 0.0, %v4207
      %v4209 = vpop.f32.mrb[0].mxu0
      %v4210 = vadd.f32 0.0, %v4209
      %v4211 = vpop.f32.mrb[0].mxu0
      %v4212 = vadd.f32 0.0, %v4211
      %4213 = vdwg.mxu0
      %4214 = vst [vmem:[#allocation4] sm:$0xff] %v4196
      %4215 = vst [vmem:[#allocation4 + $0x8] sm:$0xff] %v4198
      %4216 = vst [vmem:[#allocation4 + $0x10] sm:$0xff] %v4200
      %4217 = vst [vmem:[#allocation4 + $0x18] sm:$0xff] %v4202
      %4218 = vst [vmem:[#allocation4 + $0x20] sm:$0xff] %v4206
      %4219 = vst [vmem:[#allocation4 + $0x28] sm:$0xff] %v4208
      %4220 = vst [vmem:[#allocation4 + $0x30] sm:$0x1] %v4210
      %4221 = vst [vmem:[#allocation4 + $0x38] sm:$0x1] %v4212
      %v4222 = vld [vmem:[#allocation4] sm:$0xff]
      %v4223 = vld [vmem:[#allocation4 + $0x8] sm:$0xff]
      %v4224 = vld [vmem:[#allocation4 + $0x10] sm:$0x1f]
      %v4225 = vld [vmem:[#allocation4 + $0x18] sm:$0x1f]
      %v4226 = vpack.c.bf16 %v4224, %v4222
      %v4227 = vpack.c.bf16 %v4225, %v4223
      %v4228 = vld [vmem:[%s14] sm:$0xff]
      %v4229 = vld [vmem:[%s14 + $0x8] sm:$0xff]
      %v4230 = vld [vmem:[%s14 + $0x10] sm:$0xff]
      %v4231 = vld [vmem:[%s14 + $0x18] sm:$0xff]
      %v4232 = vld [vmem:[%s14 + $0x20] sm:$0xff]
      %v4233 = vld [vmem:[%s14 + $0x28] sm:$0xff]
      %v4234 = vld [vmem:[%s14 + $0x30] sm:$0xff]
      %v4235 = vld [vmem:[%s14 + $0x38] sm:$0xff]
      %v4236 = vld [vmem:[%s14 + $0x40] sm:$0xff]
      %v4237 = vld [vmem:[%s14 + $0x48] sm:$0xff]
      %v4238 = vld [vmem:[%s14 + $0x50] sm:$0xff]
      %v4239 = vld [vmem:[%s14 + $0x58] sm:$0xff]
      %v4240 = vld [vmem:[%s14 + $0x60] sm:$0xff]
      %v4241 = vld [vmem:[%s14 + $0x68] sm:$0xff]
      %v4242 = vld [vmem:[%s14 + $0x70] sm:$0xff]
      %v4243 = vld [vmem:[%s14 + $0x78] sm:$0xff]
      %v4244 = vld [vmem:[%s14 + $0x80] sm:$0xff]
      %v4245 = vld [vmem:[%s14 + $0x88] sm:$0xff]
      %v4246 = vld [vmem:[%s14 + $0x90] sm:$0xff]
      %v4247 = vld [vmem:[%s14 + $0x98] sm:$0xff]
      %v4248 = vld [vmem:[%s14 + $0xa0] sm:$0xff]
      %v4249 = vld [vmem:[%s14 + $0xa8] sm:$0xff]
      %v4250 = vld [vmem:[%s14 + $0xb0] sm:$0xff]
      %v4251 = vld [vmem:[%s14 + $0xb8] sm:$0xff]
      %v4252 = vld [vmem:[%s14 + $0xc0] sm:$0xff]
      %v4253 = vld [vmem:[%s14 + $0xc8] sm:$0xff]
      %v4254 = vld [vmem:[%s14 + $0xd0] sm:$0xff]
      %v4255 = vld [vmem:[%s14 + $0xd8] sm:$0xff]
      %v4256 = vld [vmem:[%s14 + $0xe0] sm:$0xff]
      %v4257 = vld [vmem:[%s14 + $0xe8] sm:$0xff]
      %v4258 = vld [vmem:[%s14 + $0xf0] sm:$0xff]
      %v4259 = vld [vmem:[%s14 + $0xf8] sm:$0xff]
      %v4260 = vld [vmem:[%s14 + $0x100] sm:$0xff]
      %v4261 = vld [vmem:[%s14 + $0x108] sm:$0xff]
      %v4262 = vld [vmem:[%s14 + $0x110] sm:$0xff]
      %v4263 = vld [vmem:[%s14 + $0x118] sm:$0xff]
      %v4264 = vld [vmem:[%s14 + $0x120] sm:$0xff]
      %v4265 = vld [vmem:[%s14 + $0x128] sm:$0xff]
      %v4266 = vld [vmem:[%s14 + $0x130] sm:$0xff]
      %v4267 = vld [vmem:[%s14 + $0x138] sm:$0xff]
      %v4268 = vld [vmem:[%s14 + $0x140] sm:$0xff]
      %v4269 = vld [vmem:[%s14 + $0x148] sm:$0xff]
      %v4270 = vld [vmem:[%s14 + $0x150] sm:$0xff]
      %v4271 = vld [vmem:[%s14 + $0x158] sm:$0xff]
      %v4272 = vld [vmem:[%s14 + $0x160] sm:$0xff]
      %v4273 = vld [vmem:[%s14 + $0x168] sm:$0xff]
      %v4274 = vld [vmem:[%s14 + $0x170] sm:$0xff]
      %v4275 = vld [vmem:[%s14 + $0x178] sm:$0xff]
      %v4276 = vld [vmem:[%s14 + $0x180] sm:$0xff]
      %v4277 = vld [vmem:[%s14 + $0x188] sm:$0xff]
      %v4278 = vld [vmem:[%s14 + $0x190] sm:$0xff]
      %v4279 = vld [vmem:[%s14 + $0x198] sm:$0xff]
      %v4280 = vld [vmem:[%s14 + $0x1a0] sm:$0xff]
      %v4281 = vld [vmem:[%s14 + $0x1a8] sm:$0xff]
      %v4282 = vld [vmem:[%s14 + $0x1b0] sm:$0xff]
      %v4283 = vld [vmem:[%s14 + $0x1b8] sm:$0xff]
      %v4284 = vld [vmem:[%s14 + $0x1c0] sm:$0xff]
      %v4285 = vld [vmem:[%s14 + $0x1c8] sm:$0xff]
      %v4286 = vld [vmem:[%s14 + $0x1d0] sm:$0xff]
      %v4287 = vld [vmem:[%s14 + $0x1d8] sm:$0xff]
      %v4288 = vld [vmem:[%s14 + $0x1e0] sm:$0xff]
      %v4289 = vld [vmem:[%s14 + $0x1e8] sm:$0xff]
      %v4290 = vld [vmem:[%s14 + $0x1f0] sm:$0xff]
      %v4291 = vld [vmem:[%s14 + $0x1f8] sm:$0xff]
      %v4292 = vld [vmem:[#allocation4] sm:$0xfe]
      %v4293 = vld [vmem:[#allocation4 + $0x8] sm:$0xfe]
      %v4294 = vld [vmem:[#allocation4 + $0x10] sm:$0x3f]
      %v4295 = vld [vmem:[#allocation4 + $0x18] sm:$0x3f]
      %v4296 = vpack.c.bf16 %v4294, %v4292
      %v4297 = vpack.c.bf16 %v4295, %v4293
      %s4298 = scalar_lea.vmem %s14, 512
      %v4299 = vld [vmem:[%s4298] sm:$0xff]
      %v4300 = vld [vmem:[%s4298 + $0x8] sm:$0xff]
      %v4301 = vld [vmem:[%s4298 + $0x10] sm:$0xff]
      %v4302 = vld [vmem:[%s4298 + $0x18] sm:$0xff]
      %v4303 = vld [vmem:[%s4298 + $0x20] sm:$0xff]
      %v4304 = vld [vmem:[%s4298 + $0x28] sm:$0xff]
      %v4305 = vld [vmem:[%s4298 + $0x30] sm:$0xff]
      %v4306 = vld [vmem:[%s4298 + $0x38] sm:$0xff]
      %v4307 = vld [vmem:[%s4298 + $0x40] sm:$0xff]
      %v4308 = vld [vmem:[%s4298 + $0x48] sm:$0xff]
      %v4309 = vld [vmem:[%s4298 + $0x50] sm:$0xff]
      %v4310 = vld [vmem:[%s4298 + $0x58] sm:$0xff]
      %v4311 = vld [vmem:[%s4298 + $0x60] sm:$0xff]
      %v4312 = vld [vmem:[%s4298 + $0x68] sm:$0xff]
      %v4313 = vld [vmem:[%s4298 + $0x70] sm:$0xff]
      %v4314 = vld [vmem:[%s4298 + $0x78] sm:$0xff]
      %v4315 = vld [vmem:[%s4298 + $0x80] sm:$0xff]
      %v4316 = vld [vmem:[%s4298 + $0x88] sm:$0xff]
      %v4317 = vld [vmem:[%s4298 + $0x90] sm:$0xff]
      %v4318 = vld [vmem:[%s4298 + $0x98] sm:$0xff]
      %v4319 = vld [vmem:[%s4298 + $0xa0] sm:$0xff]
      %v4320 = vld [vmem:[%s4298 + $0xa8] sm:$0xff]
      %v4321 = vld [vmem:[%s4298 + $0xb0] sm:$0xff]
      %v4322 = vld [vmem:[%s4298 + $0xb8] sm:$0xff]
      %v4323 = vld [vmem:[%s4298 + $0xc0] sm:$0xff]
      %v4324 = vld [vmem:[%s4298 + $0xc8] sm:$0xff]
      %v4325 = vld [vmem:[%s4298 + $0xd0] sm:$0xff]
      %v4326 = vld [vmem:[%s4298 + $0xd8] sm:$0xff]
      %v4327 = vld [vmem:[%s4298 + $0xe0] sm:$0xff]
      %v4328 = vld [vmem:[%s4298 + $0xe8] sm:$0xff]
      %v4329 = vld [vmem:[%s4298 + $0xf0] sm:$0xff]
      %v4330 = vld [vmem:[%s4298 + $0xf8] sm:$0xff]
      %v4331 = vld [vmem:[%s4298 + $0x100] sm:$0xff]
      %v4332 = vld [vmem:[%s4298 + $0x108] sm:$0xff]
      %v4333 = vld [vmem:[%s4298 + $0x110] sm:$0xff]
      %v4334 = vld [vmem:[%s4298 + $0x118] sm:$0xff]
      %v4335 = vld [vmem:[%s4298 + $0x120] sm:$0xff]
      %v4336 = vld [vmem:[%s4298 + $0x128] sm:$0xff]
      %v4337 = vld [vmem:[%s4298 + $0x130] sm:$0xff]
      %v4338 = vld [vmem:[%s4298 + $0x138] sm:$0xff]
      %v4339 = vld [vmem:[%s4298 + $0x140] sm:$0xff]
      %v4340 = vld [vmem:[%s4298 + $0x148] sm:$0xff]
      %v4341 = vld [vmem:[%s4298 + $0x150] sm:$0xff]
      %v4342 = vld [vmem:[%s4298 + $0x158] sm:$0xff]
      %v4343 = vld [vmem:[%s4298 + $0x160] sm:$0xff]
      %v4344 = vld [vmem:[%s4298 + $0x168] sm:$0xff]
      %v4345 = vld [vmem:[%s4298 + $0x170] sm:$0xff]
      %v4346 = vld [vmem:[%s4298 + $0x178] sm:$0xff]
      %v4347 = vld [vmem:[%s4298 + $0x180] sm:$0xff]
      %v4348 = vld [vmem:[%s4298 + $0x188] sm:$0xff]
      %v4349 = vld [vmem:[%s4298 + $0x190] sm:$0xff]
      %v4350 = vld [vmem:[%s4298 + $0x198] sm:$0xff]
      %v4351 = vld [vmem:[%s4298 + $0x1a0] sm:$0xff]
      %v4352 = vld [vmem:[%s4298 + $0x1a8] sm:$0xff]
      %v4353 = vld [vmem:[%s4298 + $0x1b0] sm:$0xff]
      %v4354 = vld [vmem:[%s4298 + $0x1b8] sm:$0xff]
      %v4355 = vld [vmem:[%s4298 + $0x1c0] sm:$0xff]
      %v4356 = vld [vmem:[%s4298 + $0x1c8] sm:$0xff]
      %v4357 = vld [vmem:[%s4298 + $0x1d0] sm:$0xff]
      %v4358 = vld [vmem:[%s4298 + $0x1d8] sm:$0xff]
      %v4359 = vld [vmem:[%s4298 + $0x1e0] sm:$0xff]
      %v4360 = vld [vmem:[%s4298 + $0x1e8] sm:$0xff]
      %v4361 = vld [vmem:[%s4298 + $0x1f0] sm:$0xff]
      %v4362 = vld [vmem:[%s4298 + $0x1f8] sm:$0xff]
      %v4364 = vshrl.u32 %v4296, 16
      %v4366 = vshll.u32 %v4296, 16
      %v4368 = vrot.slane %v4366, 1
      %v4369 = vor.u32 %v4364, %v4368
      %v4371 = vshrl.u32 %v4297, 16
      %v4373 = vshll.u32 %v4297, 16
      %v4375 = vrot.slane %v4373, 1
      %v4376 = vor.u32 %v4371, %v4375
      %v4443 = vunpack.c.l.b16 %v4299
      %v4444 = vunpack.c.h.b16 %v4299
      %v4445 = vunpack.c.l.b16 %v4300
      %v4446 = vunpack.c.h.b16 %v4300
      %v4447 = vunpack.c.l.b16 %v4301
      %v4448 = vunpack.c.h.b16 %v4301
      %v4449 = vunpack.c.l.b16 %v4302
      %v4450 = vunpack.c.h.b16 %v4302
      %v4451 = vunpack.c.l.b16 %v4303
      %v4452 = vunpack.c.h.b16 %v4303
      %v4453 = vunpack.c.l.b16 %v4304
      %v4454 = vunpack.c.h.b16 %v4304
      %v4455 = vunpack.c.l.b16 %v4305
      %v4456 = vunpack.c.h.b16 %v4305
      %v4457 = vunpack.c.l.b16 %v4306
      %v4458 = vunpack.c.h.b16 %v4306
      %v4459 = vunpack.c.l.b16 %v4307
      %v4460 = vunpack.c.h.b16 %v4307
      %v4461 = vunpack.c.l.b16 %v4308
      %v4462 = vunpack.c.h.b16 %v4308
      %v4463 = vunpack.c.l.b16 %v4309
      %v4464 = vunpack.c.h.b16 %v4309
      %v4465 = vunpack.c.l.b16 %v4310
      %v4466 = vunpack.c.h.b16 %v4310
      %v4467 = vunpack.c.l.b16 %v4311
      %v4468 = vunpack.c.h.b16 %v4311
      %v4469 = vunpack.c.l.b16 %v4312
      %v4470 = vunpack.c.h.b16 %v4312
      %v4471 = vunpack.c.l.b16 %v4313
      %v4472 = vunpack.c.h.b16 %v4313
      %v4473 = vunpack.c.l.b16 %v4314
      %v4474 = vunpack.c.h.b16 %v4314
      %v4475 = vunpack.c.l.b16 %v4315
      %v4476 = vunpack.c.h.b16 %v4315
      %v4477 = vunpack.c.l.b16 %v4316
      %v4478 = vunpack.c.h.b16 %v4316
      %v4479 = vunpack.c.l.b16 %v4317
      %v4480 = vunpack.c.h.b16 %v4317
      %v4481 = vunpack.c.l.b16 %v4318
      %v4482 = vunpack.c.h.b16 %v4318
      %v4483 = vunpack.c.l.b16 %v4319
      %v4484 = vunpack.c.h.b16 %v4319
      %v4485 = vunpack.c.l.b16 %v4320
      %v4486 = vunpack.c.h.b16 %v4320
      %v4487 = vunpack.c.l.b16 %v4321
      %v4488 = vunpack.c.h.b16 %v4321
      %v4489 = vunpack.c.l.b16 %v4322
      %v4490 = vunpack.c.h.b16 %v4322
      %v4491 = vunpack.c.l.b16 %v4323
      %v4492 = vunpack.c.h.b16 %v4323
      %v4493 = vunpack.c.l.b16 %v4324
      %v4494 = vunpack.c.h.b16 %v4324
      %v4495 = vunpack.c.l.b16 %v4325
      %v4496 = vunpack.c.h.b16 %v4325
      %v4497 = vunpack.c.l.b16 %v4326
      %v4498 = vunpack.c.h.b16 %v4326
      %v4499 = vunpack.c.l.b16 %v4327
      %v4500 = vunpack.c.h.b16 %v4327
      %v4501 = vunpack.c.l.b16 %v4328
      %v4502 = vunpack.c.h.b16 %v4328
      %v4503 = vunpack.c.l.b16 %v4329
      %v4504 = vunpack.c.h.b16 %v4329
      %v4505 = vunpack.c.l.b16 %v4330
      %v4506 = vunpack.c.h.b16 %v4330
      %v4507 = vunpack.c.l.b16 %v4331
      %v4508 = vunpack.c.h.b16 %v4331
      %v4509 = vunpack.c.l.b16 %v4332
      %v4510 = vunpack.c.h.b16 %v4332
      %v4511 = vunpack.c.l.b16 %v4333
      %v4512 = vunpack.c.h.b16 %v4333
      %v4513 = vunpack.c.l.b16 %v4334
      %v4514 = vunpack.c.h.b16 %v4334
      %v4515 = vunpack.c.l.b16 %v4335
      %v4516 = vunpack.c.h.b16 %v4335
      %v4517 = vunpack.c.l.b16 %v4336
      %v4518 = vunpack.c.h.b16 %v4336
      %v4519 = vunpack.c.l.b16 %v4337
      %v4520 = vunpack.c.h.b16 %v4337
      %v4521 = vunpack.c.l.b16 %v4338
      %v4522 = vunpack.c.h.b16 %v4338
      %v4523 = vunpack.c.l.b16 %v4339
      %v4524 = vunpack.c.h.b16 %v4339
      %v4525 = vunpack.c.l.b16 %v4340
      %v4526 = vunpack.c.h.b16 %v4340
      %v4527 = vunpack.c.l.b16 %v4341
      %v4528 = vunpack.c.h.b16 %v4341
      %v4529 = vunpack.c.l.b16 %v4342
      %v4530 = vunpack.c.h.b16 %v4342
      %v4531 = vunpack.c.l.b16 %v4343
      %v4532 = vunpack.c.h.b16 %v4343
      %v4533 = vunpack.c.l.b16 %v4344
      %v4534 = vunpack.c.h.b16 %v4344
      %v4535 = vunpack.c.l.b16 %v4345
      %v4536 = vunpack.c.h.b16 %v4345
      %v4537 = vunpack.c.l.b16 %v4346
      %v4538 = vunpack.c.h.b16 %v4346
      %v4539 = vunpack.c.l.b16 %v4347
      %v4540 = vunpack.c.h.b16 %v4347
      %v4541 = vunpack.c.l.b16 %v4348
      %v4542 = vunpack.c.h.b16 %v4348
      %v4543 = vunpack.c.l.b16 %v4349
      %v4544 = vunpack.c.h.b16 %v4349
      %v4545 = vunpack.c.l.b16 %v4350
      %v4546 = vunpack.c.h.b16 %v4350
      %v4547 = vunpack.c.l.b16 %v4351
      %v4548 = vunpack.c.h.b16 %v4351
      %v4549 = vunpack.c.l.b16 %v4352
      %v4550 = vunpack.c.h.b16 %v4352
      %v4551 = vunpack.c.l.b16 %v4353
      %v4552 = vunpack.c.h.b16 %v4353
      %v4553 = vunpack.c.l.b16 %v4354
      %v4554 = vunpack.c.h.b16 %v4354
      %v4555 = vunpack.c.l.b16 %v4355
      %v4556 = vunpack.c.h.b16 %v4355
      %v4557 = vunpack.c.l.b16 %v4356
      %v4558 = vunpack.c.h.b16 %v4356
      %v4559 = vunpack.c.l.b16 %v4357
      %v4560 = vunpack.c.h.b16 %v4357
      %v4561 = vunpack.c.l.b16 %v4358
      %v4562 = vunpack.c.h.b16 %v4358
      %v4563 = vunpack.c.l.b16 %v4359
      %v4564 = vunpack.c.h.b16 %v4359
      %v4565 = vunpack.c.l.b16 %v4360
      %v4566 = vunpack.c.h.b16 %v4360
      %v4567 = vunpack.c.l.b16 %v4361
      %v4568 = vunpack.c.h.b16 %v4361
      %v4569 = vunpack.c.l.b16 %v4362
      %v4570 = vunpack.c.h.b16 %v4362
      %v4571 = vpack.c.b16 %v4447, %v4443
      %v4572 = vpack.c.b16 %v4448, %v4444
      %v4573 = vpack.c.b16 %v4449, %v4445
      %v4574 = vpack.c.b16 %v4450, %v4446
      %v4575 = vpack.c.b16 %v4455, %v4451
      %v4576 = vpack.c.b16 %v4456, %v4452
      %v4577 = vpack.c.b16 %v4457, %v4453
      %v4578 = vpack.c.b16 %v4458, %v4454
      %v4579 = vpack.c.b16 %v4463, %v4459
      %v4580 = vpack.c.b16 %v4464, %v4460
      %v4581 = vpack.c.b16 %v4465, %v4461
      %v4582 = vpack.c.b16 %v4466, %v4462
      %v4583 = vpack.c.b16 %v4471, %v4467
      %v4584 = vpack.c.b16 %v4472, %v4468
      %v4585 = vpack.c.b16 %v4473, %v4469
      %v4586 = vpack.c.b16 %v4474, %v4470
      %v4587 = vpack.c.b16 %v4479, %v4475
      %v4588 = vpack.c.b16 %v4480, %v4476
      %v4589 = vpack.c.b16 %v4481, %v4477
      %v4590 = vpack.c.b16 %v4482, %v4478
      %v4591 = vpack.c.b16 %v4487, %v4483
      %v4592 = vpack.c.b16 %v4488, %v4484
      %v4593 = vpack.c.b16 %v4489, %v4485
      %v4594 = vpack.c.b16 %v4490, %v4486
      %v4595 = vpack.c.b16 %v4495, %v4491
      %v4596 = vpack.c.b16 %v4496, %v4492
      %v4597 = vpack.c.b16 %v4497, %v4493
      %v4598 = vpack.c.b16 %v4498, %v4494
      %v4599 = vpack.c.b16 %v4503, %v4499
      %v4600 = vpack.c.b16 %v4504, %v4500
      %v4601 = vpack.c.b16 %v4505, %v4501
      %v4602 = vpack.c.b16 %v4506, %v4502
      %v4603 = vpack.c.b16 %v4511, %v4507
      %v4604 = vpack.c.b16 %v4512, %v4508
      %v4605 = vpack.c.b16 %v4513, %v4509
      %v4606 = vpack.c.b16 %v4514, %v4510
      %v4607 = vpack.c.b16 %v4519, %v4515
      %v4608 = vpack.c.b16 %v4520, %v4516
      %v4609 = vpack.c.b16 %v4521, %v4517
      %v4610 = vpack.c.b16 %v4522, %v4518
      %v4611 = vpack.c.b16 %v4527, %v4523
      %v4612 = vpack.c.b16 %v4528, %v4524
      %v4613 = vpack.c.b16 %v4529, %v4525
      %v4614 = vpack.c.b16 %v4530, %v4526
      %v4615 = vpack.c.b16 %v4535, %v4531
      %v4616 = vpack.c.b16 %v4536, %v4532
      %v4617 = vpack.c.b16 %v4537, %v4533
      %v4618 = vpack.c.b16 %v4538, %v4534
      %v4619 = vpack.c.b16 %v4543, %v4539
      %v4620 = vpack.c.b16 %v4544, %v4540
      %v4621 = vpack.c.b16 %v4545, %v4541
      %v4622 = vpack.c.b16 %v4546, %v4542
      %v4623 = vpack.c.b16 %v4551, %v4547
      %v4624 = vpack.c.b16 %v4552, %v4548
      %v4625 = vpack.c.b16 %v4553, %v4549
      %v4626 = vpack.c.b16 %v4554, %v4550
      %v4627 = vpack.c.b16 %v4559, %v4555
      %v4628 = vpack.c.b16 %v4560, %v4556
      %v4629 = vpack.c.b16 %v4561, %v4557
      %v4630 = vpack.c.b16 %v4562, %v4558
      %v4631 = vpack.c.b16 %v4567, %v4563
      %v4632 = vpack.c.b16 %v4568, %v4564
      %v4633 = vpack.c.b16 %v4569, %v4565
      %v4634 = vpack.c.b16 %v4570, %v4566
      %4699 = vmatprep.subr.bf16.mxu0 %v4572
      %4700 = vmatpush1.bf16.msra.mxu0 %v4571
      %4701 = vmatprep.subr.bf16.mxu0 %v4576
      %4702 = vmatpush1.bf16.msra.mxu0 %v4575
      %4703 = vmatprep.subr.bf16.mxu0 %v4580
      %4704 = vmatpush1.bf16.msra.mxu0 %v4579
      %4705 = vmatprep.subr.bf16.mxu0 %v4584
      %4706 = vmatpush1.bf16.msra.mxu0 %v4583
      %4707 = vmatprep.subr.bf16.mxu0 %v4588
      %4708 = vmatpush1.bf16.msra.mxu0 %v4587
      %4709 = vmatprep.subr.bf16.mxu0 %v4592
      %4710 = vmatpush1.bf16.msra.mxu0 %v4591
      %4711 = vmatprep.subr.bf16.mxu0 %v4596
      %4712 = vmatpush1.bf16.msra.mxu0 %v4595
      %4713 = vmatprep.subr.bf16.mxu0 %v4600
      %4714 = vmatpush1.bf16.msra.mxu0 %v4599
      %4715 = vmatprep.subr.bf16.mxu0 %v4604
      %4716 = vmatpush1.bf16.msra.mxu0 %v4603
      %4717 = vmatprep.subr.bf16.mxu0 %v4608
      %4718 = vmatpush1.bf16.msra.mxu0 %v4607
      %4719 = vmatprep.subr.bf16.mxu0 %v4612
      %4720 = vmatpush1.bf16.msra.mxu0 %v4611
      %4721 = vmatprep.subr.bf16.mxu0 %v4616
      %4722 = vmatpush1.bf16.msra.mxu0 %v4615
      %4723 = vmatprep.subr.bf16.mxu0 %v4620
      %4724 = vmatpush1.bf16.msra.mxu0 %v4619
      %4725 = vmatprep.subr.bf16.mxu0 %v4624
      %4726 = vmatpush1.bf16.msra.mxu0 %v4623
      %4727 = vmatprep.subr.bf16.mxu0 %v4628
      %4728 = vmatpush1.bf16.msra.mxu0 %v4627
      %4729 = vmatprep.subr.bf16.mxu0 %v4632
      %4730 = vmatpush1.bf16.msra.mxu0 %v4631
      %4731 = vmatprep.mubr.bf16.mxu0 %v4376
      %4732 = vmatmul.mubr.bf16.gmra.mrb[0].mxu0 %v4369
      %v4733 = vpop.f32.mrb[0].mxu0
      %v4734 = vadd.f32 0.0, %v4733
      %v4735 = vpop.f32.mrb[0].mxu0
      %v4736 = vadd.f32 0.0, %v4735
      %v4737 = vpop.f32.mrb[0].mxu0
      %v4738 = vadd.f32 0.0, %v4737
      %v4739 = vpop.f32.mrb[0].mxu0
      %v4740 = vadd.f32 0.0, %v4739
      %4741 = vdwg.mxu0
      %4742 = vmatprep.subr.bf16.mxu0 %v4574
      %4743 = vmatpush1.bf16.msra.mxu0 %v4573
      %4744 = vmatprep.subr.bf16.mxu0 %v4578
      %4745 = vmatpush1.bf16.msra.mxu0 %v4577
      %4746 = vmatprep.subr.bf16.mxu0 %v4582
      %4747 = vmatpush1.bf16.msra.mxu0 %v4581
      %4748 = vmatprep.subr.bf16.mxu0 %v4586
      %4749 = vmatpush1.bf16.msra.mxu0 %v4585
      %4750 = vmatprep.subr.bf16.mxu0 %v4590
      %4751 = vmatpush1.bf16.msra.mxu0 %v4589
      %4752 = vmatprep.subr.bf16.mxu0 %v4594
      %4753 = vmatpush1.bf16.msra.mxu0 %v4593
      %4754 = vmatprep.subr.bf16.mxu0 %v4598
      %4755 = vmatpush1.bf16.msra.mxu0 %v4597
      %4756 = vmatprep.subr.bf16.mxu0 %v4602
      %4757 = vmatpush1.bf16.msra.mxu0 %v4601
      %4758 = vmatprep.subr.bf16.mxu0 %v4606
      %4759 = vmatpush1.bf16.msra.mxu0 %v4605
      %4760 = vmatprep.subr.bf16.mxu0 %v4610
      %4761 = vmatpush1.bf16.msra.mxu0 %v4609
      %4762 = vmatprep.subr.bf16.mxu0 %v4614
      %4763 = vmatpush1.bf16.msra.mxu0 %v4613
      %4764 = vmatprep.subr.bf16.mxu0 %v4618
      %4765 = vmatpush1.bf16.msra.mxu0 %v4617
      %4766 = vmatprep.subr.bf16.mxu0 %v4622
      %4767 = vmatpush1.bf16.msra.mxu0 %v4621
      %4768 = vmatprep.subr.bf16.mxu0 %v4626
      %4769 = vmatpush1.bf16.msra.mxu0 %v4625
      %4770 = vmatprep.subr.bf16.mxu0 %v4630
      %4771 = vmatpush1.bf16.msra.mxu0 %v4629
      %4772 = vmatprep.subr.bf16.mxu0 %v4634
      %4773 = vmatpush1.bf16.msra.mxu0 %v4633
      %4774 = vmatprep.mubr.bf16.mxu0 %v4376
      %4775 = vmatmul.mubr.bf16.gmra.mrb[0].mxu0 %v4369
      %v4776 = vpop.f32.mrb[0].mxu0
      %v4777 = vadd.f32 0.0, %v4776
      %v4778 = vpop.f32.mrb[0].mxu0
      %v4779 = vadd.f32 0.0, %v4778
      %v4780 = vpop.f32.mrb[0].mxu0
      %v4781 = vadd.f32 0.0, %v4780
      %v4782 = vpop.f32.mrb[0].mxu0
      %v4783 = vadd.f32 0.0, %v4782
      %4784 = vdwg.mxu0
      %v4849 = vunpack.c.l.b16 %v4228
      %v4850 = vunpack.c.h.b16 %v4228
      %v4851 = vunpack.c.l.b16 %v4229
      %v4852 = vunpack.c.h.b16 %v4229
      %v4853 = vunpack.c.l.b16 %v4230
      %v4854 = vunpack.c.h.b16 %v4230
      %v4855 = vunpack.c.l.b16 %v4231
      %v4856 = vunpack.c.h.b16 %v4231
      %v4857 = vunpack.c.l.b16 %v4232
      %v4858 = vunpack.c.h.b16 %v4232
      %v4859 = vunpack.c.l.b16 %v4233
      %v4860 = vunpack.c.h.b16 %v4233
      %v4861 = vunpack.c.l.b16 %v4234
      %v4862 = vunpack.c.h.b16 %v4234
      %v4863 = vunpack.c.l.b16 %v4235
      %v4864 = vunpack.c.h.b16 %v4235
      %v4865 = vunpack.c.l.b16 %v4236
      %v4866 = vunpack.c.h.b16 %v4236
      %v4867 = vunpack.c.l.b16 %v4237
      %v4868 = vunpack.c.h.b16 %v4237
      %v4869 = vunpack.c.l.b16 %v4238
      %v4870 = vunpack.c.h.b16 %v4238
      %v4871 = vunpack.c.l.b16 %v4239
      %v4872 = vunpack.c.h.b16 %v4239
      %v4873 = vunpack.c.l.b16 %v4240
      %v4874 = vunpack.c.h.b16 %v4240
      %v4875 = vunpack.c.l.b16 %v4241
      %v4876 = vunpack.c.h.b16 %v4241
      %v4877 = vunpack.c.l.b16 %v4242
      %v4878 = vunpack.c.h.b16 %v4242
      %v4879 = vunpack.c.l.b16 %v4243
      %v4880 = vunpack.c.h.b16 %v4243
      %v4881 = vunpack.c.l.b16 %v4244
      %v4882 = vunpack.c.h.b16 %v4244
      %v4883 = vunpack.c.l.b16 %v4245
      %v4884 = vunpack.c.h.b16 %v4245
      %v4885 = vunpack.c.l.b16 %v4246
      %v4886 = vunpack.c.h.b16 %v4246
      %v4887 = vunpack.c.l.b16 %v4247
      %v4888 = vunpack.c.h.b16 %v4247
      %v4889 = vunpack.c.l.b16 %v4248
      %v4890 = vunpack.c.h.b16 %v4248
      %v4891 = vunpack.c.l.b16 %v4249
      %v4892 = vunpack.c.h.b16 %v4249
      %v4893 = vunpack.c.l.b16 %v4250
      %v4894 = vunpack.c.h.b16 %v4250
      %v4895 = vunpack.c.l.b16 %v4251
      %v4896 = vunpack.c.h.b16 %v4251
      %v4897 = vunpack.c.l.b16 %v4252
      %v4898 = vunpack.c.h.b16 %v4252
      %v4899 = vunpack.c.l.b16 %v4253
      %v4900 = vunpack.c.h.b16 %v4253
      %v4901 = vunpack.c.l.b16 %v4254
      %v4902 = vunpack.c.h.b16 %v4254
      %v4903 = vunpack.c.l.b16 %v4255
      %v4904 = vunpack.c.h.b16 %v4255
      %v4905 = vunpack.c.l.b16 %v4256
      %v4906 = vunpack.c.h.b16 %v4256
      %v4907 = vunpack.c.l.b16 %v4257
      %v4908 = vunpack.c.h.b16 %v4257
      %v4909 = vunpack.c.l.b16 %v4258
      %v4910 = vunpack.c.h.b16 %v4258
      %v4911 = vunpack.c.l.b16 %v4259
      %v4912 = vunpack.c.h.b16 %v4259
      %v4913 = vunpack.c.l.b16 %v4260
      %v4914 = vunpack.c.h.b16 %v4260
      %v4915 = vunpack.c.l.b16 %v4261
      %v4916 = vunpack.c.h.b16 %v4261
      %v4917 = vunpack.c.l.b16 %v4262
      %v4918 = vunpack.c.h.b16 %v4262
      %v4919 = vunpack.c.l.b16 %v4263
      %v4920 = vunpack.c.h.b16 %v4263
      %v4921 = vunpack.c.l.b16 %v4264
      %v4922 = vunpack.c.h.b16 %v4264
      %v4923 = vunpack.c.l.b16 %v4265
      %v4924 = vunpack.c.h.b16 %v4265
      %v4925 = vunpack.c.l.b16 %v4266
      %v4926 = vunpack.c.h.b16 %v4266
      %v4927 = vunpack.c.l.b16 %v4267
      %v4928 = vunpack.c.h.b16 %v4267
      %v4929 = vunpack.c.l.b16 %v4268
      %v4930 = vunpack.c.h.b16 %v4268
      %v4931 = vunpack.c.l.b16 %v4269
      %v4932 = vunpack.c.h.b16 %v4269
      %v4933 = vunpack.c.l.b16 %v4270
      %v4934 = vunpack.c.h.b16 %v4270
      %v4935 = vunpack.c.l.b16 %v4271
      %v4936 = vunpack.c.h.b16 %v4271
      %v4937 = vunpack.c.l.b16 %v4272
      %v4938 = vunpack.c.h.b16 %v4272
      %v4939 = vunpack.c.l.b16 %v4273
      %v4940 = vunpack.c.h.b16 %v4273
      %v4941 = vunpack.c.l.b16 %v4274
      %v4942 = vunpack.c.h.b16 %v4274
      %v4943 = vunpack.c.l.b16 %v4275
      %v4944 = vunpack.c.h.b16 %v4275
      %v4945 = vunpack.c.l.b16 %v4276
      %v4946 = vunpack.c.h.b16 %v4276
      %v4947 = vunpack.c.l.b16 %v4277
      %v4948 = vunpack.c.h.b16 %v4277
      %v4949 = vunpack.c.l.b16 %v4278
      %v4950 = vunpack.c.h.b16 %v4278
      %v4951 = vunpack.c.l.b16 %v4279
      %v4952 = vunpack.c.h.b16 %v4279
      %v4953 = vunpack.c.l.b16 %v4280
      %v4954 = vunpack.c.h.b16 %v4280
      %v4955 = vunpack.c.l.b16 %v4281
      %v4956 = vunpack.c.h.b16 %v4281
      %v4957 = vunpack.c.l.b16 %v4282
      %v4958 = vunpack.c.h.b16 %v4282
      %v4959 = vunpack.c.l.b16 %v4283
      %v4960 = vunpack.c.h.b16 %v4283
      %v4961 = vunpack.c.l.b16 %v4284
      %v4962 = vunpack.c.h.b16 %v4284
      %v4963 = vunpack.c.l.b16 %v4285
      %v4964 = vunpack.c.h.b16 %v4285
      %v4965 = vunpack.c.l.b16 %v4286
      %v4966 = vunpack.c.h.b16 %v4286
      %v4967 = vunpack.c.l.b16 %v4287
      %v4968 = vunpack.c.h.b16 %v4287
      %v4969 = vunpack.c.l.b16 %v4288
      %v4970 = vunpack.c.h.b16 %v4288
      %v4971 = vunpack.c.l.b16 %v4289
      %v4972 = vunpack.c.h.b16 %v4289
      %v4973 = vunpack.c.l.b16 %v4290
      %v4974 = vunpack.c.h.b16 %v4290
      %v4975 = vunpack.c.l.b16 %v4291
      %v4976 = vunpack.c.h.b16 %v4291
      %v4977 = vpack.c.b16 %v4853, %v4849
      %v4978 = vpack.c.b16 %v4854, %v4850
      %v4979 = vpack.c.b16 %v4855, %v4851
      %v4980 = vpack.c.b16 %v4856, %v4852
      %v4981 = vpack.c.b16 %v4861, %v4857
      %v4982 = vpack.c.b16 %v4862, %v4858
      %v4983 = vpack.c.b16 %v4863, %v4859
      %v4984 = vpack.c.b16 %v4864, %v4860
      %v4985 = vpack.c.b16 %v4869, %v4865
      %v4986 = vpack.c.b16 %v4870, %v4866
      %v4987 = vpack.c.b16 %v4871, %v4867
      %v4988 = vpack.c.b16 %v4872, %v4868
      %v4989 = vpack.c.b16 %v4877, %v4873
      %v4990 = vpack.c.b16 %v4878, %v4874
      %v4991 = vpack.c.b16 %v4879, %v4875
      %v4992 = vpack.c.b16 %v4880, %v4876
      %v4993 = vpack.c.b16 %v4885, %v4881
      %v4994 = vpack.c.b16 %v4886, %v4882
      %v4995 = vpack.c.b16 %v4887, %v4883
      %v4996 = vpack.c.b16 %v4888, %v4884
      %v4997 = vpack.c.b16 %v4893, %v4889
      %v4998 = vpack.c.b16 %v4894, %v4890
      %v4999 = vpack.c.b16 %v4895, %v4891
      %v5000 = vpack.c.b16 %v4896, %v4892
      %v5001 = vpack.c.b16 %v4901, %v4897
      %v5002 = vpack.c.b16 %v4902, %v4898
      %v5003 = vpack.c.b16 %v4903, %v4899
      %v5004 = vpack.c.b16 %v4904, %v4900
      %v5005 = vpack.c.b16 %v4909, %v4905
      %v5006 = vpack.c.b16 %v4910, %v4906
      %v5007 = vpack.c.b16 %v4911, %v4907
      %v5008 = vpack.c.b16 %v4912, %v4908
      %v5009 = vpack.c.b16 %v4917, %v4913
      %v5010 = vpack.c.b16 %v4918, %v4914
      %v5011 = vpack.c.b16 %v4919, %v4915
      %v5012 = vpack.c.b16 %v4920, %v4916
      %v5013 = vpack.c.b16 %v4925, %v4921
      %v5014 = vpack.c.b16 %v4926, %v4922
      %v5015 = vpack.c.b16 %v4927, %v4923
      %v5016 = vpack.c.b16 %v4928, %v4924
      %v5017 = vpack.c.b16 %v4933, %v4929
      %v5018 = vpack.c.b16 %v4934, %v4930
      %v5019 = vpack.c.b16 %v4935, %v4931
      %v5020 = vpack.c.b16 %v4936, %v4932
      %v5021 = vpack.c.b16 %v4941, %v4937
      %v5022 = vpack.c.b16 %v4942, %v4938
      %v5023 = vpack.c.b16 %v4943, %v4939
      %v5024 = vpack.c.b16 %v4944, %v4940
      %v5025 = vpack.c.b16 %v4949, %v4945
      %v5026 = vpack.c.b16 %v4950, %v4946
      %v5027 = vpack.c.b16 %v4951, %v4947
      %v5028 = vpack.c.b16 %v4952, %v4948
      %v5029 = vpack.c.b16 %v4957, %v4953
      %v5030 = vpack.c.b16 %v4958, %v4954
      %v5031 = vpack.c.b16 %v4959, %v4955
      %v5032 = vpack.c.b16 %v4960, %v4956
      %v5033 = vpack.c.b16 %v4965, %v4961
      %v5034 = vpack.c.b16 %v4966, %v4962
      %v5035 = vpack.c.b16 %v4967, %v4963
      %v5036 = vpack.c.b16 %v4968, %v4964
      %v5037 = vpack.c.b16 %v4973, %v4969
      %v5038 = vpack.c.b16 %v4974, %v4970
      %v5039 = vpack.c.b16 %v4975, %v4971
      %v5040 = vpack.c.b16 %v4976, %v4972
      %5105 = vmatprep.subr.bf16.mxu0 %v4978
      %5106 = vmatpush1.bf16.msra.mxu0 %v4977
      %5107 = vmatprep.subr.bf16.mxu0 %v4982
      %5108 = vmatpush1.bf16.msra.mxu0 %v4981
      %5109 = vmatprep.subr.bf16.mxu0 %v4986
      %5110 = vmatpush1.bf16.msra.mxu0 %v4985
      %5111 = vmatprep.subr.bf16.mxu0 %v4990
      %5112 = vmatpush1.bf16.msra.mxu0 %v4989
      %5113 = vmatprep.subr.bf16.mxu0 %v4994
      %5114 = vmatpush1.bf16.msra.mxu0 %v4993
      %5115 = vmatprep.subr.bf16.mxu0 %v4998
      %5116 = vmatpush1.bf16.msra.mxu0 %v4997
      %5117 = vmatprep.subr.bf16.mxu0 %v5002
      %5118 = vmatpush1.bf16.msra.mxu0 %v5001
      %5119 = vmatprep.subr.bf16.mxu0 %v5006
      %5120 = vmatpush1.bf16.msra.mxu0 %v5005
      %5121 = vmatprep.subr.bf16.mxu0 %v5010
      %5122 = vmatpush1.bf16.msra.mxu0 %v5009
      %5123 = vmatprep.subr.bf16.mxu0 %v5014
      %5124 = vmatpush1.bf16.msra.mxu0 %v5013
      %5125 = vmatprep.subr.bf16.mxu0 %v5018
      %5126 = vmatpush1.bf16.msra.mxu0 %v5017
      %5127 = vmatprep.subr.bf16.mxu0 %v5022
      %5128 = vmatpush1.bf16.msra.mxu0 %v5021
      %5129 = vmatprep.subr.bf16.mxu0 %v5026
      %5130 = vmatpush1.bf16.msra.mxu0 %v5025
      %5131 = vmatprep.subr.bf16.mxu0 %v5030
      %5132 = vmatpush1.bf16.msra.mxu0 %v5029
      %5133 = vmatprep.subr.bf16.mxu0 %v5034
      %5134 = vmatpush1.bf16.msra.mxu0 %v5033
      %5135 = vmatprep.subr.bf16.mxu0 %v5038
      %5136 = vmatpush1.bf16.msra.mxu0 %v5037
      %5137 = vmatprep.mubr.bf16.mxu0 %v4227
      %5138 = vmatmul.mubr.bf16.gmra.mrb[0].mxu0 %v4226
      %v5139 = vpop.f32.mrb[0].mxu0
      %v5140 = vadd.f32 %v4734, %v5139
      %v5141 = vpop.f32.mrb[0].mxu0
      %v5142 = vadd.f32 %v4736, %v5141
      %v5143 = vpop.f32.mrb[0].mxu0
      %v5144 = vadd.f32 %v4738, %v5143
      %v5145 = vpop.f32.mrb[0].mxu0
      %v5146 = vadd.f32 %v4740, %v5145
      %5147 = vdwg.mxu0
      %5148 = vmatprep.subr.bf16.mxu0 %v4980
      %5149 = vmatpush1.bf16.msra.mxu0 %v4979
      %5150 = vmatprep.subr.bf16.mxu0 %v4984
      %5151 = vmatpush1.bf16.msra.mxu0 %v4983
      %5152 = vmatprep.subr.bf16.mxu0 %v4988
      %5153 = vmatpush1.bf16.msra.mxu0 %v4987
      %5154 = vmatprep.subr.bf16.mxu0 %v4992
      %5155 = vmatpush1.bf16.msra.mxu0 %v4991
      %5156 = vmatprep.subr.bf16.mxu0 %v4996
      %5157 = vmatpush1.bf16.msra.mxu0 %v4995
      %5158 = vmatprep.subr.bf16.mxu0 %v5000
      %5159 = vmatpush1.bf16.msra.mxu0 %v4999
      %5160 = vmatprep.subr.bf16.mxu0 %v5004
      %5161 = vmatpush1.bf16.msra.mxu0 %v5003
      %5162 = vmatprep.subr.bf16.mxu0 %v5008
      %5163 = vmatpush1.bf16.msra.mxu0 %v5007
      %5164 = vmatprep.subr.bf16.mxu0 %v5012
      %5165 = vmatpush1.bf16.msra.mxu0 %v5011
      %5166 = vmatprep.subr.bf16.mxu0 %v5016
      %5167 = vmatpush1.bf16.msra.mxu0 %v5015
      %5168 = vmatprep.subr.bf16.mxu0 %v5020
      %5169 = vmatpush1.bf16.msra.mxu0 %v5019
      %5170 = vmatprep.subr.bf16.mxu0 %v5024
      %5171 = vmatpush1.bf16.msra.mxu0 %v5023
      %5172 = vmatprep.subr.bf16.mxu0 %v5028
      %5173 = vmatpush1.bf16.msra.mxu0 %v5027
      %5174 = vmatprep.subr.bf16.mxu0 %v5032
      %5175 = vmatpush1.bf16.msra.mxu0 %v5031
      %5176 = vmatprep.subr.bf16.mxu0 %v5036
      %5177 = vmatpush1.bf16.msra.mxu0 %v5035
      %5178 = vmatprep.subr.bf16.mxu0 %v5040
      %5179 = vmatpush1.bf16.msra.mxu0 %v5039
      %5180 = vmatprep.mubr.bf16.mxu0 %v4227
      %5181 = vmatmul.mubr.bf16.gmra.mrb[0].mxu0 %v4226
      %v5182 = vpop.f32.mrb[0].mxu0
      %v5183 = vadd.f32 %v4777, %v5182
      %v5184 = vpop.f32.mrb[0].mxu0
      %v5185 = vadd.f32 %v4779, %v5184
      %v5186 = vpop.f32.mrb[0].mxu0
      %v5187 = vadd.f32 %v4781, %v5186
      %v5188 = vpop.f32.mrb[0].mxu0
      %v5189 = vadd.f32 %v4783, %v5188
      %5190 = vdwg.mxu0
      %v5191 = vld [vmem:[#allocation4] sm:$0xfc]
      %v5192 = vld [vmem:[#allocation4 + $0x8] sm:$0xfc]
      %v5193 = vld [vmem:[#allocation4 + $0x10] sm:$0x7f]
      %v5194 = vld [vmem:[#allocation4 + $0x18] sm:$0x7f]
      %v5195 = vpack.c.bf16 %v5193, %v5191
      %v5196 = vpack.c.bf16 %v5194, %v5192
      %s5197 = scalar_lea.vmem %s14, 1024
      %v5198 = vld [vmem:[%s5197] sm:$0xff]
      %v5199 = vld [vmem:[%s5197 + $0x8] sm:$0xff]
      %v5200 = vld [vmem:[%s5197 + $0x10] sm:$0xff]
      %v5201 = vld [vmem:[%s5197 + $0x18] sm:$0xff]
      %v5202 = vld [vmem:[%s5197 + $0x20] sm:$0xff]
      %v5203 = vld [vmem:[%s5197 + $0x28] sm:$0xff]
      %v5204 = vld [vmem:[%s5197 + $0x30] sm:$0xff]
      %v5205 = vld [vmem:[%s5197 + $0x38] sm:$0xff]
      %v5206 = vld [vmem:[%s5197 + $0x40] sm:$0xff]
      %v5207 = vld [vmem:[%s5197 + $0x48] sm:$0xff]
      %v5208 = vld [vmem:[%s5197 + $0x50] sm:$0xff]
      %v5209 = vld [vmem:[%s5197 + $0x58] sm:$0xff]
      %v5210 = vld [vmem:[%s5197 + $0x60] sm:$0xff]
      %v5211 = vld [vmem:[%s5197 + $0x68] sm:$0xff]
      %v5212 = vld [vmem:[%s5197 + $0x70] sm:$0xff]
      %v5213 = vld [vmem:[%s5197 + $0x78] sm:$0xff]
      %v5214 = vld [vmem:[%s5197 + $0x80] sm:$0xff]
      %v5215 = vld [vmem:[%s5197 + $0x88] sm:$0xff]
      %v5216 = vld [vmem:[%s5197 + $0x90] sm:$0xff]
      %v5217 = vld [vmem:[%s5197 + $0x98] sm:$0xff]
      %v5218 = vld [vmem:[%s5197 + $0xa0] sm:$0xff]
      %v5219 = vld [vmem:[%s5197 + $0xa8] sm:$0xff]
      %v5220 = vld [vmem:[%s5197 + $0xb0] sm:$0xff]
      %v5221 = vld [vmem:[%s5197 + $0xb8] sm:$0xff]
      %v5222 = vld [vmem:[%s5197 + $0xc0] sm:$0xff]
      %v5223 = vld [vmem:[%s5197 + $0xc8] sm:$0xff]
      %v5224 = vld [vmem:[%s5197 + $0xd0] sm:$0xff]
      %v5225 = vld [vmem:[%s5197 + $0xd8] sm:$0xff]
      %v5226 = vld [vmem:[%s5197 + $0xe0] sm:$0xff]
      %v5227 = vld [vmem:[%s5197 + $0xe8] sm:$0xff]
      %v5228 = vld [vmem:[%s5197 + $0xf0] sm:$0xff]
      %v5229 = vld [vmem:[%s5197 + $0xf8] sm:$0xff]
      %v5230 = vld [vmem:[%s5197 + $0x100] sm:$0xff]
      %v5231 = vld [vmem:[%s5197 + $0x108] sm:$0xff]
      %v5232 = vld [vmem:[%s5197 + $0x110] sm:$0xff]
      %v5233 = vld [vmem:[%s5197 + $0x118] sm:$0xff]
      %v5234 = vld [vmem:[%s5197 + $0x120] sm:$0xff]
      %v5235 = vld [vmem:[%s5197 + $0x128] sm:$0xff]
      %v5236 = vld [vmem:[%s5197 + $0x130] sm:$0xff]
      %v5237 = vld [vmem:[%s5197 + $0x138] sm:$0xff]
      %v5238 = vld [vmem:[%s5197 + $0x140] sm:$0xff]
      %v5239 = vld [vmem:[%s5197 + $0x148] sm:$0xff]
      %v5240 = vld [vmem:[%s5197 + $0x150] sm:$0xff]
      %v5241 = vld [vmem:[%s5197 + $0x158] sm:$0xff]
      %v5242 = vld [vmem:[%s5197 + $0x160] sm:$0xff]
      %v5243 = vld [vmem:[%s5197 + $0x168] sm:$0xff]
      %v5244 = vld [vmem:[%s5197 + $0x170] sm:$0xff]
      %v5245 = vld [vmem:[%s5197 + $0x178] sm:$0xff]
      %v5246 = vld [vmem:[%s5197 + $0x180] sm:$0xff]
      %v5247 = vld [vmem:[%s5197 + $0x188] sm:$0xff]
      %v5248 = vld [vmem:[%s5197 + $0x190] sm:$0xff]
      %v5249 = vld [vmem:[%s5197 + $0x198] sm:$0xff]
      %v5250 = vld [vmem:[%s5197 + $0x1a0] sm:$0xff]
      %v5251 = vld [vmem:[%s5197 + $0x1a8] sm:$0xff]
      %v5252 = vld [vmem:[%s5197 + $0x1b0] sm:$0xff]
      %v5253 = vld [vmem:[%s5197 + $0x1b8] sm:$0xff]
      %v5254 = vld [vmem:[%s5197 + $0x1c0] sm:$0xff]
      %v5255 = vld [vmem:[%s5197 + $0x1c8] sm:$0xff]
      %v5256 = vld [vmem:[%s5197 + $0x1d0] sm:$0xff]
      %v5257 = vld [vmem:[%s5197 + $0x1d8] sm:$0xff]
      %v5258 = vld [vmem:[%s5197 + $0x1e0] sm:$0xff]
      %v5259 = vld [vmem:[%s5197 + $0x1e8] sm:$0xff]
      %v5260 = vld [vmem:[%s5197 + $0x1f0] sm:$0xff]
      %v5261 = vld [vmem:[%s5197 + $0x1f8] sm:$0xff]
      %v5264 = vrot.slane %v5195, 1
      %v5265 = vrot.slane %v5196, 1
      %v5332 = vunpack.c.l.b16 %v5198
      %v5333 = vunpack.c.h.b16 %v5198
      %v5334 = vunpack.c.l.b16 %v5199
      %v5335 = vunpack.c.h.b16 %v5199
      %v5336 = vunpack.c.l.b16 %v5200
      %v5337 = vunpack.c.h.b16 %v5200
      %v5338 = vunpack.c.l.b16 %v5201
      %v5339 = vunpack.c.h.b16 %v5201
      %v5340 = vunpack.c.l.b16 %v5202
      %v5341 = vunpack.c.h.b16 %v5202
      %v5342 = vunpack.c.l.b16 %v5203
      %v5343 = vunpack.c.h.b16 %v5203
      %v5344 = vunpack.c.l.b16 %v5204
      %v5345 = vunpack.c.h.b16 %v5204
      %v5346 = vunpack.c.l.b16 %v5205
      %v5347 = vunpack.c.h.b16 %v5205
      %v5348 = vunpack.c.l.b16 %v5206
      %v5349 = vunpack.c.h.b16 %v5206
      %v5350 = vunpack.c.l.b16 %v5207
      %v5351 = vunpack.c.h.b16 %v5207
      %v5352 = vunpack.c.l.b16 %v5208
      %v5353 = vunpack.c.h.b16 %v5208
      %v5354 = vunpack.c.l.b16 %v5209
      %v5355 = vunpack.c.h.b16 %v5209
      %v5356 = vunpack.c.l.b16 %v5210
      %v5357 = vunpack.c.h.b16 %v5210
      %v5358 = vunpack.c.l.b16 %v5211
      %v5359 = vunpack.c.h.b16 %v5211
      %v5360 = vunpack.c.l.b16 %v5212
      %v5361 = vunpack.c.h.b16 %v5212
      %v5362 = vunpack.c.l.b16 %v5213
      %v5363 = vunpack.c.h.b16 %v5213
      %v5364 = vunpack.c.l.b16 %v5214
      %v5365 = vunpack.c.h.b16 %v5214
      %v5366 = vunpack.c.l.b16 %v5215
      %v5367 = vunpack.c.h.b16 %v5215
      %v5368 = vunpack.c.l.b16 %v5216
      %v5369 = vunpack.c.h.b16 %v5216
      %v5370 = vunpack.c.l.b16 %v5217
      %v5371 = vunpack.c.h.b16 %v5217
      %v5372 = vunpack.c.l.b16 %v5218
      %v5373 = vunpack.c.h.b16 %v5218
      %v5374 = vunpack.c.l.b16 %v5219
      %v5375 = vunpack.c.h.b16 %v5219
      %v5376 = vunpack.c.l.b16 %v5220
      %v5377 = vunpack.c.h.b16 %v5220
      %v5378 = vunpack.c.l.b16 %v5221
      %v5379 = vunpack.c.h.b16 %v5221
      %v5380 = vunpack.c.l.b16 %v5222
      %v5381 = vunpack.c.h.b16 %v5222
      %v5382 = vunpack.c.l.b16 %v5223
      %v5383 = vunpack.c.h.b16 %v5223
      %v5384 = vunpack.c.l.b16 %v5224
      %v5385 = vunpack.c.h.b16 %v5224
      %v5386 = vunpack.c.l.b16 %v5225
      %v5387 = vunpack.c.h.b16 %v5225
      %v5388 = vunpack.c.l.b16 %v5226
      %v5389 = vunpack.c.h.b16 %v5226
      %v5390 = vunpack.c.l.b16 %v5227
      %v5391 = vunpack.c.h.b16 %v5227
      %v5392 = vunpack.c.l.b16 %v5228
      %v5393 = vunpack.c.h.b16 %v5228
      %v5394 = vunpack.c.l.b16 %v5229
      %v5395 = vunpack.c.h.b16 %v5229
      %v5396 = vunpack.c.l.b16 %v5230
      %v5397 = vunpack.c.h.b16 %v5230
      %v5398 = vunpack.c.l.b16 %v5231
      %v5399 = vunpack.c.h.b16 %v5231
      %v5400 = vunpack.c.l.b16 %v5232
      %v5401 = vunpack.c.h.b16 %v5232
      %v5402 = vunpack.c.l.b16 %v5233
      %v5403 = vunpack.c.h.b16 %v5233
      %v5404 = vunpack.c.l.b16 %v5234
      %v5405 = vunpack.c.h.b16 %v5234
      %v5406 = vunpack.c.l.b16 %v5235
      %v5407 = vunpack.c.h.b16 %v5235
      %v5408 = vunpack.c.l.b16 %v5236
      %v5409 = vunpack.c.h.b16 %v5236
      %v5410 = vunpack.c.l.b16 %v5237
      %v5411 = vunpack.c.h.b16 %v5237
      %v5412 = vunpack.c.l.b16 %v5238
      %v5413 = vunpack.c.h.b16 %v5238
      %v5414 = vunpack.c.l.b16 %v5239
      %v5415 = vunpack.c.h.b16 %v5239
      %v5416 = vunpack.c.l.b16 %v5240
      %v5417 = vunpack.c.h.b16 %v5240
      %v5418 = vunpack.c.l.b16 %v5241
      %v5419 = vunpack.c.h.b16 %v5241
      %v5420 = vunpack.c.l.b16 %v5242
      %v5421 = vunpack.c.h.b16 %v5242
      %v5422 = vunpack.c.l.b16 %v5243
      %v5423 = vunpack.c.h.b16 %v5243
      %v5424 = vunpack.c.l.b16 %v5244
      %v5425 = vunpack.c.h.b16 %v5244
      %v5426 = vunpack.c.l.b16 %v5245
      %v5427 = vunpack.c.h.b16 %v5245
      %v5428 = vunpack.c.l.b16 %v5246
      %v5429 = vunpack.c.h.b16 %v5246
      %v5430 = vunpack.c.l.b16 %v5247
      %v5431 = vunpack.c.h.b16 %v5247
      %v5432 = vunpack.c.l.b16 %v5248
      %v5433 = vunpack.c.h.b16 %v5248
      %v5434 = vunpack.c.l.b16 %v5249
      %v5435 = vunpack.c.h.b16 %v5249
      %v5436 = vunpack.c.l.b16 %v5250
      %v5437 = vunpack.c.h.b16 %v5250
      %v5438 = vunpack.c.l.b16 %v5251
      %v5439 = vunpack.c.h.b16 %v5251
      %v5440 = vunpack.c.l.b16 %v5252
      %v5441 = vunpack.c.h.b16 %v5252
      %v5442 = vunpack.c.l.b16 %v5253
      %v5443 = vunpack.c.h.b16 %v5253
      %v5444 = vunpack.c.l.b16 %v5254
      %v5445 = vunpack.c.h.b16 %v5254
      %v5446 = vunpack.c.l.b16 %v5255
      %v5447 = vunpack.c.h.b16 %v5255
      %v5448 = vunpack.c.l.b16 %v5256
      %v5449 = vunpack.c.h.b16 %v5256
      %v5450 = vunpack.c.l.b16 %v5257
      %v5451 = vunpack.c.h.b16 %v5257
      %v5452 = vunpack.c.l.b16 %v5258
      %v5453 = vunpack.c.h.b16 %v5258
      %v5454 = vunpack.c.l.b16 %v5259
      %v5455 = vunpack.c.h.b16 %v5259
      %v5456 = vunpack.c.l.b16 %v5260
      %v5457 = vunpack.c.h.b16 %v5260
      %v5458 = vunpack.c.l.b16 %v5261
      %v5459 = vunpack.c.h.b16 %v5261
      %v5460 = vpack.c.b16 %v5336, %v5332
      %v5461 = vpack.c.b16 %v5337, %v5333
      %v5462 = vpack.c.b16 %v5338, %v5334
      %v5463 = vpack.c.b16 %v5339, %v5335
      %v5464 = vpack.c.b16 %v5344, %v5340
      %v5465 = vpack.c.b16 %v5345, %v5341
      %v5466 = vpack.c.b16 %v5346, %v5342
      %v5467 = vpack.c.b16 %v5347, %v5343
      %v5468 = vpack.c.b16 %v5352, %v5348
      %v5469 = vpack.c.b16 %v5353, %v5349
      %v5470 = vpack.c.b16 %v5354, %v5350
      %v5471 = vpack.c.b16 %v5355, %v5351
      %v5472 = vpack.c.b16 %v5360, %v5356
      %v5473 = vpack.c.b16 %v5361, %v5357
      %v5474 = vpack.c.b16 %v5362, %v5358
      %v5475 = vpack.c.b16 %v5363, %v5359
      %v5476 = vpack.c.b16 %v5368, %v5364
      %v5477 = vpack.c.b16 %v5369, %v5365
      %v5478 = vpack.c.b16 %v5370, %v5366
      %v5479 = vpack.c.b16 %v5371, %v5367
      %v5480 = vpack.c.b16 %v5376, %v5372
      %v5481 = vpack.c.b16 %v5377, %v5373
      %v5482 = vpack.c.b16 %v5378, %v5374
      %v5483 = vpack.c.b16 %v5379, %v5375
      %v5484 = vpack.c.b16 %v5384, %v5380
      %v5485 = vpack.c.b16 %v5385, %v5381
      %v5486 = vpack.c.b16 %v5386, %v5382
      %v5487 = vpack.c.b16 %v5387, %v5383
      %v5488 = vpack.c.b16 %v5392, %v5388
      %v5489 = vpack.c.b16 %v5393, %v5389
      %v5490 = vpack.c.b16 %v5394, %v5390
      %v5491 = vpack.c.b16 %v5395, %v5391
      %v5492 = vpack.c.b16 %v5400, %v5396
      %v5493 = vpack.c.b16 %v5401, %v5397
      %v5494 = vpack.c.b16 %v5402, %v5398
      %v5495 = vpack.c.b16 %v5403, %v5399
      %v5496 = vpack.c.b16 %v5408, %v5404
      %v5497 = vpack.c.b16 %v5409, %v5405
      %v5498 = vpack.c.b16 %v5410, %v5406
      %v5499 = vpack.c.b16 %v5411, %v5407
      %v5500 = vpack.c.b16 %v5416, %v5412
      %v5501 = vpack.c.b16 %v5417, %v5413
      %v5502 = vpack.c.b16 %v5418, %v5414
      %v5503 = vpack.c.b16 %v5419, %v5415
      %v5504 = vpack.c.b16 %v5424, %v5420
      %v5505 = vpack.c.b16 %v5425, %v5421
      %v5506 = vpack.c.b16 %v5426, %v5422
      %v5507 = vpack.c.b16 %v5427, %v5423
      %v5508 = vpack.c.b16 %v5432, %v5428
      %v5509 = vpack.c.b16 %v5433, %v5429
      %v5510 = vpack.c.b16 %v5434, %v5430
      %v5511 = vpack.c.b16 %v5435, %v5431
      %v5512 = vpack.c.b16 %v5440, %v5436
      %v5513 = vpack.c.b16 %v5441, %v5437
      %v5514 = vpack.c.b16 %v5442, %v5438
      %v5515 = vpack.c.b16 %v5443, %v5439
      %v5516 = vpack.c.b16 %v5448, %v5444
      %v5517 = vpack.c.b16 %v5449, %v5445
      %v5518 = vpack.c.b16 %v5450, %v5446
      %v5519 = vpack.c.b16 %v5451, %v5447
      %v5520 = vpack.c.b16 %v5456, %v5452
      %v5521 = vpack.c.b16 %v5457, %v5453
      %v5522 = vpack.c.b16 %v5458, %v5454
      %v5523 = vpack.c.b16 %v5459, %v5455
      %5588 = vmatprep.subr.bf16.mxu0 %v5461
      %5589 = vmatpush1.bf16.msra.mxu0 %v5460
      %5590 = vmatprep.subr.bf16.mxu0 %v5465
      %5591 = vmatpush1.bf16.msra.mxu0 %v5464
      %5592 = vmatprep.subr.bf16.mxu0 %v5469
      %5593 = vmatpush1.bf16.msra.mxu0 %v5468
      %5594 = vmatprep.subr.bf16.mxu0 %v5473
      %5595 = vmatpush1.bf16.msra.mxu0 %v5472
      %5596 = vmatprep.subr.bf16.mxu0 %v5477
      %5597 = vmatpush1.bf16.msra.mxu0 %v5476
      %5598 = vmatprep.subr.bf16.mxu0 %v5481
      %5599 = vmatpush1.bf16.msra.mxu0 %v5480
      %5600 = vmatprep.subr.bf16.mxu0 %v5485
      %5601 = vmatpush1.bf16.msra.mxu0 %v5484
      %5602 = vmatprep.subr.bf16.mxu0 %v5489
      %5603 = vmatpush1.bf16.msra.mxu0 %v5488
      %5604 = vmatprep.subr.bf16.mxu0 %v5493
      %5605 = vmatpush1.bf16.msra.mxu0 %v5492
      %5606 = vmatprep.subr.bf16.mxu0 %v5497
      %5607 = vmatpush1.bf16.msra.mxu0 %v5496
      %5608 = vmatprep.subr.bf16.mxu0 %v5501
      %5609 = vmatpush1.bf16.msra.mxu0 %v5500
      %5610 = vmatprep.subr.bf16.mxu0 %v5505
      %5611 = vmatpush1.bf16.msra.mxu0 %v5504
      %5612 = vmatprep.subr.bf16.mxu0 %v5509
      %5613 = vmatpush1.bf16.msra.mxu0 %v5508
      %5614 = vmatprep.subr.bf16.mxu0 %v5513
      %5615 = vmatpush1.bf16.msra.mxu0 %v5512
      %5616 = vmatprep.subr.bf16.mxu0 %v5517
      %5617 = vmatpush1.bf16.msra.mxu0 %v5516
      %5618 = vmatprep.subr.bf16.mxu0 %v5521
      %5619 = vmatpush1.bf16.msra.mxu0 %v5520
      %5620 = vmatprep.mubr.bf16.mxu0 %v5265
      %5621 = vmatmul.mubr.bf16.gmra.mrb[0].mxu0 %v5264
      %v5622 = vpop.f32.mrb[0].mxu0
      %v5623 = vadd.f32 0.0, %v5622
      %v5624 = vpop.f32.mrb[0].mxu0
      %v5625 = vadd.f32 0.0, %v5624
      %v5626 = vpop.f32.mrb[0].mxu0
      %v5627 = vadd.f32 0.0, %v5626
      %v5628 = vpop.f32.mrb[0].mxu0
      %v5629 = vadd.f32 0.0, %v5628
      %5630 = vdwg.mxu0
      %5631 = vmatprep.subr.bf16.mxu0 %v5463
      %5632 = vmatpush1.bf16.msra.mxu0 %v5462
      %5633 = vmatprep.subr.bf16.mxu0 %v5467
      %5634 = vmatpush1.bf16.msra.mxu0 %v5466
      %5635 = vmatprep.subr.bf16.mxu0 %v5471
      %5636 = vmatpush1.bf16.msra.mxu0 %v5470
      %5637 = vmatprep.subr.bf16.mxu0 %v5475
      %5638 = vmatpush1.bf16.msra.mxu0 %v5474
      %5639 = vmatprep.subr.bf16.mxu0 %v5479
      %5640 = vmatpush1.bf16.msra.mxu0 %v5478
      %5641 = vmatprep.subr.bf16.mxu0 %v5483
      %5642 = vmatpush1.bf16.msra.mxu0 %v5482
      %5643 = vmatprep.subr.bf16.mxu0 %v5487
      %5644 = vmatpush1.bf16.msra.mxu0 %v5486
      %5645 = vmatprep.subr.bf16.mxu0 %v5491
      %5646 = vmatpush1.bf16.msra.mxu0 %v5490
      %5647 = vmatprep.subr.bf16.mxu0 %v5495
      %5648 = vmatpush1.bf16.msra.mxu0 %v5494
      %5649 = vmatprep.subr.bf16.mxu0 %v5499
      %5650 = vmatpush1.bf16.msra.mxu0 %v5498
      %5651 = vmatprep.subr.bf16.mxu0 %v5503
      %5652 = vmatpush1.bf16.msra.mxu0 %v5502
      %5653 = vmatprep.subr.bf16.mxu0 %v5507
      %5654 = vmatpush1.bf16.msra.mxu0 %v5506
      %5655 = vmatprep.subr.bf16.mxu0 %v5511
      %5656 = vmatpush1.bf16.msra.mxu0 %v5510
      %5657 = vmatprep.subr.bf16.mxu0 %v5515
      %5658 = vmatpush1.bf16.msra.mxu0 %v5514
      %5659 = vmatprep.subr.bf16.mxu0 %v5519
      %5660 = vmatpush1.bf16.msra.mxu0 %v5518
      %5661 = vmatprep.subr.bf16.mxu0 %v5523
      %5662 = vmatpush1.bf16.msra.mxu0 %v5522
      %5663 = vmatprep.mubr.bf16.mxu0 %v5265
      %5664 = vmatmul.mubr.bf16.gmra.mrb[0].mxu0 %v5264
      %v5665 = vpop.f32.mrb[0].mxu0
      %v5666 = vadd.f32 0.0, %v5665
      %v5667 = vpop.f32.mrb[0].mxu0
      %v5668 = vadd.f32 0.0, %v5667
      %v5669 = vpop.f32.mrb[0].mxu0
      %v5670 = vadd.f32 0.0, %v5669
      %v5671 = vpop.f32.mrb[0].mxu0
      %v5672 = vadd.f32 0.0, %v5671
      %5673 = vdwg.mxu0
      %v5674 = vadd.f32 %v5140, %v5623
      %v5675 = vadd.f32 %v5142, %v5625
      %v5676 = vadd.f32 %v5183, %v5666
      %v5677 = vadd.f32 %v5185, %v5668
      %v5678 = vadd.f32 %v5144, %v5627
      %v5679 = vadd.f32 %v5146, %v5629
      %v5680 = vadd.f32 %v5187, %v5670
      %v5681 = vadd.f32 %v5189, %v5672
      %v5682 = vld [vmem:[#allocation4] sm:$0xe0]
      %v5683 = vld [vmem:[#allocation4 + $0x8] sm:$0xe0]
      %v5684 = vld [vmem:[#allocation4 + $0x10] sm:$0xff]
      %v5685 = vld [vmem:[#allocation4 + $0x18] sm:$0xff]
      %v5686 = vld [vmem:[#allocation4 + $0x20] sm:$0x3]
      %v5687 = vld [vmem:[#allocation4 + $0x28] sm:$0x3]
      %v5688 = vpack.c.bf16 %v5684, %v5682
      %v5689 = vpack.c.bf16 %v5685, %v5683
      %v5690 = vpack.c.bf16 %v5686, %v5686
      %v5691 = vpack.c.bf16 %v5687, %v5687
      %s5692 = scalar_lea.vmem %s14, 1536
      %v5693 = vld [vmem:[%s5692] sm:$0xff]
      %v5694 = vld [vmem:[%s5692 + $0x8] sm:$0xff]
      %v5695 = vld [vmem:[%s5692 + $0x10] sm:$0xff]
      %v5696 = vld [vmem:[%s5692 + $0x18] sm:$0xff]
      %v5697 = vld [vmem:[%s5692 + $0x20] sm:$0xff]
      %v5698 = vld [vmem:[%s5692 + $0x28] sm:$0xff]
      %v5699 = vld [vmem:[%s5692 + $0x30] sm:$0xff]
      %v5700 = vld [vmem:[%s5692 + $0x38] sm:$0xff]
      %v5701 = vld [vmem:[%s5692 + $0x40] sm:$0xff]
      %v5702 = vld [vmem:[%s5692 + $0x48] sm:$0xff]
      %v5703 = vld [vmem:[%s5692 + $0x50] sm:$0xff]
      %v5704 = vld [vmem:[%s5692 + $0x58] sm:$0xff]
      %v5705 = vld [vmem:[%s5692 + $0x60] sm:$0xff]
      %v5706 = vld [vmem:[%s5692 + $0x68] sm:$0xff]
      %v5707 = vld [vmem:[%s5692 + $0x70] sm:$0xff]
      %v5708 = vld [vmem:[%s5692 + $0x78] sm:$0xff]
      %v5709 = vld [vmem:[%s5692 + $0x80] sm:$0xff]
      %v5710 = vld [vmem:[%s5692 + $0x88] sm:$0xff]
      %v5711 = vld [vmem:[%s5692 + $0x90] sm:$0xff]
      %v5712 = vld [vmem:[%s5692 + $0x98] sm:$0xff]
      %v5713 = vld [vmem:[%s5692 + $0xa0] sm:$0xff]
      %v5714 = vld [vmem:[%s5692 + $0xa8] sm:$0xff]
      %v5715 = vld [vmem:[%s5692 + $0xb0] sm:$0xff]
      %v5716 = vld [vmem:[%s5692 + $0xb8] sm:$0xff]
      %v5717 = vld [vmem:[%s5692 + $0xc0] sm:$0xff]
      %v5718 = vld [vmem:[%s5692 + $0xc8] sm:$0xff]
      %v5719 = vld [vmem:[%s5692 + $0xd0] sm:$0xff]
      %v5720 = vld [vmem:[%s5692 + $0xd8] sm:$0xff]
      %v5721 = vld [vmem:[%s5692 + $0xe0] sm:$0xff]
      %v5722 = vld [vmem:[%s5692 + $0xe8] sm:$0xff]
      %v5723 = vld [vmem:[%s5692 + $0xf0] sm:$0xff]
      %v5724 = vld [vmem:[%s5692 + $0xf8] sm:$0xff]
      %v5725 = vld [vmem:[%s5692 + $0x100] sm:$0xff]
      %v5726 = vld [vmem:[%s5692 + $0x108] sm:$0xff]
      %v5727 = vld [vmem:[%s5692 + $0x110] sm:$0xff]
      %v5728 = vld [vmem:[%s5692 + $0x118] sm:$0xff]
      %v5729 = vld [vmem:[%s5692 + $0x120] sm:$0xff]
      %v5730 = vld [vmem:[%s5692 + $0x128] sm:$0xff]
      %v5731 = vld [vmem:[%s5692 + $0x130] sm:$0xff]
      %v5732 = vld [vmem:[%s5692 + $0x138] sm:$0xff]
      %v5733 = vld [vmem:[%s5692 + $0x140] sm:$0xff]
      %v5734 = vld [vmem:[%s5692 + $0x148] sm:$0xff]
      %v5735 = vld [vmem:[%s5692 + $0x150] sm:$0xff]
      %v5736 = vld [vmem:[%s5692 + $0x158] sm:$0xff]
      %v5737 = vld [vmem:[%s5692 + $0x160] sm:$0xff]
      %v5738 = vld [vmem:[%s5692 + $0x168] sm:$0xff]
      %v5739 = vld [vmem:[%s5692 + $0x170] sm:$0xff]
      %v5740 = vld [vmem:[%s5692 + $0x178] sm:$0xff]
      %v5741 = vld [vmem:[%s5692 + $0x180] sm:$0xff]
      %v5742 = vld [vmem:[%s5692 + $0x188] sm:$0xff]
      %v5743 = vld [vmem:[%s5692 + $0x190] sm:$0xff]
      %v5744 = vld [vmem:[%s5692 + $0x198] sm:$0xff]
      %v5745 = vld [vmem:[%s5692 + $0x1a0] sm:$0xff]
      %v5746 = vld [vmem:[%s5692 + $0x1a8] sm:$0xff]
      %v5747 = vld [vmem:[%s5692 + $0x1b0] sm:$0xff]
      %v5748 = vld [vmem:[%s5692 + $0x1b8] sm:$0xff]
      %v5749 = vld [vmem:[%s5692 + $0x1c0] sm:$0xff]
      %v5750 = vld [vmem:[%s5692 + $0x1c8] sm:$0xff]
      %v5751 = vld [vmem:[%s5692 + $0x1d0] sm:$0xff]
      %v5752 = vld [vmem:[%s5692 + $0x1d8] sm:$0xff]
      %v5753 = vld [vmem:[%s5692 + $0x1e0] sm:$0xff]
      %v5754 = vld [vmem:[%s5692 + $0x1e8] sm:$0xff]
      %v5755 = vld [vmem:[%s5692 + $0x1f0] sm:$0xff]
      %v5756 = vld [vmem:[%s5692 + $0x1f8] sm:$0xff]
      %vm5757 = vsmask.f32 5376
      %v5759 = vshrl.u32 %v5688, 16
      %v5761 = vrot.slane %v5759, 2
      %v5762 = vshll.u32 %v5688, 16
      %v5764 = vrot.slane %v5762, 3
      %v5765 = vor.u32 %v5761, %v5764
      %v5767 = vshrl.u32 %v5690, 16
      %v5769 = vrot.slane %v5767, 2
      %v5770 = vshll.u32 %v5690, 16
      %v5772 = vrot.slane %v5770, 3
      %v5773 = vor.u32 %v5769, %v5772
      %v5774 = vsel %vm5757, %v5765, %v5773
      %v5776 = vshrl.u32 %v5689, 16
      %v5778 = vrot.slane %v5776, 2
      %v5779 = vshll.u32 %v5689, 16
      %v5781 = vrot.slane %v5779, 3
      %v5782 = vor.u32 %v5778, %v5781
      %v5784 = vshrl.u32 %v5691, 16
      %v5786 = vrot.slane %v5784, 2
      %v5787 = vshll.u32 %v5691, 16
      %v5789 = vrot.slane %v5787, 3
      %v5790 = vor.u32 %v5786, %v5789
      %v5791 = vsel %vm5757, %v5782, %v5790
      %v5858 = vunpack.c.l.b16 %v5693
      %v5859 = vunpack.c.h.b16 %v5693
      %v5860 = vunpack.c.l.b16 %v5694
      %v5861 = vunpack.c.h.b16 %v5694
      %v5862 = vunpack.c.l.b16 %v5695
      %v5863 = vunpack.c.h.b16 %v5695
      %v5864 = vunpack.c.l.b16 %v5696
      %v5865 = vunpack.c.h.b16 %v5696
      %v5866 = vunpack.c.l.b16 %v5697
      %v5867 = vunpack.c.h.b16 %v5697
      %v5868 = vunpack.c.l.b16 %v5698
      %v5869 = vunpack.c.h.b16 %v5698
      %v5870 = vunpack.c.l.b16 %v5699
      %v5871 = vunpack.c.h.b16 %v5699
      %v5872 = vunpack.c.l.b16 %v5700
      %v5873 = vunpack.c.h.b16 %v5700
      %v5874 = vunpack.c.l.b16 %v5701
      %v5875 = vunpack.c.h.b16 %v5701
      %v5876 = vunpack.c.l.b16 %v5702
      %v5877 = vunpack.c.h.b16 %v5702
      %v5878 = vunpack.c.l.b16 %v5703
      %v5879 = vunpack.c.h.b16 %v5703
      %v5880 = vunpack.c.l.b16 %v5704
      %v5881 = vunpack.c.h.b16 %v5704
      %v5882 = vunpack.c.l.b16 %v5705
      %v5883 = vunpack.c.h.b16 %v5705
      %v5884 = vunpack.c.l.b16 %v5706
      %v5885 = vunpack.c.h.b16 %v5706
      %v5886 = vunpack.c.l.b16 %v5707
      %v5887 = vunpack.c.h.b16 %v5707
      %v5888 = vunpack.c.l.b16 %v5708
      %v5889 = vunpack.c.h.b16 %v5708
      %v5890 = vunpack.c.l.b16 %v5709
      %v5891 = vunpack.c.h.b16 %v5709
      %v5892 = vunpack.c.l.b16 %v5710
      %v5893 = vunpack.c.h.b16 %v5710
      %v5894 = vunpack.c.l.b16 %v5711
      %v5895 = vunpack.c.h.b16 %v5711
      %v5896 = vunpack.c.l.b16 %v5712
      %v5897 = vunpack.c.h.b16 %v5712
      %v5898 = vunpack.c.l.b16 %v5713
      %v5899 = vunpack.c.h.b16 %v5713
      %v5900 = vunpack.c.l.b16 %v5714
      %v5901 = vunpack.c.h.b16 %v5714
      %v5902 = vunpack.c.l.b16 %v5715
      %v5903 = vunpack.c.h.b16 %v5715
      %v5904 = vunpack.c.l.b16 %v5716
      %v5905 = vunpack.c.h.b16 %v5716
      %v5906 = vunpack.c.l.b16 %v5717
      %v5907 = vunpack.c.h.b16 %v5717
      %v5908 = vunpack.c.l.b16 %v5718
      %v5909 = vunpack.c.h.b16 %v5718
      %v5910 = vunpack.c.l.b16 %v5719
      %v5911 = vunpack.c.h.b16 %v5719
      %v5912 = vunpack.c.l.b16 %v5720
      %v5913 = vunpack.c.h.b16 %v5720
      %v5914 = vunpack.c.l.b16 %v5721
      %v5915 = vunpack.c.h.b16 %v5721
      %v5916 = vunpack.c.l.b16 %v5722
      %v5917 = vunpack.c.h.b16 %v5722
      %v5918 = vunpack.c.l.b16 %v5723
      %v5919 = vunpack.c.h.b16 %v5723
      %v5920 = vunpack.c.l.b16 %v5724
      %v5921 = vunpack.c.h.b16 %v5724
      %v5922 = vunpack.c.l.b16 %v5725
      %v5923 = vunpack.c.h.b16 %v5725
      %v5924 = vunpack.c.l.b16 %v5726
      %v5925 = vunpack.c.h.b16 %v5726
      %v5926 = vunpack.c.l.b16 %v5727
      %v5927 = vunpack.c.h.b16 %v5727
      %v5928 = vunpack.c.l.b16 %v5728
      %v5929 = vunpack.c.h.b16 %v5728
      %v5930 = vunpack.c.l.b16 %v5729
      %v5931 = vunpack.c.h.b16 %v5729
      %v5932 = vunpack.c.l.b16 %v5730
      %v5933 = vunpack.c.h.b16 %v5730
      %v5934 = vunpack.c.l.b16 %v5731
      %v5935 = vunpack.c.h.b16 %v5731
      %v5936 = vunpack.c.l.b16 %v5732
      %v5937 = vunpack.c.h.b16 %v5732
      %v5938 = vunpack.c.l.b16 %v5733
      %v5939 = vunpack.c.h.b16 %v5733
      %v5940 = vunpack.c.l.b16 %v5734
      %v5941 = vunpack.c.h.b16 %v5734
      %v5942 = vunpack.c.l.b16 %v5735
      %v5943 = vunpack.c.h.b16 %v5735
      %v5944 = vunpack.c.l.b16 %v5736
      %v5945 = vunpack.c.h.b16 %v5736
      %v5946 = vunpack.c.l.b16 %v5737
      %v5947 = vunpack.c.h.b16 %v5737
      %v5948 = vunpack.c.l.b16 %v5738
      %v5949 = vunpack.c.h.b16 %v5738
      %v5950 = vunpack.c.l.b16 %v5739
      %v5951 = vunpack.c.h.b16 %v5739
      %v5952 = vunpack.c.l.b16 %v5740
      %v5953 = vunpack.c.h.b16 %v5740
      %v5954 = vunpack.c.l.b16 %v5741
      %v5955 = vunpack.c.h.b16 %v5741
      %v5956 = vunpack.c.l.b16 %v5742
      %v5957 = vunpack.c.h.b16 %v5742
      %v5958 = vunpack.c.l.b16 %v5743
      %v5959 = vunpack.c.h.b16 %v5743
      %v5960 = vunpack.c.l.b16 %v5744
      %v5961 = vunpack.c.h.b16 %v5744
      %v5962 = vunpack.c.l.b16 %v5745
      %v5963 = vunpack.c.h.b16 %v5745
      %v5964 = vunpack.c.l.b16 %v5746
      %v5965 = vunpack.c.h.b16 %v5746
      %v5966 = vunpack.c.l.b16 %v5747
      %v5967 = vunpack.c.h.b16 %v5747
      %v5968 = vunpack.c.l.b16 %v5748
      %v5969 = vunpack.c.h.b16 %v5748
      %v5970 = vunpack.c.l.b16 %v5749
      %v5971 = vunpack.c.h.b16 %v5749
      %v5972 = vunpack.c.l.b16 %v5750
      %v5973 = vunpack.c.h.b16 %v5750
      %v5974 = vunpack.c.l.b16 %v5751
      %v5975 = vunpack.c.h.b16 %v5751
      %v5976 = vunpack.c.l.b16 %v5752
      %v5977 = vunpack.c.h.b16 %v5752
      %v5978 = vunpack.c.l.b16 %v5753
      %v5979 = vunpack.c.h.b16 %v5753
      %v5980 = vunpack.c.l.b16 %v5754
      %v5981 = vunpack.c.h.b16 %v5754
      %v5982 = vunpack.c.l.b16 %v5755
      %v5983 = vunpack.c.h.b16 %v5755
      %v5984 = vunpack.c.l.b16 %v5756
      %v5985 = vunpack.c.h.b16 %v5756
      %v5986 = vpack.c.b16 %v5862, %v5858
      %v5987 = vpack.c.b16 %v5863, %v5859
      %v5988 = vpack.c.b16 %v5864, %v5860
      %v5989 = vpack.c.b16 %v5865, %v5861
      %v5990 = vpack.c.b16 %v5870, %v5866
      %v5991 = vpack.c.b16 %v5871, %v5867
      %v5992 = vpack.c.b16 %v5872, %v5868
      %v5993 = vpack.c.b16 %v5873, %v5869
      %v5994 = vpack.c.b16 %v5878, %v5874
      %v5995 = vpack.c.b16 %v5879, %v5875
      %v5996 = vpack.c.b16 %v5880, %v5876
      %v5997 = vpack.c.b16 %v5881, %v5877
      %v5998 = vpack.c.b16 %v5886, %v5882
      %v5999 = vpack.c.b16 %v5887, %v5883
      %v6000 = vpack.c.b16 %v5888, %v5884
      %v6001 = vpack.c.b16 %v5889, %v5885
      %v6002 = vpack.c.b16 %v5894, %v5890
      %v6003 = vpack.c.b16 %v5895, %v5891
      %v6004 = vpack.c.b16 %v5896, %v5892
      %v6005 = vpack.c.b16 %v5897, %v5893
      %v6006 = vpack.c.b16 %v5902, %v5898
      %v6007 = vpack.c.b16 %v5903, %v5899
      %v6008 = vpack.c.b16 %v5904, %v5900
      %v6009 = vpack.c.b16 %v5905, %v5901
      %v6010 = vpack.c.b16 %v5910, %v5906
      %v6011 = vpack.c.b16 %v5911, %v5907
      %v6012 = vpack.c.b16 %v5912, %v5908
      %v6013 = vpack.c.b16 %v5913, %v5909
      %v6014 = vpack.c.b16 %v5918, %v5914
      %v6015 = vpack.c.b16 %v5919, %v5915
      %v6016 = vpack.c.b16 %v5920, %v5916
      %v6017 = vpack.c.b16 %v5921, %v5917
      %v6018 = vpack.c.b16 %v5926, %v5922
      %v6019 = vpack.c.b16 %v5927, %v5923
      %v6020 = vpack.c.b16 %v5928, %v5924
      %v6021 = vpack.c.b16 %v5929, %v5925
      %v6022 = vpack.c.b16 %v5934, %v5930
      %v6023 = vpack.c.b16 %v5935, %v5931
      %v6024 = vpack.c.b16 %v5936, %v5932
      %v6025 = vpack.c.b16 %v5937, %v5933
      %v6026 = vpack.c.b16 %v5942, %v5938
      %v6027 = vpack.c.b16 %v5943, %v5939
      %v6028 = vpack.c.b16 %v5944, %v5940
      %v6029 = vpack.c.b16 %v5945, %v5941
      %v6030 = vpack.c.b16 %v5950, %v5946
      %v6031 = vpack.c.b16 %v5951, %v5947
      %v6032 = vpack.c.b16 %v5952, %v5948
      %v6033 = vpack.c.b16 %v5953, %v5949
      %v6034 = vpack.c.b16 %v5958, %v5954
      %v6035 = vpack.c.b16 %v5959, %v5955
      %v6036 = vpack.c.b16 %v5960, %v5956
      %v6037 = vpack.c.b16 %v5961, %v5957
      %v6038 = vpack.c.b16 %v5966, %v5962
      %v6039 = vpack.c.b16 %v5967, %v5963
      %v6040 = vpack.c.b16 %v5968, %v5964
      %v6041 = vpack.c.b16 %v5969, %v5965
      %v6042 = vpack.c.b16 %v5974, %v5970
      %v6043 = vpack.c.b16 %v5975, %v5971
      %v6044 = vpack.c.b16 %v5976, %v5972
      %v6045 = vpack.c.b16 %v5977, %v5973
      %v6046 = vpack.c.b16 %v5982, %v5978
      %v6047 = vpack.c.b16 %v5983, %v5979
      %v6048 = vpack.c.b16 %v5984, %v5980
      %v6049 = vpack.c.b16 %v5985, %v5981
      %6114 = vmatprep.subr.bf16.mxu0 %v5987
      %6115 = vmatpush1.bf16.msra.mxu0 %v5986
      %6116 = vmatprep.subr.bf16.mxu0 %v5991
      %6117 = vmatpush1.bf16.msra.mxu0 %v5990
      %6118 = vmatprep.subr.bf16.mxu0 %v5995
      %6119 = vmatpush1.bf16.msra.mxu0 %v5994
      %6120 = vmatprep.subr.bf16.mxu0 %v5999
      %6121 = vmatpush1.bf16.msra.mxu0 %v5998
      %6122 = vmatprep.subr.bf16.mxu0 %v6003
      %6123 = vmatpush1.bf16.msra.mxu0 %v6002
      %6124 = vmatprep.subr.bf16.mxu0 %v6007
      %6125 = vmatpush1.bf16.msra.mxu0 %v6006
      %6126 = vmatprep.subr.bf16.mxu0 %v6011
      %6127 = vmatpush1.bf16.msra.mxu0 %v6010
      %6128 = vmatprep.subr.bf16.mxu0 %v6015
      %6129 = vmatpush1.bf16.msra.mxu0 %v6014
      %6130 = vmatprep.subr.bf16.mxu0 %v6019
      %6131 = vmatpush1.bf16.msra.mxu0 %v6018
      %6132 = vmatprep.subr.bf16.mxu0 %v6023
      %6133 = vmatpush1.bf16.msra.mxu0 %v6022
      %6134 = vmatprep.subr.bf16.mxu0 %v6027
      %6135 = vmatpush1.bf16.msra.mxu0 %v6026
      %6136 = vmatprep.subr.bf16.mxu0 %v6031
      %6137 = vmatpush1.bf16.msra.mxu0 %v6030
      %6138 = vmatprep.subr.bf16.mxu0 %v6035
      %6139 = vmatpush1.bf16.msra.mxu0 %v6034
      %6140 = vmatprep.subr.bf16.mxu0 %v6039
      %6141 = vmatpush1.bf16.msra.mxu0 %v6038
      %6142 = vmatprep.subr.bf16.mxu0 %v6043
      %6143 = vmatpush1.bf16.msra.mxu0 %v6042
      %6144 = vmatprep.subr.bf16.mxu0 %v6047
      %6145 = vmatpush1.bf16.msra.mxu0 %v6046
      %6146 = vmatprep.mubr.bf16.mxu0 %v5791
      %6147 = vmatmul.mubr.bf16.gmra.mrb[0].mxu0 %v5774
      %v6148 = vpop.f32.mrb[0].mxu0
      %v6149 = vadd.f32 0.0, %v6148
      %v6150 = vpop.f32.mrb[0].mxu0
      %v6151 = vadd.f32 0.0, %v6150
      %v6152 = vpop.f32.mrb[0].mxu0
      %v6153 = vadd.f32 0.0, %v6152
      %v6154 = vpop.f32.mrb[0].mxu0
      %v6155 = vadd.f32 0.0, %v6154
      %6156 = vdwg.mxu0
      %6157 = vmatprep.subr.bf16.mxu0 %v5989
      %6158 = vmatpush1.bf16.msra.mxu0 %v5988
      %6159 = vmatprep.subr.bf16.mxu0 %v5993
      %6160 = vmatpush1.bf16.msra.mxu0 %v5992
      %6161 = vmatprep.subr.bf16.mxu0 %v5997
      %6162 = vmatpush1.bf16.msra.mxu0 %v5996
      %6163 = vmatprep.subr.bf16.mxu0 %v6001
      %6164 = vmatpush1.bf16.msra.mxu0 %v6000
      %6165 = vmatprep.subr.bf16.mxu0 %v6005
      %6166 = vmatpush1.bf16.msra.mxu0 %v6004
      %6167 = vmatprep.subr.bf16.mxu0 %v6009
      %6168 = vmatpush1.bf16.msra.mxu0 %v6008
      %6169 = vmatprep.subr.bf16.mxu0 %v6013
      %6170 = vmatpush1.bf16.msra.mxu0 %v6012
      %6171 = vmatprep.subr.bf16.mxu0 %v6017
      %6172 = vmatpush1.bf16.msra.mxu0 %v6016
      %6173 = vmatprep.subr.bf16.mxu0 %v6021
      %6174 = vmatpush1.bf16.msra.mxu0 %v6020
      %6175 = vmatprep.subr.bf16.mxu0 %v6025
      %6176 = vmatpush1.bf16.msra.mxu0 %v6024
      %6177 = vmatprep.subr.bf16.mxu0 %v6029
      %6178 = vmatpush1.bf16.msra.mxu0 %v6028
      %6179 = vmatprep.subr.bf16.mxu0 %v6033
      %6180 = vmatpush1.bf16.msra.mxu0 %v6032
      %6181 = vmatprep.subr.bf16.mxu0 %v6037
      %6182 = vmatpush1.bf16.msra.mxu0 %v6036
      %6183 = vmatprep.subr.bf16.mxu0 %v6041
      %6184 = vmatpush1.bf16.msra.mxu0 %v6040
      %6185 = vmatprep.subr.bf16.mxu0 %v6045
      %6186 = vmatpush1.bf16.msra.mxu0 %v6044
      %6187 = vmatprep.subr.bf16.mxu0 %v6049
      %6188 = vmatpush1.bf16.msra.mxu0 %v6048
      %6189 = vmatprep.mubr.bf16.mxu0 %v5791
      %6190 = vmatmul.mubr.bf16.gmra.mrb[0].mxu0 %v5774
      %v6191 = vpop.f32.mrb[0].mxu0
      %v6192 = vadd.f32 0.0, %v6191
      %v6193 = vpop.f32.mrb[0].mxu0
      %v6194 = vadd.f32 0.0, %v6193
      %v6195 = vpop.f32.mrb[0].mxu0
      %v6196 = vadd.f32 0.0, %v6195
      %v6197 = vpop.f32.mrb[0].mxu0
      %v6198 = vadd.f32 0.0, %v6197
      %6199 = vdwg.mxu0
      %v6200 = vadd.f32 %v5674, %v6149
      %v6201 = vadd.f32 %v5675, %v6151
      %v6202 = vadd.f32 %v5676, %v6192
      %v6203 = vadd.f32 %v5677, %v6194
      %v6204 = vadd.f32 %v5678, %v6153
      %v6205 = vadd.f32 %v5679, %v6155
      %v6206 = vadd.f32 %v5680, %v6196
      %v6207 = vadd.f32 %v5681, %v6198
      %v6208 = vld [vmem:[#allocation4] sm:$0xc0]
      %v6209 = vld [vmem:[#allocation4 + $0x8] sm:$0xc0]
      %v6210 = vld [vmem:[#allocation4 + $0x20] sm:$0x7]
      %v6211 = vld [vmem:[#allocation4 + $0x28] sm:$0x7]
      %v6212 = vpack.c.bf16 %v5684, %v6208
      %v6213 = vpack.c.bf16 %v5685, %v6209
      %v6214 = vpack.c.bf16 %v6210, %v6210
      %v6215 = vpack.c.bf16 %v6211, %v6211
      %s6216 = scalar_lea.vmem %s14, 2048
      %v6217 = vld [vmem:[%s6216] sm:$0xff]
      %v6218 = vld [vmem:[%s6216 + $0x8] sm:$0xff]
      %v6219 = vld [vmem:[%s6216 + $0x10] sm:$0xff]
      %v6220 = vld [vmem:[%s6216 + $0x18] sm:$0xff]
      %v6221 = vld [vmem:[%s6216 + $0x20] sm:$0xff]
      %v6222 = vld [vmem:[%s6216 + $0x28] sm:$0xff]
      %v6223 = vld [vmem:[%s6216 + $0x30] sm:$0xff]
      %v6224 = vld [vmem:[%s6216 + $0x38] sm:$0xff]
      %v6225 = vld [vmem:[%s6216 + $0x40] sm:$0xff]
      %v6226 = vld [vmem:[%s6216 + $0x48] sm:$0xff]
      %v6227 = vld [vmem:[%s6216 + $0x50] sm:$0xff]
      %v6228 = vld [vmem:[%s6216 + $0x58] sm:$0xff]
      %v6229 = vld [vmem:[%s6216 + $0x60] sm:$0xff]
      %v6230 = vld [vmem:[%s6216 + $0x68] sm:$0xff]
      %v6231 = vld [vmem:[%s6216 + $0x70] sm:$0xff]
      %v6232 = vld [vmem:[%s6216 + $0x78] sm:$0xff]
      %v6233 = vld [vmem:[%s6216 + $0x80] sm:$0xff]
      %v6234 = vld [vmem:[%s6216 + $0x88] sm:$0xff]
      %v6235 = vld [vmem:[%s6216 + $0x90] sm:$0xff]
      %v6236 = vld [vmem:[%s6216 + $0x98] sm:$0xff]
      %v6237 = vld [vmem:[%s6216 + $0xa0] sm:$0xff]
      %v6238 = vld [vmem:[%s6216 + $0xa8] sm:$0xff]
      %v6239 = vld [vmem:[%s6216 + $0xb0] sm:$0xff]
      %v6240 = vld [vmem:[%s6216 + $0xb8] sm:$0xff]
      %v6241 = vld [vmem:[%s6216 + $0xc0] sm:$0xff]
      %v6242 = vld [vmem:[%s6216 + $0xc8] sm:$0xff]
      %v6243 = vld [vmem:[%s6216 + $0xd0] sm:$0xff]
      %v6244 = vld [vmem:[%s6216 + $0xd8] sm:$0xff]
      %v6245 = vld [vmem:[%s6216 + $0xe0] sm:$0xff]
      %v6246 = vld [vmem:[%s6216 + $0xe8] sm:$0xff]
      %v6247 = vld [vmem:[%s6216 + $0xf0] sm:$0xff]
      %v6248 = vld [vmem:[%s6216 + $0xf8] sm:$0xff]
      %v6249 = vld [vmem:[%s6216 + $0x100] sm:$0xff]
      %v6250 = vld [vmem:[%s6216 + $0x108] sm:$0xff]
      %v6251 = vld [vmem:[%s6216 + $0x110] sm:$0xff]
      %v6252 = vld [vmem:[%s6216 + $0x118] sm:$0xff]
      %v6253 = vld [vmem:[%s6216 + $0x120] sm:$0xff]
      %v6254 = vld [vmem:[%s6216 + $0x128] sm:$0xff]
      %v6255 = vld [vmem:[%s6216 + $0x130] sm:$0xff]
      %v6256 = vld [vmem:[%s6216 + $0x138] sm:$0xff]
      %v6257 = vld [vmem:[%s6216 + $0x140] sm:$0xff]
      %v6258 = vld [vmem:[%s6216 + $0x148] sm:$0xff]
      %v6259 = vld [vmem:[%s6216 + $0x150] sm:$0xff]
      %v6260 = vld [vmem:[%s6216 + $0x158] sm:$0xff]
      %v6261 = vld [vmem:[%s6216 + $0x160] sm:$0xff]
      %v6262 = vld [vmem:[%s6216 + $0x168] sm:$0xff]
      %v6263 = vld [vmem:[%s6216 + $0x170] sm:$0xff]
      %v6264 = vld [vmem:[%s6216 + $0x178] sm:$0xff]
      %v6265 = vld [vmem:[%s6216 + $0x180] sm:$0xff]
      %v6266 = vld [vmem:[%s6216 + $0x188] sm:$0xff]
      %v6267 = vld [vmem:[%s6216 + $0x190] sm:$0xff]
      %v6268 = vld [vmem:[%s6216 + $0x198] sm:$0xff]
      %v6269 = vld [vmem:[%s6216 + $0x1a0] sm:$0xff]
      %v6270 = vld [vmem:[%s6216 + $0x1a8] sm:$0xff]
      %v6271 = vld [vmem:[%s6216 + $0x1b0] sm:$0xff]
      %v6272 = vld [vmem:[%s6216 + $0x1b8] sm:$0xff]
      %v6273 = vld [vmem:[%s6216 + $0x1c0] sm:$0xff]
      %v6274 = vld [vmem:[%s6216 + $0x1c8] sm:$0xff]
      %v6275 = vld [vmem:[%s6216 + $0x1d0] sm:$0xff]
      %v6276 = vld [vmem:[%s6216 + $0x1d8] sm:$0xff]
      %v6277 = vld [vmem:[%s6216 + $0x1e0] sm:$0xff]
      %v6278 = vld [vmem:[%s6216 + $0x1e8] sm:$0xff]
      %v6279 = vld [vmem:[%s6216 + $0x1f0] sm:$0xff]
      %v6280 = vld [vmem:[%s6216 + $0x1f8] sm:$0xff]
      %vm6285 = vcmask 1044480
      %v6286 = vrot.slane %v6212, 3
      %v6287 = vrot.slane %v6214, 3
      %v6288 = vsel %vm6285, %v6286, %v6287
      %v6289 = vrot.slane %v6213, 3
      %v6290 = vrot.slane %v6215, 3
      %v6291 = vsel %vm6285, %v6289, %v6290
      %v6358 = vunpack.c.l.b16 %v6217
      %v6359 = vunpack.c.h.b16 %v6217
      %v6360 = vunpack.c.l.b16 %v6218
      %v6361 = vunpack.c.h.b16 %v6218
      %v6362 = vunpack.c.l.b16 %v6219
      %v6363 = vunpack.c.h.b16 %v6219
      %v6364 = vunpack.c.l.b16 %v6220
      %v6365 = vunpack.c.h.b16 %v6220
      %v6366 = vunpack.c.l.b16 %v6221
      %v6367 = vunpack.c.h.b16 %v6221
      %v6368 = vunpack.c.l.b16 %v6222
      %v6369 = vunpack.c.h.b16 %v6222
      %v6370 = vunpack.c.l.b16 %v6223
      %v6371 = vunpack.c.h.b16 %v6223
      %v6372 = vunpack.c.l.b16 %v6224
      %v6373 = vunpack.c.h.b16 %v6224
      %v6374 = vunpack.c.l.b16 %v6225
      %v6375 = vunpack.c.h.b16 %v6225
      %v6376 = vunpack.c.l.b16 %v6226
      %v6377 = vunpack.c.h.b16 %v6226
      %v6378 = vunpack.c.l.b16 %v6227
      %v6379 = vunpack.c.h.b16 %v6227
      %v6380 = vunpack.c.l.b16 %v6228
      %v6381 = vunpack.c.h.b16 %v6228
      %v6382 = vunpack.c.l.b16 %v6229
      %v6383 = vunpack.c.h.b16 %v6229
      %v6384 = vunpack.c.l.b16 %v6230
      %v6385 = vunpack.c.h.b16 %v6230
      %v6386 = vunpack.c.l.b16 %v6231
      %v6387 = vunpack.c.h.b16 %v6231
      %v6388 = vunpack.c.l.b16 %v6232
      %v6389 = vunpack.c.h.b16 %v6232
      %v6390 = vunpack.c.l.b16 %v6233
      %v6391 = vunpack.c.h.b16 %v6233
      %v6392 = vunpack.c.l.b16 %v6234
      %v6393 = vunpack.c.h.b16 %v6234
      %v6394 = vunpack.c.l.b16 %v6235
      %v6395 = vunpack.c.h.b16 %v6235
      %v6396 = vunpack.c.l.b16 %v6236
      %v6397 = vunpack.c.h.b16 %v6236
      %v6398 = vunpack.c.l.b16 %v6237
      %v6399 = vunpack.c.h.b16 %v6237
      %v6400 = vunpack.c.l.b16 %v6238
      %v6401 = vunpack.c.h.b16 %v6238
      %v6402 = vunpack.c.l.b16 %v6239
      %v6403 = vunpack.c.h.b16 %v6239
      %v6404 = vunpack.c.l.b16 %v6240
      %v6405 = vunpack.c.h.b16 %v6240
      %v6406 = vunpack.c.l.b16 %v6241
      %v6407 = vunpack.c.h.b16 %v6241
      %v6408 = vunpack.c.l.b16 %v6242
      %v6409 = vunpack.c.h.b16 %v6242
      %v6410 = vunpack.c.l.b16 %v6243
      %v6411 = vunpack.c.h.b16 %v6243
      %v6412 = vunpack.c.l.b16 %v6244
      %v6413 = vunpack.c.h.b16 %v6244
      %v6414 = vunpack.c.l.b16 %v6245
      %v6415 = vunpack.c.h.b16 %v6245
      %v6416 = vunpack.c.l.b16 %v6246
      %v6417 = vunpack.c.h.b16 %v6246
      %v6418 = vunpack.c.l.b16 %v6247
      %v6419 = vunpack.c.h.b16 %v6247
      %v6420 = vunpack.c.l.b16 %v6248
      %v6421 = vunpack.c.h.b16 %v6248
      %v6422 = vunpack.c.l.b16 %v6249
      %v6423 = vunpack.c.h.b16 %v6249
      %v6424 = vunpack.c.l.b16 %v6250
      %v6425 = vunpack.c.h.b16 %v6250
      %v6426 = vunpack.c.l.b16 %v6251
      %v6427 = vunpack.c.h.b16 %v6251
      %v6428 = vunpack.c.l.b16 %v6252
      %v6429 = vunpack.c.h.b16 %v6252
      %v6430 = vunpack.c.l.b16 %v6253
      %v6431 = vunpack.c.h.b16 %v6253
      %v6432 = vunpack.c.l.b16 %v6254
      %v6433 = vunpack.c.h.b16 %v6254
      %v6434 = vunpack.c.l.b16 %v6255
      %v6435 = vunpack.c.h.b16 %v6255
      %v6436 = vunpack.c.l.b16 %v6256
      %v6437 = vunpack.c.h.b16 %v6256
      %v6438 = vunpack.c.l.b16 %v6257
      %v6439 = vunpack.c.h.b16 %v6257
      %v6440 = vunpack.c.l.b16 %v6258
      %v6441 = vunpack.c.h.b16 %v6258
      %v6442 = vunpack.c.l.b16 %v6259
      %v6443 = vunpack.c.h.b16 %v6259
      %v6444 = vunpack.c.l.b16 %v6260
      %v6445 = vunpack.c.h.b16 %v6260
      %v6446 = vunpack.c.l.b16 %v6261
      %v6447 = vunpack.c.h.b16 %v6261
      %v6448 = vunpack.c.l.b16 %v6262
      %v6449 = vunpack.c.h.b16 %v6262
      %v6450 = vunpack.c.l.b16 %v6263
      %v6451 = vunpack.c.h.b16 %v6263
      %v6452 = vunpack.c.l.b16 %v6264
      %v6453 = vunpack.c.h.b16 %v6264
      %v6454 = vunpack.c.l.b16 %v6265
      %v6455 = vunpack.c.h.b16 %v6265
      %v6456 = vunpack.c.l.b16 %v6266
      %v6457 = vunpack.c.h.b16 %v6266
      %v6458 = vunpack.c.l.b16 %v6267
      %v6459 = vunpack.c.h.b16 %v6267
      %v6460 = vunpack.c.l.b16 %v6268
      %v6461 = vunpack.c.h.b16 %v6268
      %v6462 = vunpack.c.l.b16 %v6269
      %v6463 = vunpack.c.h.b16 %v6269
      %v6464 = vunpack.c.l.b16 %v6270
      %v6465 = vunpack.c.h.b16 %v6270
      %v6466 = vunpack.c.l.b16 %v6271
      %v6467 = vunpack.c.h.b16 %v6271
      %v6468 = vunpack.c.l.b16 %v6272
      %v6469 = vunpack.c.h.b16 %v6272
      %v6470 = vunpack.c.l.b16 %v6273
      %v6471 = vunpack.c.h.b16 %v6273
      %v6472 = vunpack.c.l.b16 %v6274
      %v6473 = vunpack.c.h.b16 %v6274
      %v6474 = vunpack.c.l.b16 %v6275
      %v6475 = vunpack.c.h.b16 %v6275
      %v6476 = vunpack.c.l.b16 %v6276
      %v6477 = vunpack.c.h.b16 %v6276
      %v6478 = vunpack.c.l.b16 %v6277
      %v6479 = vunpack.c.h.b16 %v6277
      %v6480 = vunpack.c.l.b16 %v6278
      %v6481 = vunpack.c.h.b16 %v6278
      %v6482 = vunpack.c.l.b16 %v6279
      %v6483 = vunpack.c.h.b16 %v6279
      %v6484 = vunpack.c.l.b16 %v6280
      %v6485 = vunpack.c.h.b16 %v6280
      %v6486 = vpack.c.b16 %v6362, %v6358
      %v6487 = vpack.c.b16 %v6363, %v6359
      %v6488 = vpack.c.b16 %v6364, %v6360
      %v6489 = vpack.c.b16 %v6365, %v6361
      %v6490 = vpack.c.b16 %v6370, %v6366
      %v6491 = vpack.c.b16 %v6371, %v6367
      %v6492 = vpack.c.b16 %v6372, %v6368
      %v6493 = vpack.c.b16 %v6373, %v6369
      %v6494 = vpack.c.b16 %v6378, %v6374
      %v6495 = vpack.c.b16 %v6379, %v6375
      %v6496 = vpack.c.b16 %v6380, %v6376
      %v6497 = vpack.c.b16 %v6381, %v6377
      %v6498 = vpack.c.b16 %v6386, %v6382
      %v6499 = vpack.c.b16 %v6387, %v6383
      %v6500 = vpack.c.b16 %v6388, %v6384
      %v6501 = vpack.c.b16 %v6389, %v6385
      %v6502 = vpack.c.b16 %v6394, %v6390
      %v6503 = vpack.c.b16 %v6395, %v6391
      %v6504 = vpack.c.b16 %v6396, %v6392
      %v6505 = vpack.c.b16 %v6397, %v6393
      %v6506 = vpack.c.b16 %v6402, %v6398
      %v6507 = vpack.c.b16 %v6403, %v6399
      %v6508 = vpack.c.b16 %v6404, %v6400
      %v6509 = vpack.c.b16 %v6405, %v6401
      %v6510 = vpack.c.b16 %v6410, %v6406
      %v6511 = vpack.c.b16 %v6411, %v6407
      %v6512 = vpack.c.b16 %v6412, %v6408
      %v6513 = vpack.c.b16 %v6413, %v6409
      %v6514 = vpack.c.b16 %v6418, %v6414
      %v6515 = vpack.c.b16 %v6419, %v6415
      %v6516 = vpack.c.b16 %v6420, %v6416
      %v6517 = vpack.c.b16 %v6421, %v6417
      %v6518 = vpack.c.b16 %v6426, %v6422
      %v6519 = vpack.c.b16 %v6427, %v6423
      %v6520 = vpack.c.b16 %v6428, %v6424
      %v6521 = vpack.c.b16 %v6429, %v6425
      %v6522 = vpack.c.b16 %v6434, %v6430
      %v6523 = vpack.c.b16 %v6435, %v6431
      %v6524 = vpack.c.b16 %v6436, %v6432
      %v6525 = vpack.c.b16 %v6437, %v6433
      %v6526 = vpack.c.b16 %v6442, %v6438
      %v6527 = vpack.c.b16 %v6443, %v6439
      %v6528 = vpack.c.b16 %v6444, %v6440
      %v6529 = vpack.c.b16 %v6445, %v6441
      %v6530 = vpack.c.b16 %v6450, %v6446
      %v6531 = vpack.c.b16 %v6451, %v6447
      %v6532 = vpack.c.b16 %v6452, %v6448
      %v6533 = vpack.c.b16 %v6453, %v6449
      %v6534 = vpack.c.b16 %v6458, %v6454
      %v6535 = vpack.c.b16 %v6459, %v6455
      %v6536 = vpack.c.b16 %v6460, %v6456
      %v6537 = vpack.c.b16 %v6461, %v6457
      %v6538 = vpack.c.b16 %v6466, %v6462
      %v6539 = vpack.c.b16 %v6467, %v6463
      %v6540 = vpack.c.b16 %v6468, %v6464
      %v6541 = vpack.c.b16 %v6469, %v6465
      %v6542 = vpack.c.b16 %v6474, %v6470
      %v6543 = vpack.c.b16 %v6475, %v6471
      %v6544 = vpack.c.b16 %v6476, %v6472
      %v6545 = vpack.c.b16 %v6477, %v6473
      %v6546 = vpack.c.b16 %v6482, %v6478
      %v6547 = vpack.c.b16 %v6483, %v6479
      %v6548 = vpack.c.b16 %v6484, %v6480
      %v6549 = vpack.c.b16 %v6485, %v6481
      %6614 = vmatprep.subr.bf16.mxu0 %v6487
      %6615 = vmatpush1.bf16.msra.mxu0 %v6486
      %6616 = vmatprep.subr.bf16.mxu0 %v6491
      %6617 = vmatpush1.bf16.msra.mxu0 %v6490
      %6618 = vmatprep.subr.bf16.mxu0 %v6495
      %6619 = vmatpush1.bf16.msra.mxu0 %v6494
      %6620 = vmatprep.subr.bf16.mxu0 %v6499
      %6621 = vmatpush1.bf16.msra.mxu0 %v6498
      %6622 = vmatprep.subr.bf16.mxu0 %v6503
      %6623 = vmatpush1.bf16.msra.mxu0 %v6502
      %6624 = vmatprep.subr.bf16.mxu0 %v6507
      %6625 = vmatpush1.bf16.msra.mxu0 %v6506
      %6626 = vmatprep.subr.bf16.mxu0 %v6511
      %6627 = vmatpush1.bf16.msra.mxu0 %v6510
      %6628 = vmatprep.subr.bf16.mxu0 %v6515
      %6629 = vmatpush1.bf16.msra.mxu0 %v6514
      %6630 = vmatprep.subr.bf16.mxu0 %v6519
      %6631 = vmatpush1.bf16.msra.mxu0 %v6518
      %6632 = vmatprep.subr.bf16.mxu0 %v6523
      %6633 = vmatpush1.bf16.msra.mxu0 %v6522
      %6634 = vmatprep.subr.bf16.mxu0 %v6527
      %6635 = vmatpush1.bf16.msra.mxu0 %v6526
      %6636 = vmatprep.subr.bf16.mxu0 %v6531
      %6637 = vmatpush1.bf16.msra.mxu0 %v6530
      %6638 = vmatprep.subr.bf16.mxu0 %v6535
      %6639 = vmatpush1.bf16.msra.mxu0 %v6534
      %6640 = vmatprep.subr.bf16.mxu0 %v6539
      %6641 = vmatpush1.bf16.msra.mxu0 %v6538
      %6642 = vmatprep.subr.bf16.mxu0 %v6543
      %6643 = vmatpush1.bf16.msra.mxu0 %v6542
      %6644 = vmatprep.subr.bf16.mxu0 %v6547
      %6645 = vmatpush1.bf16.msra.mxu0 %v6546
      %6646 = vmatprep.mubr.bf16.mxu0 %v6291
      %6647 = vmatmul.mubr.bf16.gmra.mrb[0].mxu0 %v6288
      %v6648 = vpop.f32.mrb[0].mxu0
      %v6649 = vadd.f32 0.0, %v6648
      %v6650 = vpop.f32.mrb[0].mxu0
      %v6651 = vadd.f32 0.0, %v6650
      %v6652 = vpop.f32.mrb[0].mxu0
      %v6653 = vadd.f32 0.0, %v6652
      %v6654 = vpop.f32.mrb[0].mxu0
      %v6655 = vadd.f32 0.0, %v6654
      %6656 = vdwg.mxu0
      %6657 = vmatprep.subr.bf16.mxu0 %v6489
      %6658 = vmatpush1.bf16.msra.mxu0 %v6488
      %6659 = vmatprep.subr.bf16.mxu0 %v6493
      %6660 = vmatpush1.bf16.msra.mxu0 %v6492
      %6661 = vmatprep.subr.bf16.mxu0 %v6497
      %6662 = vmatpush1.bf16.msra.mxu0 %v6496
      %6663 = vmatprep.subr.bf16.mxu0 %v6501
      %6664 = vmatpush1.bf16.msra.mxu0 %v6500
      %6665 = vmatprep.subr.bf16.mxu0 %v6505
      %6666 = vmatpush1.bf16.msra.mxu0 %v6504
      %6667 = vmatprep.subr.bf16.mxu0 %v6509
      %6668 = vmatpush1.bf16.msra.mxu0 %v6508
      %6669 = vmatprep.subr.bf16.mxu0 %v6513
      %6670 = vmatpush1.bf16.msra.mxu0 %v6512
      %6671 = vmatprep.subr.bf16.mxu0 %v6517
      %6672 = vmatpush1.bf16.msra.mxu0 %v6516
      %6673 = vmatprep.subr.bf16.mxu0 %v6521
      %6674 = vmatpush1.bf16.msra.mxu0 %v6520
      %6675 = vmatprep.subr.bf16.mxu0 %v6525
      %6676 = vmatpush1.bf16.msra.mxu0 %v6524
      %6677 = vmatprep.subr.bf16.mxu0 %v6529
      %6678 = vmatpush1.bf16.msra.mxu0 %v6528
      %6679 = vmatprep.subr.bf16.mxu0 %v6533
      %6680 = vmatpush1.bf16.msra.mxu0 %v6532
      %6681 = vmatprep.subr.bf16.mxu0 %v6537
      %6682 = vmatpush1.bf16.msra.mxu0 %v6536
      %6683 = vmatprep.subr.bf16.mxu0 %v6541
      %6684 = vmatpush1.bf16.msra.mxu0 %v6540
      %6685 = vmatprep.subr.bf16.mxu0 %v6545
      %6686 = vmatpush1.bf16.msra.mxu0 %v6544
      %6687 = vmatprep.subr.bf16.mxu0 %v6549
      %6688 = vmatpush1.bf16.msra.mxu0 %v6548
      %6689 = vmatprep.mubr.bf16.mxu0 %v6291
      %6690 = vmatmul.mubr.bf16.gmra.mrb[0].mxu0 %v6288
      %v6691 = vpop.f32.mrb[0].mxu0
      %v6692 = vadd.f32 0.0, %v6691
      %v6693 = vpop.f32.mrb[0].mxu0
      %v6694 = vadd.f32 0.0, %v6693
      %v6695 = vpop.f32.mrb[0].mxu0
      %v6696 = vadd.f32 0.0, %v6695
      %v6697 = vpop.f32.mrb[0].mxu0
      %v6698 = vadd.f32 0.0, %v6697
      %6699 = vdwg.mxu0
      %v6700 = vadd.f32 %v6200, %v6649
      %v6701 = vadd.f32 %v6201, %v6651
      %v6702 = vadd.f32 %v6202, %v6692
      %v6703 = vadd.f32 %v6203, %v6694
      %v6704 = vadd.f32 %v6204, %v6653
      %v6705 = vadd.f32 %v6205, %v6655
      %v6706 = vadd.f32 %v6206, %v6696
      %v6707 = vadd.f32 %v6207, %v6698
      %v6708 = vld [vmem:[#allocation4] sm:$0x80]
      %v6709 = vld [vmem:[#allocation4 + $0x8] sm:$0x80]
      %v6710 = vld [vmem:[#allocation4 + $0x20] sm:$0xf]
      %v6711 = vld [vmem:[#allocation4 + $0x28] sm:$0xf]
      %v6712 = vpack.c.bf16 %v5684, %v6708
      %v6713 = vpack.c.bf16 %v5685, %v6709
      %v6714 = vpack.c.bf16 %v6710, %v6710
      %v6715 = vpack.c.bf16 %v6711, %v6711
      %s6716 = scalar_lea.vmem %s14, 2560
      %v6717 = vld [vmem:[%s6716] sm:$0xff]
      %v6718 = vld [vmem:[%s6716 + $0x8] sm:$0xff]
      %v6719 = vld [vmem:[%s6716 + $0x10] sm:$0xff]
      %v6720 = vld [vmem:[%s6716 + $0x18] sm:$0xff]
      %v6721 = vld [vmem:[%s6716 + $0x20] sm:$0xff]
      %v6722 = vld [vmem:[%s6716 + $0x28] sm:$0xff]
      %v6723 = vld [vmem:[%s6716 + $0x30] sm:$0xff]
      %v6724 = vld [vmem:[%s6716 + $0x38] sm:$0xff]
      %v6725 = vld [vmem:[%s6716 + $0x40] sm:$0xff]
      %v6726 = vld [vmem:[%s6716 + $0x48] sm:$0xff]
      %v6727 = vld [vmem:[%s6716 + $0x50] sm:$0xff]
      %v6728 = vld [vmem:[%s6716 + $0x58] sm:$0xff]
      %v6729 = vld [vmem:[%s6716 + $0x60] sm:$0xff]
      %v6730 = vld [vmem:[%s6716 + $0x68] sm:$0xff]
      %v6731 = vld [vmem:[%s6716 + $0x70] sm:$0xff]
      %v6732 = vld [vmem:[%s6716 + $0x78] sm:$0xff]
      %v6733 = vld [vmem:[%s6716 + $0x80] sm:$0xff]
      %v6734 = vld [vmem:[%s6716 + $0x88] sm:$0xff]
      %v6735 = vld [vmem:[%s6716 + $0x90] sm:$0xff]
      %v6736 = vld [vmem:[%s6716 + $0x98] sm:$0xff]
      %v6737 = vld [vmem:[%s6716 + $0xa0] sm:$0xff]
      %v6738 = vld [vmem:[%s6716 + $0xa8] sm:$0xff]
      %v6739 = vld [vmem:[%s6716 + $0xb0] sm:$0xff]
      %v6740 = vld [vmem:[%s6716 + $0xb8] sm:$0xff]
      %v6741 = vld [vmem:[%s6716 + $0xc0] sm:$0xff]
      %v6742 = vld [vmem:[%s6716 + $0xc8] sm:$0xff]
      %v6743 = vld [vmem:[%s6716 + $0xd0] sm:$0xff]
      %v6744 = vld [vmem:[%s6716 + $0xd8] sm:$0xff]
      %v6745 = vld [vmem:[%s6716 + $0xe0] sm:$0xff]
      %v6746 = vld [vmem:[%s6716 + $0xe8] sm:$0xff]
      %v6747 = vld [vmem:[%s6716 + $0xf0] sm:$0xff]
      %v6748 = vld [vmem:[%s6716 + $0xf8] sm:$0xff]
      %v6749 = vld [vmem:[%s6716 + $0x100] sm:$0xff]
      %v6750 = vld [vmem:[%s6716 + $0x108] sm:$0xff]
      %v6751 = vld [vmem:[%s6716 + $0x110] sm:$0xff]
      %v6752 = vld [vmem:[%s6716 + $0x118] sm:$0xff]
      %v6753 = vld [vmem:[%s6716 + $0x120] sm:$0xff]
      %v6754 = vld [vmem:[%s6716 + $0x128] sm:$0xff]
      %v6755 = vld [vmem:[%s6716 + $0x130] sm:$0xff]
      %v6756 = vld [vmem:[%s6716 + $0x138] sm:$0xff]
      %v6757 = vld [vmem:[%s6716 + $0x140] sm:$0xff]
      %v6758 = vld [vmem:[%s6716 + $0x148] sm:$0xff]
      %v6759 = vld [vmem:[%s6716 + $0x150] sm:$0xff]
      %v6760 = vld [vmem:[%s6716 + $0x158] sm:$0xff]
      %v6761 = vld [vmem:[%s6716 + $0x160] sm:$0xff]
      %v6762 = vld [vmem:[%s6716 + $0x168] sm:$0xff]
      %v6763 = vld [vmem:[%s6716 + $0x170] sm:$0xff]
      %v6764 = vld [vmem:[%s6716 + $0x178] sm:$0xff]
      %v6765 = vld [vmem:[%s6716 + $0x180] sm:$0xff]
      %v6766 = vld [vmem:[%s6716 + $0x188] sm:$0xff]
      %v6767 = vld [vmem:[%s6716 + $0x190] sm:$0xff]
      %v6768 = vld [vmem:[%s6716 + $0x198] sm:$0xff]
      %v6769 = vld [vmem:[%s6716 + $0x1a0] sm:$0xff]
      %v6770 = vld [vmem:[%s6716 + $0x1a8] sm:$0xff]
      %v6771 = vld [vmem:[%s6716 + $0x1b0] sm:$0xff]
      %v6772 = vld [vmem:[%s6716 + $0x1b8] sm:$0xff]
      %v6773 = vld [vmem:[%s6716 + $0x1c0] sm:$0xff]
      %v6774 = vld [vmem:[%s6716 + $0x1c8] sm:$0xff]
      %v6775 = vld [vmem:[%s6716 + $0x1d0] sm:$0xff]
      %v6776 = vld [vmem:[%s6716 + $0x1d8] sm:$0xff]
      %v6777 = vld [vmem:[%s6716 + $0x1e0] sm:$0xff]
      %v6778 = vld [vmem:[%s6716 + $0x1e8] sm:$0xff]
      %v6779 = vld [vmem:[%s6716 + $0x1f0] sm:$0xff]
      %v6780 = vld [vmem:[%s6716 + $0x1f8] sm:$0xff]
      %vm6781 = vsmask.f32 4352
      %v6783 = vshrl.u32 %v6712, 16
      %v6785 = vrot.slane %v6783, 3
      %v6786 = vshll.u32 %v6712, 16
      %v6788 = vrot.slane %v6786, 4
      %v6789 = vor.u32 %v6785, %v6788
      %v6791 = vshrl.u32 %v6714, 16
      %v6793 = vrot.slane %v6791, 3
      %v6794 = vshll.u32 %v6714, 16
      %v6796 = vrot.slane %v6794, 4
      %v6797 = vor.u32 %v6793, %v6796
      %v6798 = vsel %vm6781, %v6789, %v6797
      %v6800 = vshrl.u32 %v6713, 16
      %v6802 = vrot.slane %v6800, 3
      %v6803 = vshll.u32 %v6713, 16
      %v6805 = vrot.slane %v6803, 4
      %v6806 = vor.u32 %v6802, %v6805
      %v6808 = vshrl.u32 %v6715, 16
      %v6810 = vrot.slane %v6808, 3
      %v6811 = vshll.u32 %v6715, 16
      %v6813 = vrot.slane %v6811, 4
      %v6814 = vor.u32 %v6810, %v6813
      %v6815 = vsel %vm6781, %v6806, %v6814
      %v6882 = vunpack.c.l.b16 %v6717
      %v6883 = vunpack.c.h.b16 %v6717
      %v6884 = vunpack.c.l.b16 %v6718
      %v6885 = vunpack.c.h.b16 %v6718
      %v6886 = vunpack.c.l.b16 %v6719
      %v6887 = vunpack.c.h.b16 %v6719
      %v6888 = vunpack.c.l.b16 %v6720
      %v6889 = vunpack.c.h.b16 %v6720
      %v6890 = vunpack.c.l.b16 %v6721
      %v6891 = vunpack.c.h.b16 %v6721
      %v6892 = vunpack.c.l.b16 %v6722
      %v6893 = vunpack.c.h.b16 %v6722
      %v6894 = vunpack.c.l.b16 %v6723
      %v6895 = vunpack.c.h.b16 %v6723
      %v6896 = vunpack.c.l.b16 %v6724
      %v6897 = vunpack.c.h.b16 %v6724
      %v6898 = vunpack.c.l.b16 %v6725
      %v6899 = vunpack.c.h.b16 %v6725
      %v6900 = vunpack.c.l.b16 %v6726
      %v6901 = vunpack.c.h.b16 %v6726
      %v6902 = vunpack.c.l.b16 %v6727
      %v6903 = vunpack.c.h.b16 %v6727
      %v6904 = vunpack.c.l.b16 %v6728
      %v6905 = vunpack.c.h.b16 %v6728
      %v6906 = vunpack.c.l.b16 %v6729
      %v6907 = vunpack.c.h.b16 %v6729
      %v6908 = vunpack.c.l.b16 %v6730
      %v6909 = vunpack.c.h.b16 %v6730
      %v6910 = vunpack.c.l.b16 %v6731
      %v6911 = vunpack.c.h.b16 %v6731
      %v6912 = vunpack.c.l.b16 %v6732
      %v6913 = vunpack.c.h.b16 %v6732
      %v6914 = vunpack.c.l.b16 %v6733
      %v6915 = vunpack.c.h.b16 %v6733
      %v6916 = vunpack.c.l.b16 %v6734
      %v6917 = vunpack.c.h.b16 %v6734
      %v6918 = vunpack.c.l.b16 %v6735
      %v6919 = vunpack.c.h.b16 %v6735
      %v6920 = vunpack.c.l.b16 %v6736
      %v6921 = vunpack.c.h.b16 %v6736
      %v6922 = vunpack.c.l.b16 %v6737
      %v6923 = vunpack.c.h.b16 %v6737
      %v6924 = vunpack.c.l.b16 %v6738
      %v6925 = vunpack.c.h.b16 %v6738
      %v6926 = vunpack.c.l.b16 %v6739
      %v6927 = vunpack.c.h.b16 %v6739
      %v6928 = vunpack.c.l.b16 %v6740
      %v6929 = vunpack.c.h.b16 %v6740
      %v6930 = vunpack.c.l.b16 %v6741
      %v6931 = vunpack.c.h.b16 %v6741
      %v6932 = vunpack.c.l.b16 %v6742
      %v6933 = vunpack.c.h.b16 %v6742
      %v6934 = vunpack.c.l.b16 %v6743
      %v6935 = vunpack.c.h.b16 %v6743
      %v6936 = vunpack.c.l.b16 %v6744
      %v6937 = vunpack.c.h.b16 %v6744
      %v6938 = vunpack.c.l.b16 %v6745
      %v6939 = vunpack.c.h.b16 %v6745
      %v6940 = vunpack.c.l.b16 %v6746
      %v6941 = vunpack.c.h.b16 %v6746
      %v6942 = vunpack.c.l.b16 %v6747
      %v6943 = vunpack.c.h.b16 %v6747
      %v6944 = vunpack.c.l.b16 %v6748
      %v6945 = vunpack.c.h.b16 %v6748
      %v6946 = vunpack.c.l.b16 %v6749
      %v6947 = vunpack.c.h.b16 %v6749
      %v6948 = vunpack.c.l.b16 %v6750
      %v6949 = vunpack.c.h.b16 %v6750
      %v6950 = vunpack.c.l.b16 %v6751
      %v6951 = vunpack.c.h.b16 %v6751
      %v6952 = vunpack.c.l.b16 %v6752
      %v6953 = vunpack.c.h.b16 %v6752
      %v6954 = vunpack.c.l.b16 %v6753
      %v6955 = vunpack.c.h.b16 %v6753
      %v6956 = vunpack.c.l.b16 %v6754
      %v6957 = vunpack.c.h.b16 %v6754
      %v6958 = vunpack.c.l.b16 %v6755
      %v6959 = vunpack.c.h.b16 %v6755
      %v6960 = vunpack.c.l.b16 %v6756
      %v6961 = vunpack.c.h.b16 %v6756
      %v6962 = vunpack.c.l.b16 %v6757
      %v6963 = vunpack.c.h.b16 %v6757
      %v6964 = vunpack.c.l.b16 %v6758
      %v6965 = vunpack.c.h.b16 %v6758
      %v6966 = vunpack.c.l.b16 %v6759
      %v6967 = vunpack.c.h.b16 %v6759
      %v6968 = vunpack.c.l.b16 %v6760
      %v6969 = vunpack.c.h.b16 %v6760
      %v6970 = vunpack.c.l.b16 %v6761
      %v6971 = vunpack.c.h.b16 %v6761
      %v6972 = vunpack.c.l.b16 %v6762
      %v6973 = vunpack.c.h.b16 %v6762
      %v6974 = vunpack.c.l.b16 %v6763
      %v6975 = vunpack.c.h.b16 %v6763
      %v6976 = vunpack.c.l.b16 %v6764
      %v6977 = vunpack.c.h.b16 %v6764
      %v6978 = vunpack.c.l.b16 %v6765
      %v6979 = vunpack.c.h.b16 %v6765
      %v6980 = vunpack.c.l.b16 %v6766
      %v6981 = vunpack.c.h.b16 %v6766
      %v6982 = vunpack.c.l.b16 %v6767
      %v6983 = vunpack.c.h.b16 %v6767
      %v6984 = vunpack.c.l.b16 %v6768
      %v6985 = vunpack.c.h.b16 %v6768
      %v6986 = vunpack.c.l.b16 %v6769
      %v6987 = vunpack.c.h.b16 %v6769
      %v6988 = vunpack.c.l.b16 %v6770
      %v6989 = vunpack.c.h.b16 %v6770
      %v6990 = vunpack.c.l.b16 %v6771
      %v6991 = vunpack.c.h.b16 %v6771
      %v6992 = vunpack.c.l.b16 %v6772
      %v6993 = vunpack.c.h.b16 %v6772
      %v6994 = vunpack.c.l.b16 %v6773
      %v6995 = vunpack.c.h.b16 %v6773
      %v6996 = vunpack.c.l.b16 %v6774
      %v6997 = vunpack.c.h.b16 %v6774
      %v6998 = vunpack.c.l.b16 %v6775
      %v6999 = vunpack.c.h.b16 %v6775
      %v7000 = vunpack.c.l.b16 %v6776
      %v7001 = vunpack.c.h.b16 %v6776
      %v7002 = vunpack.c.l.b16 %v6777
      %v7003 = vunpack.c.h.b16 %v6777
      %v7004 = vunpack.c.l.b16 %v6778
      %v7005 = vunpack.c.h.b16 %v6778
      %v7006 = vunpack.c.l.b16 %v6779
      %v7007 = vunpack.c.h.b16 %v6779
      %v7008 = vunpack.c.l.b16 %v6780
      %v7009 = vunpack.c.h.b16 %v6780
      %v7010 = vpack.c.b16 %v6886, %v6882
      %v7011 = vpack.c.b16 %v6887, %v6883
      %v7012 = vpack.c.b16 %v6888, %v6884
      %v7013 = vpack.c.b16 %v6889, %v6885
      %v7014 = vpack.c.b16 %v6894, %v6890
      %v7015 = vpack.c.b16 %v6895, %v6891
      %v7016 = vpack.c.b16 %v6896, %v6892
      %v7017 = vpack.c.b16 %v6897, %v6893
      %v7018 = vpack.c.b16 %v6902, %v6898
      %v7019 = vpack.c.b16 %v6903, %v6899
      %v7020 = vpack.c.b16 %v6904, %v6900
      %v7021 = vpack.c.b16 %v6905, %v6901
      %v7022 = vpack.c.b16 %v6910, %v6906
      %v7023 = vpack.c.b16 %v6911, %v6907
      %v7024 = vpack.c.b16 %v6912, %v6908
      %v7025 = vpack.c.b16 %v6913, %v6909
      %v7026 = vpack.c.b16 %v6918, %v6914
      %v7027 = vpack.c.b16 %v6919, %v6915
      %v7028 = vpack.c.b16 %v6920, %v6916
      %v7029 = vpack.c.b16 %v6921, %v6917
      %v7030 = vpack.c.b16 %v6926, %v6922
      %v7031 = vpack.c.b16 %v6927, %v6923
      %v7032 = vpack.c.b16 %v6928, %v6924
      %v7033 = vpack.c.b16 %v6929, %v6925
      %v7034 = vpack.c.b16 %v6934, %v6930
      %v7035 = vpack.c.b16 %v6935, %v6931
      %v7036 = vpack.c.b16 %v6936, %v6932
      %v7037 = vpack.c.b16 %v6937, %v6933
      %v7038 = vpack.c.b16 %v6942, %v6938
      %v7039 = vpack.c.b16 %v6943, %v6939
      %v7040 = vpack.c.b16 %v6944, %v6940
      %v7041 = vpack.c.b16 %v6945, %v6941
      %v7042 = vpack.c.b16 %v6950, %v6946
      %v7043 = vpack.c.b16 %v6951, %v6947
      %v7044 = vpack.c.b16 %v6952, %v6948
      %v7045 = vpack.c.b16 %v6953, %v6949
      %v7046 = vpack.c.b16 %v6958, %v6954
      %v7047 = vpack.c.b16 %v6959, %v6955
      %v7048 = vpack.c.b16 %v6960, %v6956
      %v7049 = vpack.c.b16 %v6961, %v6957
      %v7050 = vpack.c.b16 %v6966, %v6962
      %v7051 = vpack.c.b16 %v6967, %v6963
      %v7052 = vpack.c.b16 %v6968, %v6964
      %v7053 = vpack.c.b16 %v6969, %v6965
      %v7054 = vpack.c.b16 %v6974, %v6970
      %v7055 = vpack.c.b16 %v6975, %v6971
      %v7056 = vpack.c.b16 %v6976, %v6972
      %v7057 = vpack.c.b16 %v6977, %v6973
      %v7058 = vpack.c.b16 %v6982, %v6978
      %v7059 = vpack.c.b16 %v6983, %v6979
      %v7060 = vpack.c.b16 %v6984, %v6980
      %v7061 = vpack.c.b16 %v6985, %v6981
      %v7062 = vpack.c.b16 %v6990, %v6986
      %v7063 = vpack.c.b16 %v6991, %v6987
      %v7064 = vpack.c.b16 %v6992, %v6988
      %v7065 = vpack.c.b16 %v6993, %v6989
      %v7066 = vpack.c.b16 %v6998, %v6994
      %v7067 = vpack.c.b16 %v6999, %v6995
      %v7068 = vpack.c.b16 %v7000, %v6996
      %v7069 = vpack.c.b16 %v7001, %v6997
      %v7070 = vpack.c.b16 %v7006, %v7002
      %v7071 = vpack.c.b16 %v7007, %v7003
      %v7072 = vpack.c.b16 %v7008, %v7004
      %v7073 = vpack.c.b16 %v7009, %v7005
      %7138 = vmatprep.subr.bf16.mxu0 %v7011
      %7139 = vmatpush1.bf16.msra.mxu0 %v7010
      %7140 = vmatprep.subr.bf16.mxu0 %v7015
      %7141 = vmatpush1.bf16.msra.mxu0 %v7014
      %7142 = vmatprep.subr.bf16.mxu0 %v7019
      %7143 = vmatpush1.bf16.msra.mxu0 %v7018
      %7144 = vmatprep.subr.bf16.mxu0 %v7023
      %7145 = vmatpush1.bf16.msra.mxu0 %v7022
      %7146 = vmatprep.subr.bf16.mxu0 %v7027
      %7147 = vmatpush1.bf16.msra.mxu0 %v7026
      %7148 = vmatprep.subr.bf16.mxu0 %v7031
      %7149 = vmatpush1.bf16.msra.mxu0 %v7030
      %7150 = vmatprep.subr.bf16.mxu0 %v7035
      %7151 = vmatpush1.bf16.msra.mxu0 %v7034
      %7152 = vmatprep.subr.bf16.mxu0 %v7039
      %7153 = vmatpush1.bf16.msra.mxu0 %v7038
      %7154 = vmatprep.subr.bf16.mxu0 %v7043
      %7155 = vmatpush1.bf16.msra.mxu0 %v7042
      %7156 = vmatprep.subr.bf16.mxu0 %v7047
      %7157 = vmatpush1.bf16.msra.mxu0 %v7046
      %7158 = vmatprep.subr.bf16.mxu0 %v7051
      %7159 = vmatpush1.bf16.msra.mxu0 %v7050
      %7160 = vmatprep.subr.bf16.mxu0 %v7055
      %7161 = vmatpush1.bf16.msra.mxu0 %v7054
      %7162 = vmatprep.subr.bf16.mxu0 %v7059
      %7163 = vmatpush1.bf16.msra.mxu0 %v7058
      %7164 = vmatprep.subr.bf16.mxu0 %v7063
      %7165 = vmatpush1.bf16.msra.mxu0 %v7062
      %7166 = vmatprep.subr.bf16.mxu0 %v7067
      %7167 = vmatpush1.bf16.msra.mxu0 %v7066
      %7168 = vmatprep.subr.bf16.mxu0 %v7071
      %7169 = vmatpush1.bf16.msra.mxu0 %v7070
      %7170 = vmatprep.mubr.bf16.mxu0 %v6815
      %7171 = vmatmul.mubr.bf16.gmra.mrb[0].mxu0 %v6798
      %v7172 = vpop.f32.mrb[0].mxu0
      %v7173 = vadd.f32 0.0, %v7172
      %v7174 = vpop.f32.mrb[0].mxu0
      %v7175 = vadd.f32 0.0, %v7174
      %v7176 = vpop.f32.mrb[0].mxu0
      %v7177 = vadd.f32 0.0, %v7176
      %v7178 = vpop.f32.mrb[0].mxu0
      %v7179 = vadd.f32 0.0, %v7178
      %7180 = vdwg.mxu0
      %7181 = vmatprep.subr.bf16.mxu0 %v7013
      %7182 = vmatpush1.bf16.msra.mxu0 %v7012
      %7183 = vmatprep.subr.bf16.mxu0 %v7017
      %7184 = vmatpush1.bf16.msra.mxu0 %v7016
      %7185 = vmatprep.subr.bf16.mxu0 %v7021
      %7186 = vmatpush1.bf16.msra.mxu0 %v7020
      %7187 = vmatprep.subr.bf16.mxu0 %v7025
      %7188 = vmatpush1.bf16.msra.mxu0 %v7024
      %7189 = vmatprep.subr.bf16.mxu0 %v7029
      %7190 = vmatpush1.bf16.msra.mxu0 %v7028
      %7191 = vmatprep.subr.bf16.mxu0 %v7033
      %7192 = vmatpush1.bf16.msra.mxu0 %v7032
      %7193 = vmatprep.subr.bf16.mxu0 %v7037
      %7194 = vmatpush1.bf16.msra.mxu0 %v7036
      %7195 = vmatprep.subr.bf16.mxu0 %v7041
      %7196 = vmatpush1.bf16.msra.mxu0 %v7040
      %7197 = vmatprep.subr.bf16.mxu0 %v7045
      %7198 = vmatpush1.bf16.msra.mxu0 %v7044
      %7199 = vmatprep.subr.bf16.mxu0 %v7049
      %7200 = vmatpush1.bf16.msra.mxu0 %v7048
      %7201 = vmatprep.subr.bf16.mxu0 %v7053
      %7202 = vmatpush1.bf16.msra.mxu0 %v7052
      %7203 = vmatprep.subr.bf16.mxu0 %v7057
      %7204 = vmatpush1.bf16.msra.mxu0 %v7056
      %7205 = vmatprep.subr.bf16.mxu0 %v7061
      %7206 = vmatpush1.bf16.msra.mxu0 %v7060
      %7207 = vmatprep.subr.bf16.mxu0 %v7065
      %7208 = vmatpush1.bf16.msra.mxu0 %v7064
      %7209 = vmatprep.subr.bf16.mxu0 %v7069
      %7210 = vmatpush1.bf16.msra.mxu0 %v7068
      %7211 = vmatprep.subr.bf16.mxu0 %v7073
      %7212 = vmatpush1.bf16.msra.mxu0 %v7072
      %7213 = vmatprep.mubr.bf16.mxu0 %v6815
      %7214 = vmatmul.mubr.bf16.gmra.mrb[0].mxu0 %v6798
      %v7215 = vpop.f32.mrb[0].mxu0
      %v7216 = vadd.f32 0.0, %v7215
      %v7217 = vpop.f32.mrb[0].mxu0
      %v7218 = vadd.f32 0.0, %v7217
      %v7219 = vpop.f32.mrb[0].mxu0
      %v7220 = vadd.f32 0.0, %v7219
      %v7221 = vpop.f32.mrb[0].mxu0
      %v7222 = vadd.f32 0.0, %v7221
      %7223 = vdwg.mxu0
      %v7224 = vadd.f32 %v6700, %v7173
      %v7225 = vadd.f32 %v6701, %v7175
      %v7226 = vadd.f32 %v6702, %v7216
      %v7227 = vadd.f32 %v6703, %v7218
      %v7228 = vadd.f32 %v6704, %v7177
      %v7229 = vadd.f32 %v6705, %v7179
      %v7230 = vadd.f32 %v6706, %v7220
      %v7231 = vadd.f32 %v6707, %v7222
      %v7232 = vld [vmem:[#allocation4 + $0x10] sm:$0xfc]
      %v7233 = vld [vmem:[#allocation4 + $0x18] sm:$0xfc]
      %v7234 = vld [vmem:[#allocation4 + $0x20] sm:$0x7f]
      %v7235 = vld [vmem:[#allocation4 + $0x28] sm:$0x7f]
      %v7236 = vpack.c.bf16 %v7234, %v7232
      %v7237 = vpack.c.bf16 %v7235, %v7233
      %s7238 = scalar_lea.vmem %s14, 3072
      %v7239 = vld [vmem:[%s7238] sm:$0xff]
      %v7240 = vld [vmem:[%s7238 + $0x8] sm:$0xff]
      %v7241 = vld [vmem:[%s7238 + $0x10] sm:$0xff]
      %v7242 = vld [vmem:[%s7238 + $0x18] sm:$0xff]
      %v7243 = vld [vmem:[%s7238 + $0x20] sm:$0xff]
      %v7244 = vld [vmem:[%s7238 + $0x28] sm:$0xff]
      %v7245 = vld [vmem:[%s7238 + $0x30] sm:$0xff]
      %v7246 = vld [vmem:[%s7238 + $0x38] sm:$0xff]
      %v7247 = vld [vmem:[%s7238 + $0x40] sm:$0xff]
      %v7248 = vld [vmem:[%s7238 + $0x48] sm:$0xff]
      %v7249 = vld [vmem:[%s7238 + $0x50] sm:$0xff]
      %v7250 = vld [vmem:[%s7238 + $0x58] sm:$0xff]
      %v7251 = vld [vmem:[%s7238 + $0x60] sm:$0xff]
      %v7252 = vld [vmem:[%s7238 + $0x68] sm:$0xff]
      %v7253 = vld [vmem:[%s7238 + $0x70] sm:$0xff]
      %v7254 = vld [vmem:[%s7238 + $0x78] sm:$0xff]
      %v7255 = vld [vmem:[%s7238 + $0x80] sm:$0xff]
      %v7256 = vld [vmem:[%s7238 + $0x88] sm:$0xff]
      %v7257 = vld [vmem:[%s7238 + $0x90] sm:$0xff]
      %v7258 = vld [vmem:[%s7238 + $0x98] sm:$0xff]
      %v7259 = vld [vmem:[%s7238 + $0xa0] sm:$0xff]
      %v7260 = vld [vmem:[%s7238 + $0xa8] sm:$0xff]
      %v7261 = vld [vmem:[%s7238 + $0xb0] sm:$0xff]
      %v7262 = vld [vmem:[%s7238 + $0xb8] sm:$0xff]
      %v7263 = vld [vmem:[%s7238 + $0xc0] sm:$0xff]
      %v7264 = vld [vmem:[%s7238 + $0xc8] sm:$0xff]
      %v7265 = vld [vmem:[%s7238 + $0xd0] sm:$0xff]
      %v7266 = vld [vmem:[%s7238 + $0xd8] sm:$0xff]
      %v7267 = vld [vmem:[%s7238 + $0xe0] sm:$0xff]
      %v7268 = vld [vmem:[%s7238 + $0xe8] sm:$0xff]
      %v7269 = vld [vmem:[%s7238 + $0xf0] sm:$0xff]
      %v7270 = vld [vmem:[%s7238 + $0xf8] sm:$0xff]
      %v7271 = vld [vmem:[%s7238 + $0x100] sm:$0xff]
      %v7272 = vld [vmem:[%s7238 + $0x108] sm:$0xff]
      %v7273 = vld [vmem:[%s7238 + $0x110] sm:$0xff]
      %v7274 = vld [vmem:[%s7238 + $0x118] sm:$0xff]
      %v7275 = vld [vmem:[%s7238 + $0x120] sm:$0xff]
      %v7276 = vld [vmem:[%s7238 + $0x128] sm:$0xff]
      %v7277 = vld [vmem:[%s7238 + $0x130] sm:$0xff]
      %v7278 = vld [vmem:[%s7238 + $0x138] sm:$0xff]
      %v7279 = vld [vmem:[%s7238 + $0x140] sm:$0xff]
      %v7280 = vld [vmem:[%s7238 + $0x148] sm:$0xff]
      %v7281 = vld [vmem:[%s7238 + $0x150] sm:$0xff]
      %v7282 = vld [vmem:[%s7238 + $0x158] sm:$0xff]
      %v7283 = vld [vmem:[%s7238 + $0x160] sm:$0xff]
      %v7284 = vld [vmem:[%s7238 + $0x168] sm:$0xff]
      %v7285 = vld [vmem:[%s7238 + $0x170] sm:$0xff]
      %v7286 = vld [vmem:[%s7238 + $0x178] sm:$0xff]
      %v7287 = vld [vmem:[%s7238 + $0x180] sm:$0xff]
      %v7288 = vld [vmem:[%s7238 + $0x188] sm:$0xff]
      %v7289 = vld [vmem:[%s7238 + $0x190] sm:$0xff]
      %v7290 = vld [vmem:[%s7238 + $0x198] sm:$0xff]
      %v7291 = vld [vmem:[%s7238 + $0x1a0] sm:$0xff]
      %v7292 = vld [vmem:[%s7238 + $0x1a8] sm:$0xff]
      %v7293 = vld [vmem:[%s7238 + $0x1b0] sm:$0xff]
      %v7294 = vld [vmem:[%s7238 + $0x1b8] sm:$0xff]
      %v7295 = vld [vmem:[%s7238 + $0x1c0] sm:$0xff]
      %v7296 = vld [vmem:[%s7238 + $0x1c8] sm:$0xff]
      %v7297 = vld [vmem:[%s7238 + $0x1d0] sm:$0xff]
      %v7298 = vld [vmem:[%s7238 + $0x1d8] sm:$0xff]
      %v7299 = vld [vmem:[%s7238 + $0x1e0] sm:$0xff]
      %v7300 = vld [vmem:[%s7238 + $0x1e8] sm:$0xff]
      %v7301 = vld [vmem:[%s7238 + $0x1f0] sm:$0xff]
      %v7302 = vld [vmem:[%s7238 + $0x1f8] sm:$0xff]
      %v7305 = vrot.slane %v7236, 1
      %v7306 = vrot.slane %v7237, 1
      %v7373 = vunpack.c.l.b16 %v7239
      %v7374 = vunpack.c.h.b16 %v7239
      %v7375 = vunpack.c.l.b16 %v7240
      %v7376 = vunpack.c.h.b16 %v7240
      %v7377 = vunpack.c.l.b16 %v7241
      %v7378 = vunpack.c.h.b16 %v7241
      %v7379 = vunpack.c.l.b16 %v7242
      %v7380 = vunpack.c.h.b16 %v7242
      %v7381 = vunpack.c.l.b16 %v7243
      %v7382 = vunpack.c.h.b16 %v7243
      %v7383 = vunpack.c.l.b16 %v7244
      %v7384 = vunpack.c.h.b16 %v7244
      %v7385 = vunpack.c.l.b16 %v7245
      %v7386 = vunpack.c.h.b16 %v7245
      %v7387 = vunpack.c.l.b16 %v7246
      %v7388 = vunpack.c.h.b16 %v7246
      %v7389 = vunpack.c.l.b16 %v7247
      %v7390 = vunpack.c.h.b16 %v7247
      %v7391 = vunpack.c.l.b16 %v7248
      %v7392 = vunpack.c.h.b16 %v7248
      %v7393 = vunpack.c.l.b16 %v7249
      %v7394 = vunpack.c.h.b16 %v7249
      %v7395 = vunpack.c.l.b16 %v7250
      %v7396 = vunpack.c.h.b16 %v7250
      %v7397 = vunpack.c.l.b16 %v7251
      %v7398 = vunpack.c.h.b16 %v7251
      %v7399 = vunpack.c.l.b16 %v7252
      %v7400 = vunpack.c.h.b16 %v7252
      %v7401 = vunpack.c.l.b16 %v7253
      %v7402 = vunpack.c.h.b16 %v7253
      %v7403 = vunpack.c.l.b16 %v7254
      %v7404 = vunpack.c.h.b16 %v7254
      %v7405 = vunpack.c.l.b16 %v7255
      %v7406 = vunpack.c.h.b16 %v7255
      %v7407 = vunpack.c.l.b16 %v7256
      %v7408 = vunpack.c.h.b16 %v7256
      %v7409 = vunpack.c.l.b16 %v7257
      %v7410 = vunpack.c.h.b16 %v7257
      %v7411 = vunpack.c.l.b16 %v7258
      %v7412 = vunpack.c.h.b16 %v7258
      %v7413 = vunpack.c.l.b16 %v7259
      %v7414 = vunpack.c.h.b16 %v7259
      %v7415 = vunpack.c.l.b16 %v7260
      %v7416 = vunpack.c.h.b16 %v7260
      %v7417 = vunpack.c.l.b16 %v7261
      %v7418 = vunpack.c.h.b16 %v7261
      %v7419 = vunpack.c.l.b16 %v7262
      %v7420 = vunpack.c.h.b16 %v7262
      %v7421 = vunpack.c.l.b16 %v7263
      %v7422 = vunpack.c.h.b16 %v7263
      %v7423 = vunpack.c.l.b16 %v7264
      %v7424 = vunpack.c.h.b16 %v7264
      %v7425 = vunpack.c.l.b16 %v7265
      %v7426 = vunpack.c.h.b16 %v7265
      %v7427 = vunpack.c.l.b16 %v7266
      %v7428 = vunpack.c.h.b16 %v7266
      %v7429 = vunpack.c.l.b16 %v7267
      %v7430 = vunpack.c.h.b16 %v7267
      %v7431 = vunpack.c.l.b16 %v7268
      %v7432 = vunpack.c.h.b16 %v7268
      %v7433 = vunpack.c.l.b16 %v7269
      %v7434 = vunpack.c.h.b16 %v7269
      %v7435 = vunpack.c.l.b16 %v7270
      %v7436 = vunpack.c.h.b16 %v7270
      %v7437 = vunpack.c.l.b16 %v7271
      %v7438 = vunpack.c.h.b16 %v7271
      %v7439 = vunpack.c.l.b16 %v7272
      %v7440 = vunpack.c.h.b16 %v7272
      %v7441 = vunpack.c.l.b16 %v7273
      %v7442 = vunpack.c.h.b16 %v7273
      %v7443 = vunpack.c.l.b16 %v7274
      %v7444 = vunpack.c.h.b16 %v7274
      %v7445 = vunpack.c.l.b16 %v7275
      %v7446 = vunpack.c.h.b16 %v7275
      %v7447 = vunpack.c.l.b16 %v7276
      %v7448 = vunpack.c.h.b16 %v7276
      %v7449 = vunpack.c.l.b16 %v7277
      %v7450 = vunpack.c.h.b16 %v7277
      %v7451 = vunpack.c.l.b16 %v7278
      %v7452 = vunpack.c.h.b16 %v7278
      %v7453 = vunpack.c.l.b16 %v7279
      %v7454 = vunpack.c.h.b16 %v7279
      %v7455 = vunpack.c.l.b16 %v7280
      %v7456 = vunpack.c.h.b16 %v7280
      %v7457 = vunpack.c.l.b16 %v7281
      %v7458 = vunpack.c.h.b16 %v7281
      %v7459 = vunpack.c.l.b16 %v7282
      %v7460 = vunpack.c.h.b16 %v7282
      %v7461 = vunpack.c.l.b16 %v7283
      %v7462 = vunpack.c.h.b16 %v7283
      %v7463 = vunpack.c.l.b16 %v7284
      %v7464 = vunpack.c.h.b16 %v7284
      %v7465 = vunpack.c.l.b16 %v7285
      %v7466 = vunpack.c.h.b16 %v7285
      %v7467 = vunpack.c.l.b16 %v7286
      %v7468 = vunpack.c.h.b16 %v7286
      %v7469 = vunpack.c.l.b16 %v7287
      %v7470 = vunpack.c.h.b16 %v7287
      %v7471 = vunpack.c.l.b16 %v7288
      %v7472 = vunpack.c.h.b16 %v7288
      %v7473 = vunpack.c.l.b16 %v7289
      %v7474 = vunpack.c.h.b16 %v7289
      %v7475 = vunpack.c.l.b16 %v7290
      %v7476 = vunpack.c.h.b16 %v7290
      %v7477 = vunpack.c.l.b16 %v7291
      %v7478 = vunpack.c.h.b16 %v7291
      %v7479 = vunpack.c.l.b16 %v7292
      %v7480 = vunpack.c.h.b16 %v7292
      %v7481 = vunpack.c.l.b16 %v7293
      %v7482 = vunpack.c.h.b16 %v7293
      %v7483 = vunpack.c.l.b16 %v7294
      %v7484 = vunpack.c.h.b16 %v7294
      %v7485 = vunpack.c.l.b16 %v7295
      %v7486 = vunpack.c.h.b16 %v7295
      %v7487 = vunpack.c.l.b16 %v7296
      %v7488 = vunpack.c.h.b16 %v7296
      %v7489 = vunpack.c.l.b16 %v7297
      %v7490 = vunpack.c.h.b16 %v7297
      %v7491 = vunpack.c.l.b16 %v7298
      %v7492 = vunpack.c.h.b16 %v7298
      %v7493 = vunpack.c.l.b16 %v7299
      %v7494 = vunpack.c.h.b16 %v7299
      %v7495 = vunpack.c.l.b16 %v7300
      %v7496 = vunpack.c.h.b16 %v7300
      %v7497 = vunpack.c.l.b16 %v7301
      %v7498 = vunpack.c.h.b16 %v7301
      %v7499 = vunpack.c.l.b16 %v7302
      %v7500 = vunpack.c.h.b16 %v7302
      %v7501 = vpack.c.b16 %v7377, %v7373
      %v7502 = vpack.c.b16 %v7378, %v7374
      %v7503 = vpack.c.b16 %v7379, %v7375
      %v7504 = vpack.c.b16 %v7380, %v7376
      %v7505 = vpack.c.b16 %v7385, %v7381
      %v7506 = vpack.c.b16 %v7386, %v7382
      %v7507 = vpack.c.b16 %v7387, %v7383
      %v7508 = vpack.c.b16 %v7388, %v7384
      %v7509 = vpack.c.b16 %v7393, %v7389
      %v7510 = vpack.c.b16 %v7394, %v7390
      %v7511 = vpack.c.b16 %v7395, %v7391
      %v7512 = vpack.c.b16 %v7396, %v7392
      %v7513 = vpack.c.b16 %v7401, %v7397
      %v7514 = vpack.c.b16 %v7402, %v7398
      %v7515 = vpack.c.b16 %v7403, %v7399
      %v7516 = vpack.c.b16 %v7404, %v7400
      %v7517 = vpack.c.b16 %v7409, %v7405
      %v7518 = vpack.c.b16 %v7410, %v7406
      %v7519 = vpack.c.b16 %v7411, %v7407
      %v7520 = vpack.c.b16 %v7412, %v7408
      %v7521 = vpack.c.b16 %v7417, %v7413
      %v7522 = vpack.c.b16 %v7418, %v7414
      %v7523 = vpack.c.b16 %v7419, %v7415
      %v7524 = vpack.c.b16 %v7420, %v7416
      %v7525 = vpack.c.b16 %v7425, %v7421
      %v7526 = vpack.c.b16 %v7426, %v7422
      %v7527 = vpack.c.b16 %v7427, %v7423
      %v7528 = vpack.c.b16 %v7428, %v7424
      %v7529 = vpack.c.b16 %v7433, %v7429
      %v7530 = vpack.c.b16 %v7434, %v7430
      %v7531 = vpack.c.b16 %v7435, %v7431
      %v7532 = vpack.c.b16 %v7436, %v7432
      %v7533 = vpack.c.b16 %v7441, %v7437
      %v7534 = vpack.c.b16 %v7442, %v7438
      %v7535 = vpack.c.b16 %v7443, %v7439
      %v7536 = vpack.c.b16 %v7444, %v7440
      %v7537 = vpack.c.b16 %v7449, %v7445
      %v7538 = vpack.c.b16 %v7450, %v7446
      %v7539 = vpack.c.b16 %v7451, %v7447
      %v7540 = vpack.c.b16 %v7452, %v7448
      %v7541 = vpack.c.b16 %v7457, %v7453
      %v7542 = vpack.c.b16 %v7458, %v7454
      %v7543 = vpack.c.b16 %v7459, %v7455
      %v7544 = vpack.c.b16 %v7460, %v7456
      %v7545 = vpack.c.b16 %v7465, %v7461
      %v7546 = vpack.c.b16 %v7466, %v7462
      %v7547 = vpack.c.b16 %v7467, %v7463
      %v7548 = vpack.c.b16 %v7468, %v7464
      %v7549 = vpack.c.b16 %v7473, %v7469
      %v7550 = vpack.c.b16 %v7474, %v7470
      %v7551 = vpack.c.b16 %v7475, %v7471
      %v7552 = vpack.c.b16 %v7476, %v7472
      %v7553 = vpack.c.b16 %v7481, %v7477
      %v7554 = vpack.c.b16 %v7482, %v7478
      %v7555 = vpack.c.b16 %v7483, %v7479
      %v7556 = vpack.c.b16 %v7484, %v7480
      %v7557 = vpack.c.b16 %v7489, %v7485
      %v7558 = vpack.c.b16 %v7490, %v7486
      %v7559 = vpack.c.b16 %v7491, %v7487
      %v7560 = vpack.c.b16 %v7492, %v7488
      %v7561 = vpack.c.b16 %v7497, %v7493
      %v7562 = vpack.c.b16 %v7498, %v7494
      %v7563 = vpack.c.b16 %v7499, %v7495
      %v7564 = vpack.c.b16 %v7500, %v7496
      %7629 = vmatprep.subr.bf16.mxu0 %v7502
      %7630 = vmatpush1.bf16.msra.mxu0 %v7501
      %7631 = vmatprep.subr.bf16.mxu0 %v7506
      %7632 = vmatpush1.bf16.msra.mxu0 %v7505
      %7633 = vmatprep.subr.bf16.mxu0 %v7510
      %7634 = vmatpush1.bf16.msra.mxu0 %v7509
      %7635 = vmatprep.subr.bf16.mxu0 %v7514
      %7636 = vmatpush1.bf16.msra.mxu0 %v7513
      %7637 = vmatprep.subr.bf16.mxu0 %v7518
      %7638 = vmatpush1.bf16.msra.mxu0 %v7517
      %7639 = vmatprep.subr.bf16.mxu0 %v7522
      %7640 = vmatpush1.bf16.msra.mxu0 %v7521
      %7641 = vmatprep.subr.bf16.mxu0 %v7526
      %7642 = vmatpush1.bf16.msra.mxu0 %v7525
      %7643 = vmatprep.subr.bf16.mxu0 %v7530
      %7644 = vmatpush1.bf16.msra.mxu0 %v7529
      %7645 = vmatprep.subr.bf16.mxu0 %v7534
      %7646 = vmatpush1.bf16.msra.mxu0 %v7533
      %7647 = vmatprep.subr.bf16.mxu0 %v7538
      %7648 = vmatpush1.bf16.msra.mxu0 %v7537
      %7649 = vmatprep.subr.bf16.mxu0 %v7542
      %7650 = vmatpush1.bf16.msra.mxu0 %v7541
      %7651 = vmatprep.subr.bf16.mxu0 %v7546
      %7652 = vmatpush1.bf16.msra.mxu0 %v7545
      %7653 = vmatprep.subr.bf16.mxu0 %v7550
      %7654 = vmatpush1.bf16.msra.mxu0 %v7549
      %7655 = vmatprep.subr.bf16.mxu0 %v7554
      %7656 = vmatpush1.bf16.msra.mxu0 %v7553
      %7657 = vmatprep.subr.bf16.mxu0 %v7558
      %7658 = vmatpush1.bf16.msra.mxu0 %v7557
      %7659 = vmatprep.subr.bf16.mxu0 %v7562
      %7660 = vmatpush1.bf16.msra.mxu0 %v7561
      %7661 = vmatprep.mubr.bf16.mxu0 %v7306
      %7662 = vmatmul.mubr.bf16.gmra.mrb[0].mxu0 %v7305
      %v7663 = vpop.f32.mrb[0].mxu0
      %v7664 = vadd.f32 0.0, %v7663
      %v7665 = vpop.f32.mrb[0].mxu0
      %v7666 = vadd.f32 0.0, %v7665
      %v7667 = vpop.f32.mrb[0].mxu0
      %v7668 = vadd.f32 0.0, %v7667
      %v7669 = vpop.f32.mrb[0].mxu0
      %v7670 = vadd.f32 0.0, %v7669
      %7671 = vdwg.mxu0
      %7672 = vmatprep.subr.bf16.mxu0 %v7504
      %7673 = vmatpush1.bf16.msra.mxu0 %v7503
      %7674 = vmatprep.subr.bf16.mxu0 %v7508
      %7675 = vmatpush1.bf16.msra.mxu0 %v7507
      %7676 = vmatprep.subr.bf16.mxu0 %v7512
      %7677 = vmatpush1.bf16.msra.mxu0 %v7511
      %7678 = vmatprep.subr.bf16.mxu0 %v7516
      %7679 = vmatpush1.bf16.msra.mxu0 %v7515
      %7680 = vmatprep.subr.bf16.mxu0 %v7520
      %7681 = vmatpush1.bf16.msra.mxu0 %v7519
      %7682 = vmatprep.subr.bf16.mxu0 %v7524
      %7683 = vmatpush1.bf16.msra.mxu0 %v7523
      %7684 = vmatprep.subr.bf16.mxu0 %v7528
      %7685 = vmatpush1.bf16.msra.mxu0 %v7527
      %7686 = vmatprep.subr.bf16.mxu0 %v7532
      %7687 = vmatpush1.bf16.msra.mxu0 %v7531
      %7688 = vmatprep.subr.bf16.mxu0 %v7536
      %7689 = vmatpush1.bf16.msra.mxu0 %v7535
      %7690 = vmatprep.subr.bf16.mxu0 %v7540
      %7691 = vmatpush1.bf16.msra.mxu0 %v7539
      %7692 = vmatprep.subr.bf16.mxu0 %v7544
      %7693 = vmatpush1.bf16.msra.mxu0 %v7543
      %7694 = vmatprep.subr.bf16.mxu0 %v7548
      %7695 = vmatpush1.bf16.msra.mxu0 %v7547
      %7696 = vmatprep.subr.bf16.mxu0 %v7552
      %7697 = vmatpush1.bf16.msra.mxu0 %v7551
      %7698 = vmatprep.subr.bf16.mxu0 %v7556
      %7699 = vmatpush1.bf16.msra.mxu0 %v7555
      %7700 = vmatprep.subr.bf16.mxu0 %v7560
      %7701 = vmatpush1.bf16.msra.mxu0 %v7559
      %7702 = vmatprep.subr.bf16.mxu0 %v7564
      %7703 = vmatpush1.bf16.msra.mxu0 %v7563
      %7704 = vmatprep.mubr.bf16.mxu0 %v7306
      %7705 = vmatmul.mubr.bf16.gmra.mrb[0].mxu0 %v7305
      %v7706 = vpop.f32.mrb[0].mxu0
      %v7707 = vadd.f32 0.0, %v7706
      %v7708 = vpop.f32.mrb[0].mxu0
      %v7709 = vadd.f32 0.0, %v7708
      %v7710 = vpop.f32.mrb[0].mxu0
      %v7711 = vadd.f32 0.0, %v7710
      %v7712 = vpop.f32.mrb[0].mxu0
      %v7713 = vadd.f32 0.0, %v7712
      %7714 = vdwg.mxu0
      %v7715 = vadd.f32 %v7224, %v7664
      %v7716 = vadd.f32 %v7225, %v7666
      %v7717 = vadd.f32 %v7226, %v7707
      %v7718 = vadd.f32 %v7227, %v7709
      %v7719 = vadd.f32 %v7228, %v7668
      %v7720 = vadd.f32 %v7229, %v7670
      %v7721 = vadd.f32 %v7230, %v7711
      %v7722 = vadd.f32 %v7231, %v7713
      %v7723 = vld [vmem:[#allocation4 + $0x10] sm:$0xf8]
      %v7724 = vld [vmem:[#allocation4 + $0x18] sm:$0xf8]
      %v7725 = vld [vmem:[#allocation4 + $0x20] sm:$0xff]
      %v7726 = vld [vmem:[#allocation4 + $0x28] sm:$0xff]
      %v7727 = vpack.c.bf16 %v7725, %v7723
      %v7728 = vpack.c.bf16 %v7726, %v7724
      %s7729 = scalar_lea.vmem %s14, 3584
      %v7730 = vld [vmem:[%s7729] sm:$0xff]
      %v7731 = vld [vmem:[%s7729 + $0x8] sm:$0xff]
      %v7732 = vld [vmem:[%s7729 + $0x10] sm:$0xff]
      %v7733 = vld [vmem:[%s7729 + $0x18] sm:$0xff]
      %v7734 = vld [vmem:[%s7729 + $0x20] sm:$0xff]
      %v7735 = vld [vmem:[%s7729 + $0x28] sm:$0xff]
      %v7736 = vld [vmem:[%s7729 + $0x30] sm:$0xff]
      %v7737 = vld [vmem:[%s7729 + $0x38] sm:$0xff]
      %v7738 = vld [vmem:[%s7729 + $0x40] sm:$0xff]
      %v7739 = vld [vmem:[%s7729 + $0x48] sm:$0xff]
      %v7740 = vld [vmem:[%s7729 + $0x50] sm:$0xff]
      %v7741 = vld [vmem:[%s7729 + $0x58] sm:$0xff]
      %v7742 = vld [vmem:[%s7729 + $0x60] sm:$0xff]
      %v7743 = vld [vmem:[%s7729 + $0x68] sm:$0xff]
      %v7744 = vld [vmem:[%s7729 + $0x70] sm:$0xff]
      %v7745 = vld [vmem:[%s7729 + $0x78] sm:$0xff]
      %v7746 = vld [vmem:[%s7729 + $0x80] sm:$0xff]
      %v7747 = vld [vmem:[%s7729 + $0x88] sm:$0xff]
      %v7748 = vld [vmem:[%s7729 + $0x90] sm:$0xff]
      %v7749 = vld [vmem:[%s7729 + $0x98] sm:$0xff]
      %v7750 = vld [vmem:[%s7729 + $0xa0] sm:$0xff]
      %v7751 = vld [vmem:[%s7729 + $0xa8] sm:$0xff]
      %v7752 = vld [vmem:[%s7729 + $0xb0] sm:$0xff]
      %v7753 = vld [vmem:[%s7729 + $0xb8] sm:$0xff]
      %v7754 = vld [vmem:[%s7729 + $0xc0] sm:$0xff]
      %v7755 = vld [vmem:[%s7729 + $0xc8] sm:$0xff]
      %v7756 = vld [vmem:[%s7729 + $0xd0] sm:$0xff]
      %v7757 = vld [vmem:[%s7729 + $0xd8] sm:$0xff]
      %v7758 = vld [vmem:[%s7729 + $0xe0] sm:$0xff]
      %v7759 = vld [vmem:[%s7729 + $0xe8] sm:$0xff]
      %v7760 = vld [vmem:[%s7729 + $0xf0] sm:$0xff]
      %v7761 = vld [vmem:[%s7729 + $0xf8] sm:$0xff]
      %v7762 = vld [vmem:[%s7729 + $0x100] sm:$0xff]
      %v7763 = vld [vmem:[%s7729 + $0x108] sm:$0xff]
      %v7764 = vld [vmem:[%s7729 + $0x110] sm:$0xff]
      %v7765 = vld [vmem:[%s7729 + $0x118] sm:$0xff]
      %v7766 = vld [vmem:[%s7729 + $0x120] sm:$0xff]
      %v7767 = vld [vmem:[%s7729 + $0x128] sm:$0xff]
      %v7768 = vld [vmem:[%s7729 + $0x130] sm:$0xff]
      %v7769 = vld [vmem:[%s7729 + $0x138] sm:$0xff]
      %v7770 = vld [vmem:[%s7729 + $0x140] sm:$0xff]
      %v7771 = vld [vmem:[%s7729 + $0x148] sm:$0xff]
      %v7772 = vld [vmem:[%s7729 + $0x150] sm:$0xff]
      %v7773 = vld [vmem:[%s7729 + $0x158] sm:$0xff]
      %v7774 = vld [vmem:[%s7729 + $0x160] sm:$0xff]
      %v7775 = vld [vmem:[%s7729 + $0x168] sm:$0xff]
      %v7776 = vld [vmem:[%s7729 + $0x170] sm:$0xff]
      %v7777 = vld [vmem:[%s7729 + $0x178] sm:$0xff]
      %v7778 = vld [vmem:[%s7729 + $0x180] sm:$0xff]
      %v7779 = vld [vmem:[%s7729 + $0x188] sm:$0xff]
      %v7780 = vld [vmem:[%s7729 + $0x190] sm:$0xff]
      %v7781 = vld [vmem:[%s7729 + $0x198] sm:$0xff]
      %v7782 = vld [vmem:[%s7729 + $0x1a0] sm:$0xff]
      %v7783 = vld [vmem:[%s7729 + $0x1a8] sm:$0xff]
      %v7784 = vld [vmem:[%s7729 + $0x1b0] sm:$0xff]
      %v7785 = vld [vmem:[%s7729 + $0x1b8] sm:$0xff]
      %v7786 = vld [vmem:[%s7729 + $0x1c0] sm:$0xff]
      %v7787 = vld [vmem:[%s7729 + $0x1c8] sm:$0xff]
      %v7788 = vld [vmem:[%s7729 + $0x1d0] sm:$0xff]
      %v7789 = vld [vmem:[%s7729 + $0x1d8] sm:$0xff]
      %v7790 = vld [vmem:[%s7729 + $0x1e0] sm:$0xff]
      %v7791 = vld [vmem:[%s7729 + $0x1e8] sm:$0xff]
      %v7792 = vld [vmem:[%s7729 + $0x1f0] sm:$0xff]
      %v7793 = vld [vmem:[%s7729 + $0x1f8] sm:$0xff]
      %v7795 = vshrl.u32 %v7727, 16
      %v7797 = vrot.slane %v7795, 1
      %v7798 = vshll.u32 %v7727, 16
      %v7800 = vrot.slane %v7798, 2
      %v7801 = vor.u32 %v7797, %v7800
      %v7803 = vshrl.u32 %v7728, 16
      %v7805 = vrot.slane %v7803, 1
      %v7806 = vshll.u32 %v7728, 16
      %v7808 = vrot.slane %v7806, 2
      %v7809 = vor.u32 %v7805, %v7808
      %v7876 = vunpack.c.l.b16 %v7730
      %v7877 = vunpack.c.h.b16 %v7730
      %v7878 = vunpack.c.l.b16 %v7731
      %v7879 = vunpack.c.h.b16 %v7731
      %v7880 = vunpack.c.l.b16 %v7732
      %v7881 = vunpack.c.h.b16 %v7732
      %v7882 = vunpack.c.l.b16 %v7733
      %v7883 = vunpack.c.h.b16 %v7733
      %v7884 = vunpack.c.l.b16 %v7734
      %v7885 = vunpack.c.h.b16 %v7734
      %v7886 = vunpack.c.l.b16 %v7735
      %v7887 = vunpack.c.h.b16 %v7735
      %v7888 = vunpack.c.l.b16 %v7736
      %v7889 = vunpack.c.h.b16 %v7736
      %v7890 = vunpack.c.l.b16 %v7737
      %v7891 = vunpack.c.h.b16 %v7737
      %v7892 = vunpack.c.l.b16 %v7738
      %v7893 = vunpack.c.h.b16 %v7738
      %v7894 = vunpack.c.l.b16 %v7739
      %v7895 = vunpack.c.h.b16 %v7739
      %v7896 = vunpack.c.l.b16 %v7740
      %v7897 = vunpack.c.h.b16 %v7740
      %v7898 = vunpack.c.l.b16 %v7741
      %v7899 = vunpack.c.h.b16 %v7741
      %v7900 = vunpack.c.l.b16 %v7742
      %v7901 = vunpack.c.h.b16 %v7742
      %v7902 = vunpack.c.l.b16 %v7743
      %v7903 = vunpack.c.h.b16 %v7743
      %v7904 = vunpack.c.l.b16 %v7744
      %v7905 = vunpack.c.h.b16 %v7744
      %v7906 = vunpack.c.l.b16 %v7745
      %v7907 = vunpack.c.h.b16 %v7745
      %v7908 = vunpack.c.l.b16 %v7746
      %v7909 = vunpack.c.h.b16 %v7746
      %v7910 = vunpack.c.l.b16 %v7747
      %v7911 = vunpack.c.h.b16 %v7747
      %v7912 = vunpack.c.l.b16 %v7748
      %v7913 = vunpack.c.h.b16 %v7748
      %v7914 = vunpack.c.l.b16 %v7749
      %v7915 = vunpack.c.h.b16 %v7749
      %v7916 = vunpack.c.l.b16 %v7750
      %v7917 = vunpack.c.h.b16 %v7750
      %v7918 = vunpack.c.l.b16 %v7751
      %v7919 = vunpack.c.h.b16 %v7751
      %v7920 = vunpack.c.l.b16 %v7752
      %v7921 = vunpack.c.h.b16 %v7752
      %v7922 = vunpack.c.l.b16 %v7753
      %v7923 = vunpack.c.h.b16 %v7753
      %v7924 = vunpack.c.l.b16 %v7754
      %v7925 = vunpack.c.h.b16 %v7754
      %v7926 = vunpack.c.l.b16 %v7755
      %v7927 = vunpack.c.h.b16 %v7755
      %v7928 = vunpack.c.l.b16 %v7756
      %v7929 = vunpack.c.h.b16 %v7756
      %v7930 = vunpack.c.l.b16 %v7757
      %v7931 = vunpack.c.h.b16 %v7757
      %v7932 = vunpack.c.l.b16 %v7758
      %v7933 = vunpack.c.h.b16 %v7758
      %v7934 = vunpack.c.l.b16 %v7759
      %v7935 = vunpack.c.h.b16 %v7759
      %v7936 = vunpack.c.l.b16 %v7760
      %v7937 = vunpack.c.h.b16 %v7760
      %v7938 = vunpack.c.l.b16 %v7761
      %v7939 = vunpack.c.h.b16 %v7761
      %v7940 = vunpack.c.l.b16 %v7762
      %v7941 = vunpack.c.h.b16 %v7762
      %v7942 = vunpack.c.l.b16 %v7763
      %v7943 = vunpack.c.h.b16 %v7763
      %v7944 = vunpack.c.l.b16 %v7764
      %v7945 = vunpack.c.h.b16 %v7764
      %v7946 = vunpack.c.l.b16 %v7765
      %v7947 = vunpack.c.h.b16 %v7765
      %v7948 = vunpack.c.l.b16 %v7766
      %v7949 = vunpack.c.h.b16 %v7766
      %v7950 = vunpack.c.l.b16 %v7767
      %v7951 = vunpack.c.h.b16 %v7767
      %v7952 = vunpack.c.l.b16 %v7768
      %v7953 = vunpack.c.h.b16 %v7768
      %v7954 = vunpack.c.l.b16 %v7769
      %v7955 = vunpack.c.h.b16 %v7769
      %v7956 = vunpack.c.l.b16 %v7770
      %v7957 = vunpack.c.h.b16 %v7770
      %v7958 = vunpack.c.l.b16 %v7771
      %v7959 = vunpack.c.h.b16 %v7771
      %v7960 = vunpack.c.l.b16 %v7772
      %v7961 = vunpack.c.h.b16 %v7772
      %v7962 = vunpack.c.l.b16 %v7773
      %v7963 = vunpack.c.h.b16 %v7773
      %v7964 = vunpack.c.l.b16 %v7774
      %v7965 = vunpack.c.h.b16 %v7774
      %v7966 = vunpack.c.l.b16 %v7775
      %v7967 = vunpack.c.h.b16 %v7775
      %v7968 = vunpack.c.l.b16 %v7776
      %v7969 = vunpack.c.h.b16 %v7776
      %v7970 = vunpack.c.l.b16 %v7777
      %v7971 = vunpack.c.h.b16 %v7777
      %v7972 = vunpack.c.l.b16 %v7778
      %v7973 = vunpack.c.h.b16 %v7778
      %v7974 = vunpack.c.l.b16 %v7779
      %v7975 = vunpack.c.h.b16 %v7779
      %v7976 = vunpack.c.l.b16 %v7780
      %v7977 = vunpack.c.h.b16 %v7780
      %v7978 = vunpack.c.l.b16 %v7781
      %v7979 = vunpack.c.h.b16 %v7781
      %v7980 = vunpack.c.l.b16 %v7782
      %v7981 = vunpack.c.h.b16 %v7782
      %v7982 = vunpack.c.l.b16 %v7783
      %v7983 = vunpack.c.h.b16 %v7783
      %v7984 = vunpack.c.l.b16 %v7784
      %v7985 = vunpack.c.h.b16 %v7784
      %v7986 = vunpack.c.l.b16 %v7785
      %v7987 = vunpack.c.h.b16 %v7785
      %v7988 = vunpack.c.l.b16 %v7786
      %v7989 = vunpack.c.h.b16 %v7786
      %v7990 = vunpack.c.l.b16 %v7787
      %v7991 = vunpack.c.h.b16 %v7787
      %v7992 = vunpack.c.l.b16 %v7788
      %v7993 = vunpack.c.h.b16 %v7788
      %v7994 = vunpack.c.l.b16 %v7789
      %v7995 = vunpack.c.h.b16 %v7789
      %v7996 = vunpack.c.l.b16 %v7790
      %v7997 = vunpack.c.h.b16 %v7790
      %v7998 = vunpack.c.l.b16 %v7791
      %v7999 = vunpack.c.h.b16 %v7791
      %v8000 = vunpack.c.l.b16 %v7792
      %v8001 = vunpack.c.h.b16 %v7792
      %v8002 = vunpack.c.l.b16 %v7793
      %v8003 = vunpack.c.h.b16 %v7793
      %v8004 = vpack.c.b16 %v7880, %v7876
      %v8005 = vpack.c.b16 %v7881, %v7877
      %v8006 = vpack.c.b16 %v7882, %v7878
      %v8007 = vpack.c.b16 %v7883, %v7879
      %v8008 = vpack.c.b16 %v7888, %v7884
      %v8009 = vpack.c.b16 %v7889, %v7885
      %v8010 = vpack.c.b16 %v7890, %v7886
      %v8011 = vpack.c.b16 %v7891, %v7887
      %v8012 = vpack.c.b16 %v7896, %v7892
      %v8013 = vpack.c.b16 %v7897, %v7893
      %v8014 = vpack.c.b16 %v7898, %v7894
      %v8015 = vpack.c.b16 %v7899, %v7895
      %v8016 = vpack.c.b16 %v7904, %v7900
      %v8017 = vpack.c.b16 %v7905, %v7901
      %v8018 = vpack.c.b16 %v7906, %v7902
      %v8019 = vpack.c.b16 %v7907, %v7903
      %v8020 = vpack.c.b16 %v7912, %v7908
      %v8021 = vpack.c.b16 %v7913, %v7909
      %v8022 = vpack.c.b16 %v7914, %v7910
      %v8023 = vpack.c.b16 %v7915, %v7911
      %v8024 = vpack.c.b16 %v7920, %v7916
      %v8025 = vpack.c.b16 %v7921, %v7917
      %v8026 = vpack.c.b16 %v7922, %v7918
      %v8027 = vpack.c.b16 %v7923, %v7919
      %v8028 = vpack.c.b16 %v7928, %v7924
      %v8029 = vpack.c.b16 %v7929, %v7925
      %v8030 = vpack.c.b16 %v7930, %v7926
      %v8031 = vpack.c.b16 %v7931, %v7927
      %v8032 = vpack.c.b16 %v7936, %v7932
      %v8033 = vpack.c.b16 %v7937, %v7933
      %v8034 = vpack.c.b16 %v7938, %v7934
      %v8035 = vpack.c.b16 %v7939, %v7935
      %v8036 = vpack.c.b16 %v7944, %v7940
      %v8037 = vpack.c.b16 %v7945, %v7941
      %v8038 = vpack.c.b16 %v7946, %v7942
      %v8039 = vpack.c.b16 %v7947, %v7943
      %v8040 = vpack.c.b16 %v7952, %v7948
      %v8041 = vpack.c.b16 %v7953, %v7949
      %v8042 = vpack.c.b16 %v7954, %v7950
      %v8043 = vpack.c.b16 %v7955, %v7951
      %v8044 = vpack.c.b16 %v7960, %v7956
      %v8045 = vpack.c.b16 %v7961, %v7957
      %v8046 = vpack.c.b16 %v7962, %v7958
      %v8047 = vpack.c.b16 %v7963, %v7959
      %v8048 = vpack.c.b16 %v7968, %v7964
      %v8049 = vpack.c.b16 %v7969, %v7965
      %v8050 = vpack.c.b16 %v7970, %v7966
      %v8051 = vpack.c.b16 %v7971, %v7967
      %v8052 = vpack.c.b16 %v7976, %v7972
      %v8053 = vpack.c.b16 %v7977, %v7973
      %v8054 = vpack.c.b16 %v7978, %v7974
      %v8055 = vpack.c.b16 %v7979, %v7975
      %v8056 = vpack.c.b16 %v7984, %v7980
      %v8057 = vpack.c.b16 %v7985, %v7981
      %v8058 = vpack.c.b16 %v7986, %v7982
      %v8059 = vpack.c.b16 %v7987, %v7983
      %v8060 = vpack.c.b16 %v7992, %v7988
      %v8061 = vpack.c.b16 %v7993, %v7989
      %v8062 = vpack.c.b16 %v7994, %v7990
      %v8063 = vpack.c.b16 %v7995, %v7991
      %v8064 = vpack.c.b16 %v8000, %v7996
      %v8065 = vpack.c.b16 %v8001, %v7997
      %v8066 = vpack.c.b16 %v8002, %v7998
      %v8067 = vpack.c.b16 %v8003, %v7999
      %8132 = vmatprep.subr.bf16.mxu0 %v8005
      %8133 = vmatpush1.bf16.msra.mxu0 %v8004
      %8134 = vmatprep.subr.bf16.mxu0 %v8009
      %8135 = vmatpush1.bf16.msra.mxu0 %v8008
      %8136 = vmatprep.subr.bf16.mxu0 %v8013
      %8137 = vmatpush1.bf16.msra.mxu0 %v8012
      %8138 = vmatprep.subr.bf16.mxu0 %v8017
      %8139 = vmatpush1.bf16.msra.mxu0 %v8016
      %8140 = vmatprep.subr.bf16.mxu0 %v8021
      %8141 = vmatpush1.bf16.msra.mxu0 %v8020
      %8142 = vmatprep.subr.bf16.mxu0 %v8025
      %8143 = vmatpush1.bf16.msra.mxu0 %v8024
      %8144 = vmatprep.subr.bf16.mxu0 %v8029
      %8145 = vmatpush1.bf16.msra.mxu0 %v8028
      %8146 = vmatprep.subr.bf16.mxu0 %v8033
      %8147 = vmatpush1.bf16.msra.mxu0 %v8032
      %8148 = vmatprep.subr.bf16.mxu0 %v8037
      %8149 = vmatpush1.bf16.msra.mxu0 %v8036
      %8150 = vmatprep.subr.bf16.mxu0 %v8041
      %8151 = vmatpush1.bf16.msra.mxu0 %v8040
      %8152 = vmatprep.subr.bf16.mxu0 %v8045
      %8153 = vmatpush1.bf16.msra.mxu0 %v8044
      %8154 = vmatprep.subr.bf16.mxu0 %v8049
      %8155 = vmatpush1.bf16.msra.mxu0 %v8048
      %8156 = vmatprep.subr.bf16.mxu0 %v8053
      %8157 = vmatpush1.bf16.msra.mxu0 %v8052
      %8158 = vmatprep.subr.bf16.mxu0 %v8057
      %8159 = vmatpush1.bf16.msra.mxu0 %v8056
      %8160 = vmatprep.subr.bf16.mxu0 %v8061
      %8161 = vmatpush1.bf16.msra.mxu0 %v8060
      %8162 = vmatprep.subr.bf16.mxu0 %v8065
      %8163 = vmatpush1.bf16.msra.mxu0 %v8064
      %8164 = vmatprep.mubr.bf16.mxu0 %v7809
      %8165 = vmatmul.mubr.bf16.gmra.mrb[0].mxu0 %v7801
      %v8166 = vpop.f32.mrb[0].mxu0
      %v8167 = vadd.f32 0.0, %v8166
      %v8168 = vpop.f32.mrb[0].mxu0
      %v8169 = vadd.f32 0.0, %v8168
      %v8170 = vpop.f32.mrb[0].mxu0
      %v8171 = vadd.f32 0.0, %v8170
      %v8172 = vpop.f32.mrb[0].mxu0
      %v8173 = vadd.f32 0.0, %v8172
      %8174 = vdwg.mxu0
      %8175 = vmatprep.subr.bf16.mxu0 %v8007
      %8176 = vmatpush1.bf16.msra.mxu0 %v8006
      %8177 = vmatprep.subr.bf16.mxu0 %v8011
      %8178 = vmatpush1.bf16.msra.mxu0 %v8010
      %8179 = vmatprep.subr.bf16.mxu0 %v8015
      %8180 = vmatpush1.bf16.msra.mxu0 %v8014
      %8181 = vmatprep.subr.bf16.mxu0 %v8019
      %8182 = vmatpush1.bf16.msra.mxu0 %v8018
      %8183 = vmatprep.subr.bf16.mxu0 %v8023
      %8184 = vmatpush1.bf16.msra.mxu0 %v8022
      %8185 = vmatprep.subr.bf16.mxu0 %v8027
      %8186 = vmatpush1.bf16.msra.mxu0 %v8026
      %8187 = vmatprep.subr.bf16.mxu0 %v8031
      %8188 = vmatpush1.bf16.msra.mxu0 %v8030
      %8189 = vmatprep.subr.bf16.mxu0 %v8035
      %8190 = vmatpush1.bf16.msra.mxu0 %v8034
      %8191 = vmatprep.subr.bf16.mxu0 %v8039
      %8192 = vmatpush1.bf16.msra.mxu0 %v8038
      %8193 = vmatprep.subr.bf16.mxu0 %v8043
      %8194 = vmatpush1.bf16.msra.mxu0 %v8042
      %8195 = vmatprep.subr.bf16.mxu0 %v8047
      %8196 = vmatpush1.bf16.msra.mxu0 %v8046
      %8197 = vmatprep.subr.bf16.mxu0 %v8051
      %8198 = vmatpush1.bf16.msra.mxu0 %v8050
      %8199 = vmatprep.subr.bf16.mxu0 %v8055
      %8200 = vmatpush1.bf16.msra.mxu0 %v8054
      %8201 = vmatprep.subr.bf16.mxu0 %v8059
      %8202 = vmatpush1.bf16.msra.mxu0 %v8058
      %8203 = vmatprep.subr.bf16.mxu0 %v8063
      %8204 = vmatpush1.bf16.msra.mxu0 %v8062
      %8205 = vmatprep.subr.bf16.mxu0 %v8067
      %8206 = vmatpush1.bf16.msra.mxu0 %v8066
      %8207 = vmatprep.mubr.bf16.mxu0 %v7809
      %8208 = vmatmul.mubr.bf16.gmra.mrb[0].mxu0 %v7801
      %v8209 = vpop.f32.mrb[0].mxu0
      %v8210 = vadd.f32 0.0, %v8209
      %v8211 = vpop.f32.mrb[0].mxu0
      %v8212 = vadd.f32 0.0, %v8211
      %v8213 = vpop.f32.mrb[0].mxu0
      %v8214 = vadd.f32 0.0, %v8213
      %v8215 = vpop.f32.mrb[0].mxu0
      %v8216 = vadd.f32 0.0, %v8215
      %8217 = vdwg.mxu0
      %v8218 = vadd.f32 %v7715, %v8167
      %v8219 = vadd.f32 %v7716, %v8169
      %v8220 = vadd.f32 %v7717, %v8210
      %v8221 = vadd.f32 %v7718, %v8212
      %v8222 = vadd.f32 %v7719, %v8171
      %v8223 = vadd.f32 %v7720, %v8173
      %v8224 = vadd.f32 %v7721, %v8214
      %v8225 = vadd.f32 %v7722, %v8216
      %v8226 = vld [vmem:[#allocation4 + $0x10] sm:$0xf0]
      %v8227 = vld [vmem:[#allocation4 + $0x18] sm:$0xf0]
      %v8228 = vld [vmem:[#allocation4 + $0x20] sm:$0xff]
      %v8229 = vld [vmem:[#allocation4 + $0x28] sm:$0xff]
      %v8230 = vld [vmem:[#allocation4 + $0x30] sm:$0x1]
      %v8231 = vld [vmem:[#allocation4 + $0x38] sm:$0x1]
      %v8232 = vpack.c.bf16 %v8228, %v8226
      %v8233 = vpack.c.bf16 %v8229, %v8227
      %v8234 = vpack.c.bf16 %v8230, %v8230
      %v8235 = vpack.c.bf16 %v8231, %v8231
      %s8236 = scalar_lea.vmem %s14, 4096
      %v8237 = vld [vmem:[%s8236] sm:$0xff]
      %v8238 = vld [vmem:[%s8236 + $0x8] sm:$0xff]
      %v8239 = vld [vmem:[%s8236 + $0x10] sm:$0xff]
      %v8240 = vld [vmem:[%s8236 + $0x18] sm:$0xff]
      %v8241 = vld [vmem:[%s8236 + $0x20] sm:$0xff]
      %v8242 = vld [vmem:[%s8236 + $0x28] sm:$0xff]
      %v8243 = vld [vmem:[%s8236 + $0x30] sm:$0xff]
      %v8244 = vld [vmem:[%s8236 + $0x38] sm:$0xff]
      %v8245 = vld [vmem:[%s8236 + $0x40] sm:$0xff]
      %v8246 = vld [vmem:[%s8236 + $0x48] sm:$0xff]
      %v8247 = vld [vmem:[%s8236 + $0x50] sm:$0xff]
      %v8248 = vld [vmem:[%s8236 + $0x58] sm:$0xff]
      %v8249 = vld [vmem:[%s8236 + $0x60] sm:$0xff]
      %v8250 = vld [vmem:[%s8236 + $0x68] sm:$0xff]
      %v8251 = vld [vmem:[%s8236 + $0x70] sm:$0xff]
      %v8252 = vld [vmem:[%s8236 + $0x78] sm:$0xff]
      %v8253 = vld [vmem:[%s8236 + $0x80] sm:$0xff]
      %v8254 = vld [vmem:[%s8236 + $0x88] sm:$0xff]
      %v8255 = vld [vmem:[%s8236 + $0x90] sm:$0xff]
      %v8256 = vld [vmem:[%s8236 + $0x98] sm:$0xff]
      %v8257 = vld [vmem:[%s8236 + $0xa0] sm:$0xff]
      %v8258 = vld [vmem:[%s8236 + $0xa8] sm:$0xff]
      %v8259 = vld [vmem:[%s8236 + $0xb0] sm:$0xff]
      %v8260 = vld [vmem:[%s8236 + $0xb8] sm:$0xff]
      %v8261 = vld [vmem:[%s8236 + $0xc0] sm:$0xff]
      %v8262 = vld [vmem:[%s8236 + $0xc8] sm:$0xff]
      %v8263 = vld [vmem:[%s8236 + $0xd0] sm:$0xff]
      %v8264 = vld [vmem:[%s8236 + $0xd8] sm:$0xff]
      %v8265 = vld [vmem:[%s8236 + $0xe0] sm:$0xff]
      %v8266 = vld [vmem:[%s8236 + $0xe8] sm:$0xff]
      %v8267 = vld [vmem:[%s8236 + $0xf0] sm:$0xff]
      %v8268 = vld [vmem:[%s8236 + $0xf8] sm:$0xff]
      %v8269 = vld [vmem:[%s8236 + $0x100] sm:$0xff]
      %v8270 = vld [vmem:[%s8236 + $0x108] sm:$0xff]
      %v8271 = vld [vmem:[%s8236 + $0x110] sm:$0xff]
      %v8272 = vld [vmem:[%s8236 + $0x118] sm:$0xff]
      %v8273 = vld [vmem:[%s8236 + $0x120] sm:$0xff]
      %v8274 = vld [vmem:[%s8236 + $0x128] sm:$0xff]
      %v8275 = vld [vmem:[%s8236 + $0x130] sm:$0xff]
      %v8276 = vld [vmem:[%s8236 + $0x138] sm:$0xff]
      %v8277 = vld [vmem:[%s8236 + $0x140] sm:$0xff]
      %v8278 = vld [vmem:[%s8236 + $0x148] sm:$0xff]
      %v8279 = vld [vmem:[%s8236 + $0x150] sm:$0xff]
      %v8280 = vld [vmem:[%s8236 + $0x158] sm:$0xff]
      %v8281 = vld [vmem:[%s8236 + $0x160] sm:$0xff]
      %v8282 = vld [vmem:[%s8236 + $0x168] sm:$0xff]
      %v8283 = vld [vmem:[%s8236 + $0x170] sm:$0xff]
      %v8284 = vld [vmem:[%s8236 + $0x178] sm:$0xff]
      %v8285 = vld [vmem:[%s8236 + $0x180] sm:$0xff]
      %v8286 = vld [vmem:[%s8236 + $0x188] sm:$0xff]
      %v8287 = vld [vmem:[%s8236 + $0x190] sm:$0xff]
      %v8288 = vld [vmem:[%s8236 + $0x198] sm:$0xff]
      %v8289 = vld [vmem:[%s8236 + $0x1a0] sm:$0xff]
      %v8290 = vld [vmem:[%s8236 + $0x1a8] sm:$0xff]
      %v8291 = vld [vmem:[%s8236 + $0x1b0] sm:$0xff]
      %v8292 = vld [vmem:[%s8236 + $0x1b8] sm:$0xff]
      %v8293 = vld [vmem:[%s8236 + $0x1c0] sm:$0xff]
      %v8294 = vld [vmem:[%s8236 + $0x1c8] sm:$0xff]
      %v8295 = vld [vmem:[%s8236 + $0x1d0] sm:$0xff]
      %v8296 = vld [vmem:[%s8236 + $0x1d8] sm:$0xff]
      %v8297 = vld [vmem:[%s8236 + $0x1e0] sm:$0xff]
      %v8298 = vld [vmem:[%s8236 + $0x1e8] sm:$0xff]
      %v8299 = vld [vmem:[%s8236 + $0x1f0] sm:$0xff]
      %v8300 = vld [vmem:[%s8236 + $0x1f8] sm:$0xff]
      %vm8305 = vcmask 1045504
      %v8306 = vrot.slane %v8232, 2
      %v8307 = vrot.slane %v8234, 2
      %v8308 = vsel %vm8305, %v8306, %v8307
      %v8309 = vrot.slane %v8233, 2
      %v8310 = vrot.slane %v8235, 2
      %v8311 = vsel %vm8305, %v8309, %v8310
      %v8378 = vunpack.c.l.b16 %v8237
      %v8379 = vunpack.c.h.b16 %v8237
      %v8380 = vunpack.c.l.b16 %v8238
      %v8381 = vunpack.c.h.b16 %v8238
      %v8382 = vunpack.c.l.b16 %v8239
      %v8383 = vunpack.c.h.b16 %v8239
      %v8384 = vunpack.c.l.b16 %v8240
      %v8385 = vunpack.c.h.b16 %v8240
      %v8386 = vunpack.c.l.b16 %v8241
      %v8387 = vunpack.c.h.b16 %v8241
      %v8388 = vunpack.c.l.b16 %v8242
      %v8389 = vunpack.c.h.b16 %v8242
      %v8390 = vunpack.c.l.b16 %v8243
      %v8391 = vunpack.c.h.b16 %v8243
      %v8392 = vunpack.c.l.b16 %v8244
      %v8393 = vunpack.c.h.b16 %v8244
      %v8394 = vunpack.c.l.b16 %v8245
      %v8395 = vunpack.c.h.b16 %v8245
      %v8396 = vunpack.c.l.b16 %v8246
      %v8397 = vunpack.c.h.b16 %v8246
      %v8398 = vunpack.c.l.b16 %v8247
      %v8399 = vunpack.c.h.b16 %v8247
      %v8400 = vunpack.c.l.b16 %v8248
      %v8401 = vunpack.c.h.b16 %v8248
      %v8402 = vunpack.c.l.b16 %v8249
      %v8403 = vunpack.c.h.b16 %v8249
      %v8404 = vunpack.c.l.b16 %v8250
      %v8405 = vunpack.c.h.b16 %v8250
      %v8406 = vunpack.c.l.b16 %v8251
      %v8407 = vunpack.c.h.b16 %v8251
      %v8408 = vunpack.c.l.b16 %v8252
      %v8409 = vunpack.c.h.b16 %v8252
      %v8410 = vunpack.c.l.b16 %v8253
      %v8411 = vunpack.c.h.b16 %v8253
      %v8412 = vunpack.c.l.b16 %v8254
      %v8413 = vunpack.c.h.b16 %v8254
      %v8414 = vunpack.c.l.b16 %v8255
      %v8415 = vunpack.c.h.b16 %v8255
      %v8416 = vunpack.c.l.b16 %v8256
      %v8417 = vunpack.c.h.b16 %v8256
      %v8418 = vunpack.c.l.b16 %v8257
      %v8419 = vunpack.c.h.b16 %v8257
      %v8420 = vunpack.c.l.b16 %v8258
      %v8421 = vunpack.c.h.b16 %v8258
      %v8422 = vunpack.c.l.b16 %v8259
      %v8423 = vunpack.c.h.b16 %v8259
      %v8424 = vunpack.c.l.b16 %v8260
      %v8425 = vunpack.c.h.b16 %v8260
      %v8426 = vunpack.c.l.b16 %v8261
      %v8427 = vunpack.c.h.b16 %v8261
      %v8428 = vunpack.c.l.b16 %v8262
      %v8429 = vunpack.c.h.b16 %v8262
      %v8430 = vunpack.c.l.b16 %v8263
      %v8431 = vunpack.c.h.b16 %v8263
      %v8432 = vunpack.c.l.b16 %v8264
      %v8433 = vunpack.c.h.b16 %v8264
      %v8434 = vunpack.c.l.b16 %v8265
      %v8435 = vunpack.c.h.b16 %v8265
      %v8436 = vunpack.c.l.b16 %v8266
      %v8437 = vunpack.c.h.b16 %v8266
      %v8438 = vunpack.c.l.b16 %v8267
      %v8439 = vunpack.c.h.b16 %v8267
      %v8440 = vunpack.c.l.b16 %v8268
      %v8441 = vunpack.c.h.b16 %v8268
      %v8442 = vunpack.c.l.b16 %v8269
      %v8443 = vunpack.c.h.b16 %v8269
      %v8444 = vunpack.c.l.b16 %v8270
      %v8445 = vunpack.c.h.b16 %v8270
      %v8446 = vunpack.c.l.b16 %v8271
      %v8447 = vunpack.c.h.b16 %v8271
      %v8448 = vunpack.c.l.b16 %v8272
      %v8449 = vunpack.c.h.b16 %v8272
      %v8450 = vunpack.c.l.b16 %v8273
      %v8451 = vunpack.c.h.b16 %v8273
      %v8452 = vunpack.c.l.b16 %v8274
      %v8453 = vunpack.c.h.b16 %v8274
      %v8454 = vunpack.c.l.b16 %v8275
      %v8455 = vunpack.c.h.b16 %v8275
      %v8456 = vunpack.c.l.b16 %v8276
      %v8457 = vunpack.c.h.b16 %v8276
      %v8458 = vunpack.c.l.b16 %v8277
      %v8459 = vunpack.c.h.b16 %v8277
      %v8460 = vunpack.c.l.b16 %v8278
      %v8461 = vunpack.c.h.b16 %v8278
      %v8462 = vunpack.c.l.b16 %v8279
      %v8463 = vunpack.c.h.b16 %v8279
      %v8464 = vunpack.c.l.b16 %v8280
      %v8465 = vunpack.c.h.b16 %v8280
      %v8466 = vunpack.c.l.b16 %v8281
      %v8467 = vunpack.c.h.b16 %v8281
      %v8468 = vunpack.c.l.b16 %v8282
      %v8469 = vunpack.c.h.b16 %v8282
      %v8470 = vunpack.c.l.b16 %v8283
      %v8471 = vunpack.c.h.b16 %v8283
      %v8472 = vunpack.c.l.b16 %v8284
      %v8473 = vunpack.c.h.b16 %v8284
      %v8474 = vunpack.c.l.b16 %v8285
      %v8475 = vunpack.c.h.b16 %v8285
      %v8476 = vunpack.c.l.b16 %v8286
      %v8477 = vunpack.c.h.b16 %v8286
      %v8478 = vunpack.c.l.b16 %v8287
      %v8479 = vunpack.c.h.b16 %v8287
      %v8480 = vunpack.c.l.b16 %v8288
      %v8481 = vunpack.c.h.b16 %v8288
      %v8482 = vunpack.c.l.b16 %v8289
      %v8483 = vunpack.c.h.b16 %v8289
      %v8484 = vunpack.c.l.b16 %v8290
      %v8485 = vunpack.c.h.b16 %v8290
      %v8486 = vunpack.c.l.b16 %v8291
      %v8487 = vunpack.c.h.b16 %v8291
      %v8488 = vunpack.c.l.b16 %v8292
      %v8489 = vunpack.c.h.b16 %v8292
      %v8490 = vunpack.c.l.b16 %v8293
      %v8491 = vunpack.c.h.b16 %v8293
      %v8492 = vunpack.c.l.b16 %v8294
      %v8493 = vunpack.c.h.b16 %v8294
      %v8494 = vunpack.c.l.b16 %v8295
      %v8495 = vunpack.c.h.b16 %v8295
      %v8496 = vunpack.c.l.b16 %v8296
      %v8497 = vunpack.c.h.b16 %v8296
      %v8498 = vunpack.c.l.b16 %v8297
      %v8499 = vunpack.c.h.b16 %v8297
      %v8500 = vunpack.c.l.b16 %v8298
      %v8501 = vunpack.c.h.b16 %v8298
      %v8502 = vunpack.c.l.b16 %v8299
      %v8503 = vunpack.c.h.b16 %v8299
      %v8504 = vunpack.c.l.b16 %v8300
      %v8505 = vunpack.c.h.b16 %v8300
      %v8506 = vpack.c.b16 %v8382, %v8378
      %v8507 = vpack.c.b16 %v8383, %v8379
      %v8508 = vpack.c.b16 %v8384, %v8380
      %v8509 = vpack.c.b16 %v8385, %v8381
      %v8510 = vpack.c.b16 %v8390, %v8386
      %v8511 = vpack.c.b16 %v8391, %v8387
      %v8512 = vpack.c.b16 %v8392, %v8388
      %v8513 = vpack.c.b16 %v8393, %v8389
      %v8514 = vpack.c.b16 %v8398, %v8394
      %v8515 = vpack.c.b16 %v8399, %v8395
      %v8516 = vpack.c.b16 %v8400, %v8396
      %v8517 = vpack.c.b16 %v8401, %v8397
      %v8518 = vpack.c.b16 %v8406, %v8402
      %v8519 = vpack.c.b16 %v8407, %v8403
      %v8520 = vpack.c.b16 %v8408, %v8404
      %v8521 = vpack.c.b16 %v8409, %v8405
      %v8522 = vpack.c.b16 %v8414, %v8410
      %v8523 = vpack.c.b16 %v8415, %v8411
      %v8524 = vpack.c.b16 %v8416, %v8412
      %v8525 = vpack.c.b16 %v8417, %v8413
      %v8526 = vpack.c.b16 %v8422, %v8418
      %v8527 = vpack.c.b16 %v8423, %v8419
      %v8528 = vpack.c.b16 %v8424, %v8420
      %v8529 = vpack.c.b16 %v8425, %v8421
      %v8530 = vpack.c.b16 %v8430, %v8426
      %v8531 = vpack.c.b16 %v8431, %v8427
      %v8532 = vpack.c.b16 %v8432, %v8428
      %v8533 = vpack.c.b16 %v8433, %v8429
      %v8534 = vpack.c.b16 %v8438, %v8434
      %v8535 = vpack.c.b16 %v8439, %v8435
      %v8536 = vpack.c.b16 %v8440, %v8436
      %v8537 = vpack.c.b16 %v8441, %v8437
      %v8538 = vpack.c.b16 %v8446, %v8442
      %v8539 = vpack.c.b16 %v8447, %v8443
      %v8540 = vpack.c.b16 %v8448, %v8444
      %v8541 = vpack.c.b16 %v8449, %v8445
      %v8542 = vpack.c.b16 %v8454, %v8450
      %v8543 = vpack.c.b16 %v8455, %v8451
      %v8544 = vpack.c.b16 %v8456, %v8452
      %v8545 = vpack.c.b16 %v8457, %v8453
      %v8546 = vpack.c.b16 %v8462, %v8458
      %v8547 = vpack.c.b16 %v8463, %v8459
      %v8548 = vpack.c.b16 %v8464, %v8460
      %v8549 = vpack.c.b16 %v8465, %v8461
      %v8550 = vpack.c.b16 %v8470, %v8466
      %v8551 = vpack.c.b16 %v8471, %v8467
      %v8552 = vpack.c.b16 %v8472, %v8468
      %v8553 = vpack.c.b16 %v8473, %v8469
      %v8554 = vpack.c.b16 %v8478, %v8474
      %v8555 = vpack.c.b16 %v8479, %v8475
      %v8556 = vpack.c.b16 %v8480, %v8476
      %v8557 = vpack.c.b16 %v8481, %v8477
      %v8558 = vpack.c.b16 %v8486, %v8482
      %v8559 = vpack.c.b16 %v8487, %v8483
      %v8560 = vpack.c.b16 %v8488, %v8484
      %v8561 = vpack.c.b16 %v8489, %v8485
      %v8562 = vpack.c.b16 %v8494, %v8490
      %v8563 = vpack.c.b16 %v8495, %v8491
      %v8564 = vpack.c.b16 %v8496, %v8492
      %v8565 = vpack.c.b16 %v8497, %v8493
      %v8566 = vpack.c.b16 %v8502, %v8498
      %v8567 = vpack.c.b16 %v8503, %v8499
      %v8568 = vpack.c.b16 %v8504, %v8500
      %v8569 = vpack.c.b16 %v8505, %v8501
      %8634 = vmatprep.subr.bf16.mxu0 %v8507
      %8635 = vmatpush1.bf16.msra.mxu0 %v8506
      %8636 = vmatprep.subr.bf16.mxu0 %v8511
      %8637 = vmatpush1.bf16.msra.mxu0 %v8510
      %8638 = vmatprep.subr.bf16.mxu0 %v8515
      %8639 = vmatpush1.bf16.msra.mxu0 %v8514
      %8640 = vmatprep.subr.bf16.mxu0 %v8519
      %8641 = vmatpush1.bf16.msra.mxu0 %v8518
      %8642 = vmatprep.subr.bf16.mxu0 %v8523
      %8643 = vmatpush1.bf16.msra.mxu0 %v8522
      %8644 = vmatprep.subr.bf16.mxu0 %v8527
      %8645 = vmatpush1.bf16.msra.mxu0 %v8526
      %8646 = vmatprep.subr.bf16.mxu0 %v8531
      %8647 = vmatpush1.bf16.msra.mxu0 %v8530
      %8648 = vmatprep.subr.bf16.mxu0 %v8535
      %8649 = vmatpush1.bf16.msra.mxu0 %v8534
      %8650 = vmatprep.subr.bf16.mxu0 %v8539
      %8651 = vmatpush1.bf16.msra.mxu0 %v8538
      %8652 = vmatprep.subr.bf16.mxu0 %v8543
      %8653 = vmatpush1.bf16.msra.mxu0 %v8542
      %8654 = vmatprep.subr.bf16.mxu0 %v8547
      %8655 = vmatpush1.bf16.msra.mxu0 %v8546
      %8656 = vmatprep.subr.bf16.mxu0 %v8551
      %8657 = vmatpush1.bf16.msra.mxu0 %v8550
      %8658 = vmatprep.subr.bf16.mxu0 %v8555
      %8659 = vmatpush1.bf16.msra.mxu0 %v8554
      %8660 = vmatprep.subr.bf16.mxu0 %v8559
      %8661 = vmatpush1.bf16.msra.mxu0 %v8558
      %8662 = vmatprep.subr.bf16.mxu0 %v8563
      %8663 = vmatpush1.bf16.msra.mxu0 %v8562
      %8664 = vmatprep.subr.bf16.mxu0 %v8567
      %8665 = vmatpush1.bf16.msra.mxu0 %v8566
      %8666 = vmatprep.mubr.bf16.mxu0 %v8311
      %8667 = vmatmul.mubr.bf16.gmra.mrb[0].mxu0 %v8308
      %v8668 = vpop.f32.mrb[0].mxu0
      %v8669 = vadd.f32 0.0, %v8668
      %v8670 = vpop.f32.mrb[0].mxu0
      %v8671 = vadd.f32 0.0, %v8670
      %v8672 = vpop.f32.mrb[0].mxu0
      %v8673 = vadd.f32 0.0, %v8672
      %v8674 = vpop.f32.mrb[0].mxu0
      %v8675 = vadd.f32 0.0, %v8674
      %8676 = vdwg.mxu0
      %8677 = vmatprep.subr.bf16.mxu0 %v8509
      %8678 = vmatpush1.bf16.msra.mxu0 %v8508
      %8679 = vmatprep.subr.bf16.mxu0 %v8513
      %8680 = vmatpush1.bf16.msra.mxu0 %v8512
      %8681 = vmatprep.subr.bf16.mxu0 %v8517
      %8682 = vmatpush1.bf16.msra.mxu0 %v8516
      %8683 = vmatprep.subr.bf16.mxu0 %v8521
      %8684 = vmatpush1.bf16.msra.mxu0 %v8520
      %8685 = vmatprep.subr.bf16.mxu0 %v8525
      %8686 = vmatpush1.bf16.msra.mxu0 %v8524
      %8687 = vmatprep.subr.bf16.mxu0 %v8529
      %8688 = vmatpush1.bf16.msra.mxu0 %v8528
      %8689 = vmatprep.subr.bf16.mxu0 %v8533
      %8690 = vmatpush1.bf16.msra.mxu0 %v8532
      %8691 = vmatprep.subr.bf16.mxu0 %v8537
      %8692 = vmatpush1.bf16.msra.mxu0 %v8536
      %8693 = vmatprep.subr.bf16.mxu0 %v8541
      %8694 = vmatpush1.bf16.msra.mxu0 %v8540
      %8695 = vmatprep.subr.bf16.mxu0 %v8545
      %8696 = vmatpush1.bf16.msra.mxu0 %v8544
      %8697 = vmatprep.subr.bf16.mxu0 %v8549
      %8698 = vmatpush1.bf16.msra.mxu0 %v8548
      %8699 = vmatprep.subr.bf16.mxu0 %v8553
      %8700 = vmatpush1.bf16.msra.mxu0 %v8552
      %8701 = vmatprep.subr.bf16.mxu0 %v8557
      %8702 = vmatpush1.bf16.msra.mxu0 %v8556
      %8703 = vmatprep.subr.bf16.mxu0 %v8561
      %8704 = vmatpush1.bf16.msra.mxu0 %v8560
      %8705 = vmatprep.subr.bf16.mxu0 %v8565
      %8706 = vmatpush1.bf16.msra.mxu0 %v8564
      %8707 = vmatprep.subr.bf16.mxu0 %v8569
      %8708 = vmatpush1.bf16.msra.mxu0 %v8568
      %8709 = vmatprep.mubr.bf16.mxu0 %v8311
      %8710 = vmatmul.mubr.bf16.gmra.mrb[0].mxu0 %v8308
      %v8711 = vpop.f32.mrb[0].mxu0
      %v8712 = vadd.f32 0.0, %v8711
      %v8713 = vpop.f32.mrb[0].mxu0
      %v8714 = vadd.f32 0.0, %v8713
      %v8715 = vpop.f32.mrb[0].mxu0
      %v8716 = vadd.f32 0.0, %v8715
      %v8717 = vpop.f32.mrb[0].mxu0
      %v8718 = vadd.f32 0.0, %v8717
      %8719 = vdwg.mxu0
      %v8720 = vadd.f32 %v8218, %v8669
      %v8721 = vadd.f32 %v8219, %v8671
      %v8722 = vadd.f32 %v8220, %v8712
      %v8723 = vadd.f32 %v8221, %v8714
      %v8724 = vadd.f32 %v8222, %v8673
      %v8725 = vadd.f32 %v8223, %v8675
      %v8726 = vadd.f32 %v8224, %v8716
      %v8727 = vadd.f32 %v8225, %v8718
      %v8728 = vld [vmem:[%s15] sm:$0xf]
      %v8730 = vlaneseq
      %v8731 = vshrl.u32 %v8730, 7
      %v8732 = vsub.s32 0, %v8731
      %v8733 = vrot.slane %v8728, %v8732
      %v8734 = vlaneseq
      %v8735 = vshrl.u32 %v8734, 7
      %v8736 = vsub.s32 1, %v8735
      %v8737 = vrot.slane %v8728, %v8736
      %v8738 = vlaneseq
      %v8739 = vshrl.u32 %v8738, 7
      %v8740 = vsub.s32 2, %v8739
      %v8741 = vrot.slane %v8728, %v8740
      %v8742 = vlaneseq
      %v8743 = vshrl.u32 %v8742, 7
      %v8744 = vsub.s32 3, %v8743
      %v8745 = vrot.slane %v8728, %v8744
      %v8750 = vadd.f32 %v8720, %v8733
      %v8751 = vadd.f32 %v8721, %v8737
      %v8752 = vadd.f32 %v8722, %v8741
      %v8753 = vadd.f32 %v8723, %v8745
      %v8754 = vadd.f32 %v8724, %v8733
      %v8755 = vadd.f32 %v8725, %v8737
      %v8756 = vadd.f32 %v8726, %v8741
      %v8757 = vadd.f32 %v8727, %v8745
      %v8758 = vmax.f32 %v8750, 0.0
      %v8759 = vmax.f32 %v8751, 0.0
      %v8760 = vmax.f32 %v8752, 0.0
      %v8761 = vmax.f32 %v8753, 0.0
      %v8762 = vmax.f32 %v8754, 0.0
      %v8763 = vmax.f32 %v8755, 0.0
      %v8764 = vmax.f32 %v8756, 0.0
      %v8765 = vmax.f32 %v8757, 0.0
      %v8766 = vpack.c.bf16 %v8762, %v8758
      %v8767 = vpack.c.bf16 %v8763, %v8759
      %v8768 = vpack.c.bf16 %v8764, %v8760
      %v8769 = vpack.c.bf16 %v8765, %v8761
      %v8770 = vld [vmem:[%s16] sm:$0xf]
      %v8771 = vld [vmem:[%s16 + $0x4] sm:$0xf]
      %v8774 = vunpack.c.l.b16 %v8770
      %v8775 = vunpack.c.l.b16 %v8771
      %v8776 = vpack.c.b16 %v8775, %v8774
      %v8778 = vsel %vm4148, %v8776, 0
      %v8781 = vand.u32 %v8766, %v2622
      %v8784 = vand.u32 %v8767, %v2622
      %v8787 = vand.u32 %v8768, %v2622
      %v8790 = vand.u32 %v8769, %v2622
      %8792 = vmatprep.subr.bf16.mxu0 %v8784
      %8793 = vmatpush1.bf16.msra.mxu0 %v8781
      %8794 = vmatprep.subr.bf16.mxu0 0
      %8795 = vmatpush1.bf16.msra.mxu0 0
      %8796 = vmatprep.subr.bf16.mxu0 0
      %8797 = vmatpush1.bf16.msra.mxu0 0
      %8798 = vmatprep.subr.bf16.mxu0 0
      %8799 = vmatpush1.bf16.msra.mxu0 0
      %8800 = vmatprep.subr.bf16.mxu0 0
      %8801 = vmatpush1.bf16.msra.mxu0 0
      %8802 = vmatprep.subr.bf16.mxu0 0
      %8803 = vmatpush1.bf16.msra.mxu0 0
      %8804 = vmatprep.subr.bf16.mxu0 0
      %8805 = vmatpush1.bf16.msra.mxu0 0
      %8806 = vmatprep.subr.bf16.mxu0 0
      %8807 = vmatpush1.bf16.msra.mxu0 0
      %8808 = vmatprep.subr.bf16.mxu0 0
      %8809 = vmatpush1.bf16.msra.mxu0 0
      %8810 = vmatprep.subr.bf16.mxu0 0
      %8811 = vmatpush1.bf16.msra.mxu0 0
      %8812 = vmatprep.subr.bf16.mxu0 0
      %8813 = vmatpush1.bf16.msra.mxu0 0
      %8814 = vmatprep.subr.bf16.mxu0 0
      %8815 = vmatpush1.bf16.msra.mxu0 0
      %8816 = vmatprep.subr.bf16.mxu0 0
      %8817 = vmatpush1.bf16.msra.mxu0 0
      %8818 = vmatprep.subr.bf16.mxu0 0
      %8819 = vmatpush1.bf16.msra.mxu0 0
      %8820 = vmatprep.subr.bf16.mxu0 0
      %8821 = vmatpush1.bf16.msra.mxu0 0
      %8822 = vmatprep.subr.bf16.mxu0 0
      %8823 = vmatpush1.bf16.msra.mxu0 0
      %8824 = vmatprep.mubr.bf16.mxu0 0
      %8825 = vmatmul.mubr.bf16.gmra.mrb[0].mxu0 %v8778
      %v8826 = vpop.f32.mrb[0].mxu0
      %v8827 = vadd.f32 0.0, %v8826
      %v8828 = vpop.f32.mrb[0].mxu0
      %v8829 = vadd.f32 0.0, %v8828
      %v8830 = vpop.f32.mrb[0].mxu0
      %v8831 = vadd.f32 0.0, %v8830
      %v8832 = vpop.f32.mrb[0].mxu0
      %v8833 = vadd.f32 0.0, %v8832
      %8834 = vdwg.mxu0
      %8835 = vmatprep.subr.bf16.mxu0 %v8790
      %8836 = vmatpush1.bf16.msra.mxu0 %v8787
      %8837 = vmatprep.subr.bf16.mxu0 0
      %8838 = vmatpush1.bf16.msra.mxu0 0
      %8839 = vmatprep.subr.bf16.mxu0 0
      %8840 = vmatpush1.bf16.msra.mxu0 0
      %8841 = vmatprep.subr.bf16.mxu0 0
      %8842 = vmatpush1.bf16.msra.mxu0 0
      %8843 = vmatprep.subr.bf16.mxu0 0
      %8844 = vmatpush1.bf16.msra.mxu0 0
      %8845 = vmatprep.subr.bf16.mxu0 0
      %8846 = vmatpush1.bf16.msra.mxu0 0
      %8847 = vmatprep.subr.bf16.mxu0 0
      %8848 = vmatpush1.bf16.msra.mxu0 0
      %8849 = vmatprep.subr.bf16.mxu0 0
      %8850 = vmatpush1.bf16.msra.mxu0 0
      %8851 = vmatprep.subr.bf16.mxu0 0
      %8852 = vmatpush1.bf16.msra.mxu0 0
      %8853 = vmatprep.subr.bf16.mxu0 0
      %8854 = vmatpush1.bf16.msra.mxu0 0
      %8855 = vmatprep.subr.bf16.mxu0 0
      %8856 = vmatpush1.bf16.msra.mxu0 0
      %8857 = vmatprep.subr.bf16.mxu0 0
      %8858 = vmatpush1.bf16.msra.mxu0 0
      %8859 = vmatprep.subr.bf16.mxu0 0
      %8860 = vmatpush1.bf16.msra.mxu0 0
      %8861 = vmatprep.subr.bf16.mxu0 0
      %8862 = vmatpush1.bf16.msra.mxu0 0
      %8863 = vmatprep.subr.bf16.mxu0 0
      %8864 = vmatpush1.bf16.msra.mxu0 0
      %8865 = vmatprep.subr.bf16.mxu0 0
      %8866 = vmatpush1.bf16.msra.mxu0 0
      %8867 = vmatprep.mubr.bf16.mxu0 0
      %8868 = vmatmul.mubr.bf16.gmra.mrb[0].mxu0 %v8778
      %v8869 = vpop.f32.mrb[0].mxu0
      %v8870 = vadd.f32 0.0, %v8869
      %v8871 = vpop.f32.mrb[0].mxu0
      %v8872 = vadd.f32 0.0, %v8871
      %v8873 = vpop.f32.mrb[0].mxu0
      %v8874 = vadd.f32 0.0, %v8873
      %v8875 = vpop.f32.mrb[0].mxu0
      %v8876 = vadd.f32 0.0, %v8875
      %8877 = vdwg.mxu0
      %8878 = vst [vmem:[%s552] sm:$0xff] %v8827
      %8879 = vst [vmem:[%s552 + $0x8] sm:$0xff] %v8829
      %8880 = vst [vmem:[%s552 + $0x10] sm:$0xff] %v8870
      %8881 = vst [vmem:[%s552 + $0x18] sm:$0xff] %v8872
      %8882 = vst [vmem:[%s552 + $0x20] sm:$0xff] %v8831
      %8883 = vst [vmem:[%s552 + $0x28] sm:$0xff] %v8833
      %8884 = vst [vmem:[%s552 + $0x30] sm:$0xff] %v8874
      %8885 = vst [vmem:[%s552 + $0x38] sm:$0xff] %v8876
      %s8886 = smul.u32 2, %s28
      %p8887 = scmp.lt.s32.totalorder %s8886, 3
      %s8888 = scalar_select %p8887, %s8886, 3
      %s8889 = smul.addr %s8888, 4
      %s8890 = smul.addr %s8889, 8
      %s8891 = scalar_lea.vmem %s17, %s8890
      // Predicated region
      $region89: #{conv4_512_s_forward.1} parent=87 // pred_check
        %p8892 = pneg %p408
      $region90: #{conv4_512_s_forward.1} parent=87 // pred_check_branch
        %8894 = sbr.rel (%p8892) target = $region92
      $region91: #{conv4_512_s_forward.1} parent=87 // pred_region
        %s8895 = smul.u32 2, %s28
      $region92: #{conv4_512_s_forward.1} parent=87 // pred_fallthru
        _
    $region88: #{conv4_512_s_forward.1} parent=5 // pred_fallthru
      _
    %p8896 = scmp.le.s32.totalorder 2, %s23
    // Predicated region
    $region93: #{conv4_512_s_forward.1} parent=5 // pred_check
      %p8897 = pneg %p8896
    $region94: #{conv4_512_s_forward.1} parent=5 // pred_check_branch
      %8899 = sbr.rel (%p8897) target = $region96
    $region95: #{conv4_512_s_forward.1} parent=5 // pred_region
      %s8900 = ssub.s32 %s23, 2
      // Predicated region
      $region97: #{conv4_512_s_forward.1} parent=95 // pred_check
        %p8901 = pneg %p414
      $region98: #{conv4_512_s_forward.1} parent=95 // pred_check_branch
        %8903 = sbr.rel (%p8901) target = $region100
      $region99: #{conv4_512_s_forward.1} parent=95 // pred_region
        %s8904 = smul.u32 2, %s29
        %p8905 = scmp.lt.s32.totalorder %s8904, 3
        %s8906 = scalar_select %p8905, %s8904, 3
        %s8907 = smul.addr %s8906, 4
        %s8908 = smul.addr %s8907, 8
        %s8909 = scalar_lea.vmem %s17, %s8908
      $region100: #{conv4_512_s_forward.1} parent=95 // pred_fallthru
        _
    $region96: #{conv4_512_s_forward.1} parent=5 // pred_fallthru
      _
  $region6: #{conv4_512_s_forward.1} parent=0 // loop_footer
    %s27 = sadd.s32 1, %s23
  $region7: #{conv4_512_s_forward.1} parent=0 // loop_footer_branch
    %22 = sbr.rel target = $region3
  $region8: #{conv4_512_s_forward.1} parent=0 // loop_exit
    _

</llo_original>
